<compile_context>
chip_gen: v7x
topology: tpu7x:2x2x1
jax: 0.10.0
libtpu: 0.0.40
codegen_flags: <defaults>
</compile_context>

<pallas_src>
import math
import jax
import jax.numpy as jnp
from jax.experimental import pallas as pl
from jax.experimental.pallas import tpu as pltpu

# ---- configuration (matches the PyTorch script; input/output dims are data-dependent, kept small) ----
INPUT_DIM  = 16
MODEL_DIM  = 128
NUM_HEADS  = 8
NUM_LAYERS = 2
DFF        = 2048          # nn.TransformerEncoderLayer default dim_feedforward
OUTPUT_DIM = 8
SEQ_LEN    = 10            # implied by output_linear = Linear(model_dim * 10, output_dim)
BATCH      = 2
LN_EPS     = 1e-5
HEAD_DIM   = MODEL_DIM // NUM_HEADS
FF_CHUNK   = 512           # DFF tiling chunk


def _layer_norm(x, w, b):
    mu = jnp.mean(x, axis=-1, keepdims=True)
    var = jnp.mean((x - mu) ** 2, axis=-1, keepdims=True)
    return (x - mu) * jax.lax.rsqrt(var + LN_EPS) * w + b


def transformer_kernel(x_ref, pe_ref, w_in_ref, b_in_ref,
                       wqkv_ref, bqkv_ref, wo_ref, bo_ref,
                       ln1w_ref, ln1b_ref, w1_ref, b1_ref, w2_ref, b2_ref,
                       ln2w_ref, ln2b_ref, wout_ref, bout_ref,
                       out_ref, h_ref):
    l = pl.program_id(0)
    B, S, D, H, hd = BATCH, SEQ_LEN, MODEL_DIM, NUM_HEADS, HEAD_DIM
    BS = B * S

    # ---- first grid step: input linear + sqrt(D) scaling + positional encoding ----
    @pl.when(l == 0)
    def _():
        h = jnp.dot(x_ref[...], w_in_ref[...],
                    preferred_element_type=jnp.float32) + b_in_ref[...]
        h = h * jnp.float32(math.sqrt(D))
        # pe_ref is pre-broadcast on the host to the flat (B*S, D) layout
        # (PyTorch quirk: pe indexed by batch, broadcast over sequence).
        h_ref[...] = h + pe_ref[...]
        # dropout -> identity (eval mode)

    hf = h_ref[...]                                  # (BS, D) float32 activation
    hf_bf = hf.astype(jnp.bfloat16)                  # bf16 only as MXU input

    # ---- multi-head self-attention: all heads in one batched matmul ----
    qkv = jnp.dot(hf_bf, wqkv_ref[...],
                  preferred_element_type=jnp.float32) + bqkv_ref[...]    # (BS, 3D) f32
    scale = jnp.float32(1.0 / math.sqrt(hd))
    q = (qkv[:, :D] * scale).reshape(B, S, D)        # fold 1/sqrt(hd) into q once
    k = qkv[:, D:2 * D].reshape(B, S, D)
    v = qkv[:, 2 * D:].reshape(B, S, D)

    # head-major batched layout (H*B, S, hd): one dot_general over all (b, h) pairs
    qh = jnp.concatenate([q[:, :, hh * hd:(hh + 1) * hd] for hh in range(H)], axis=0)
    kh = jnp.concatenate([k[:, :, hh * hd:(hh + 1) * hd] for hh in range(H)], axis=0)
    vh = jnp.concatenate([v[:, :, hh * hd:(hh + 1) * hd] for hh in range(H)], axis=0)

    s = jnp.einsum('bqd,bkd->bqk', qh, kh, preferred_element_type=jnp.float32)
    s = s - jnp.max(s, axis=-1, keepdims=True)
    p = jnp.exp(s)
    p = p * pl.reciprocal(jnp.sum(p, axis=-1, keepdims=True), approx=True)
    o = jnp.einsum('bqk,bkd->bqd', p, vh, preferred_element_type=jnp.float32)   # (H*B, S, hd)

    attn = jnp.concatenate([o[hh * B:(hh + 1) * B] for hh in range(H)], axis=-1)  # (B, S, D)
    attn = attn.reshape(BS, D)
    attn = jnp.dot(attn.astype(jnp.bfloat16), wo_ref[...],
                   preferred_element_type=jnp.float32) + bo_ref[...]

    # ---- residual + LayerNorm1 (post-norm) ----
    h1 = _layer_norm(hf + attn, ln1w_ref[...], ln1b_ref[...])

    # ---- feed-forward (relu), chunked over DFF to keep the live set small ----
    h1_bf = h1.astype(jnp.bfloat16)
    ff = jnp.zeros((BS, D), jnp.float32)
    for c in range(DFF // FF_CHUNK):                 # 4 static chunks of 512
        lo = c * FF_CHUNK
        a = jnp.dot(h1_bf, w1_ref[:, lo:lo + FF_CHUNK],
                    preferred_element_type=jnp.float32) + b1_ref[:, lo:lo + FF_CHUNK]
        a = jnp.maximum(a, 0.0)
        ff = ff + jnp.dot(a.astype(jnp.bfloat16), w2_ref[lo:lo + FF_CHUNK, :],
                          preferred_element_type=jnp.float32)
    ff = ff + b2_ref[...]

    # ---- residual + LayerNorm2; write the activation back for the next layer ----
    h_ref[...] = _layer_norm(h1 + ff, ln2w_ref[...], ln2b_ref[...])

    # ---- last grid step: flatten (B, S*D) and output linear ----
    # NOTE: the (BS,D)->(B,S*D) relayout is a one-time ~10 KiB copy outside the layer loop;
    # kept because it is the proven-lowering form (vs a 2-contracting-dim einsum).
    @pl.when(l == NUM_LAYERS - 1)
    def _():
        hflat = h_ref[...].reshape(B, S * D)
        out_ref[...] = (jnp.dot(hflat, wout_ref[...],
                                preferred_element_type=jnp.float32) + bout_ref[...])


def transformer_forward(x, params):
    B, S, Din = x.shape
    D, L, Dff, O = MODEL_DIM, NUM_LAYERS, DFF, OUTPUT_DIM
    BS = B * S
    x_flat = x.reshape(BS, Din)

    c2 = lambda l: (0, 0)          # constant (whole-array) blocks
    per_layer = lambda l: (l, 0, 0)  # per-layer weight slab (leading dim squeezed)

    grid_spec = pltpu.PrefetchScalarGridSpec(
        num_scalar_prefetch=0,
        grid=(L,),
        in_specs=[
            pl.BlockSpec((BS, Din), c2),               # x_flat
            pl.BlockSpec((BS, D), c2),                 # pe_flat
            pl.BlockSpec((Din, D), c2),                # w_in
            pl.BlockSpec((1, D), c2),                  # b_in
            pl.BlockSpec((None, D, 3 * D), per_layer),   # wqkv (bf16)
            pl.BlockSpec((None, 1, 3 * D), per_layer),   # bqkv
            pl.BlockSpec((None, D, D), per_layer),       # wo   (bf16)
            pl.BlockSpec((None, 1, D), per_layer),       # bo
            pl.BlockSpec((None, 1, D), per_layer),       # ln1w
            pl.BlockSpec((None, 1, D), per_layer),       # ln1b
            pl.BlockSpec((None, D, Dff), per_layer),     # w1   (bf16)
            pl.BlockSpec((None, 1, Dff), per_layer),     # b1
            pl.BlockSpec((None, Dff, D), per_layer),     # w2   (bf16)
            pl.BlockSpec((None, 1, D), per_layer),       # b2
            pl.BlockSpec((None, 1, D), per_layer),       # ln2w
            pl.BlockSpec((None, 1, D), per_layer),       # ln2b
            pl.BlockSpec((S * D, O), c2),              # wout
            pl.BlockSpec((1, O), c2),                  # bout
        ],
        out_specs=pl.BlockSpec((B, O), c2),
        scratch_shapes=[pltpu.VMEM((BS, D), jnp.float32)],   # activation, persists across layers
    )
    return pl.pallas_call(
        transformer_kernel,
        out_shape=jax.ShapeDtypeStruct((B, O), jnp.float32),
        grid_spec=grid_spec,
        compiler_params=pltpu.CompilerParams(
            dimension_semantics=("arbitrary",),        # layers are sequential
            vmem_limit_bytes=32 << 20,                 # v7x-safe (<= physical/scoped limits)
        ),
    )(x_flat, params['pe_flat'], params['w_in'], params['b_in'],
      params['wqkv'], params['bqkv'], params['wo'], params['bo'],
      params['ln1w'], params['ln1b'], params['w1'], params['b1'],
      params['w2'], params['b2'], params['ln2w'], params['ln2b'],
      params['wout'], params['bout'])


def make_positional_encoding(n_rows, d_model):
    position = jnp.arange(n_rows, dtype=jnp.float32)[:, None]
    div_term = jnp.exp(jnp.arange(0, d_model, 2, dtype=jnp.float32)
                       * (-math.log(10000.0) / d_model))
    # interleave so pe[:, 0::2] = sin, pe[:, 1::2] = cos
    pe = jnp.stack([jnp.sin(position * div_term),
                    jnp.cos(position * div_term)], axis=-1).reshape(n_rows, d_model)
    return pe


def init_params(key):
    D, L, Dff = MODEL_DIM, NUM_LAYERS, DFF
    ks = jax.random.split(key, 6)

    def w(k, shape, scale=0.02, dtype=jnp.float32):
        return (scale * jax.random.normal(k, shape, dtype=jnp.float32)).astype(dtype)

    bf16 = jnp.bfloat16
    # PyTorch quirk reproduced: pe rows indexed by *batch*, broadcast over seq;
    # pre-broadcast to the flat (B*S, D) layout used inside the kernel.
    pe = make_positional_encoding(BATCH, D)
    pe_flat = jnp.repeat(pe[:, None, :], SEQ_LEN, axis=1).reshape(BATCH * SEQ_LEN, D)

    params = {
        'pe_flat': pe_flat,
        'w_in': w(ks[0], (INPUT_DIM, D)),
        'b_in': jnp.zeros((1, D), jnp.float32),
        'wqkv': w(ks[1], (L, D, 3 * D), dtype=bf16),
        'bqkv': jnp.zeros((L, 1, 3 * D), jnp.float32),
        'wo':   w(ks[2], (L, D, D), dtype=bf16),
        'bo':   jnp.zeros((L, 1, D), jnp.float32),
        'ln1w': jnp.ones((L, 1, D), jnp.float32),
        'ln1b': jnp.zeros((L, 1, D), jnp.float32),
        'w1':   w(ks[3], (L, D, Dff), dtype=bf16),
        'b1':   jnp.zeros((L, 1, Dff), jnp.float32),
        'w2':   w(ks[4], (L, Dff, D), dtype=bf16),
        'b2':   jnp.zeros((L, 1, D), jnp.float32),
        'ln2w': jnp.ones((L, 1, D), jnp.float32),
        'ln2b': jnp.zeros((L, 1, D), jnp.float32),
        'wout': w(ks[5], (SEQ_LEN * D, OUTPUT_DIM)),
        'bout': jnp.zeros((1, OUTPUT_DIM), jnp.float32),
    }
    return params


if __name__ == "__main__":
    key = jax.random.PRNGKey(0)
    k_x, k_p = jax.random.split(key)
    x = jax.random.normal(k_x, (BATCH, SEQ_LEN, INPUT_DIM), dtype=jnp.float32)
    params = init_params(k_p)

    out = transformer_forward(x, params)
    out = jax.block_until_ready(out)
    assert out.shape == (BATCH, OUTPUT_DIM), out.shape
    assert bool(jnp.all(jnp.isfinite(out)))
    print("KERNEL_OK")
</pallas_src>

<mosaic_0001>
module attributes {stable_mosaic.version = 11 : i64} {
  func.func @transformer_kernel(%arg0: i32, %arg1: memref<20x16xf32, #tpu.memory_space<vmem>>, %arg2: memref<20x128xf32, #tpu.memory_space<vmem>>, %arg3: memref<16x128xf32, #tpu.memory_space<vmem>>, %arg4: memref<1x128xf32, #tpu.memory_space<vmem>>, %arg5: memref<1x128x384xbf16, #tpu.memory_space<vmem>>, %arg6: memref<1x1x384xf32, #tpu.memory_space<vmem>>, %arg7: memref<1x128x128xbf16, #tpu.memory_space<vmem>>, %arg8: memref<1x1x128xf32, #tpu.memory_space<vmem>>, %arg9: memref<1x1x128xf32, #tpu.memory_space<vmem>>, %arg10: memref<1x1x128xf32, #tpu.memory_space<vmem>>, %arg11: memref<1x128x2048xbf16, #tpu.memory_space<vmem>>, %arg12: memref<1x1x2048xf32, #tpu.memory_space<vmem>>, %arg13: memref<1x2048x128xbf16, #tpu.memory_space<vmem>>, %arg14: memref<1x1x128xf32, #tpu.memory_space<vmem>>, %arg15: memref<1x1x128xf32, #tpu.memory_space<vmem>>, %arg16: memref<1x1x128xf32, #tpu.memory_space<vmem>>, %arg17: memref<1280x8xf32, #tpu.memory_space<vmem>>, %arg18: memref<1x8xf32, #tpu.memory_space<vmem>>, %arg19: memref<2x8xf32, #tpu.memory_space<vmem>>, %arg20: memref<20x128xf32, #tpu.memory_space<vmem>>) attributes {dimension_semantics = [#tpu.dimension_semantics<arbitrary>], iteration_bounds = array<i64: 2>, scalar_prefetch = 0 : i64, scratch_operands = 1 : i64, tpu.core_type = #tpu.core_type<tc>, window_params = [{pipeline_mode = #tpu.pipeline_mode<synchronous>, transform_indices = @transform_0, window_bounds = array<i64: 20, 16>}, {pipeline_mode = #tpu.pipeline_mode<synchronous>, transform_indices = @transform_1, window_bounds = array<i64: 20, 128>}, {pipeline_mode = #tpu.pipeline_mode<synchronous>, transform_indices = @transform_2, window_bounds = array<i64: 16, 128>}, {pipeline_mode = #tpu.pipeline_mode<synchronous>, transform_indices = @transform_3, window_bounds = array<i64: 1, 128>}, {transform_indices = @transform_4, window_bounds = array<i64: 1, 128, 384>}, {transform_indices = @transform_5, window_bounds = array<i64: 1, 1, 384>}, {transform_indices = @transform_6, window_bounds = array<i64: 1, 128, 128>}, {transform_indices = @transform_7, window_bounds = array<i64: 1, 1, 128>}, {transform_indices = @transform_8, window_bounds = array<i64: 1, 1, 128>}, {transform_indices = @transform_9, window_bounds = array<i64: 1, 1, 128>}, {transform_indices = @transform_10, window_bounds = array<i64: 1, 128, 2048>}, {transform_indices = @transform_11, window_bounds = array<i64: 1, 1, 2048>}, {transform_indices = @transform_12, window_bounds = array<i64: 1, 2048, 128>}, {transform_indices = @transform_13, window_bounds = array<i64: 1, 1, 128>}, {transform_indices = @transform_14, window_bounds = array<i64: 1, 1, 128>}, {transform_indices = @transform_15, window_bounds = array<i64: 1, 1, 128>}, {pipeline_mode = #tpu.pipeline_mode<synchronous>, transform_indices = @transform_16, window_bounds = array<i64: 1280, 8>}, {pipeline_mode = #tpu.pipeline_mode<synchronous>, transform_indices = @transform_17, window_bounds = array<i64: 1, 8>}, {pipeline_mode = #tpu.pipeline_mode<synchronous>, transform_indices = @transform_18, window_bounds = array<i64: 2, 8>}]} {
    %c0_i32 = arith.constant 0 : i32
    %0 = arith.cmpi eq, %arg0, %c0_i32 : i32
    %1 = arith.extui %0 : i1 to i32
    %c0_i32_0 = arith.constant 0 : i32
    %2 = arith.cmpi ne, %1, %c0_i32_0 : i32
    scf.if %2 {
      %c0_94 = arith.constant 0 : index
      %c0_95 = arith.constant 0 : index
      %197 = vector.load %arg1[%c0_94, %c0_95] : memref<20x16xf32, #tpu.memory_space<vmem>>, vector<20x16xf32>
      %c0_96 = arith.constant 0 : index
      %c0_97 = arith.constant 0 : index
      %198 = vector.load %arg3[%c0_96, %c0_97] : memref<16x128xf32, #tpu.memory_space<vmem>>, vector<16x128xf32>
      %cst_98 = arith.constant dense<0.000000e+00> : vector<20x128xf32>
      %199 = tpu.matmul %197, %198, %cst_98 {dimension_numbers = #tpu.dot_dimension_numbers<[1], [0], [0], [1], [0, 0, 1, 1], [], []>} : vector<20x16xf32>, vector<16x128xf32>, vector<20x128xf32> -> vector<20x128xf32>
      %c0_99 = arith.constant 0 : index
      %c0_100 = arith.constant 0 : index
      %200 = vector.load %arg4[%c0_99, %c0_100] : memref<1x128xf32, #tpu.memory_space<vmem>>, vector<1x128xf32>
      %201 = vector.broadcast %200 : vector<1x128xf32> to vector<20x128xf32>
      %202 = arith.addf %199, %201 : vector<20x128xf32>
      %cst_101 = arith.constant 11.3137083 : f32
      %203 = vector.broadcast %cst_101 : f32 to vector<20x128xf32>
      %204 = arith.mulf %202, %203 : vector<20x128xf32>
      %c0_102 = arith.constant 0 : index
      %c0_103 = arith.constant 0 : index
      %205 = vector.load %arg2[%c0_102, %c0_103] : memref<20x128xf32, #tpu.memory_space<vmem>>, vector<20x128xf32>
      %206 = arith.addf %204, %205 : vector<20x128xf32>
      %c0_104 = arith.constant 0 : index
      %c0_105 = arith.constant 0 : index
      %207 = vector.load %arg20[%c0_104, %c0_105] : memref<20x128xf32, #tpu.memory_space<vmem>>, vector<20x128xf32>
      tpu.vector_store %arg20[%c0_104, %c0_105], %206 {strides = array<i32>} : memref<20x128xf32, #tpu.memory_space<vmem>>, vector<20x128xf32>,
    } else {
    }
    %c0 = arith.constant 0 : index
    %c0_1 = arith.constant 0 : index
    %3 = vector.load %arg20[%c0, %c0_1] : memref<20x128xf32, #tpu.memory_space<vmem>>, vector<20x128xf32>
    %4 = arith.truncf %3 : vector<20x128xf32> to vector<20x128xbf16>
    %c0_2 = arith.constant 0 : index
    %c0_3 = arith.constant 0 : index
    %c0_4 = arith.constant 0 : index
    %5 = vector.load %arg5[%c0_2, %c0_3, %c0_4] : memref<1x128x384xbf16, #tpu.memory_space<vmem>>, vector<1x128x384xbf16>
    %6 = vector.shape_cast %5 : vector<1x128x384xbf16> to vector<128x384xbf16>
    %cst = arith.constant dense<0.000000e+00> : vector<20x384xf32>
    %7 = tpu.matmul %4, %6, %cst {dimension_numbers = #tpu.dot_dimension_numbers<[1], [0], [0], [1], [0, 0, 1, 1], [], []>} : vector<20x128xbf16>, vector<128x384xbf16>, vector<20x384xf32> -> vector<20x384xf32>
    %c0_5 = arith.constant 0 : index
    %c0_6 = arith.constant 0 : index
    %c0_7 = arith.constant 0 : index
    %8 = vector.load %arg6[%c0_5, %c0_6, %c0_7] : memref<1x1x384xf32, #tpu.memory_space<vmem>>, vector<1x1x384xf32>
    %9 = vector.shape_cast %8 : vector<1x1x384xf32> to vector<1x384xf32>
    %10 = vector.broadcast %9 : vector<1x384xf32> to vector<20x384xf32>
    %11 = arith.addf %7, %10 : vector<20x384xf32>
    %12 = vector.extract_strided_slice %11 {offsets = [0, 0], sizes = [20, 128], strides = [1, 1]} : vector<20x384xf32> to vector<20x128xf32>
    %cst_8 = arith.constant 2.500000e-01 : f32
    %13 = vector.broadcast %cst_8 : f32 to vector<20x128xf32>
    %14 = arith.mulf %12, %13 : vector<20x128xf32>
    %15 = vector.shape_cast %14 : vector<20x128xf32> to vector<2x10x128xf32>
    %16 = vector.extract_strided_slice %11 {offsets = [0, 128], sizes = [20, 128], strides = [1, 1]} : vector<20x384xf32> to vector<20x128xf32>
    %17 = vector.shape_cast %16 : vector<20x128xf32> to vector<2x10x128xf32>
    %18 = vector.extract_strided_slice %11 {offsets = [0, 256], sizes = [20, 128], strides = [1, 1]} : vector<20x384xf32> to vector<20x128xf32>
    %19 = vector.shape_cast %18 : vector<20x128xf32> to vector<2x10x128xf32>
    %20 = vector.extract_strided_slice %15 {offsets = [0, 0, 0], sizes = [2, 10, 16], strides = [1, 1, 1]} : vector<2x10x128xf32> to vector<2x10x16xf32>
    %21 = vector.extract_strided_slice %15 {offsets = [0, 0, 16], sizes = [2, 10, 16], strides = [1, 1, 1]} : vector<2x10x128xf32> to vector<2x10x16xf32>
    %22 = vector.extract_strided_slice %15 {offsets = [0, 0, 32], sizes = [2, 10, 16], strides = [1, 1, 1]} : vector<2x10x128xf32> to vector<2x10x16xf32>
    %23 = vector.extract_strided_slice %15 {offsets = [0, 0, 48], sizes = [2, 10, 16], strides = [1, 1, 1]} : vector<2x10x128xf32> to vector<2x10x16xf32>
    %24 = vector.extract_strided_slice %15 {offsets = [0, 0, 64], sizes = [2, 10, 16], strides = [1, 1, 1]} : vector<2x10x128xf32> to vector<2x10x16xf32>
    %25 = vector.extract_strided_slice %15 {offsets = [0, 0, 80], sizes = [2, 10, 16], strides = [1, 1, 1]} : vector<2x10x128xf32> to vector<2x10x16xf32>
    %26 = vector.extract_strided_slice %15 {offsets = [0, 0, 96], sizes = [2, 10, 16], strides = [1, 1, 1]} : vector<2x10x128xf32> to vector<2x10x16xf32>
    %27 = vector.extract_strided_slice %15 {offsets = [0, 0, 112], sizes = [2, 10, 16], strides = [1, 1, 1]} : vector<2x10x128xf32> to vector<2x10x16xf32>
    %28 = tpu.concatenate %20, %21, %22, %23, %24, %25, %26, %27 in 0 : vector<2x10x16xf32>, vector<2x10x16xf32>, vector<2x10x16xf32>, vector<2x10x16xf32>, vector<2x10x16xf32>, vector<2x10x16xf32>, vector<2x10x16xf32>, vector<2x10x16xf32> -> vector<16x10x16xf32>
    %29 = vector.extract_strided_slice %17 {offsets = [0, 0, 0], sizes = [2, 10, 16], strides = [1, 1, 1]} : vector<2x10x128xf32> to vector<2x10x16xf32>
    %30 = vector.extract_strided_slice %17 {offsets = [0, 0, 16], sizes = [2, 10, 16], strides = [1, 1, 1]} : vector<2x10x128xf32> to vector<2x10x16xf32>
    %31 = vector.extract_strided_slice %17 {offsets = [0, 0, 32], sizes = [2, 10, 16], strides = [1, 1, 1]} : vector<2x10x128xf32> to vector<2x10x16xf32>
    %32 = vector.extract_strided_slice %17 {offsets = [0, 0, 48], sizes = [2, 10, 16], strides = [1, 1, 1]} : vector<2x10x128xf32> to vector<2x10x16xf32>
    %33 = vector.extract_strided_slice %17 {offsets = [0, 0, 64], sizes = [2, 10, 16], strides = [1, 1, 1]} : vector<2x10x128xf32> to vector<2x10x16xf32>
    %34 = vector.extract_strided_slice %17 {offsets = [0, 0, 80], sizes = [2, 10, 16], strides = [1, 1, 1]} : vector<2x10x128xf32> to vector<2x10x16xf32>
    %35 = vector.extract_strided_slice %17 {offsets = [0, 0, 96], sizes = [2, 10, 16], strides = [1, 1, 1]} : vector<2x10x128xf32> to vector<2x10x16xf32>
    %36 = vector.extract_strided_slice %17 {offsets = [0, 0, 112], sizes = [2, 10, 16], strides = [1, 1, 1]} : vector<2x10x128xf32> to vector<2x10x16xf32>
    %37 = tpu.concatenate %29, %30, %31, %32, %33, %34, %35, %36 in 0 : vector<2x10x16xf32>, vector<2x10x16xf32>, vector<2x10x16xf32>, vector<2x10x16xf32>, vector<2x10x16xf32>, vector<2x10x16xf32>, vector<2x10x16xf32>, vector<2x10x16xf32> -> vector<16x10x16xf32>
    %38 = vector.extract_strided_slice %19 {offsets = [0, 0, 0], sizes = [2, 10, 16], strides = [1, 1, 1]} : vector<2x10x128xf32> to vector<2x10x16xf32>
    %39 = vector.extract_strided_slice %19 {offsets = [0, 0, 16], sizes = [2, 10, 16], strides = [1, 1, 1]} : vector<2x10x128xf32> to vector<2x10x16xf32>
    %40 = vector.extract_strided_slice %19 {offsets = [0, 0, 32], sizes = [2, 10, 16], strides = [1, 1, 1]} : vector<2x10x128xf32> to vector<2x10x16xf32>
    %41 = vector.extract_strided_slice %19 {offsets = [0, 0, 48], sizes = [2, 10, 16], strides = [1, 1, 1]} : vector<2x10x128xf32> to vector<2x10x16xf32>
    %42 = vector.extract_strided_slice %19 {offsets = [0, 0, 64], sizes = [2, 10, 16], strides = [1, 1, 1]} : vector<2x10x128xf32> to vector<2x10x16xf32>
    %43 = vector.extract_strided_slice %19 {offsets = [0, 0, 80], sizes = [2, 10, 16], strides = [1, 1, 1]} : vector<2x10x128xf32> to vector<2x10x16xf32>
    %44 = vector.extract_strided_slice %19 {offsets = [0, 0, 96], sizes = [2, 10, 16], strides = [1, 1, 1]} : vector<2x10x128xf32> to vector<2x10x16xf32>
    %45 = vector.extract_strided_slice %19 {offsets = [0, 0, 112], sizes = [2, 10, 16], strides = [1, 1, 1]} : vector<2x10x128xf32> to vector<2x10x16xf32>
    %46 = tpu.concatenate %38, %39, %40, %41, %42, %43, %44, %45 in 0 : vector<2x10x16xf32>, vector<2x10x16xf32>, vector<2x10x16xf32>, vector<2x10x16xf32>, vector<2x10x16xf32>, vector<2x10x16xf32>, vector<2x10x16xf32>, vector<2x10x16xf32> -> vector<16x10x16xf32>
    "tpu.trace_start"() <{level = 10 : i32, message = "bqd,bkd->bqk"}> : () -> ()
    %cst_9 = arith.constant dense<0.000000e+00> : vector<16x10x10xf32>
    %47 = tpu.matmul %28, %37, %cst_9 {dimension_numbers = #tpu.dot_dimension_numbers<[2], [2], [1], [1], [0, 0, 0, 1, 1, 1], [0], [0]>} : vector<16x10x16xf32>, vector<16x10x16xf32>, vector<16x10x10xf32> -> vector<16x10x10xf32>
    "tpu.trace_stop"() : () -> ()
    %cst_10 = arith.constant dense<0xFF800000> : vector<16x10xf32>
    %48 = vector.multi_reduction <maximumf>, %47, %cst_10 [2] : vector<16x10x10xf32> to vector<16x10xf32>
    %49 = vector.shape_cast %48 : vector<16x10xf32> to vector<16x10x1xf32>
    %50 = vector.broadcast %49 : vector<16x10x1xf32> to vector<16x10x10xf32>
    %51 = arith.subf %47, %50 : vector<16x10x10xf32>
    %52 = math.exp %51 : vector<16x10x10xf32>
    %cst_11 = arith.constant dense<0.000000e+00> : vector<16x10xf32>
    %53 = vector.multi_reduction <add>, %52, %cst_11 [2] : vector<16x10x10xf32> to vector<16x10xf32>
    %54 = vector.shape_cast %53 : vector<16x10xf32> to vector<16x10x1xf32>
    %55 = tpu.reciprocal %54 {approx = true} : vector<16x10x1xf32> -> vector<16x10x1xf32>
    %56 = vector.broadcast %55 : vector<16x10x1xf32> to vector<16x10x10xf32>
    %57 = arith.mulf %52, %56 : vector<16x10x10xf32>
    "tpu.trace_start"() <{level = 10 : i32, message = "bqk,bkd->bqd"}> : () -> ()
    %cst_12 = arith.constant dense<0.000000e+00> : vector<16x10x16xf32>
    %58 = tpu.matmul %57, %46, %cst_12 {dimension_numbers = #tpu.dot_dimension_numbers<[2], [1], [1], [2], [0, 0, 0, 1, 1, 2], [0], [0]>} : vector<16x10x10xf32>, vector<16x10x16xf32>, vector<16x10x16xf32> -> vector<16x10x16xf32>
    "tpu.trace_stop"() : () -> ()
    %59 = vector.extract_strided_slice %58 {offsets = [0, 0, 0], sizes = [2, 10, 16], strides = [1, 1, 1]} : vector<16x10x16xf32> to vector<2x10x16xf32>
    %60 = vector.extract_strided_slice %58 {offsets = [2, 0, 0], sizes = [2, 10, 16], strides = [1, 1, 1]} : vector<16x10x16xf32> to vector<2x10x16xf32>
    %61 = vector.extract_strided_slice %58 {offsets = [4, 0, 0], sizes = [2, 10, 16], strides = [1, 1, 1]} : vector<16x10x16xf32> to vector<2x10x16xf32>
    %62 = vector.extract_strided_slice %58 {offsets = [6, 0, 0], sizes = [2, 10, 16], strides = [1, 1, 1]} : vector<16x10x16xf32> to vector<2x10x16xf32>
    %63 = vector.extract_strided_slice %58 {offsets = [8, 0, 0], sizes = [2, 10, 16], strides = [1, 1, 1]} : vector<16x10x16xf32> to vector<2x10x16xf32>
    %64 = vector.extract_strided_slice %58 {offsets = [10, 0, 0], sizes = [2, 10, 16], strides = [1, 1, 1]} : vector<16x10x16xf32> to vector<2x10x16xf32>
    %65 = vector.extract_strided_slice %58 {offsets = [12, 0, 0], sizes = [2, 10, 16], strides = [1, 1, 1]} : vector<16x10x16xf32> to vector<2x10x16xf32>
    %66 = vector.extract_strided_slice %58 {offsets = [14, 0, 0], sizes = [2, 10, 16], strides = [1, 1, 1]} : vector<16x10x16xf32> to vector<2x10x16xf32>
    %67 = tpu.concatenate %59, %60, %61, %62, %63, %64, %65, %66 in 2 : vector<2x10x16xf32>, vector<2x10x16xf32>, vector<2x10x16xf32>, vector<2x10x16xf32>, vector<2x10x16xf32>, vector<2x10x16xf32>, vector<2x10x16xf32>, vector<2x10x16xf32> -> vector<2x10x128xf32>
    %68 = vector.shape_cast %67 : vector<2x10x128xf32> to vector<20x128xf32>
    %69 = arith.truncf %68 : vector<20x128xf32> to vector<20x128xbf16>
    %c0_13 = arith.constant 0 : index
    %c0_14 = arith.constant 0 : index
    %c0_15 = arith.constant 0 : index
    %70 = vector.load %arg7[%c0_13, %c0_14, %c0_15] : memref<1x128x128xbf16, #tpu.memory_space<vmem>>, vector<1x128x128xbf16>
    %71 = vector.shape_cast %70 : vector<1x128x128xbf16> to vector<128x128xbf16>
    %cst_16 = arith.constant dense<0.000000e+00> : vector<20x128xf32>
    %72 = tpu.matmul %69, %71, %cst_16 {dimension_numbers = #tpu.dot_dimension_numbers<[1], [0], [0], [1], [0, 0, 1, 1], [], []>} : vector<20x128xbf16>, vector<128x128xbf16>, vector<20x128xf32> -> vector<20x128xf32>
    %c0_17 = arith.constant 0 : index
    %c0_18 = arith.constant 0 : index
    %c0_19 = arith.constant 0 : index
    %73 = vector.load %arg8[%c0_17, %c0_18, %c0_19] : memref<1x1x128xf32, #tpu.memory_space<vmem>>, vector<1x1x128xf32>
    %74 = vector.shape_cast %73 : vector<1x1x128xf32> to vector<1x128xf32>
    %75 = vector.broadcast %74 : vector<1x128xf32> to vector<20x128xf32>
    %76 = arith.addf %72, %75 : vector<20x128xf32>
    %77 = arith.addf %3, %76 : vector<20x128xf32>
    %c0_20 = arith.constant 0 : index
    %c0_21 = arith.constant 0 : index
    %c0_22 = arith.constant 0 : index
    %78 = vector.load %arg9[%c0_20, %c0_21, %c0_22] : memref<1x1x128xf32, #tpu.memory_space<vmem>>, vector<1x1x128xf32>
    %79 = vector.shape_cast %78 : vector<1x1x128xf32> to vector<1x128xf32>
    %c0_23 = arith.constant 0 : index
    %c0_24 = arith.constant 0 : index
    %c0_25 = arith.constant 0 : index
    %80 = vector.load %arg10[%c0_23, %c0_24, %c0_25] : memref<1x1x128xf32, #tpu.memory_space<vmem>>, vector<1x1x128xf32>
    %81 = vector.shape_cast %80 : vector<1x1x128xf32> to vector<1x128xf32>
    %cst_26 = arith.constant dense<0.000000e+00> : vector<20xf32>
    %82 = vector.multi_reduction <add>, %77, %cst_26 [1] : vector<20x128xf32> to vector<20xf32>
    %83 = vector.shape_cast %82 : vector<20xf32> to vector<20x1xf32>
    %cst_27 = arith.constant 1.280000e+02 : f32
    %84 = vector.broadcast %cst_27 : f32 to vector<20x1xf32>
    %85 = arith.divf %83, %84 : vector<20x1xf32>
    %86 = vector.broadcast %85 : vector<20x1xf32> to vector<20x128xf32>
    %87 = arith.subf %77, %86 : vector<20x128xf32>
    %88 = arith.mulf %87, %87 : vector<20x128xf32>
    %cst_28 = arith.constant dense<0.000000e+00> : vector<20xf32>
    %89 = vector.multi_reduction <add>, %88, %cst_28 [1] : vector<20x128xf32> to vector<20xf32>
    %90 = vector.shape_cast %89 : vector<20xf32> to vector<20x1xf32>
    %cst_29 = arith.constant 1.280000e+02 : f32
    %91 = vector.broadcast %cst_29 : f32 to vector<20x1xf32>
    %92 = arith.divf %90, %91 : vector<20x1xf32>
    %93 = vector.broadcast %85 : vector<20x1xf32> to vector<20x128xf32>
    %94 = arith.subf %77, %93 : vector<20x128xf32>
    %cst_30 = arith.constant 9.99999974E-6 : f32
    %95 = vector.broadcast %cst_30 : f32 to vector<20x1xf32>
    %96 = arith.addf %92, %95 : vector<20x1xf32>
    %97 = math.rsqrt %96 : vector<20x1xf32>
    %98 = vector.broadcast %97 : vector<20x1xf32> to vector<20x128xf32>
    %99 = arith.mulf %94, %98 : vector<20x128xf32>
    %100 = vector.broadcast %79 : vector<1x128xf32> to vector<20x128xf32>
    %101 = arith.mulf %99, %100 : vector<20x128xf32>
    %102 = vector.broadcast %81 : vector<1x128xf32> to vector<20x128xf32>
    %103 = arith.addf %101, %102 : vector<20x128xf32>
    %104 = arith.truncf %103 : vector<20x128xf32> to vector<20x128xbf16>
    %cst_31 = arith.constant 0.000000e+00 : f32
    %105 = vector.broadcast %cst_31 : f32 to vector<20x128xf32>
    %c0_32 = arith.constant 0 : index
    %c0_33 = arith.constant 0 : index
    %c0_34 = arith.constant 0 : index
    %106 = vector.load %arg11[%c0_32, %c0_33, %c0_34] : memref<1x128x2048xbf16, #tpu.memory_space<vmem>>, vector<1x128x512xbf16>
    %107 = vector.shape_cast %106 : vector<1x128x512xbf16> to vector<128x512xbf16>
    %cst_35 = arith.constant dense<0.000000e+00> : vector<20x512xf32>
    %108 = tpu.matmul %104, %107, %cst_35 {dimension_numbers = #tpu.dot_dimension_numbers<[1], [0], [0], [1], [0, 0, 1, 1], [], []>} : vector<20x128xbf16>, vector<128x512xbf16>, vector<20x512xf32> -> vector<20x512xf32>
    %c0_36 = arith.constant 0 : index
    %c0_37 = arith.constant 0 : index
    %c0_38 = arith.constant 0 : index
    %109 = vector.load %arg12[%c0_36, %c0_37, %c0_38] : memref<1x1x2048xf32, #tpu.memory_space<vmem>>, vector<1x1x512xf32>
    %110 = vector.shape_cast %109 : vector<1x1x512xf32> to vector<1x512xf32>
    %111 = vector.broadcast %110 : vector<1x512xf32> to vector<20x512xf32>
    %112 = arith.addf %108, %111 : vector<20x512xf32>
    %cst_39 = arith.constant 0.000000e+00 : f32
    %113 = vector.broadcast %cst_39 : f32 to vector<20x512xf32>
    %114 = arith.maximumf %112, %113 : vector<20x512xf32>
    %115 = arith.truncf %114 : vector<20x512xf32> to vector<20x512xbf16>
    %c0_40 = arith.constant 0 : index
    %c0_41 = arith.constant 0 : index
    %c0_42 = arith.constant 0 : index
    %116 = vector.load %arg13[%c0_40, %c0_41, %c0_42] : memref<1x2048x128xbf16, #tpu.memory_space<vmem>>, vector<1x512x128xbf16>
    %117 = vector.shape_cast %116 : vector<1x512x128xbf16> to vector<512x128xbf16>
    %cst_43 = arith.constant dense<0.000000e+00> : vector<20x128xf32>
    %118 = tpu.matmul %115, %117, %cst_43 {dimension_numbers = #tpu.dot_dimension_numbers<[1], [0], [0], [1], [0, 0, 1, 1], [], []>} : vector<20x512xbf16>, vector<512x128xbf16>, vector<20x128xf32> -> vector<20x128xf32>
    %119 = arith.addf %105, %118 : vector<20x128xf32>
    %c0_44 = arith.constant 0 : index
    %c0_45 = arith.constant 0 : index
    %c512 = arith.constant 512 : index
    %120 = vector.load %arg11[%c0_44, %c0_45, %c512] : memref<1x128x2048xbf16, #tpu.memory_space<vmem>>, vector<1x128x512xbf16>
    %121 = vector.shape_cast %120 : vector<1x128x512xbf16> to vector<128x512xbf16>
    %cst_46 = arith.constant dense<0.000000e+00> : vector<20x512xf32>
    %122 = tpu.matmul %104, %121, %cst_46 {dimension_numbers = #tpu.dot_dimension_numbers<[1], [0], [0], [1], [0, 0, 1, 1], [], []>} : vector<20x128xbf16>, vector<128x512xbf16>, vector<20x512xf32> -> vector<20x512xf32>
    %c0_47 = arith.constant 0 : index
    %c0_48 = arith.constant 0 : index
    %c512_49 = arith.constant 512 : index
    %123 = vector.load %arg12[%c0_47, %c0_48, %c512_49] : memref<1x1x2048xf32, #tpu.memory_space<vmem>>, vector<1x1x512xf32>
    %124 = vector.shape_cast %123 : vector<1x1x512xf32> to vector<1x512xf32>
    %125 = vector.broadcast %124 : vector<1x512xf32> to vector<20x512xf32>
    %126 = arith.addf %122, %125 : vector<20x512xf32>
    %cst_50 = arith.constant 0.000000e+00 : f32
    %127 = vector.broadcast %cst_50 : f32 to vector<20x512xf32>
    %128 = arith.maximumf %126, %127 : vector<20x512xf32>
    %129 = arith.truncf %128 : vector<20x512xf32> to vector<20x512xbf16>
    %c0_51 = arith.constant 0 : index
    %c512_52 = arith.constant 512 : index
    %c0_53 = arith.constant 0 : index
    %130 = vector.load %arg13[%c0_51, %c512_52, %c0_53] : memref<1x2048x128xbf16, #tpu.memory_space<vmem>>, vector<1x512x128xbf16>
    %131 = vector.shape_cast %130 : vector<1x512x128xbf16> to vector<512x128xbf16>
    %cst_54 = arith.constant dense<0.000000e+00> : vector<20x128xf32>
    %132 = tpu.matmul %129, %131, %cst_54 {dimension_numbers = #tpu.dot_dimension_numbers<[1], [0], [0], [1], [0, 0, 1, 1], [], []>} : vector<20x512xbf16>, vector<512x128xbf16>, vector<20x128xf32> -> vector<20x128xf32>
    %133 = arith.addf %119, %132 : vector<20x128xf32>
    %c0_55 = arith.constant 0 : index
    %c0_56 = arith.constant 0 : index
    %c1024 = arith.constant 1024 : index
    %134 = vector.load %arg11[%c0_55, %c0_56, %c1024] : memref<1x128x2048xbf16, #tpu.memory_space<vmem>>, vector<1x128x512xbf16>
    %135 = vector.shape_cast %134 : vector<1x128x512xbf16> to vector<128x512xbf16>
    %cst_57 = arith.constant dense<0.000000e+00> : vector<20x512xf32>
    %136 = tpu.matmul %104, %135, %cst_57 {dimension_numbers = #tpu.dot_dimension_numbers<[1], [0], [0], [1], [0, 0, 1, 1], [], []>} : vector<20x128xbf16>, vector<128x512xbf16>, vector<20x512xf32> -> vector<20x512xf32>
    %c0_58 = arith.constant 0 : index
    %c0_59 = arith.constant 0 : index
    %c1024_60 = arith.constant 1024 : index
    %137 = vector.load %arg12[%c0_58, %c0_59, %c1024_60] : memref<1x1x2048xf32, #tpu.memory_space<vmem>>, vector<1x1x512xf32>
    %138 = vector.shape_cast %137 : vector<1x1x512xf32> to vector<1x512xf32>
    %139 = vector.broadcast %138 : vector<1x512xf32> to vector<20x512xf32>
    %140 = arith.addf %136, %139 : vector<20x512xf32>
    %cst_61 = arith.constant 0.000000e+00 : f32
    %141 = vector.broadcast %cst_61 : f32 to vector<20x512xf32>
    %142 = arith.maximumf %140, %141 : vector<20x512xf32>
    %143 = arith.truncf %142 : vector<20x512xf32> to vector<20x512xbf16>
    %c0_62 = arith.constant 0 : index
    %c1024_63 = arith.constant 1024 : index
    %c0_64 = arith.constant 0 : index
    %144 = vector.load %arg13[%c0_62, %c1024_63, %c0_64] : memref<1x2048x128xbf16, #tpu.memory_space<vmem>>, vector<1x512x128xbf16>
    %145 = vector.shape_cast %144 : vector<1x512x128xbf16> to vector<512x128xbf16>
    %cst_65 = arith.constant dense<0.000000e+00> : vector<20x128xf32>
    %146 = tpu.matmul %143, %145, %cst_65 {dimension_numbers = #tpu.dot_dimension_numbers<[1], [0], [0], [1], [0, 0, 1, 1], [], []>} : vector<20x512xbf16>, vector<512x128xbf16>, vector<20x128xf32> -> vector<20x128xf32>
    %147 = arith.addf %133, %146 : vector<20x128xf32>
    %c0_66 = arith.constant 0 : index
    %c0_67 = arith.constant 0 : index
    %c1536 = arith.constant 1536 : index
    %148 = vector.load %arg11[%c0_66, %c0_67, %c1536] : memref<1x128x2048xbf16, #tpu.memory_space<vmem>>, vector<1x128x512xbf16>
    %149 = vector.shape_cast %148 : vector<1x128x512xbf16> to vector<128x512xbf16>
    %cst_68 = arith.constant dense<0.000000e+00> : vector<20x512xf32>
    %150 = tpu.matmul %104, %149, %cst_68 {dimension_numbers = #tpu.dot_dimension_numbers<[1], [0], [0], [1], [0, 0, 1, 1], [], []>} : vector<20x128xbf16>, vector<128x512xbf16>, vector<20x512xf32> -> vector<20x512xf32>
    %c0_69 = arith.constant 0 : index
    %c0_70 = arith.constant 0 : index
    %c1536_71 = arith.constant 1536 : index
    %151 = vector.load %arg12[%c0_69, %c0_70, %c1536_71] : memref<1x1x2048xf32, #tpu.memory_space<vmem>>, vector<1x1x512xf32>
    %152 = vector.shape_cast %151 : vector<1x1x512xf32> to vector<1x512xf32>
    %153 = vector.broadcast %152 : vector<1x512xf32> to vector<20x512xf32>
    %154 = arith.addf %150, %153 : vector<20x512xf32>
    %cst_72 = arith.constant 0.000000e+00 : f32
    %155 = vector.broadcast %cst_72 : f32 to vector<20x512xf32>
    %156 = arith.maximumf %154, %155 : vector<20x512xf32>
    %157 = arith.truncf %156 : vector<20x512xf32> to vector<20x512xbf16>
    %c0_73 = arith.constant 0 : index
    %c1536_74 = arith.constant 1536 : index
    %c0_75 = arith.constant 0 : index
    %158 = vector.load %arg13[%c0_73, %c1536_74, %c0_75] : memref<1x2048x128xbf16, #tpu.memory_space<vmem>>, vector<1x512x128xbf16>
    %159 = vector.shape_cast %158 : vector<1x512x128xbf16> to vector<512x128xbf16>
    %cst_76 = arith.constant dense<0.000000e+00> : vector<20x128xf32>
    %160 = tpu.matmul %157, %159, %cst_76 {dimension_numbers = #tpu.dot_dimension_numbers<[1], [0], [0], [1], [0, 0, 1, 1], [], []>} : vector<20x512xbf16>, vector<512x128xbf16>, vector<20x128xf32> -> vector<20x128xf32>
    %161 = arith.addf %147, %160 : vector<20x128xf32>
    %c0_77 = arith.constant 0 : index
    %c0_78 = arith.constant 0 : index
    %c0_79 = arith.constant 0 : index
    %162 = vector.load %arg14[%c0_77, %c0_78, %c0_79] : memref<1x1x128xf32, #tpu.memory_space<vmem>>, vector<1x1x128xf32>
    %163 = vector.shape_cast %162 : vector<1x1x128xf32> to vector<1x128xf32>
    %164 = vector.broadcast %163 : vector<1x128xf32> to vector<20x128xf32>
    %165 = arith.addf %161, %164 : vector<20x128xf32>
    %166 = arith.addf %103, %165 : vector<20x128xf32>
    %c0_80 = arith.constant 0 : index
    %c0_81 = arith.constant 0 : index
    %c0_82 = arith.constant 0 : index
    %167 = vector.load %arg15[%c0_80, %c0_81, %c0_82] : memref<1x1x128xf32, #tpu.memory_space<vmem>>, vector<1x1x128xf32>
    %168 = vector.shape_cast %167 : vector<1x1x128xf32> to vector<1x128xf32>
    %c0_83 = arith.constant 0 : index
    %c0_84 = arith.constant 0 : index
    %c0_85 = arith.constant 0 : index
    %169 = vector.load %arg16[%c0_83, %c0_84, %c0_85] : memref<1x1x128xf32, #tpu.memory_space<vmem>>, vector<1x1x128xf32>
    %170 = vector.shape_cast %169 : vector<1x1x128xf32> to vector<1x128xf32>
    %cst_86 = arith.constant dense<0.000000e+00> : vector<20xf32>
    %171 = vector.multi_reduction <add>, %166, %cst_86 [1] : vector<20x128xf32> to vector<20xf32>
    %172 = vector.shape_cast %171 : vector<20xf32> to vector<20x1xf32>
    %cst_87 = arith.constant 1.280000e+02 : f32
    %173 = vector.broadcast %cst_87 : f32 to vector<20x1xf32>
    %174 = arith.divf %172, %173 : vector<20x1xf32>
    %175 = vector.broadcast %174 : vector<20x1xf32> to vector<20x128xf32>
    %176 = arith.subf %166, %175 : vector<20x128xf32>
    %177 = arith.mulf %176, %176 : vector<20x128xf32>
    %cst_88 = arith.constant dense<0.000000e+00> : vector<20xf32>
    %178 = vector.multi_reduction <add>, %177, %cst_88 [1] : vector<20x128xf32> to vector<20xf32>
    %179 = vector.shape_cast %178 : vector<20xf32> to vector<20x1xf32>
    %cst_89 = arith.constant 1.280000e+02 : f32
    %180 = vector.broadcast %cst_89 : f32 to vector<20x1xf32>
    %181 = arith.divf %179, %180 : vector<20x1xf32>
    %182 = vector.broadcast %174 : vector<20x1xf32> to vector<20x128xf32>
    %183 = arith.subf %166, %182 : vector<20x128xf32>
    %cst_90 = arith.constant 9.99999974E-6 : f32
    %184 = vector.broadcast %cst_90 : f32 to vector<20x1xf32>
    %185 = arith.addf %181, %184 : vector<20x1xf32>
    %186 = math.rsqrt %185 : vector<20x1xf32>
    %187 = vector.broadcast %186 : vector<20x1xf32> to vector<20x128xf32>
    %188 = arith.mulf %183, %187 : vector<20x128xf32>
    %189 = vector.broadcast %168 : vector<1x128xf32> to vector<20x128xf32>
    %190 = arith.mulf %188, %189 : vector<20x128xf32>
    %191 = vector.broadcast %170 : vector<1x128xf32> to vector<20x128xf32>
    %192 = arith.addf %190, %191 : vector<20x128xf32>
    %c0_91 = arith.constant 0 : index
    %c0_92 = arith.constant 0 : index
    %193 = vector.load %arg20[%c0_91, %c0_92] : memref<20x128xf32, #tpu.memory_space<vmem>>, vector<20x128xf32>
    tpu.vector_store %arg20[%c0_91, %c0_92], %192 {strides = array<i32>} : memref<20x128xf32, #tpu.memory_space<vmem>>, vector<20x128xf32>,
    %c1_i32 = arith.constant 1 : i32
    %194 = arith.cmpi eq, %arg0, %c1_i32 : i32
    %195 = arith.extui %194 : i1 to i32
    %c0_i32_93 = arith.constant 0 : i32
    %196 = arith.cmpi ne, %195, %c0_i32_93 : i32
    scf.if %196 {
      %c0_94 = arith.constant 0 : index
      %c0_95 = arith.constant 0 : index
      %197 = vector.load %arg20[%c0_94, %c0_95] : memref<20x128xf32, #tpu.memory_space<vmem>>, vector<20x128xf32>
      %198 = vector.shape_cast %197 : vector<20x128xf32> to vector<2x1280xf32>
      %c0_96 = arith.constant 0 : index
      %c0_97 = arith.constant 0 : index
      %199 = vector.load %arg17[%c0_96, %c0_97] : memref<1280x8xf32, #tpu.memory_space<vmem>>, vector<1280x8xf32>
      %cst_98 = arith.constant dense<0.000000e+00> : vector<2x8xf32>
      %200 = tpu.matmul %198, %199, %cst_98 {dimension_numbers = #tpu.dot_dimension_numbers<[1], [0], [0], [1], [0, 0, 1, 1], [], []>} : vector<2x1280xf32>, vector<1280x8xf32>, vector<2x8xf32> -> vector<2x8xf32>
      %c0_99 = arith.constant 0 : index
      %c0_100 = arith.constant 0 : index
      %201 = vector.load %arg18[%c0_99, %c0_100] : memref<1x8xf32, #tpu.memory_space<vmem>>, vector<1x8xf32>
      %202 = vector.broadcast %201 : vector<1x8xf32> to vector<2x8xf32>
      %203 = arith.addf %200, %202 : vector<2x8xf32>
      %c0_101 = arith.constant 0 : index
      %c0_102 = arith.constant 0 : index
      %204 = vector.load %arg19[%c0_101, %c0_102] : memref<2x8xf32, #tpu.memory_space<vmem>>, vector<2x8xf32>
      tpu.vector_store %arg19[%c0_101, %c0_102], %203 {strides = array<i32>} : memref<2x8xf32, #tpu.memory_space<vmem>>, vector<2x8xf32>,
    } else {
    }
    return
  }
  func.func @transform_0(%arg0: i32) -> (i32, i32) {
    %c0_i32 = arith.constant 0 : i32
    %c0_i32_0 = arith.constant 0 : i32
    %c0_i32_1 = arith.constant 0 : i32
    return %c0_i32, %c0_i32_0 : i32, i32
  }
  func.func @transform_1(%arg0: i32) -> (i32, i32) {
    %c0_i32 = arith.constant 0 : i32
    %c0_i32_0 = arith.constant 0 : i32
    %c0_i32_1 = arith.constant 0 : i32
    return %c0_i32, %c0_i32_0 : i32, i32
  }
  func.func @transform_2(%arg0: i32) -> (i32, i32) {
    %c0_i32 = arith.constant 0 : i32
    %c0_i32_0 = arith.constant 0 : i32
    %c0_i32_1 = arith.constant 0 : i32
    return %c0_i32, %c0_i32_0 : i32, i32
  }
  func.func @transform_3(%arg0: i32) -> (i32, i32) {
    %c0_i32 = arith.constant 0 : i32
    %c0_i32_0 = arith.constant 0 : i32
    %c0_i32_1 = arith.constant 0 : i32
    return %c0_i32, %c0_i32_0 : i32, i32
  }
  func.func @transform_4(%arg0: i32) -> (i32, i32, i32) {
    %c0_i32 = arith.constant 0 : i32
    %c0_i32_0 = arith.constant 0 : i32
    %c0_i32_1 = arith.constant 0 : i32
    return %arg0, %c0_i32, %c0_i32_0 : i32, i32, i32
  }
  func.func @transform_5(%arg0: i32) -> (i32, i32, i32) {
    %c0_i32 = arith.constant 0 : i32
    %c0_i32_0 = arith.constant 0 : i32
    %c0_i32_1 = arith.constant 0 : i32
    return %arg0, %c0_i32, %c0_i32_0 : i32, i32, i32
  }
  func.func @transform_6(%arg0: i32) -> (i32, i32, i32) {
    %c0_i32 = arith.constant 0 : i32
    %c0_i32_0 = arith.constant 0 : i32
    %c0_i32_1 = arith.constant 0 : i32
    return %arg0, %c0_i32, %c0_i32_0 : i32, i32, i32
  }
  func.func @transform_7(%arg0: i32) -> (i32, i32, i32) {
    %c0_i32 = arith.constant 0 : i32
    %c0_i32_0 = arith.constant 0 : i32
    %c0_i32_1 = arith.constant 0 : i32
    return %arg0, %c0_i32, %c0_i32_0 : i32, i32, i32
  }
  func.func @transform_8(%arg0: i32) -> (i32, i32, i32) {
    %c0_i32 = arith.constant 0 : i32
    %c0_i32_0 = arith.constant 0 : i32
    %c0_i32_1 = arith.constant 0 : i32
    return %arg0, %c0_i32, %c0_i32_0 : i32, i32, i32
  }
  func.func @transform_9(%arg0: i32) -> (i32, i32, i32) {
    %c0_i32 = arith.constant 0 : i32
    %c0_i32_0 = arith.constant 0 : i32
    %c0_i32_1 = arith.constant 0 : i32
    return %arg0, %c0_i32, %c0_i32_0 : i32, i32, i32
  }
  func.func @transform_10(%arg0: i32) -> (i32, i32, i32) {
    %c0_i32 = arith.constant 0 : i32
    %c0_i32_0 = arith.constant 0 : i32
    %c0_i32_1 = arith.constant 0 : i32
    return %arg0, %c0_i32, %c0_i32_0 : i32, i32, i32
  }
  func.func @transform_11(%arg0: i32) -> (i32, i32, i32) {
    %c0_i32 = arith.constant 0 : i32
    %c0_i32_0 = arith.constant 0 : i32
    %c0_i32_1 = arith.constant 0 : i32
    return %arg0, %c0_i32, %c0_i32_0 : i32, i32, i32
  }
  func.func @transform_12(%arg0: i32) -> (i32, i32, i32) {
    %c0_i32 = arith.constant 0 : i32
    %c0_i32_0 = arith.constant 0 : i32
    %c0_i32_1 = arith.constant 0 : i32
    return %arg0, %c0_i32, %c0_i32_0 : i32, i32, i32
  }
  func.func @transform_13(%arg0: i32) -> (i32, i32, i32) {
    %c0_i32 = arith.constant 0 : i32
    %c0_i32_0 = arith.constant 0 : i32
    %c0_i32_1 = arith.constant 0 : i32
    return %arg0, %c0_i32, %c0_i32_0 : i32, i32, i32
  }
  func.func @transform_14(%arg0: i32) -> (i32, i32, i32) {
    %c0_i32 = arith.constant 0 : i32
    %c0_i32_0 = arith.constant 0 : i32
    %c0_i32_1 = arith.constant 0 : i32
    return %arg0, %c0_i32, %c0_i32_0 : i32, i32, i32
  }
  func.func @transform_15(%arg0: i32) -> (i32, i32, i32) {
    %c0_i32 = arith.constant 0 : i32
    %c0_i32_0 = arith.constant 0 : i32
    %c0_i32_1 = arith.constant 0 : i32
    return %arg0, %c0_i32, %c0_i32_0 : i32, i32, i32
  }
  func.func @transform_16(%arg0: i32) -> (i32, i32) {
    %c0_i32 = arith.constant 0 : i32
    %c0_i32_0 = arith.constant 0 : i32
    %c0_i32_1 = arith.constant 0 : i32
    return %c0_i32, %c0_i32_0 : i32, i32
  }
  func.func @transform_17(%arg0: i32) -> (i32, i32) {
    %c0_i32 = arith.constant 0 : i32
    %c0_i32_0 = arith.constant 0 : i32
    %c0_i32_1 = arith.constant 0 : i32
    return %c0_i32, %c0_i32_0 : i32, i32
  }
  func.func @transform_18(%arg0: i32) -> (i32, i32) {
    %c0_i32 = arith.constant 0 : i32
    %c0_i32_0 = arith.constant 0 : i32
    %c0_i32_1 = arith.constant 0 : i32
    return %c0_i32, %c0_i32_0 : i32, i32
  }
}

</mosaic_0001>

<llo_original>
// kernel: tpu_custom_call.1
$region0: #{tpu_custom_call.1}
  #allocation0 [shape = 'u32[]', space=smem, size = 0x4, offset = 0x4, fixed_abs, tag = 'smem constant byte address 0x4 - core index']
  #allocation1 [shape = 'u32[144,128]{1,0:T(1,128)}', space=vmem, size = 0x12000, scoped, tag = 'internal scratch']
  #allocation2 [shape = 'f32[20,128]{1,0:T(8,128)}', space=vmem, size = 0x3000, scoped, tag = 'scratch operand']
  %s0 = inlined_call_operand.vmem [shape: f32[20,16], index: 0, kind: input, shape index: {}]
  %s1 = inlined_call_operand.vmem [shape: f32[20,128], index: 1, kind: input, shape index: {}]
  %s2 = inlined_call_operand.vmem [shape: f32[16,128], index: 2, kind: input, shape index: {}]
  %s3 = inlined_call_operand.vmem [shape: f32[1,128], index: 3, kind: input, shape index: {}]
  %s4 = inlined_call_operand.vmem [shape: bf16[2,128,384], index: 4, kind: input, shape index: {}]
  %s5 = inlined_call_operand.vmem [shape: f32[2,1,384], index: 5, kind: input, shape index: {}]
  %s6 = inlined_call_operand.vmem [shape: bf16[2,128,128], index: 6, kind: input, shape index: {}]
  %s7 = inlined_call_operand.vmem [shape: f32[2,1,128], index: 7, kind: input, shape index: {}]
  %s8 = inlined_call_operand.vmem [shape: f32[2,1,128], index: 8, kind: input, shape index: {}]
  %s9 = inlined_call_operand.vmem [shape: f32[2,1,128], index: 9, kind: input, shape index: {}]
  %s10 = inlined_call_operand.hbm [shape: bf16[2,128,2048], index: 10, kind: input, shape index: {}]
  %s11 = inlined_call_operand.vmem [shape: f32[2,1,2048], index: 11, kind: input, shape index: {}]
  %s12 = inlined_call_operand.hbm [shape: bf16[2,2048,128], index: 12, kind: input, shape index: {}]
  %s13 = inlined_call_operand.vmem [shape: f32[2,1,128], index: 13, kind: input, shape index: {}]
  %s14 = inlined_call_operand.vmem [shape: f32[2,1,128], index: 14, kind: input, shape index: {}]
  %s15 = inlined_call_operand.vmem [shape: f32[2,1,128], index: 15, kind: input, shape index: {}]
  %s16 = inlined_call_operand.vmem [shape: f32[1280,8], index: 16, kind: input, shape index: {}]
  %s17 = inlined_call_operand.vmem [shape: f32[1,8], index: 17, kind: input, shape index: {}]
  %s18 = inlined_call_operand.hbm [shape: f32[2,8], index: 18, kind: output, shape index: {}]
  %s19 = sld [smem:[#allocation0]]
  $region121: #{tpu_custom_call.1} parent=0
    _
  %s21 = ssub.s32 1, %s19
  %s22 = scalar_select 0, %s21, %s19
  $region1: #{tpu_custom_call.1} parent=0
    #allocation3 [shape = 'u8[1048576]{0}', space=vmem, size = 0x100000, scoped, tag = 'input window, operand 10']
    #allocation4 [shape = 's32[2]{0}', space=sflag, size = 0x8, scoped, tag = 'scoped memory for tpu_custom_call.1']
    #allocation5 [shape = 's32[2]{0}', space=sflag, size = 0x8, scoped, tag = 'scoped memory for tpu_custom_call.1']
    #allocation6 [shape = 'u8[1048576]{0}', space=vmem, size = 0x100000, scoped, tag = 'input window, operand 12']
    #allocation7 [shape = 's32[2]{0}', space=sflag, size = 0x8, scoped, tag = 'scoped memory for tpu_custom_call.1']
    #allocation8 [shape = 'u8[1024]{0}', space=vmem, size = 0x400, scoped, tag = 'output window, operand 0, single buffered']
    %23 = vsyncpa [#allocation4], 0
    %s24 = scalar_lea.sflag [#allocation4], 1
    %25 = vsyncpa %s24, 0
    %26 = vsyncpa [#allocation7], 0
    %s27 = scalar_lea.sflag [#allocation7], 1
    %28 = vsyncpa %s27, 0
    %29 = vsyncpa [#allocation5], 0
    loop: start=0, step=1, limit=4
    $region2: #{tpu_custom_call.1} parent=1 // loop_pre_header
      _
    $region3: #{tpu_custom_call.1} parent=1 // loop_header
      %s31 = sphi 0, %s35
      %p32 = scmp.ge.s32.totalorder %s31, 4
      %s39 = sphi 0, %s39
      %s41 = sphi 0, %s39
      %s42 = sphi 0, %s41
      %s56 = sphi 0, %s42
      %s60 = sphi 0, %s60
      %s62 = sphi 0, %s60
      %s63 = sphi 0, %s62
      %s77 = sphi 0, %s63
      %s81 = sphi 0, %s81
      %s83 = sphi 0, %s81
      %s84 = sphi 0, %s83
      %s98 = sphi 0, %s84
      %s102 = sphi 0, %s102
      %s104 = sphi 0, %s102
      %s105 = sphi 0, %s104
      %s119 = sphi 0, %s105
      %s125 = sphi 0, %s127
      %s128 = sphi 0, %s125
      %s129 = sphi 0, %s128
      %s145 = sphi 0, %s129
      %s151 = sphi 0, %s153
      %s154 = sphi 0, %s151
      %s155 = sphi 0, %s154
      %s171 = sphi 0, %s155
      %s177 = sphi 0, %s179
      %s180 = sphi 0, %s177
      %s181 = sphi 0, %s180
      %s197 = sphi 0, %s181
      %s203 = sphi 0, %s205
      %s206 = sphi 0, %s203
      %s207 = sphi 0, %s206
      %s223 = sphi 0, %s207
      %s229 = sphi 0, %s231
      %s232 = sphi 0, %s229
      %s233 = sphi 0, %s232
      %s249 = sphi 0, %s233
      %s255 = sphi 0, %s257
      %s258 = sphi 0, %s255
      %s259 = sphi 0, %s258
      %s275 = sphi 0, %s259
      %s281 = sphi 0, %s283
      %s284 = sphi 0, %s281
      %s285 = sphi 0, %s284
      %s301 = sphi 0, %s285
      %s307 = sphi 0, %s309
      %s310 = sphi 0, %s307
      %s311 = sphi 0, %s310
      %s327 = sphi 0, %s311
      %s333 = sphi 0, %s335
      %s336 = sphi 0, %s333
      %s337 = sphi 0, %s336
      %s353 = sphi 0, %s337
      %s359 = sphi 0, %s361
      %s362 = sphi 0, %s359
      %s363 = sphi 0, %s362
      %s379 = sphi 0, %s363
      %s385 = sphi 0, %s387
      %s388 = sphi 0, %s385
      %s389 = sphi 0, %s388
      %s405 = sphi 0, %s389
      %s411 = sphi 0, %s413
      %s414 = sphi 0, %s411
      %s415 = sphi 0, %s414
      %s431 = sphi 0, %s415
      %s435 = sphi 0, %s435
      %s437 = sphi 0, %s435
      %s438 = sphi 0, %s437
      %s452 = sphi 0, %s438
      %s456 = sphi 0, %s456
      %s458 = sphi 0, %s456
      %s459 = sphi 0, %s458
      %s473 = sphi 0, %s459
      %s477 = sphi 0, %s477
      %s479 = sphi 0, %s477
      %s480 = sphi 0, %s479
      %s494 = sphi 0, %s480
    $region4: #{tpu_custom_call.1} parent=1 // loop_header_branch
      %34 = sbr.rel (%p32) target = $region8
    $region5: #{tpu_custom_call.1} parent=1 // loop_body
      %s36 = ssub.s32 %s31, 1
      %s37 = ssub.s32 %s31, 2
      %s38 = sadd.s32 %s31, 1
      %s40 = sadd.s32 %s39, 1
      %p43 = scmp.eq.s32.totalorder %s31, 1
      %p44 = scmp.ne.s32.totalorder %s39, %s41
      %p45 = scmp.eq.s32.totalorder %s31, 0
      %p46 = por %p44, %p45
      %p47 = scmp.ne.s32.totalorder %s39, %s41
      %p48 = scmp.eq.s32.totalorder %s36, 1
      %p49 = por %p47, %p48
      %p50 = scmp.ne.s32.totalorder %s41, %s42
      %p51 = scmp.eq.s32.totalorder %s36, 0
      %p52 = por %p50, %p51
      %p53 = scmp.ne.s32.totalorder %s41, %s42
      %p54 = scmp.eq.s32.totalorder %s37, 1
      %p55 = por %p53, %p54
      %p57 = scmp.ne.s32.totalorder %s42, %s56
      %p58 = scmp.eq.s32.totalorder %s37, 0
      %p59 = por %p57, %p58
      %s61 = sadd.s32 %s60, 1
      %p64 = scmp.eq.s32.totalorder %s31, 1
      %p65 = scmp.ne.s32.totalorder %s60, %s62
      %p66 = scmp.eq.s32.totalorder %s31, 0
      %p67 = por %p65, %p66
      %p68 = scmp.ne.s32.totalorder %s60, %s62
      %p69 = scmp.eq.s32.totalorder %s36, 1
      %p70 = por %p68, %p69
      %p71 = scmp.ne.s32.totalorder %s62, %s63
      %p72 = scmp.eq.s32.totalorder %s36, 0
      %p73 = por %p71, %p72
      %p74 = scmp.ne.s32.totalorder %s62, %s63
      %p75 = scmp.eq.s32.totalorder %s37, 1
      %p76 = por %p74, %p75
      %p78 = scmp.ne.s32.totalorder %s63, %s77
      %p79 = scmp.eq.s32.totalorder %s37, 0
      %p80 = por %p78, %p79
      %s82 = sadd.s32 %s81, 1
      %p85 = scmp.eq.s32.totalorder %s31, 1
      %p86 = scmp.ne.s32.totalorder %s81, %s83
      %p87 = scmp.eq.s32.totalorder %s31, 0
      %p88 = por %p86, %p87
      %p89 = scmp.ne.s32.totalorder %s81, %s83
      %p90 = scmp.eq.s32.totalorder %s36, 1
      %p91 = por %p89, %p90
      %p92 = scmp.ne.s32.totalorder %s83, %s84
      %p93 = scmp.eq.s32.totalorder %s36, 0
      %p94 = por %p92, %p93
      %p95 = scmp.ne.s32.totalorder %s83, %s84
      %p96 = scmp.eq.s32.totalorder %s37, 1
      %p97 = por %p95, %p96
      %p99 = scmp.ne.s32.totalorder %s84, %s98
      %p100 = scmp.eq.s32.totalorder %s37, 0
      %p101 = por %p99, %p100
      %s103 = sadd.s32 %s102, 1
      %p106 = scmp.eq.s32.totalorder %s31, 1
      %p107 = scmp.ne.s32.totalorder %s102, %s104
      %p108 = scmp.eq.s32.totalorder %s31, 0
      %p109 = por %p107, %p108
      %p110 = scmp.ne.s32.totalorder %s102, %s104
      %p111 = scmp.eq.s32.totalorder %s36, 1
      %p112 = por %p110, %p111
      %p113 = scmp.ne.s32.totalorder %s104, %s105
      %p114 = scmp.eq.s32.totalorder %s36, 0
      %p115 = por %p113, %p114
      %p116 = scmp.ne.s32.totalorder %s104, %s105
      %p117 = scmp.eq.s32.totalorder %s37, 1
      %p118 = por %p116, %p117
      %p120 = scmp.ne.s32.totalorder %s105, %s119
      %p121 = scmp.eq.s32.totalorder %s37, 0
      %p122 = por %p120, %p121
      %s123 = ssub.s32 %s31, %s38
      %p124 = scmp.eq.s32.totalorder %s123, 0
      %s126 = sadd.s32 %s125, 1
      %s127 = scalar_select %p124, %s125, %s126
      %p130 = pneg %p124
      %p131 = scmp.eq.s32.totalorder %s31, 1
      %p132 = por %p130, %p131
      %p133 = scmp.ne.s32.totalorder %s125, %s128
      %p134 = scmp.eq.s32.totalorder %s31, 0
      %p135 = por %p133, %p134
      %p136 = scmp.ne.s32.totalorder %s125, %s128
      %p137 = scmp.eq.s32.totalorder %s36, 1
      %p138 = por %p136, %p137
      %p139 = scmp.ne.s32.totalorder %s128, %s129
      %p140 = scmp.eq.s32.totalorder %s36, 0
      %p141 = por %p139, %p140
      %p142 = scmp.ne.s32.totalorder %s128, %s129
      %p143 = scmp.eq.s32.totalorder %s37, 1
      %p144 = por %p142, %p143
      %p146 = scmp.ne.s32.totalorder %s129, %s145
      %p147 = scmp.eq.s32.totalorder %s37, 0
      %p148 = por %p146, %p147
      %s149 = ssub.s32 %s31, %s38
      %p150 = scmp.eq.s32.totalorder %s149, 0
      %s152 = sadd.s32 %s151, 1
      %s153 = scalar_select %p150, %s151, %s152
      %p156 = pneg %p150
      %p157 = scmp.eq.s32.totalorder %s31, 1
      %p158 = por %p156, %p157
      %p159 = scmp.ne.s32.totalorder %s151, %s154
      %p160 = scmp.eq.s32.totalorder %s31, 0
      %p161 = por %p159, %p160
      %p162 = scmp.ne.s32.totalorder %s151, %s154
      %p163 = scmp.eq.s32.totalorder %s36, 1
      %p164 = por %p162, %p163
      %p165 = scmp.ne.s32.totalorder %s154, %s155
      %p166 = scmp.eq.s32.totalorder %s36, 0
      %p167 = por %p165, %p166
      %p168 = scmp.ne.s32.totalorder %s154, %s155
      %p169 = scmp.eq.s32.totalorder %s37, 1
      %p170 = por %p168, %p169
      %p172 = scmp.ne.s32.totalorder %s155, %s171
      %p173 = scmp.eq.s32.totalorder %s37, 0
      %p174 = por %p172, %p173
      %s175 = ssub.s32 %s31, %s38
      %p176 = scmp.eq.s32.totalorder %s175, 0
      %s178 = sadd.s32 %s177, 1
      %s179 = scalar_select %p176, %s177, %s178
      %p182 = pneg %p176
      %p183 = scmp.eq.s32.totalorder %s31, 1
      %p184 = por %p182, %p183
      %p185 = scmp.ne.s32.totalorder %s177, %s180
      %p186 = scmp.eq.s32.totalorder %s31, 0
      %p187 = por %p185, %p186
      %p188 = scmp.ne.s32.totalorder %s177, %s180
      %p189 = scmp.eq.s32.totalorder %s36, 1
      %p190 = por %p188, %p189
      %p191 = scmp.ne.s32.totalorder %s180, %s181
      %p192 = scmp.eq.s32.totalorder %s36, 0
      %p193 = por %p191, %p192
      %p194 = scmp.ne.s32.totalorder %s180, %s181
      %p195 = scmp.eq.s32.totalorder %s37, 1
      %p196 = por %p194, %p195
      %p198 = scmp.ne.s32.totalorder %s181, %s197
      %p199 = scmp.eq.s32.totalorder %s37, 0
      %p200 = por %p198, %p199
      %s201 = ssub.s32 %s31, %s38
      %p202 = scmp.eq.s32.totalorder %s201, 0
      %s204 = sadd.s32 %s203, 1
      %s205 = scalar_select %p202, %s203, %s204
      %p208 = pneg %p202
      %p209 = scmp.eq.s32.totalorder %s31, 1
      %p210 = por %p208, %p209
      %p211 = scmp.ne.s32.totalorder %s203, %s206
      %p212 = scmp.eq.s32.totalorder %s31, 0
      %p213 = por %p211, %p212
      %p214 = scmp.ne.s32.totalorder %s203, %s206
      %p215 = scmp.eq.s32.totalorder %s36, 1
      %p216 = por %p214, %p215
      %p217 = scmp.ne.s32.totalorder %s206, %s207
      %p218 = scmp.eq.s32.totalorder %s36, 0
      %p219 = por %p217, %p218
      %p220 = scmp.ne.s32.totalorder %s206, %s207
      %p221 = scmp.eq.s32.totalorder %s37, 1
      %p222 = por %p220, %p221
      %p224 = scmp.ne.s32.totalorder %s207, %s223
      %p225 = scmp.eq.s32.totalorder %s37, 0
      %p226 = por %p224, %p225
      %s227 = ssub.s32 %s31, %s38
      %p228 = scmp.eq.s32.totalorder %s227, 0
      %s230 = sadd.s32 %s229, 1
      %s231 = scalar_select %p228, %s229, %s230
      %p234 = pneg %p228
      %p235 = scmp.eq.s32.totalorder %s31, 1
      %p236 = por %p234, %p235
      %p237 = scmp.ne.s32.totalorder %s229, %s232
      %p238 = scmp.eq.s32.totalorder %s31, 0
      %p239 = por %p237, %p238
      %p240 = scmp.ne.s32.totalorder %s229, %s232
      %p241 = scmp.eq.s32.totalorder %s36, 1
      %p242 = por %p240, %p241
      %p243 = scmp.ne.s32.totalorder %s232, %s233
      %p244 = scmp.eq.s32.totalorder %s36, 0
      %p245 = por %p243, %p244
      %p246 = scmp.ne.s32.totalorder %s232, %s233
      %p247 = scmp.eq.s32.totalorder %s37, 1
      %p248 = por %p246, %p247
      %p250 = scmp.ne.s32.totalorder %s233, %s249
      %p251 = scmp.eq.s32.totalorder %s37, 0
      %p252 = por %p250, %p251
      %s253 = ssub.s32 %s31, %s38
      %p254 = scmp.eq.s32.totalorder %s253, 0
      %s256 = sadd.s32 %s255, 1
      %s257 = scalar_select %p254, %s255, %s256
      %p260 = pneg %p254
      %p261 = scmp.eq.s32.totalorder %s31, 1
      %p262 = por %p260, %p261
      %p263 = scmp.ne.s32.totalorder %s255, %s258
      %p264 = scmp.eq.s32.totalorder %s31, 0
      %p265 = por %p263, %p264
      %p266 = scmp.ne.s32.totalorder %s255, %s258
      %p267 = scmp.eq.s32.totalorder %s36, 1
      %p268 = por %p266, %p267
      %p269 = scmp.ne.s32.totalorder %s258, %s259
      %p270 = scmp.eq.s32.totalorder %s36, 0
      %p271 = por %p269, %p270
      %p272 = scmp.ne.s32.totalorder %s258, %s259
      %p273 = scmp.eq.s32.totalorder %s37, 1
      %p274 = por %p272, %p273
      %p276 = scmp.ne.s32.totalorder %s259, %s275
      %p277 = scmp.eq.s32.totalorder %s37, 0
      %p278 = por %p276, %p277
      %s279 = ssub.s32 %s31, %s38
      %p280 = scmp.eq.s32.totalorder %s279, 0
      %s282 = sadd.s32 %s281, 1
      %s283 = scalar_select %p280, %s281, %s282
      %p286 = pneg %p280
      %p287 = scmp.eq.s32.totalorder %s31, 1
      %p288 = por %p286, %p287
      %p289 = scmp.ne.s32.totalorder %s281, %s284
      %p290 = scmp.eq.s32.totalorder %s31, 0
      %p291 = por %p289, %p290
      %p292 = scmp.ne.s32.totalorder %s281, %s284
      %p293 = scmp.eq.s32.totalorder %s36, 1
      %p294 = por %p292, %p293
      %p295 = scmp.ne.s32.totalorder %s284, %s285
      %p296 = scmp.eq.s32.totalorder %s36, 0
      %p297 = por %p295, %p296
      %p298 = scmp.ne.s32.totalorder %s284, %s285
      %p299 = scmp.eq.s32.totalorder %s37, 1
      %p300 = por %p298, %p299
      %p302 = scmp.ne.s32.totalorder %s285, %s301
      %p303 = scmp.eq.s32.totalorder %s37, 0
      %p304 = por %p302, %p303
      %s305 = ssub.s32 %s31, %s38
      %p306 = scmp.eq.s32.totalorder %s305, 0
      %s308 = sadd.s32 %s307, 1
      %s309 = scalar_select %p306, %s307, %s308
      %p312 = pneg %p306
      %p313 = scmp.eq.s32.totalorder %s31, 1
      %p314 = por %p312, %p313
      %p315 = scmp.ne.s32.totalorder %s307, %s310
      %p316 = scmp.eq.s32.totalorder %s31, 0
      %p317 = por %p315, %p316
      %p318 = scmp.ne.s32.totalorder %s307, %s310
      %p319 = scmp.eq.s32.totalorder %s36, 1
      %p320 = por %p318, %p319
      %p321 = scmp.ne.s32.totalorder %s310, %s311
      %p322 = scmp.eq.s32.totalorder %s36, 0
      %p323 = por %p321, %p322
      %p324 = scmp.ne.s32.totalorder %s310, %s311
      %p325 = scmp.eq.s32.totalorder %s37, 1
      %p326 = por %p324, %p325
      %p328 = scmp.ne.s32.totalorder %s311, %s327
      %p329 = scmp.eq.s32.totalorder %s37, 0
      %p330 = por %p328, %p329
      %s331 = ssub.s32 %s31, %s38
      %p332 = scmp.eq.s32.totalorder %s331, 0
      %s334 = sadd.s32 %s333, 1
      %s335 = scalar_select %p332, %s333, %s334
      %p338 = pneg %p332
      %p339 = scmp.eq.s32.totalorder %s31, 1
      %p340 = por %p338, %p339
      %p341 = scmp.ne.s32.totalorder %s333, %s336
      %p342 = scmp.eq.s32.totalorder %s31, 0
      %p343 = por %p341, %p342
      %p344 = scmp.ne.s32.totalorder %s333, %s336
      %p345 = scmp.eq.s32.totalorder %s36, 1
      %p346 = por %p344, %p345
      %p347 = scmp.ne.s32.totalorder %s336, %s337
      %p348 = scmp.eq.s32.totalorder %s36, 0
      %p349 = por %p347, %p348
      %p350 = scmp.ne.s32.totalorder %s336, %s337
      %p351 = scmp.eq.s32.totalorder %s37, 1
      %p352 = por %p350, %p351
      %p354 = scmp.ne.s32.totalorder %s337, %s353
      %p355 = scmp.eq.s32.totalorder %s37, 0
      %p356 = por %p354, %p355
      %s357 = ssub.s32 %s31, %s38
      %p358 = scmp.eq.s32.totalorder %s357, 0
      %s360 = sadd.s32 %s359, 1
      %s361 = scalar_select %p358, %s359, %s360
      %p364 = pneg %p358
      %p365 = scmp.eq.s32.totalorder %s31, 1
      %p366 = por %p364, %p365
      %p367 = scmp.ne.s32.totalorder %s359, %s362
      %p368 = scmp.eq.s32.totalorder %s31, 0
      %p369 = por %p367, %p368
      %p370 = scmp.ne.s32.totalorder %s359, %s362
      %p371 = scmp.eq.s32.totalorder %s36, 1
      %p372 = por %p370, %p371
      %p373 = scmp.ne.s32.totalorder %s362, %s363
      %p374 = scmp.eq.s32.totalorder %s36, 0
      %p375 = por %p373, %p374
      %p376 = scmp.ne.s32.totalorder %s362, %s363
      %p377 = scmp.eq.s32.totalorder %s37, 1
      %p378 = por %p376, %p377
      %p380 = scmp.ne.s32.totalorder %s363, %s379
      %p381 = scmp.eq.s32.totalorder %s37, 0
      %p382 = por %p380, %p381
      %s383 = ssub.s32 %s31, %s38
      %p384 = scmp.eq.s32.totalorder %s383, 0
      %s386 = sadd.s32 %s385, 1
      %s387 = scalar_select %p384, %s385, %s386
      %p390 = pneg %p384
      %p391 = scmp.eq.s32.totalorder %s31, 1
      %p392 = por %p390, %p391
      %p393 = scmp.ne.s32.totalorder %s385, %s388
      %p394 = scmp.eq.s32.totalorder %s31, 0
      %p395 = por %p393, %p394
      %p396 = scmp.ne.s32.totalorder %s385, %s388
      %p397 = scmp.eq.s32.totalorder %s36, 1
      %p398 = por %p396, %p397
      %p399 = scmp.ne.s32.totalorder %s388, %s389
      %p400 = scmp.eq.s32.totalorder %s36, 0
      %p401 = por %p399, %p400
      %p402 = scmp.ne.s32.totalorder %s388, %s389
      %p403 = scmp.eq.s32.totalorder %s37, 1
      %p404 = por %p402, %p403
      %p406 = scmp.ne.s32.totalorder %s389, %s405
      %p407 = scmp.eq.s32.totalorder %s37, 0
      %p408 = por %p406, %p407
      %s409 = ssub.s32 %s31, %s38
      %p410 = scmp.eq.s32.totalorder %s409, 0
      %s412 = sadd.s32 %s411, 1
      %s413 = scalar_select %p410, %s411, %s412
      %p416 = pneg %p410
      %p417 = scmp.eq.s32.totalorder %s31, 1
      %p418 = por %p416, %p417
      %p419 = scmp.ne.s32.totalorder %s411, %s414
      %p420 = scmp.eq.s32.totalorder %s31, 0
      %p421 = por %p419, %p420
      %p422 = scmp.ne.s32.totalorder %s411, %s414
      %p423 = scmp.eq.s32.totalorder %s36, 1
      %p424 = por %p422, %p423
      %p425 = scmp.ne.s32.totalorder %s414, %s415
      %p426 = scmp.eq.s32.totalorder %s36, 0
      %p427 = por %p425, %p426
      %p428 = scmp.ne.s32.totalorder %s414, %s415
      %p429 = scmp.eq.s32.totalorder %s37, 1
      %p430 = por %p428, %p429
      %p432 = scmp.ne.s32.totalorder %s415, %s431
      %p433 = scmp.eq.s32.totalorder %s37, 0
      %p434 = por %p432, %p433
      %s436 = sadd.s32 %s435, 1
      %p439 = scmp.eq.s32.totalorder %s31, 1
      %p440 = scmp.ne.s32.totalorder %s435, %s437
      %p441 = scmp.eq.s32.totalorder %s31, 0
      %p442 = por %p440, %p441
      %p443 = scmp.ne.s32.totalorder %s435, %s437
      %p444 = scmp.eq.s32.totalorder %s36, 1
      %p445 = por %p443, %p444
      %p446 = scmp.ne.s32.totalorder %s437, %s438
      %p447 = scmp.eq.s32.totalorder %s36, 0
      %p448 = por %p446, %p447
      %p449 = scmp.ne.s32.totalorder %s437, %s438
      %p450 = scmp.eq.s32.totalorder %s37, 1
      %p451 = por %p449, %p450
      %p453 = scmp.ne.s32.totalorder %s438, %s452
      %p454 = scmp.eq.s32.totalorder %s37, 0
      %p455 = por %p453, %p454
      %s457 = sadd.s32 %s456, 1
      %p460 = scmp.eq.s32.totalorder %s31, 1
      %p461 = scmp.ne.s32.totalorder %s456, %s458
      %p462 = scmp.eq.s32.totalorder %s31, 0
      %p463 = por %p461, %p462
      %p464 = scmp.ne.s32.totalorder %s456, %s458
      %p465 = scmp.eq.s32.totalorder %s36, 1
      %p466 = por %p464, %p465
      %p467 = scmp.ne.s32.totalorder %s458, %s459
      %p468 = scmp.eq.s32.totalorder %s36, 0
      %p469 = por %p467, %p468
      %p470 = scmp.ne.s32.totalorder %s458, %s459
      %p471 = scmp.eq.s32.totalorder %s37, 1
      %p472 = por %p470, %p471
      %p474 = scmp.ne.s32.totalorder %s459, %s473
      %p475 = scmp.eq.s32.totalorder %s37, 0
      %p476 = por %p474, %p475
      %s478 = sadd.s32 %s477, 1
      %p481 = scmp.eq.s32.totalorder %s31, 1
      %p482 = scmp.ne.s32.totalorder %s477, %s479
      %p483 = scmp.eq.s32.totalorder %s31, 0
      %p484 = por %p482, %p483
      %p485 = scmp.ne.s32.totalorder %s477, %s479
      %p486 = scmp.eq.s32.totalorder %s36, 1
      %p487 = por %p485, %p486
      %p488 = scmp.ne.s32.totalorder %s479, %s480
      %p489 = scmp.eq.s32.totalorder %s36, 0
      %p490 = por %p488, %p489
      %p491 = scmp.ne.s32.totalorder %s479, %s480
      %p492 = scmp.eq.s32.totalorder %s37, 1
      %p493 = por %p491, %p492
      %p495 = scmp.ne.s32.totalorder %s480, %s494
      %p496 = scmp.eq.s32.totalorder %s37, 0
      %p497 = por %p495, %p496
      %p498 = scmp.le.s32.totalorder 1, %s31
      %p499 = scmp.lt.s32.totalorder %s31, 3
      %p500 = pnand %p498, %p499
      %p501 = pneg %p500
      // Predicated region
      $region9: #{tpu_custom_call.1} parent=5 // pred_check
        _
      $region10: #{tpu_custom_call.1} parent=5 // pred_check_branch
        %503 = sbr.rel (%p500) target = $region12
      $region11: #{tpu_custom_call.1} parent=5 // pred_region
        %s504 = ssub.s32 %s31, 1
        // Predicated region
        $region13: #{tpu_custom_call.1} parent=11 // pred_check
          %p505 = pneg %p52
        $region14: #{tpu_custom_call.1} parent=11 // pred_check_branch
          %507 = sbr.rel (%p505) target = $region16
        $region15: #{tpu_custom_call.1} parent=11 // pred_region
          _
        $region16: #{tpu_custom_call.1} parent=11 // pred_fallthru
          _
        // Predicated region
        $region17: #{tpu_custom_call.1} parent=11 // pred_check
          %p508 = pneg %p73
        $region18: #{tpu_custom_call.1} parent=11 // pred_check_branch
          %510 = sbr.rel (%p508) target = $region20
        $region19: #{tpu_custom_call.1} parent=11 // pred_region
          _
        $region20: #{tpu_custom_call.1} parent=11 // pred_fallthru
          _
        // Predicated region
        $region21: #{tpu_custom_call.1} parent=11 // pred_check
          %p511 = pneg %p94
        $region22: #{tpu_custom_call.1} parent=11 // pred_check_branch
          %513 = sbr.rel (%p511) target = $region24
        $region23: #{tpu_custom_call.1} parent=11 // pred_region
          _
        $region24: #{tpu_custom_call.1} parent=11 // pred_fallthru
          _
        // Predicated region
        $region25: #{tpu_custom_call.1} parent=11 // pred_check
          %p514 = pneg %p115
        $region26: #{tpu_custom_call.1} parent=11 // pred_check_branch
          %516 = sbr.rel (%p514) target = $region28
        $region27: #{tpu_custom_call.1} parent=11 // pred_region
          _
        $region28: #{tpu_custom_call.1} parent=11 // pred_fallthru
          _
        // Predicated region
        $region29: #{tpu_custom_call.1} parent=11 // pred_check
          %p517 = pneg %p448
        $region30: #{tpu_custom_call.1} parent=11 // pred_check_branch
          %519 = sbr.rel (%p517) target = $region32
        $region31: #{tpu_custom_call.1} parent=11 // pred_region
          _
        $region32: #{tpu_custom_call.1} parent=11 // pred_fallthru
          _
        // Predicated region
        $region33: #{tpu_custom_call.1} parent=11 // pred_check
          %p520 = pneg %p469
        $region34: #{tpu_custom_call.1} parent=11 // pred_check_branch
          %522 = sbr.rel (%p520) target = $region36
        $region35: #{tpu_custom_call.1} parent=11 // pred_region
          _
        $region36: #{tpu_custom_call.1} parent=11 // pred_fallthru
          _
      $region12: #{tpu_custom_call.1} parent=5 // pred_fallthru
        _
      %p523 = scmp.lt.s32.totalorder %s31, 2
      // Predicated region
      $region37: #{tpu_custom_call.1} parent=5 // pred_check
        %p524 = pneg %p523
      $region38: #{tpu_custom_call.1} parent=5 // pred_check_branch
        %526 = sbr.rel (%p524) target = $region40
      $region39: #{tpu_custom_call.1} parent=5 // pred_region
        // Predicated region
        $region41: #{tpu_custom_call.1} parent=39 // pred_check
          %p527 = pneg %p135
        $region42: #{tpu_custom_call.1} parent=39 // pred_check_branch
          %529 = sbr.rel (%p527) target = $region44
        $region43: #{tpu_custom_call.1} parent=39 // pred_region
          %p530 = scmp.lt.s32.totalorder %s31, 1
          %s531 = scalar_select %p530, %s31, 1
          %s532 = smul.addr %s531, 48
          %s533 = smul.addr %s532, 4
          %s534 = scalar_lea.vmem %s4, %s533
        $region44: #{tpu_custom_call.1} parent=39 // pred_fallthru
          _
        // Predicated region
        $region45: #{tpu_custom_call.1} parent=39 // pred_check
          %p535 = pneg %p161
        $region46: #{tpu_custom_call.1} parent=39 // pred_check_branch
          %537 = sbr.rel (%p535) target = $region48
        $region47: #{tpu_custom_call.1} parent=39 // pred_region
          %p538 = scmp.lt.s32.totalorder %s31, 1
          %s539 = scalar_select %p538, %s31, 1
          %s540 = smul.addr %s539, 3
          %s541 = scalar_lea.vmem %s5, %s540
        $region48: #{tpu_custom_call.1} parent=39 // pred_fallthru
          _
        // Predicated region
        $region49: #{tpu_custom_call.1} parent=39 // pred_check
          %p542 = pneg %p187
        $region50: #{tpu_custom_call.1} parent=39 // pred_check_branch
          %544 = sbr.rel (%p542) target = $region52
        $region51: #{tpu_custom_call.1} parent=39 // pred_region
          %p545 = scmp.lt.s32.totalorder %s31, 1
          %s546 = scalar_select %p545, %s31, 1
          %s547 = smul.addr %s546, 16
          %s548 = smul.addr %s547, 4
          %s549 = scalar_lea.vmem %s6, %s548
        $region52: #{tpu_custom_call.1} parent=39 // pred_fallthru
          _
        // Predicated region
        $region53: #{tpu_custom_call.1} parent=39 // pred_check
          %p550 = pneg %p213
        $region54: #{tpu_custom_call.1} parent=39 // pred_check_branch
          %552 = sbr.rel (%p550) target = $region56
        $region55: #{tpu_custom_call.1} parent=39 // pred_region
          %p553 = scmp.lt.s32.totalorder %s31, 1
          %s554 = scalar_select %p553, %s31, 1
          %s555 = scalar_lea.vmem %s7, %s554
        $region56: #{tpu_custom_call.1} parent=39 // pred_fallthru
          _
        // Predicated region
        $region57: #{tpu_custom_call.1} parent=39 // pred_check
          %p556 = pneg %p239
        $region58: #{tpu_custom_call.1} parent=39 // pred_check_branch
          %558 = sbr.rel (%p556) target = $region60
        $region59: #{tpu_custom_call.1} parent=39 // pred_region
          %p559 = scmp.lt.s32.totalorder %s31, 1
          %s560 = scalar_select %p559, %s31, 1
          %s561 = scalar_lea.vmem %s8, %s560
        $region60: #{tpu_custom_call.1} parent=39 // pred_fallthru
          _
        // Predicated region
        $region61: #{tpu_custom_call.1} parent=39 // pred_check
          %p562 = pneg %p265
        $region62: #{tpu_custom_call.1} parent=39 // pred_check_branch
          %564 = sbr.rel (%p562) target = $region64
        $region63: #{tpu_custom_call.1} parent=39 // pred_region
          %p565 = scmp.lt.s32.totalorder %s31, 1
          %s566 = scalar_select %p565, %s31, 1
          %s567 = scalar_lea.vmem %s9, %s566
        $region64: #{tpu_custom_call.1} parent=39 // pred_fallthru
          _
        // Predicated region
        $region65: #{tpu_custom_call.1} parent=39 // pred_check
          %p568 = pneg %p291
        $region66: #{tpu_custom_call.1} parent=39 // pred_check_branch
          %570 = sbr.rel (%p568) target = $region68
        $region67: #{tpu_custom_call.1} parent=39 // pred_region
          %s571 = sand.u32 %s281, 1
          %s572 = scalar_lea.sflag [#allocation4], %s571
          %s573 = sand.u32 %s281, 1
          %s574 = smul.addr %s573, 1024
          %s575 = scalar_lea.vmem [#allocation3], %s574
          %s577 = ssub.s32 16384, 16384
          %578 = vsyncadd %s572, %s577
          %s579 = smul.addr %s31, 256
          %s580 = smul.addr %s579, 64
          %s581 = scalar_lea.hbm %s10, %s580
          %s582 = sshll.u32 %s575, 4
          %s583 = int_to_ptr.vmem [resolvable:$true] %s582
          %588 = dma.hbm_to_vmem [thread:$0]  %s581, 16384, %s583, %s572, 1024, 1024, 64
        $region68: #{tpu_custom_call.1} parent=39 // pred_fallthru
          _
        // Predicated region
        $region69: #{tpu_custom_call.1} parent=39 // pred_check
          %p589 = pneg %p317
        $region70: #{tpu_custom_call.1} parent=39 // pred_check_branch
          %591 = sbr.rel (%p589) target = $region72
        $region71: #{tpu_custom_call.1} parent=39 // pred_region
          %p592 = scmp.lt.s32.totalorder %s31, 1
          %s593 = scalar_select %p592, %s31, 1
          %s594 = smul.addr %s593, 16
          %s595 = scalar_lea.vmem %s11, %s594
        $region72: #{tpu_custom_call.1} parent=39 // pred_fallthru
          _
        // Predicated region
        $region73: #{tpu_custom_call.1} parent=39 // pred_check
          %p596 = pneg %p343
        $region74: #{tpu_custom_call.1} parent=39 // pred_check_branch
          %598 = sbr.rel (%p596) target = $region76
        $region75: #{tpu_custom_call.1} parent=39 // pred_region
          %s599 = sand.u32 %s333, 1
          %s600 = scalar_lea.sflag [#allocation7], %s599
          %s601 = sand.u32 %s333, 1
          %s602 = smul.addr %s601, 1024
          %s603 = scalar_lea.vmem [#allocation6], %s602
          %s605 = ssub.s32 16384, 16384
          %606 = vsyncadd %s600, %s605
          %s607 = smul.addr %s31, 256
          %s608 = smul.addr %s607, 64
          %s609 = scalar_lea.hbm %s12, %s608
          %s610 = sshll.u32 %s603, 4
          %s611 = int_to_ptr.vmem [resolvable:$true] %s610
          %616 = dma.hbm_to_vmem [thread:$0]  %s609, 16384, %s611, %s600, 64, 64, 4
        $region76: #{tpu_custom_call.1} parent=39 // pred_fallthru
          _
        // Predicated region
        $region77: #{tpu_custom_call.1} parent=39 // pred_check
          %p617 = pneg %p369
        $region78: #{tpu_custom_call.1} parent=39 // pred_check_branch
          %619 = sbr.rel (%p617) target = $region80
        $region79: #{tpu_custom_call.1} parent=39 // pred_region
          %p620 = scmp.lt.s32.totalorder %s31, 1
          %s621 = scalar_select %p620, %s31, 1
          %s622 = scalar_lea.vmem %s13, %s621
        $region80: #{tpu_custom_call.1} parent=39 // pred_fallthru
          _
        // Predicated region
        $region81: #{tpu_custom_call.1} parent=39 // pred_check
          %p623 = pneg %p395
        $region82: #{tpu_custom_call.1} parent=39 // pred_check_branch
          %625 = sbr.rel (%p623) target = $region84
        $region83: #{tpu_custom_call.1} parent=39 // pred_region
          %p626 = scmp.lt.s32.totalorder %s31, 1
          %s627 = scalar_select %p626, %s31, 1
          %s628 = scalar_lea.vmem %s14, %s627
        $region84: #{tpu_custom_call.1} parent=39 // pred_fallthru
          _
        // Predicated region
        $region85: #{tpu_custom_call.1} parent=39 // pred_check
          %p629 = pneg %p421
        $region86: #{tpu_custom_call.1} parent=39 // pred_check_branch
          %631 = sbr.rel (%p629) target = $region88
        $region87: #{tpu_custom_call.1} parent=39 // pred_region
          %p632 = scmp.lt.s32.totalorder %s31, 1
          %s633 = scalar_select %p632, %s31, 1
          %s634 = scalar_lea.vmem %s15, %s633
        $region88: #{tpu_custom_call.1} parent=39 // pred_fallthru
          _
      $region40: #{tpu_custom_call.1} parent=5 // pred_fallthru
        _
      %p635 = scmp.le.s32.totalorder 1, %s31
      %p636 = scmp.lt.s32.totalorder %s31, 3
      %p637 = pnand %p635, %p636
      %p638 = pneg %p637
      // Predicated region
      $region89: #{tpu_custom_call.1} parent=5 // pred_check
        _
      $region90: #{tpu_custom_call.1} parent=5 // pred_check_branch
        %640 = sbr.rel (%p637) target = $region92
      $region91: #{tpu_custom_call.1} parent=5 // pred_region
        %s641 = ssub.s32 %s31, 1
        %s642 = sand.u32 %s284, 1
        %s643 = scalar_lea.sflag [#allocation4], %s642
        %s644 = sand.u32 %s284, 1
        %s645 = smul.addr %s644, 1024
        %s646 = scalar_lea.vmem [#allocation3], %s645
        // Predicated region
        $region93: #{tpu_custom_call.1} parent=91 // pred_check
          %p647 = pneg %p297
        $region94: #{tpu_custom_call.1} parent=91 // pred_check_branch
          %649 = sbr.rel (%p647) target = $region96
        $region95: #{tpu_custom_call.1} parent=91 // pred_region
          %650 = dma.done %s643, 16384
        $region96: #{tpu_custom_call.1} parent=91 // pred_fallthru
          _
        %s651 = sand.u32 %s336, 1
        %s652 = scalar_lea.sflag [#allocation7], %s651
        %s653 = sand.u32 %s336, 1
        %s654 = smul.addr %s653, 1024
        %s655 = scalar_lea.vmem [#allocation6], %s654
        // Predicated region
        $region97: #{tpu_custom_call.1} parent=91 // pred_check
          %p656 = pneg %p349
        $region98: #{tpu_custom_call.1} parent=91 // pred_check_branch
          %658 = sbr.rel (%p656) target = $region100
        $region99: #{tpu_custom_call.1} parent=91 // pred_region
          %659 = dma.done %s652, 16384
        $region100: #{tpu_custom_call.1} parent=91 // pred_fallthru
          _
        %p660 = pneg %p52
        %p661 = pneg %p49
        %p662 = pneg %p73
        %p663 = pneg %p70
        %p664 = pneg %p94
        %p665 = pneg %p91
        %p666 = pneg %p115
        %p667 = pneg %p112
        %p668 = scmp.lt.s32.totalorder %s36, 1
        %s669 = scalar_select %p668, %s36, 1
        %s670 = smul.addr %s669, 48
        %s671 = smul.addr %s670, 4
        %s672 = scalar_lea.vmem %s4, %s671
        %p673 = pneg %p141
        %p674 = pneg %p138
        %p675 = scmp.lt.s32.totalorder %s36, 1
        %s676 = scalar_select %p675, %s36, 1
        %s677 = smul.addr %s676, 3
        %s678 = scalar_lea.vmem %s5, %s677
        %p679 = pneg %p167
        %p680 = pneg %p164
        %p681 = scmp.lt.s32.totalorder %s36, 1
        %s682 = scalar_select %p681, %s36, 1
        %s683 = smul.addr %s682, 16
        %s684 = smul.addr %s683, 4
        %s685 = scalar_lea.vmem %s6, %s684
        %p686 = pneg %p193
        %p687 = pneg %p190
        %p688 = scmp.lt.s32.totalorder %s36, 1
        %s689 = scalar_select %p688, %s36, 1
        %s690 = scalar_lea.vmem %s7, %s689
        %p691 = pneg %p219
        %p692 = pneg %p216
        %p693 = scmp.lt.s32.totalorder %s36, 1
        %s694 = scalar_select %p693, %s36, 1
        %s695 = scalar_lea.vmem %s8, %s694
        %p696 = pneg %p245
        %p697 = pneg %p242
        %p698 = scmp.lt.s32.totalorder %s36, 1
        %s699 = scalar_select %p698, %s36, 1
        %s700 = scalar_lea.vmem %s9, %s699
        %p701 = pneg %p271
        %p702 = pneg %p268
        %s703 = sand.u32 %s284, 1
        %s704 = scalar_lea.sflag [#allocation4], %s703
        %s705 = sand.u32 %s284, 1
        %s706 = smul.addr %s705, 1024
        %s707 = scalar_lea.vmem [#allocation3], %s706
        %p708 = pneg %p297
        %p709 = pneg %p294
        %p710 = scmp.lt.s32.totalorder %s36, 1
        %s711 = scalar_select %p710, %s36, 1
        %s712 = smul.addr %s711, 16
        %s713 = scalar_lea.vmem %s11, %s712
        %p714 = pneg %p323
        %p715 = pneg %p320
        %s716 = sand.u32 %s336, 1
        %s717 = scalar_lea.sflag [#allocation7], %s716
        %s718 = sand.u32 %s336, 1
        %s719 = smul.addr %s718, 1024
        %s720 = scalar_lea.vmem [#allocation6], %s719
        %p721 = pneg %p349
        %p722 = pneg %p346
        %p723 = scmp.lt.s32.totalorder %s36, 1
        %s724 = scalar_select %p723, %s36, 1
        %s725 = scalar_lea.vmem %s13, %s724
        %p726 = pneg %p375
        %p727 = pneg %p372
        %p728 = scmp.lt.s32.totalorder %s36, 1
        %s729 = scalar_select %p728, %s36, 1
        %s730 = scalar_lea.vmem %s14, %s729
        %p731 = pneg %p401
        %p732 = pneg %p398
        %p733 = scmp.lt.s32.totalorder %s36, 1
        %s734 = scalar_select %p733, %s36, 1
        %s735 = scalar_lea.vmem %s15, %s734
        %p736 = pneg %p427
        %p737 = pneg %p424
        %p738 = pneg %p448
        %p739 = pneg %p445
        %p740 = pneg %p469
        %p741 = pneg %p466
        %p742 = pneg %p490
        %p743 = pneg %p487
        %p744 = scmp.lt.s32.totalorder %s36, 1
        %s745 = scalar_select %p744, %s36, 1
        %s746 = smul.addr %s745, 48
        %s747 = smul.addr %s746, 4
        %s748 = scalar_lea.vmem %s4, %s747
        %p749 = scmp.lt.s32.totalorder %s36, 1
        %s750 = scalar_select %p749, %s36, 1
        %s751 = smul.addr %s750, 3
        %s752 = scalar_lea.vmem %s5, %s751
        %p753 = scmp.lt.s32.totalorder %s36, 1
        %s754 = scalar_select %p753, %s36, 1
        %s755 = smul.addr %s754, 16
        %s756 = smul.addr %s755, 4
        %s757 = scalar_lea.vmem %s6, %s756
        %p758 = scmp.lt.s32.totalorder %s36, 1
        %s759 = scalar_select %p758, %s36, 1
        %s760 = scalar_lea.vmem %s7, %s759
        %p761 = scmp.lt.s32.totalorder %s36, 1
        %s762 = scalar_select %p761, %s36, 1
        %s763 = scalar_lea.vmem %s8, %s762
        %p764 = scmp.lt.s32.totalorder %s36, 1
        %s765 = scalar_select %p764, %s36, 1
        %s766 = scalar_lea.vmem %s9, %s765
        %p767 = scmp.lt.s32.totalorder %s36, 1
        %s768 = scalar_select %p767, %s36, 1
        %s769 = smul.addr %s768, 16
        %s770 = scalar_lea.vmem %s11, %s769
        %p771 = scmp.lt.s32.totalorder %s36, 1
        %s772 = scalar_select %p771, %s36, 1
        %s773 = scalar_lea.vmem %s13, %s772
        %p774 = scmp.lt.s32.totalorder %s36, 1
        %s775 = scalar_select %p774, %s36, 1
        %s776 = scalar_lea.vmem %s14, %s775
        %p777 = scmp.lt.s32.totalorder %s36, 1
        %s778 = scalar_select %p777, %s36, 1
        %s779 = scalar_lea.vmem %s15, %s778
        %p781 = scmp.eq.s32.totalorder %s36, 0
        // Predicated region
        $region101: #{tpu_custom_call.1} parent=91 // pred_check
          %p782 = pneg %p781
        $region102: #{tpu_custom_call.1} parent=91 // pred_check_branch
          %784 = sbr.rel (%p782) target = $region104
        $region103: #{tpu_custom_call.1} parent=91 // pred_region
          %v785 = vld [vmem:[%s0] sm:$0xff]
          %v786 = vld [vmem:[%s0 + $0x8] sm:$0xff]
          %v787 = vld [vmem:[%s0 + $0x10] sm:$0xf]
          %v788 = vld [vmem:[%s2] sm:$0xff]
          %v789 = vld [vmem:[%s2 + $0x8] sm:$0xff]
          %v790 = vld [vmem:[%s3] sm:$0x1]
          %v792 = vlaneseq
          %v793 = vshrl.u32 %v792, 7
          %v794 = vsub.s32 0, %v793
          %v795 = vrot.slane %v790, %v794
          %vm797 = vcmask 130048
          %v799 = vsel %vm797, %v785, 0
          %v802 = vsel %vm797, %v786, 0
          %v805 = vsel %vm797, %v787, 0
          %807 = vmatprep.subr.mxu0 0.0
          %808 = vmatpush1.msra.mxu0 %v788
          %809 = vmatprep.subr.mxu0 0.0
          %810 = vmatpush1.msra.mxu0 %v789
          %811 = vmatprep.subr.mxu0 0.0
          %812 = vmatpush1.msra.mxu0 0.0
          %813 = vmatprep.subr.mxu0 0.0
          %814 = vmatpush1.msra.mxu0 0.0
          %815 = vmatprep.subr.mxu0 0.0
          %816 = vmatpush1.msra.mxu0 0.0
          %817 = vmatprep.subr.mxu0 0.0
          %818 = vmatpush1.msra.mxu0 0.0
          %819 = vmatprep.subr.mxu0 0.0
          %820 = vmatpush1.msra.mxu0 0.0
          %821 = vmatprep.subr.mxu0 0.0
          %822 = vmatpush1.msra.mxu0 0.0
          %823 = vmatprep.subr.mxu0 0.0
          %824 = vmatpush1.msra.mxu0 0.0
          %825 = vmatprep.subr.mxu0 0.0
          %826 = vmatpush1.msra.mxu0 0.0
          %827 = vmatprep.subr.mxu0 0.0
          %828 = vmatpush1.msra.mxu0 0.0
          %829 = vmatprep.subr.mxu0 0.0
          %830 = vmatpush1.msra.mxu0 0.0
          %831 = vmatprep.subr.mxu0 0.0
          %832 = vmatpush1.msra.mxu0 0.0
          %833 = vmatprep.subr.mxu0 0.0
          %834 = vmatpush1.msra.mxu0 0.0
          %835 = vmatprep.subr.mxu0 0.0
          %836 = vmatpush1.msra.mxu0 0.0
          %837 = vmatprep.subr.mxu0 0.0
          %838 = vmatpush1.msra.mxu0 0.0
          %839 = vmatprep.subr.mxu0 0.0
          %840 = vmatpush1.msra.mxu0 0.0
          %841 = vmatprep.subr.mxu0 0.0
          %842 = vmatpush1.msra.mxu0 0.0
          %843 = vmatprep.subr.mxu0 0.0
          %844 = vmatpush1.msra.mxu0 0.0
          %845 = vmatprep.subr.mxu0 0.0
          %846 = vmatpush1.msra.mxu0 0.0
          %847 = vmatprep.subr.mxu0 0.0
          %848 = vmatpush1.msra.mxu0 0.0
          %849 = vmatprep.subr.mxu0 0.0
          %850 = vmatpush1.msra.mxu0 0.0
          %851 = vmatprep.subr.mxu0 0.0
          %852 = vmatpush1.msra.mxu0 0.0
          %853 = vmatprep.subr.mxu0 0.0
          %854 = vmatpush1.msra.mxu0 0.0
          %855 = vmatprep.subr.mxu0 0.0
          %856 = vmatpush1.msra.mxu0 0.0
          %857 = vmatprep.subr.mxu0 0.0
          %858 = vmatpush1.msra.mxu0 0.0
          %859 = vmatprep.subr.mxu0 0.0
          %860 = vmatpush1.msra.mxu0 0.0
          %861 = vmatprep.subr.mxu0 0.0
          %862 = vmatpush1.msra.mxu0 0.0
          %863 = vmatprep.subr.mxu0 0.0
          %864 = vmatpush1.msra.mxu0 0.0
          %865 = vmatprep.subr.mxu0 0.0
          %866 = vmatpush1.msra.mxu0 0.0
          %867 = vmatprep.subr.mxu0 0.0
          %868 = vmatpush1.msra.mxu0 0.0
          %869 = vmatprep.subr.mxu0 0.0
          %870 = vmatpush1.msra.mxu0 0.0
          %871 = vmatprep.mubr.f32.mxu0 0.0
          %872 = vmatmul.mubr.f32.gmra.mrb[0].mxu0 %v799
          %v873 = vpop.f32.mrb[0].mxu0
          %v874 = vadd.f32 %v795, %v873
          %v875 = vpop.f32.mrb[0].mxu0
          %876 = vmatprep.mubr.f32.mxu0 0.0
          %877 = vmatmul.mubr.f32.gmra.mrb[0].mxu0 %v802
          %v878 = vpop.f32.mrb[0].mxu0
          %v879 = vadd.f32 %v795, %v878
          %v880 = vpop.f32.mrb[0].mxu0
          %881 = vmatprep.mubr.f32.mxu0 0.0
          %882 = vmatmul.mubr.f32.gmra.mrb[0].mxu0 %v805
          %v883 = vpop.f32.mrb[0].mxu0
          %v884 = vadd.f32 %v795, %v883
          %v885 = vpop.f32.mrb[0].mxu0
          %886 = vdwg.mxu0
          %v887 = vmul.f32 %v874, 11.313708
          %v888 = vmul.f32 %v879, 11.313708
          %v889 = vmul.f32 %v884, 11.313708
          %v890 = vld [vmem:[%s1] sm:$0xff]
          %v891 = vld [vmem:[%s1 + $0x8] sm:$0xff]
          %v892 = vld [vmem:[%s1 + $0x10] sm:$0xf]
          %v893 = vadd.f32 %v887, %v890
          %v894 = vadd.f32 %v888, %v891
          %v895 = vadd.f32 %v889, %v892
          %896 = vst [vmem:[#allocation2] sm:$0xff] %v893
          %897 = vst [vmem:[#allocation2 + $0x8] sm:$0xff] %v894
          %898 = vst [vmem:[#allocation2 + $0x10] sm:$0xf] %v895
        $region104: #{tpu_custom_call.1} parent=91 // pred_fallthru
          _
        %v899 = vld [vmem:[#allocation2] sm:$0xff]
        %v900 = vld [vmem:[#allocation2 + $0x8] sm:$0xff]
        %v901 = vld [vmem:[#allocation2 + $0x10] sm:$0xf]
        %v902 = vpack.c.bf16 %v900, %v899
        %v903 = vpack.c.bf16 %v901, %v901
        %v904 = vld [vmem:[%s748] sm:$0xff]
        %v905 = vld [vmem:[%s748 + $0x8] sm:$0xf]
        %v906 = vld [vmem:[%s748 + $0xc] sm:$0xff]
        %v907 = vld [vmem:[%s748 + $0x14] sm:$0xf]
        %v908 = vld [vmem:[%s748 + $0x18] sm:$0xff]
        %v909 = vld [vmem:[%s748 + $0x20] sm:$0xf]
        %v910 = vld [vmem:[%s748 + $0x24] sm:$0xff]
        %v911 = vld [vmem:[%s748 + $0x2c] sm:$0xf]
        %v912 = vld [vmem:[%s748 + $0x30] sm:$0xff]
        %v913 = vld [vmem:[%s748 + $0x38] sm:$0xf]
        %v914 = vld [vmem:[%s748 + $0x3c] sm:$0xff]
        %v915 = vld [vmem:[%s748 + $0x44] sm:$0xf]
        %v916 = vld [vmem:[%s748 + $0x48] sm:$0xff]
        %v917 = vld [vmem:[%s748 + $0x50] sm:$0xf]
        %v918 = vld [vmem:[%s748 + $0x54] sm:$0xff]
        %v919 = vld [vmem:[%s748 + $0x5c] sm:$0xf]
        %v920 = vld [vmem:[%s748 + $0x60] sm:$0xff]
        %v921 = vld [vmem:[%s748 + $0x68] sm:$0xf]
        %v922 = vld [vmem:[%s748 + $0x6c] sm:$0xff]
        %v923 = vld [vmem:[%s748 + $0x74] sm:$0xf]
        %v924 = vld [vmem:[%s748 + $0x78] sm:$0xff]
        %v925 = vld [vmem:[%s748 + $0x80] sm:$0xf]
        %v926 = vld [vmem:[%s748 + $0x84] sm:$0xff]
        %v927 = vld [vmem:[%s748 + $0x8c] sm:$0xf]
        %v928 = vld [vmem:[%s748 + $0x90] sm:$0xff]
        %v929 = vld [vmem:[%s748 + $0x98] sm:$0xf]
        %v930 = vld [vmem:[%s748 + $0x9c] sm:$0xff]
        %v931 = vld [vmem:[%s748 + $0xa4] sm:$0xf]
        %v932 = vld [vmem:[%s748 + $0xa8] sm:$0xff]
        %v933 = vld [vmem:[%s748 + $0xb0] sm:$0xf]
        %v934 = vld [vmem:[%s748 + $0xb4] sm:$0xff]
        %v935 = vld [vmem:[%s748 + $0xbc] sm:$0xf]
        %v936 = vld [vmem:[%s752] sm:$0x7]
        %v938 = vlaneseq
        %v939 = vshrl.u32 %v938, 7
        %v940 = vsub.s32 0, %v939
        %v941 = vrot.slane %v936, %v940
        %v942 = vlaneseq
        %v943 = vshrl.u32 %v942, 7
        %v944 = vsub.s32 1, %v943
        %v945 = vrot.slane %v936, %v944
        %v946 = vlaneseq
        %v947 = vshrl.u32 %v946, 7
        %v948 = vsub.s32 2, %v947
        %v949 = vrot.slane %v936, %v948
        %v985 = vunpack.c.l.b16 %v904
        %v986 = vunpack.c.h.b16 %v904
        %v987 = vunpack.c.l.b16 %v905
        %v988 = vunpack.c.l.b16 %v906
        %v989 = vunpack.c.h.b16 %v906
        %v990 = vunpack.c.l.b16 %v907
        %v991 = vunpack.c.l.b16 %v908
        %v992 = vunpack.c.h.b16 %v908
        %v993 = vunpack.c.l.b16 %v909
        %v994 = vunpack.c.l.b16 %v910
        %v995 = vunpack.c.h.b16 %v910
        %v996 = vunpack.c.l.b16 %v911
        %v997 = vunpack.c.l.b16 %v912
        %v998 = vunpack.c.h.b16 %v912
        %v999 = vunpack.c.l.b16 %v913
        %v1000 = vunpack.c.l.b16 %v914
        %v1001 = vunpack.c.h.b16 %v914
        %v1002 = vunpack.c.l.b16 %v915
        %v1003 = vunpack.c.l.b16 %v916
        %v1004 = vunpack.c.h.b16 %v916
        %v1005 = vunpack.c.l.b16 %v917
        %v1006 = vunpack.c.l.b16 %v918
        %v1007 = vunpack.c.h.b16 %v918
        %v1008 = vunpack.c.l.b16 %v919
        %v1009 = vunpack.c.l.b16 %v920
        %v1010 = vunpack.c.h.b16 %v920
        %v1011 = vunpack.c.l.b16 %v921
        %v1012 = vunpack.c.l.b16 %v922
        %v1013 = vunpack.c.h.b16 %v922
        %v1014 = vunpack.c.l.b16 %v923
        %v1015 = vunpack.c.l.b16 %v924
        %v1016 = vunpack.c.h.b16 %v924
        %v1017 = vunpack.c.l.b16 %v925
        %v1018 = vunpack.c.l.b16 %v926
        %v1019 = vunpack.c.h.b16 %v926
        %v1020 = vunpack.c.l.b16 %v927
        %v1021 = vunpack.c.l.b16 %v928
        %v1022 = vunpack.c.h.b16 %v928
        %v1023 = vunpack.c.l.b16 %v929
        %v1024 = vunpack.c.l.b16 %v930
        %v1025 = vunpack.c.h.b16 %v930
        %v1026 = vunpack.c.l.b16 %v931
        %v1027 = vunpack.c.l.b16 %v932
        %v1028 = vunpack.c.h.b16 %v932
        %v1029 = vunpack.c.l.b16 %v933
        %v1030 = vunpack.c.l.b16 %v934
        %v1031 = vunpack.c.h.b16 %v934
        %v1032 = vunpack.c.l.b16 %v935
        %v1033 = vpack.c.b16 %v988, %v985
        %v1034 = vpack.c.b16 %v989, %v986
        %v1035 = vpack.c.b16 %v990, %v987
        %v1036 = vpack.c.b16 %v994, %v991
        %v1037 = vpack.c.b16 %v995, %v992
        %v1038 = vpack.c.b16 %v996, %v993
        %v1039 = vpack.c.b16 %v1000, %v997
        %v1040 = vpack.c.b16 %v1001, %v998
        %v1041 = vpack.c.b16 %v1002, %v999
        %v1042 = vpack.c.b16 %v1006, %v1003
        %v1043 = vpack.c.b16 %v1007, %v1004
        %v1044 = vpack.c.b16 %v1008, %v1005
        %v1045 = vpack.c.b16 %v1012, %v1009
        %v1046 = vpack.c.b16 %v1013, %v1010
        %v1047 = vpack.c.b16 %v1014, %v1011
        %v1048 = vpack.c.b16 %v1018, %v1015
        %v1049 = vpack.c.b16 %v1019, %v1016
        %v1050 = vpack.c.b16 %v1020, %v1017
        %v1051 = vpack.c.b16 %v1024, %v1021
        %v1052 = vpack.c.b16 %v1025, %v1022
        %v1053 = vpack.c.b16 %v1026, %v1023
        %v1054 = vpack.c.b16 %v1030, %v1027
        %v1055 = vpack.c.b16 %v1031, %v1028
        %v1056 = vpack.c.b16 %v1032, %v1029
        %1081 = vmatprep.subr.bf16.mxu0 %v1034
        %1082 = vmatpush1.bf16.msra.mxu0 %v1033
        %1083 = vmatprep.subr.bf16.mxu0 %v1037
        %1084 = vmatpush1.bf16.msra.mxu0 %v1036
        %1085 = vmatprep.subr.bf16.mxu0 %v1040
        %1086 = vmatpush1.bf16.msra.mxu0 %v1039
        %1087 = vmatprep.subr.bf16.mxu0 %v1043
        %1088 = vmatpush1.bf16.msra.mxu0 %v1042
        %1089 = vmatprep.subr.bf16.mxu0 %v1046
        %1090 = vmatpush1.bf16.msra.mxu0 %v1045
        %1091 = vmatprep.subr.bf16.mxu0 %v1049
        %1092 = vmatpush1.bf16.msra.mxu0 %v1048
        %1093 = vmatprep.subr.bf16.mxu0 %v1052
        %1094 = vmatpush1.bf16.msra.mxu0 %v1051
        %1095 = vmatprep.subr.bf16.mxu0 %v1055
        %1096 = vmatpush1.bf16.msra.mxu0 %v1054
        %1097 = vmatprep.subr.bf16.mxu0 0
        %1098 = vmatpush1.bf16.msra.mxu0 0
        %1099 = vmatprep.subr.bf16.mxu0 0
        %1100 = vmatpush1.bf16.msra.mxu0 0
        %1101 = vmatprep.subr.bf16.mxu0 0
        %1102 = vmatpush1.bf16.msra.mxu0 0
        %1103 = vmatprep.subr.bf16.mxu0 0
        %1104 = vmatpush1.bf16.msra.mxu0 0
        %1105 = vmatprep.subr.bf16.mxu0 0
        %1106 = vmatpush1.bf16.msra.mxu0 0
        %1107 = vmatprep.subr.bf16.mxu0 0
        %1108 = vmatpush1.bf16.msra.mxu0 0
        %1109 = vmatprep.subr.bf16.mxu0 0
        %1110 = vmatpush1.bf16.msra.mxu0 0
        %1111 = vmatprep.subr.bf16.mxu0 0
        %1112 = vmatpush1.bf16.msra.mxu0 0
        %1113 = vmatprep.mubr.bf16.mxu0 0
        %1114 = vmatmul.mubr.bf16.gmra.mrb[0].mxu0 %v902
        %v1115 = vpop.f32.mrb[0].mxu0
        %v1116 = vadd.f32 %v941, %v1115
        %v1117 = vpop.f32.mrb[0].mxu0
        %v1118 = vadd.f32 %v945, %v1117
        %v1119 = vpop.f32.mrb[0].mxu0
        %v1120 = vadd.f32 %v941, %v1119
        %v1121 = vpop.f32.mrb[0].mxu0
        %v1122 = vadd.f32 %v945, %v1121
        %1123 = vmatprep.mubr.bf16.mxu0 0
        %1124 = vmatmul.mubr.bf16.gmra.mrb[0].mxu0 %v903
        %v1125 = vpop.f32.mrb[0].mxu0
        %v1126 = vadd.f32 %v941, %v1125
        %v1127 = vpop.f32.mrb[0].mxu0
        %v1128 = vadd.f32 %v945, %v1127
        %v1129 = vpop.f32.mrb[0].mxu0
        %v1130 = vpop.f32.mrb[0].mxu0
        %1131 = vdwg.mxu0
        %1132 = vmatprep.subr.bf16.mxu0 0
        %1133 = vmatpush1.bf16.msra.mxu0 %v1035
        %1134 = vmatprep.subr.bf16.mxu0 0
        %1135 = vmatpush1.bf16.msra.mxu0 %v1038
        %1136 = vmatprep.subr.bf16.mxu0 0
        %1137 = vmatpush1.bf16.msra.mxu0 %v1041
        %1138 = vmatprep.subr.bf16.mxu0 0
        %1139 = vmatpush1.bf16.msra.mxu0 %v1044
        %1140 = vmatprep.subr.bf16.mxu0 0
        %1141 = vmatpush1.bf16.msra.mxu0 %v1047
        %1142 = vmatprep.subr.bf16.mxu0 0
        %1143 = vmatpush1.bf16.msra.mxu0 %v1050
        %1144 = vmatprep.subr.bf16.mxu0 0
        %1145 = vmatpush1.bf16.msra.mxu0 %v1053
        %1146 = vmatprep.subr.bf16.mxu0 0
        %1147 = vmatpush1.bf16.msra.mxu0 %v1056
        %1148 = vmatprep.subr.bf16.mxu0 0
        %1149 = vmatpush1.bf16.msra.mxu0 0
        %1150 = vmatprep.subr.bf16.mxu0 0
        %1151 = vmatpush1.bf16.msra.mxu0 0
        %1152 = vmatprep.subr.bf16.mxu0 0
        %1153 = vmatpush1.bf16.msra.mxu0 0
        %1154 = vmatprep.subr.bf16.mxu0 0
        %1155 = vmatpush1.bf16.msra.mxu0 0
        %1156 = vmatprep.subr.bf16.mxu0 0
        %1157 = vmatpush1.bf16.msra.mxu0 0
        %1158 = vmatprep.subr.bf16.mxu0 0
        %1159 = vmatpush1.bf16.msra.mxu0 0
        %1160 = vmatprep.subr.bf16.mxu0 0
        %1161 = vmatpush1.bf16.msra.mxu0 0
        %1162 = vmatprep.subr.bf16.mxu0 0
        %1163 = vmatpush1.bf16.msra.mxu0 0
        %1164 = vmatprep.mubr.bf16.mxu0 0
        %1165 = vmatmul.mubr.bf16.gmra.mrb[0].mxu0 %v902
        %v1166 = vpop.f32.mrb[0].mxu0
        %v1167 = vadd.f32 %v949, %v1166
        %v1168 = vpop.f32.mrb[0].mxu0
        %v1169 = vpop.f32.mrb[0].mxu0
        %v1170 = vadd.f32 %v949, %v1169
        %v1171 = vpop.f32.mrb[0].mxu0
        %1172 = vmatprep.mubr.bf16.mxu0 0
        %1173 = vmatmul.mubr.bf16.gmra.mrb[0].mxu0 %v903
        %v1174 = vpop.f32.mrb[0].mxu0
        %v1175 = vadd.f32 %v949, %v1174
        %v1176 = vpop.f32.mrb[0].mxu0
        %v1177 = vpop.f32.mrb[0].mxu0
        %v1178 = vpop.f32.mrb[0].mxu0
        %1179 = vdwg.mxu0
        %v1180 = vmul.f32 %v1116, 0.25
        %v1181 = vmul.f32 %v1120, 0.25
        %v1182 = vmul.f32 %v1126, 0.25
        %v1186 = vcombine.high %v1180, %v1180
        %v1188 = vunpack.c.l.s4 1983009808
        %v1189 = vunpack.c.0.s8 %v1188
        %v1190 = vlaneseq
        %v1191 = vshrl.u32 %v1190, 7
        %v1192 = vsub.s32 %v1189, %v1191
        %v1193 = vrot.slane %v1180, %v1192
        %v1195 = vunpack.c.l.s4 1983009808
        %v1196 = vunpack.c.0.s8 %v1195
        %v1197 = vlaneseq
        %v1198 = vshrl.u32 %v1197, 7
        %v1199 = vsub.s32 %v1196, %v1198
        %v1200 = vrot.slane %v1186, %v1199
        %v1201 = vcombine.high %v1193, %v1193
        %v1202 = vcombine.high %v1200, %v1200
        %v1203 = vcombine.high %v1181, %v1181
        %v1205 = vunpack.c.l.s4 1983009808
        %v1206 = vunpack.c.0.s8 %v1205
        %v1207 = vlaneseq
        %v1208 = vshrl.u32 %v1207, 7
        %v1209 = vsub.s32 %v1206, %v1208
        %v1210 = vrot.slane %v1181, %v1209
        %v1212 = vunpack.c.l.s4 1983009808
        %v1213 = vunpack.c.0.s8 %v1212
        %v1214 = vlaneseq
        %v1215 = vshrl.u32 %v1214, 7
        %v1216 = vsub.s32 %v1213, %v1215
        %v1217 = vrot.slane %v1203, %v1216
        %v1218 = vcombine.high %v1210, %v1210
        %v1219 = vcombine.high %v1217, %v1217
        %v1221 = vunpack.c.l.s4 1983009808
        %v1222 = vunpack.c.0.s8 %v1221
        %v1223 = vlaneseq
        %v1224 = vshrl.u32 %v1223, 7
        %v1225 = vsub.s32 %v1222, %v1224
        %v1226 = vrot.slane %v1182, %v1225
        %v1227 = vcombine.high %v1226, %v1226
        %v1231 = vcombine.high %v1118, %v1118
        %v1233 = vunpack.c.l.s4 1983009808
        %v1234 = vunpack.c.0.s8 %v1233
        %v1235 = vlaneseq
        %v1236 = vshrl.u32 %v1235, 7
        %v1237 = vsub.s32 %v1234, %v1236
        %v1238 = vrot.slane %v1118, %v1237
        %v1240 = vunpack.c.l.s4 1983009808
        %v1241 = vunpack.c.0.s8 %v1240
        %v1242 = vlaneseq
        %v1243 = vshrl.u32 %v1242, 7
        %v1244 = vsub.s32 %v1241, %v1243
        %v1245 = vrot.slane %v1231, %v1244
        %v1246 = vcombine.high %v1238, %v1238
        %v1247 = vcombine.high %v1245, %v1245
        %v1248 = vcombine.high %v1122, %v1122
        %v1250 = vunpack.c.l.s4 1983009808
        %v1251 = vunpack.c.0.s8 %v1250
        %v1252 = vlaneseq
        %v1253 = vshrl.u32 %v1252, 7
        %v1254 = vsub.s32 %v1251, %v1253
        %v1255 = vrot.slane %v1122, %v1254
        %v1257 = vunpack.c.l.s4 1983009808
        %v1258 = vunpack.c.0.s8 %v1257
        %v1259 = vlaneseq
        %v1260 = vshrl.u32 %v1259, 7
        %v1261 = vsub.s32 %v1258, %v1260
        %v1262 = vrot.slane %v1248, %v1261
        %v1263 = vcombine.high %v1255, %v1255
        %v1264 = vcombine.high %v1262, %v1262
        %v1266 = vunpack.c.l.s4 1983009808
        %v1267 = vunpack.c.0.s8 %v1266
        %v1268 = vlaneseq
        %v1269 = vshrl.u32 %v1268, 7
        %v1270 = vsub.s32 %v1267, %v1269
        %v1271 = vrot.slane %v1128, %v1270
        %v1272 = vcombine.high %v1271, %v1271
        %v1276 = vcombine.high %v1167, %v1167
        %v1278 = vunpack.c.l.s4 1983009808
        %v1279 = vunpack.c.0.s8 %v1278
        %v1280 = vlaneseq
        %v1281 = vshrl.u32 %v1280, 7
        %v1282 = vsub.s32 %v1279, %v1281
        %v1283 = vrot.slane %v1167, %v1282
        %v1285 = vunpack.c.l.s4 1983009808
        %v1286 = vunpack.c.0.s8 %v1285
        %v1287 = vlaneseq
        %v1288 = vshrl.u32 %v1287, 7
        %v1289 = vsub.s32 %v1286, %v1288
        %v1290 = vrot.slane %v1276, %v1289
        %v1291 = vcombine.high %v1283, %v1283
        %v1292 = vcombine.high %v1290, %v1290
        %v1293 = vcombine.high %v1170, %v1170
        %v1295 = vunpack.c.l.s4 1983009808
        %v1296 = vunpack.c.0.s8 %v1295
        %v1297 = vlaneseq
        %v1298 = vshrl.u32 %v1297, 7
        %v1299 = vsub.s32 %v1296, %v1298
        %v1300 = vrot.slane %v1170, %v1299
        %v1302 = vunpack.c.l.s4 1983009808
        %v1303 = vunpack.c.0.s8 %v1302
        %v1304 = vlaneseq
        %v1305 = vshrl.u32 %v1304, 7
        %v1306 = vsub.s32 %v1303, %v1305
        %v1307 = vrot.slane %v1293, %v1306
        %v1308 = vcombine.high %v1300, %v1300
        %v1309 = vcombine.high %v1307, %v1307
        %v1311 = vunpack.c.l.s4 1983009808
        %v1312 = vunpack.c.0.s8 %v1311
        %v1313 = vlaneseq
        %v1314 = vshrl.u32 %v1313, 7
        %v1315 = vsub.s32 %v1312, %v1314
        %v1316 = vrot.slane %v1175, %v1315
        %v1317 = vcombine.high %v1316, %v1316
        %1318 = vrot.lane.b32.xlu0 %v1193, 112
        %v1319 = vpop.permute.xlu0 %1318
        %1320 = vrot.lane.b32.xlu0 %v1201, 112
        %v1321 = vpop.permute.xlu0 %1320
        %1322 = vrot.lane.b32.xlu0 %v1200, 112
        %v1323 = vpop.permute.xlu0 %1322
        %1324 = vrot.lane.b32.xlu0 %v1202, 112
        %v1325 = vpop.permute.xlu0 %1324
        %1326 = vrot.lane.b32.xlu0 %v1210, 112
        %v1327 = vpop.permute.xlu0 %1326
        %1328 = vrot.lane.b32.xlu0 %v1218, 112
        %v1329 = vpop.permute.xlu0 %1328
        %1330 = vrot.lane.b32.xlu0 %v1217, 112
        %v1331 = vpop.permute.xlu0 %1330
        %1332 = vrot.lane.b32.xlu0 %v1219, 112
        %v1333 = vpop.permute.xlu0 %1332
        %1334 = vrot.lane.b32.xlu0 %v1226, 112
        %v1335 = vpop.permute.xlu0 %1334
        %1336 = vrot.lane.b32.xlu0 %v1227, 112
        %v1337 = vpop.permute.xlu0 %1336
        %1338 = vrot.lane.b32.xlu0 %v1193, 96
        %v1339 = vpop.permute.xlu0 %1338
        %1340 = vrot.lane.b32.xlu0 %v1201, 96
        %v1341 = vpop.permute.xlu0 %1340
        %1342 = vrot.lane.b32.xlu0 %v1200, 96
        %v1343 = vpop.permute.xlu0 %1342
        %1344 = vrot.lane.b32.xlu0 %v1202, 96
        %v1345 = vpop.permute.xlu0 %1344
        %1346 = vrot.lane.b32.xlu0 %v1210, 96
        %v1347 = vpop.permute.xlu0 %1346
        %1348 = vrot.lane.b32.xlu0 %v1218, 96
        %v1349 = vpop.permute.xlu0 %1348
        %1350 = vrot.lane.b32.xlu0 %v1217, 96
        %v1351 = vpop.permute.xlu0 %1350
        %1352 = vrot.lane.b32.xlu0 %v1219, 96
        %v1353 = vpop.permute.xlu0 %1352
        %1354 = vrot.lane.b32.xlu0 %v1226, 96
        %v1355 = vpop.permute.xlu0 %1354
        %1356 = vrot.lane.b32.xlu0 %v1227, 96
        %v1357 = vpop.permute.xlu0 %1356
        %1358 = vrot.lane.b32.xlu0 %v1193, 80
        %v1359 = vpop.permute.xlu0 %1358
        %1360 = vrot.lane.b32.xlu0 %v1201, 80
        %v1361 = vpop.permute.xlu0 %1360
        %1362 = vrot.lane.b32.xlu0 %v1200, 80
        %v1363 = vpop.permute.xlu0 %1362
        %1364 = vrot.lane.b32.xlu0 %v1202, 80
        %v1365 = vpop.permute.xlu0 %1364
        %1366 = vrot.lane.b32.xlu0 %v1210, 80
        %v1367 = vpop.permute.xlu0 %1366
        %1368 = vrot.lane.b32.xlu0 %v1218, 80
        %v1369 = vpop.permute.xlu0 %1368
        %1370 = vrot.lane.b32.xlu0 %v1217, 80
        %v1371 = vpop.permute.xlu0 %1370
        %1372 = vrot.lane.b32.xlu0 %v1219, 80
        %v1373 = vpop.permute.xlu0 %1372
        %1374 = vrot.lane.b32.xlu0 %v1226, 80
        %v1375 = vpop.permute.xlu0 %1374
        %1376 = vrot.lane.b32.xlu0 %v1227, 80
        %v1377 = vpop.permute.xlu0 %1376
        %1378 = vrot.lane.b32.xlu0 %v1193, 64
        %v1379 = vpop.permute.xlu0 %1378
        %1380 = vrot.lane.b32.xlu0 %v1201, 64
        %v1381 = vpop.permute.xlu0 %1380
        %1382 = vrot.lane.b32.xlu0 %v1200, 64
        %v1383 = vpop.permute.xlu0 %1382
        %1384 = vrot.lane.b32.xlu0 %v1202, 64
        %v1385 = vpop.permute.xlu0 %1384
        %1386 = vrot.lane.b32.xlu0 %v1210, 64
        %v1387 = vpop.permute.xlu0 %1386
        %1388 = vrot.lane.b32.xlu0 %v1218, 64
        %v1389 = vpop.permute.xlu0 %1388
        %1390 = vrot.lane.b32.xlu0 %v1217, 64
        %v1391 = vpop.permute.xlu0 %1390
        %1392 = vrot.lane.b32.xlu0 %v1219, 64
        %v1393 = vpop.permute.xlu0 %1392
        %1394 = vrot.lane.b32.xlu0 %v1226, 64
        %v1395 = vpop.permute.xlu0 %1394
        %1396 = vrot.lane.b32.xlu0 %v1227, 64
        %v1397 = vpop.permute.xlu0 %1396
        %1398 = vrot.lane.b32.xlu0 %v1193, 48
        %v1399 = vpop.permute.xlu0 %1398
        %1400 = vrot.lane.b32.xlu0 %v1201, 48
        %v1401 = vpop.permute.xlu0 %1400
        %1402 = vrot.lane.b32.xlu0 %v1200, 48
        %v1403 = vpop.permute.xlu0 %1402
        %1404 = vrot.lane.b32.xlu0 %v1202, 48
        %v1405 = vpop.permute.xlu0 %1404
        %1406 = vrot.lane.b32.xlu0 %v1210, 48
        %v1407 = vpop.permute.xlu0 %1406
        %1408 = vrot.lane.b32.xlu0 %v1218, 48
        %v1409 = vpop.permute.xlu0 %1408
        %1410 = vrot.lane.b32.xlu0 %v1217, 48
        %v1411 = vpop.permute.xlu0 %1410
        %1412 = vrot.lane.b32.xlu0 %v1219, 48
        %v1413 = vpop.permute.xlu0 %1412
        %1414 = vrot.lane.b32.xlu0 %v1226, 48
        %v1415 = vpop.permute.xlu0 %1414
        %1416 = vrot.lane.b32.xlu0 %v1227, 48
        %v1417 = vpop.permute.xlu0 %1416
        %1418 = vrot.lane.b32.xlu0 %v1193, 32
        %v1419 = vpop.permute.xlu0 %1418
        %1420 = vrot.lane.b32.xlu0 %v1201, 32
        %v1421 = vpop.permute.xlu0 %1420
        %1422 = vrot.lane.b32.xlu0 %v1200, 32
        %v1423 = vpop.permute.xlu0 %1422
        %1424 = vrot.lane.b32.xlu0 %v1202, 32
        %v1425 = vpop.permute.xlu0 %1424
        %1426 = vrot.lane.b32.xlu0 %v1210, 32
        %v1427 = vpop.permute.xlu0 %1426
        %1428 = vrot.lane.b32.xlu0 %v1218, 32
        %v1429 = vpop.permute.xlu0 %1428
        %1430 = vrot.lane.b32.xlu0 %v1217, 32
        %v1431 = vpop.permute.xlu0 %1430
        %1432 = vrot.lane.b32.xlu0 %v1219, 32
        %v1433 = vpop.permute.xlu0 %1432
        %1434 = vrot.lane.b32.xlu0 %v1226, 32
        %v1435 = vpop.permute.xlu0 %1434
        %1436 = vrot.lane.b32.xlu0 %v1227, 32
        %v1437 = vpop.permute.xlu0 %1436
        %1438 = vrot.lane.b32.xlu0 %v1193, 16
        %v1439 = vpop.permute.xlu0 %1438
        %1440 = vrot.lane.b32.xlu0 %v1201, 16
        %v1441 = vpop.permute.xlu0 %1440
        %1442 = vrot.lane.b32.xlu0 %v1200, 16
        %v1443 = vpop.permute.xlu0 %1442
        %1444 = vrot.lane.b32.xlu0 %v1202, 16
        %v1445 = vpop.permute.xlu0 %1444
        %1446 = vrot.lane.b32.xlu0 %v1210, 16
        %v1447 = vpop.permute.xlu0 %1446
        %1448 = vrot.lane.b32.xlu0 %v1218, 16
        %v1449 = vpop.permute.xlu0 %1448
        %1450 = vrot.lane.b32.xlu0 %v1217, 16
        %v1451 = vpop.permute.xlu0 %1450
        %1452 = vrot.lane.b32.xlu0 %v1219, 16
        %v1453 = vpop.permute.xlu0 %1452
        %1454 = vrot.lane.b32.xlu0 %v1226, 16
        %v1455 = vpop.permute.xlu0 %1454
        %1456 = vrot.lane.b32.xlu0 %v1227, 16
        %v1457 = vpop.permute.xlu0 %1456
        %1458 = vrot.lane.b32.xlu0 %v1238, 112
        %v1459 = vpop.permute.xlu0 %1458
        %1460 = vrot.lane.b32.xlu0 %v1246, 112
        %v1461 = vpop.permute.xlu0 %1460
        %1462 = vrot.lane.b32.xlu0 %v1245, 112
        %v1463 = vpop.permute.xlu0 %1462
        %1464 = vrot.lane.b32.xlu0 %v1247, 112
        %v1465 = vpop.permute.xlu0 %1464
        %1466 = vrot.lane.b32.xlu0 %v1255, 112
        %v1467 = vpop.permute.xlu0 %1466
        %1468 = vrot.lane.b32.xlu0 %v1263, 112
        %v1469 = vpop.permute.xlu0 %1468
        %1470 = vrot.lane.b32.xlu0 %v1262, 112
        %v1471 = vpop.permute.xlu0 %1470
        %1472 = vrot.lane.b32.xlu0 %v1264, 112
        %v1473 = vpop.permute.xlu0 %1472
        %1474 = vrot.lane.b32.xlu0 %v1271, 112
        %v1475 = vpop.permute.xlu0 %1474
        %1476 = vrot.lane.b32.xlu0 %v1272, 112
        %v1477 = vpop.permute.xlu0 %1476
        %1478 = vrot.lane.b32.xlu0 %v1238, 96
        %v1479 = vpop.permute.xlu0 %1478
        %1480 = vrot.lane.b32.xlu0 %v1246, 96
        %v1481 = vpop.permute.xlu0 %1480
        %1482 = vrot.lane.b32.xlu0 %v1245, 96
        %v1483 = vpop.permute.xlu0 %1482
        %1484 = vrot.lane.b32.xlu0 %v1247, 96
        %v1485 = vpop.permute.xlu0 %1484
        %1486 = vrot.lane.b32.xlu0 %v1255, 96
        %v1487 = vpop.permute.xlu0 %1486
        %1488 = vrot.lane.b32.xlu0 %v1263, 96
        %v1489 = vpop.permute.xlu0 %1488
        %1490 = vrot.lane.b32.xlu0 %v1262, 96
        %v1491 = vpop.permute.xlu0 %1490
        %1492 = vrot.lane.b32.xlu0 %v1264, 96
        %v1493 = vpop.permute.xlu0 %1492
        %1494 = vrot.lane.b32.xlu0 %v1271, 96
        %v1495 = vpop.permute.xlu0 %1494
        %1496 = vrot.lane.b32.xlu0 %v1272, 96
        %v1497 = vpop.permute.xlu0 %1496
        %1498 = vrot.lane.b32.xlu0 %v1238, 80
        %v1499 = vpop.permute.xlu0 %1498
        %1500 = vrot.lane.b32.xlu0 %v1246, 80
        %v1501 = vpop.permute.xlu0 %1500
        %1502 = vrot.lane.b32.xlu0 %v1245, 80
        %v1503 = vpop.permute.xlu0 %1502
        %1504 = vrot.lane.b32.xlu0 %v1247, 80
        %v1505 = vpop.permute.xlu0 %1504
        %1506 = vrot.lane.b32.xlu0 %v1255, 80
        %v1507 = vpop.permute.xlu0 %1506
        %1508 = vrot.lane.b32.xlu0 %v1263, 80
        %v1509 = vpop.permute.xlu0 %1508
        %1510 = vrot.lane.b32.xlu0 %v1262, 80
        %v1511 = vpop.permute.xlu0 %1510
        %1512 = vrot.lane.b32.xlu0 %v1264, 80
        %v1513 = vpop.permute.xlu0 %1512
        %1514 = vrot.lane.b32.xlu0 %v1271, 80
        %v1515 = vpop.permute.xlu0 %1514
        %1516 = vrot.lane.b32.xlu0 %v1272, 80
        %v1517 = vpop.permute.xlu0 %1516
        %1518 = vrot.lane.b32.xlu0 %v1238, 64
        %v1519 = vpop.permute.xlu0 %1518
        %1520 = vrot.lane.b32.xlu0 %v1246, 64
        %v1521 = vpop.permute.xlu0 %1520
        %1522 = vrot.lane.b32.xlu0 %v1245, 64
        %v1523 = vpop.permute.xlu0 %1522
        %1524 = vrot.lane.b32.xlu0 %v1247, 64
        %v1525 = vpop.permute.xlu0 %1524
        %1526 = vrot.lane.b32.xlu0 %v1255, 64
        %v1527 = vpop.permute.xlu0 %1526
        %1528 = vrot.lane.b32.xlu0 %v1263, 64
        %v1529 = vpop.permute.xlu0 %1528
        %1530 = vrot.lane.b32.xlu0 %v1262, 64
        %v1531 = vpop.permute.xlu0 %1530
        %1532 = vrot.lane.b32.xlu0 %v1264, 64
        %v1533 = vpop.permute.xlu0 %1532
        %1534 = vrot.lane.b32.xlu0 %v1271, 64
        %v1535 = vpop.permute.xlu0 %1534
        %1536 = vrot.lane.b32.xlu0 %v1272, 64
        %v1537 = vpop.permute.xlu0 %1536
        %1538 = vrot.lane.b32.xlu0 %v1238, 48
        %v1539 = vpop.permute.xlu0 %1538
        %1540 = vrot.lane.b32.xlu0 %v1246, 48
        %v1541 = vpop.permute.xlu0 %1540
        %1542 = vrot.lane.b32.xlu0 %v1245, 48
        %v1543 = vpop.permute.xlu0 %1542
        %1544 = vrot.lane.b32.xlu0 %v1247, 48
        %v1545 = vpop.permute.xlu0 %1544
        %1546 = vrot.lane.b32.xlu0 %v1255, 48
        %v1547 = vpop.permute.xlu0 %1546
        %1548 = vrot.lane.b32.xlu0 %v1263, 48
        %v1549 = vpop.permute.xlu0 %1548
        %1550 = vrot.lane.b32.xlu0 %v1262, 48
        %v1551 = vpop.permute.xlu0 %1550
        %1552 = vrot.lane.b32.xlu0 %v1264, 48
        %v1553 = vpop.permute.xlu0 %1552
        %1554 = vrot.lane.b32.xlu0 %v1271, 48
        %v1555 = vpop.permute.xlu0 %1554
        %1556 = vrot.lane.b32.xlu0 %v1272, 48
        %v1557 = vpop.permute.xlu0 %1556
        %1558 = vrot.lane.b32.xlu0 %v1238, 32
        %v1559 = vpop.permute.xlu0 %1558
        %1560 = vrot.lane.b32.xlu0 %v1246, 32
        %v1561 = vpop.permute.xlu0 %1560
        %1562 = vrot.lane.b32.xlu0 %v1245, 32
        %v1563 = vpop.permute.xlu0 %1562
        %1564 = vrot.lane.b32.xlu0 %v1247, 32
        %v1565 = vpop.permute.xlu0 %1564
        %1566 = vrot.lane.b32.xlu0 %v1255, 32
        %v1567 = vpop.permute.xlu0 %1566
        %1568 = vrot.lane.b32.xlu0 %v1263, 32
        %v1569 = vpop.permute.xlu0 %1568
        %1570 = vrot.lane.b32.xlu0 %v1262, 32
        %v1571 = vpop.permute.xlu0 %1570
        %1572 = vrot.lane.b32.xlu0 %v1264, 32
        %v1573 = vpop.permute.xlu0 %1572
        %1574 = vrot.lane.b32.xlu0 %v1271, 32
        %v1575 = vpop.permute.xlu0 %1574
        %1576 = vrot.lane.b32.xlu0 %v1272, 32
        %v1577 = vpop.permute.xlu0 %1576
        %1578 = vrot.lane.b32.xlu0 %v1238, 16
        %v1579 = vpop.permute.xlu0 %1578
        %1580 = vrot.lane.b32.xlu0 %v1246, 16
        %v1581 = vpop.permute.xlu0 %1580
        %1582 = vrot.lane.b32.xlu0 %v1245, 16
        %v1583 = vpop.permute.xlu0 %1582
        %1584 = vrot.lane.b32.xlu0 %v1247, 16
        %v1585 = vpop.permute.xlu0 %1584
        %1586 = vrot.lane.b32.xlu0 %v1255, 16
        %v1587 = vpop.permute.xlu0 %1586
        %1588 = vrot.lane.b32.xlu0 %v1263, 16
        %v1589 = vpop.permute.xlu0 %1588
        %1590 = vrot.lane.b32.xlu0 %v1262, 16
        %v1591 = vpop.permute.xlu0 %1590
        %1592 = vrot.lane.b32.xlu0 %v1264, 16
        %v1593 = vpop.permute.xlu0 %1592
        %1594 = vrot.lane.b32.xlu0 %v1271, 16
        %v1595 = vpop.permute.xlu0 %1594
        %1596 = vrot.lane.b32.xlu0 %v1272, 16
        %v1597 = vpop.permute.xlu0 %1596
        %1598 = vrot.lane.b32.xlu0 %v1283, 112
        %v1599 = vpop.permute.xlu0 %1598
        %1600 = vrot.lane.b32.xlu0 %v1291, 112
        %v1601 = vpop.permute.xlu0 %1600
        %1602 = vrot.lane.b32.xlu0 %v1290, 112
        %v1603 = vpop.permute.xlu0 %1602
        %1604 = vrot.lane.b32.xlu0 %v1292, 112
        %v1605 = vpop.permute.xlu0 %1604
        %1606 = vrot.lane.b32.xlu0 %v1300, 112
        %v1607 = vpop.permute.xlu0 %1606
        %1608 = vrot.lane.b32.xlu0 %v1308, 112
        %v1609 = vpop.permute.xlu0 %1608
        %1610 = vrot.lane.b32.xlu0 %v1307, 112
        %v1611 = vpop.permute.xlu0 %1610
        %1612 = vrot.lane.b32.xlu0 %v1309, 112
        %v1613 = vpop.permute.xlu0 %1612
        %1614 = vrot.lane.b32.xlu0 %v1316, 112
        %v1615 = vpop.permute.xlu0 %1614
        %1616 = vrot.lane.b32.xlu0 %v1317, 112
        %v1617 = vpop.permute.xlu0 %1616
        %1618 = vrot.lane.b32.xlu0 %v1283, 96
        %v1619 = vpop.permute.xlu0 %1618
        %1620 = vrot.lane.b32.xlu0 %v1291, 96
        %v1621 = vpop.permute.xlu0 %1620
        %1622 = vrot.lane.b32.xlu0 %v1290, 96
        %v1623 = vpop.permute.xlu0 %1622
        %1624 = vrot.lane.b32.xlu0 %v1292, 96
        %v1625 = vpop.permute.xlu0 %1624
        %1626 = vrot.lane.b32.xlu0 %v1300, 96
        %v1627 = vpop.permute.xlu0 %1626
        %1628 = vrot.lane.b32.xlu0 %v1308, 96
        %v1629 = vpop.permute.xlu0 %1628
        %1630 = vrot.lane.b32.xlu0 %v1307, 96
        %v1631 = vpop.permute.xlu0 %1630
        %1632 = vrot.lane.b32.xlu0 %v1309, 96
        %v1633 = vpop.permute.xlu0 %1632
        %1634 = vrot.lane.b32.xlu0 %v1316, 96
        %v1635 = vpop.permute.xlu0 %1634
        %1636 = vrot.lane.b32.xlu0 %v1317, 96
        %v1637 = vpop.permute.xlu0 %1636
        %1638 = vrot.lane.b32.xlu0 %v1283, 80
        %v1639 = vpop.permute.xlu0 %1638
        %1640 = vrot.lane.b32.xlu0 %v1291, 80
        %v1641 = vpop.permute.xlu0 %1640
        %1642 = vrot.lane.b32.xlu0 %v1290, 80
        %v1643 = vpop.permute.xlu0 %1642
        %1644 = vrot.lane.b32.xlu0 %v1292, 80
        %v1645 = vpop.permute.xlu0 %1644
        %1646 = vrot.lane.b32.xlu0 %v1300, 80
        %v1647 = vpop.permute.xlu0 %1646
        %1648 = vrot.lane.b32.xlu0 %v1308, 80
        %v1649 = vpop.permute.xlu0 %1648
        %1650 = vrot.lane.b32.xlu0 %v1307, 80
        %v1651 = vpop.permute.xlu0 %1650
        %1652 = vrot.lane.b32.xlu0 %v1309, 80
        %v1653 = vpop.permute.xlu0 %1652
        %1654 = vrot.lane.b32.xlu0 %v1316, 80
        %v1655 = vpop.permute.xlu0 %1654
        %1656 = vrot.lane.b32.xlu0 %v1317, 80
        %v1657 = vpop.permute.xlu0 %1656
        %1658 = vrot.lane.b32.xlu0 %v1283, 64
        %v1659 = vpop.permute.xlu0 %1658
        %1660 = vrot.lane.b32.xlu0 %v1291, 64
        %v1661 = vpop.permute.xlu0 %1660
        %1662 = vrot.lane.b32.xlu0 %v1290, 64
        %v1663 = vpop.permute.xlu0 %1662
        %1664 = vrot.lane.b32.xlu0 %v1292, 64
        %v1665 = vpop.permute.xlu0 %1664
        %1666 = vrot.lane.b32.xlu0 %v1300, 64
        %v1667 = vpop.permute.xlu0 %1666
        %1668 = vrot.lane.b32.xlu0 %v1308, 64
        %v1669 = vpop.permute.xlu0 %1668
        %1670 = vrot.lane.b32.xlu0 %v1307, 64
        %v1671 = vpop.permute.xlu0 %1670
        %1672 = vrot.lane.b32.xlu0 %v1309, 64
        %v1673 = vpop.permute.xlu0 %1672
        %1674 = vrot.lane.b32.xlu0 %v1316, 64
        %v1675 = vpop.permute.xlu0 %1674
        %1676 = vrot.lane.b32.xlu0 %v1317, 64
        %v1677 = vpop.permute.xlu0 %1676
        %1678 = vrot.lane.b32.xlu0 %v1283, 48
        %v1679 = vpop.permute.xlu0 %1678
        %1680 = vrot.lane.b32.xlu0 %v1291, 48
        %v1681 = vpop.permute.xlu0 %1680
        %1682 = vrot.lane.b32.xlu0 %v1290, 48
        %v1683 = vpop.permute.xlu0 %1682
        %1684 = vrot.lane.b32.xlu0 %v1292, 48
        %v1685 = vpop.permute.xlu0 %1684
        %1686 = vrot.lane.b32.xlu0 %v1300, 48
        %v1687 = vpop.permute.xlu0 %1686
        %1688 = vrot.lane.b32.xlu0 %v1308, 48
        %v1689 = vpop.permute.xlu0 %1688
        %1690 = vrot.lane.b32.xlu0 %v1307, 48
        %v1691 = vpop.permute.xlu0 %1690
        %1692 = vrot.lane.b32.xlu0 %v1309, 48
        %v1693 = vpop.permute.xlu0 %1692
        %1694 = vrot.lane.b32.xlu0 %v1316, 48
        %v1695 = vpop.permute.xlu0 %1694
        %1696 = vrot.lane.b32.xlu0 %v1317, 48
        %v1697 = vpop.permute.xlu0 %1696
        %1698 = vrot.lane.b32.xlu0 %v1283, 32
        %v1699 = vpop.permute.xlu0 %1698
        %1700 = vrot.lane.b32.xlu0 %v1291, 32
        %v1701 = vpop.permute.xlu0 %1700
        %1702 = vrot.lane.b32.xlu0 %v1290, 32
        %v1703 = vpop.permute.xlu0 %1702
        %1704 = vrot.lane.b32.xlu0 %v1292, 32
        %v1705 = vpop.permute.xlu0 %1704
        %1706 = vrot.lane.b32.xlu0 %v1300, 32
        %v1707 = vpop.permute.xlu0 %1706
        %1708 = vrot.lane.b32.xlu0 %v1308, 32
        %v1709 = vpop.permute.xlu0 %1708
        %1710 = vrot.lane.b32.xlu0 %v1307, 32
        %v1711 = vpop.permute.xlu0 %1710
        %1712 = vrot.lane.b32.xlu0 %v1309, 32
        %v1713 = vpop.permute.xlu0 %1712
        %1714 = vrot.lane.b32.xlu0 %v1316, 32
        %v1715 = vpop.permute.xlu0 %1714
        %1716 = vrot.lane.b32.xlu0 %v1317, 32
        %v1717 = vpop.permute.xlu0 %1716
        %1718 = vrot.lane.b32.xlu0 %v1283, 16
        %v1719 = vpop.permute.xlu0 %1718
        %1720 = vrot.lane.b32.xlu0 %v1291, 16
        %v1721 = vpop.permute.xlu0 %1720
        %1722 = vrot.lane.b32.xlu0 %v1290, 16
        %v1723 = vpop.permute.xlu0 %1722
        %1724 = vrot.lane.b32.xlu0 %v1292, 16
        %v1725 = vpop.permute.xlu0 %1724
        %1726 = vrot.lane.b32.xlu0 %v1300, 16
        %v1727 = vpop.permute.xlu0 %1726
        %1728 = vrot.lane.b32.xlu0 %v1308, 16
        %v1729 = vpop.permute.xlu0 %1728
        %1730 = vrot.lane.b32.xlu0 %v1307, 16
        %v1731 = vpop.permute.xlu0 %1730
        %1732 = vrot.lane.b32.xlu0 %v1309, 16
        %v1733 = vpop.permute.xlu0 %1732
        %1734 = vrot.lane.b32.xlu0 %v1316, 16
        %v1735 = vpop.permute.xlu0 %1734
        %1736 = vrot.lane.b32.xlu0 %v1317, 16
        %v1737 = vpop.permute.xlu0 %1736
        %v1738 = vcombine.low %v1193, %v1201
        %v1739 = vcombine.low %v1200, %v1202
        %v1741 = vunpack.c.l.s4 1983009808
        %v1742 = vunpack.c.0.s8 %v1741
        %v1743 = vlaneseq
        %v1744 = vshrl.u32 %v1743, 7
        %v1745 = vsub.s32 %v1742, %v1744
        %v1746 = vrot.slane %v1738, %v1745
        %v1748 = vunpack.c.l.s4 1983009808
        %v1749 = vunpack.c.0.s8 %v1748
        %v1750 = vlaneseq
        %v1751 = vshrl.u32 %v1750, 7
        %v1752 = vsub.s32 %v1749, %v1751
        %v1753 = vrot.slane %v1739, %v1752
        %v1754 = vcombine.low %v1746, %v1753
        %v1756 = vunpack.c.l.s4 1983009808
        %v1757 = vunpack.c.0.s8 %v1756
        %v1758 = vlaneseq
        %v1759 = vshrl.u32 %v1758, 7
        %v1760 = vsub.s32 %v1757, %v1759
        %v1761 = vrot.slane %v1210, %v1760
        %v1762 = vcombine.low %v1238, %v1246
        %v1763 = vcombine.low %v1245, %v1247
        %v1765 = vunpack.c.l.s4 1983009808
        %v1766 = vunpack.c.0.s8 %v1765
        %v1767 = vlaneseq
        %v1768 = vshrl.u32 %v1767, 7
        %v1769 = vsub.s32 %v1766, %v1768
        %v1770 = vrot.slane %v1762, %v1769
        %v1772 = vunpack.c.l.s4 1983009808
        %v1773 = vunpack.c.0.s8 %v1772
        %v1774 = vlaneseq
        %v1775 = vshrl.u32 %v1774, 7
        %v1776 = vsub.s32 %v1773, %v1775
        %v1777 = vrot.slane %v1763, %v1776
        %v1778 = vcombine.low %v1770, %v1777
        %v1780 = vunpack.c.l.s4 1983009808
        %v1781 = vunpack.c.0.s8 %v1780
        %v1782 = vlaneseq
        %v1783 = vshrl.u32 %v1782, 7
        %v1784 = vsub.s32 %v1781, %v1783
        %v1785 = vrot.slane %v1255, %v1784
        %vm1786 = vcmask 130048
        %v1787 = vsel %vm1786, %v1754, 0
        %v1789 = vsel %vm1786, %v1761, 0
        %v1791 = vsel %vm1786, %v1778, 0
        %v1793 = vsel %vm1786, %v1785, 0
        %1795 = vmatprep.subr.mxu0 0.0
        %1796 = vmatpush1.xpose.msra.mxu0 %v1791
        %1797 = vmatprep.subr.mxu0 0.0
        %1798 = vmatpush1.xpose.msra.mxu0 %v1793
        %1799 = vmatprep.subr.mxu0 0.0
        %1800 = vmatpush1.xpose.msra.mxu0 0.0
        %1801 = vmatprep.subr.mxu0 0.0
        %1802 = vmatpush1.xpose.msra.mxu0 0.0
        %1803 = vmatprep.subr.mxu0 0.0
        %1804 = vmatpush1.xpose.msra.mxu0 0.0
        %1805 = vmatprep.subr.mxu0 0.0
        %1806 = vmatpush1.xpose.msra.mxu0 0.0
        %1807 = vmatprep.subr.mxu0 0.0
        %1808 = vmatpush1.xpose.msra.mxu0 0.0
        %1809 = vmatprep.subr.mxu0 0.0
        %1810 = vmatpush1.xpose.msra.mxu0 0.0
        %1811 = vmatprep.subr.mxu0 0.0
        %1812 = vmatpush1.xpose.msra.mxu0 0.0
        %1813 = vmatprep.subr.mxu0 0.0
        %1814 = vmatpush1.xpose.msra.mxu0 0.0
        %1815 = vmatprep.subr.mxu0 0.0
        %1816 = vmatpush1.xpose.msra.mxu0 0.0
        %1817 = vmatprep.subr.mxu0 0.0
        %1818 = vmatpush1.xpose.msra.mxu0 0.0
        %1819 = vmatprep.subr.mxu0 0.0
        %1820 = vmatpush1.xpose.msra.mxu0 0.0
        %1821 = vmatprep.subr.mxu0 0.0
        %1822 = vmatpush1.xpose.msra.mxu0 0.0
        %1823 = vmatprep.subr.mxu0 0.0
        %1824 = vmatpush1.xpose.msra.mxu0 0.0
        %1825 = vmatprep.subr.mxu0 0.0
        %1826 = vmatpush1.xpose.msra.mxu0 0.0
        %1827 = vmatprep.subr.mxu0 0.0
        %1828 = vmatpush1.xpose.msra.mxu0 0.0
        %1829 = vmatprep.subr.mxu0 0.0
        %1830 = vmatpush1.xpose.msra.mxu0 0.0
        %1831 = vmatprep.subr.mxu0 0.0
        %1832 = vmatpush1.xpose.msra.mxu0 0.0
        %1833 = vmatprep.subr.mxu0 0.0
        %1834 = vmatpush1.xpose.msra.mxu0 0.0
        %1835 = vmatprep.subr.mxu0 0.0
        %1836 = vmatpush1.xpose.msra.mxu0 0.0
        %1837 = vmatprep.subr.mxu0 0.0
        %1838 = vmatpush1.xpose.msra.mxu0 0.0
        %1839 = vmatprep.subr.mxu0 0.0
        %1840 = vmatpush1.xpose.msra.mxu0 0.0
        %1841 = vmatprep.subr.mxu0 0.0
        %1842 = vmatpush1.xpose.msra.mxu0 0.0
        %1843 = vmatprep.subr.mxu0 0.0
        %1844 = vmatpush1.xpose.msra.mxu0 0.0
        %1845 = vmatprep.subr.mxu0 0.0
        %1846 = vmatpush1.xpose.msra.mxu0 0.0
        %1847 = vmatprep.subr.mxu0 0.0
        %1848 = vmatpush1.xpose.msra.mxu0 0.0
        %1849 = vmatprep.subr.mxu0 0.0
        %1850 = vmatpush1.xpose.msra.mxu0 0.0
        %1851 = vmatprep.subr.mxu0 0.0
        %1852 = vmatpush1.xpose.msra.mxu0 0.0
        %1853 = vmatprep.subr.mxu0 0.0
        %1854 = vmatpush1.xpose.msra.mxu0 0.0
        %1855 = vmatprep.subr.mxu0 0.0
        %1856 = vmatpush1.xpose.msra.mxu0 0.0
        %1857 = vmatprep.subr.mxu0 0.0
        %1858 = vmatpush1.xpose.msra.mxu0 0.0
        %1859 = vmatprep.mubr.f32.mxu0 0.0
        %1860 = vmatmul.mubr.f32.gmra.mrb[0].mxu0 %v1787
        %v1861 = vpop.f32.mrb[0].mxu0
        %v1862 = vadd.f32 0.0, %v1861
        %v1863 = vpop.f32.mrb[0].mxu0
        %1864 = vmatprep.mubr.f32.mxu0 0.0
        %1865 = vmatmul.mubr.f32.gmra.mrb[0].mxu0 %v1789
        %v1866 = vpop.f32.mrb[0].mxu0
        %v1867 = vadd.f32 0.0, %v1866
        %v1868 = vpop.f32.mrb[0].mxu0
        %1869 = vdwg.mxu0
        %v1870 = vcombine.low %v1218, %v1217
        %v1871 = vcombine.low %v1219, %v1226
        %v1873 = vunpack.c.l.s4 1983009808
        %v1874 = vunpack.c.0.s8 %v1873
        %v1875 = vlaneseq
        %v1876 = vshrl.u32 %v1875, 7
        %v1877 = vsub.s32 %v1874, %v1876
        %v1878 = vrot.slane %v1870, %v1877
        %v1880 = vunpack.c.l.s4 1983009808
        %v1881 = vunpack.c.0.s8 %v1880
        %v1882 = vlaneseq
        %v1883 = vshrl.u32 %v1882, 7
        %v1884 = vsub.s32 %v1881, %v1883
        %v1885 = vrot.slane %v1871, %v1884
        %v1886 = vcombine.low %v1878, %v1885
        %v1888 = vunpack.c.l.s4 1983009808
        %v1889 = vunpack.c.0.s8 %v1888
        %v1890 = vlaneseq
        %v1891 = vshrl.u32 %v1890, 7
        %v1892 = vsub.s32 %v1889, %v1891
        %v1893 = vrot.slane %v1227, %v1892
        %v1894 = vcombine.low %v1263, %v1262
        %v1895 = vcombine.low %v1264, %v1271
        %v1897 = vunpack.c.l.s4 1983009808
        %v1898 = vunpack.c.0.s8 %v1897
        %v1899 = vlaneseq
        %v1900 = vshrl.u32 %v1899, 7
        %v1901 = vsub.s32 %v1898, %v1900
        %v1902 = vrot.slane %v1894, %v1901
        %v1904 = vunpack.c.l.s4 1983009808
        %v1905 = vunpack.c.0.s8 %v1904
        %v1906 = vlaneseq
        %v1907 = vshrl.u32 %v1906, 7
        %v1908 = vsub.s32 %v1905, %v1907
        %v1909 = vrot.slane %v1895, %v1908
        %v1910 = vcombine.low %v1902, %v1909
        %v1912 = vunpack.c.l.s4 1983009808
        %v1913 = vunpack.c.0.s8 %v1912
        %v1914 = vlaneseq
        %v1915 = vshrl.u32 %v1914, 7
        %v1916 = vsub.s32 %v1913, %v1915
        %v1917 = vrot.slane %v1272, %v1916
        %v1918 = vsel %vm1786, %v1886, 0
        %v1920 = vsel %vm1786, %v1893, 0
        %v1922 = vsel %vm1786, %v1910, 0
        %v1924 = vsel %vm1786, %v1917, 0
        %1926 = vmatprep.subr.mxu0 0.0
        %1927 = vmatpush1.xpose.msra.mxu0 %v1922
        %1928 = vmatprep.subr.mxu0 0.0
        %1929 = vmatpush1.xpose.msra.mxu0 %v1924
        %1930 = vmatprep.subr.mxu0 0.0
        %1931 = vmatpush1.xpose.msra.mxu0 0.0
        %1932 = vmatprep.subr.mxu0 0.0
        %1933 = vmatpush1.xpose.msra.mxu0 0.0
        %1934 = vmatprep.subr.mxu0 0.0
        %1935 = vmatpush1.xpose.msra.mxu0 0.0
        %1936 = vmatprep.subr.mxu0 0.0
        %1937 = vmatpush1.xpose.msra.mxu0 0.0
        %1938 = vmatprep.subr.mxu0 0.0
        %1939 = vmatpush1.xpose.msra.mxu0 0.0
        %1940 = vmatprep.subr.mxu0 0.0
        %1941 = vmatpush1.xpose.msra.mxu0 0.0
        %1942 = vmatprep.subr.mxu0 0.0
        %1943 = vmatpush1.xpose.msra.mxu0 0.0
        %1944 = vmatprep.subr.mxu0 0.0
        %1945 = vmatpush1.xpose.msra.mxu0 0.0
        %1946 = vmatprep.subr.mxu0 0.0
        %1947 = vmatpush1.xpose.msra.mxu0 0.0
        %1948 = vmatprep.subr.mxu0 0.0
        %1949 = vmatpush1.xpose.msra.mxu0 0.0
        %1950 = vmatprep.subr.mxu0 0.0
        %1951 = vmatpush1.xpose.msra.mxu0 0.0
        %1952 = vmatprep.subr.mxu0 0.0
        %1953 = vmatpush1.xpose.msra.mxu0 0.0
        %1954 = vmatprep.subr.mxu0 0.0
        %1955 = vmatpush1.xpose.msra.mxu0 0.0
        %1956 = vmatprep.subr.mxu0 0.0
        %1957 = vmatpush1.xpose.msra.mxu0 0.0
        %1958 = vmatprep.subr.mxu0 0.0
        %1959 = vmatpush1.xpose.msra.mxu0 0.0
        %1960 = vmatprep.subr.mxu0 0.0
        %1961 = vmatpush1.xpose.msra.mxu0 0.0
        %1962 = vmatprep.subr.mxu0 0.0
        %1963 = vmatpush1.xpose.msra.mxu0 0.0
        %1964 = vmatprep.subr.mxu0 0.0
        %1965 = vmatpush1.xpose.msra.mxu0 0.0
        %1966 = vmatprep.subr.mxu0 0.0
        %1967 = vmatpush1.xpose.msra.mxu0 0.0
        %1968 = vmatprep.subr.mxu0 0.0
        %1969 = vmatpush1.xpose.msra.mxu0 0.0
        %1970 = vmatprep.subr.mxu0 0.0
        %1971 = vmatpush1.xpose.msra.mxu0 0.0
        %1972 = vmatprep.subr.mxu0 0.0
        %1973 = vmatpush1.xpose.msra.mxu0 0.0
        %1974 = vmatprep.subr.mxu0 0.0
        %1975 = vmatpush1.xpose.msra.mxu0 0.0
        %1976 = vmatprep.subr.mxu0 0.0
        %1977 = vmatpush1.xpose.msra.mxu0 0.0
        %1978 = vmatprep.subr.mxu0 0.0
        %1979 = vmatpush1.xpose.msra.mxu0 0.0
        %1980 = vmatprep.subr.mxu0 0.0
        %1981 = vmatpush1.xpose.msra.mxu0 0.0
        %1982 = vmatprep.subr.mxu0 0.0
        %1983 = vmatpush1.xpose.msra.mxu0 0.0
        %1984 = vmatprep.subr.mxu0 0.0
        %1985 = vmatpush1.xpose.msra.mxu0 0.0
        %1986 = vmatprep.subr.mxu0 0.0
        %1987 = vmatpush1.xpose.msra.mxu0 0.0
        %1988 = vmatprep.subr.mxu0 0.0
        %1989 = vmatpush1.xpose.msra.mxu0 0.0
        %1990 = vmatprep.mubr.f32.mxu0 0.0
        %1991 = vmatmul.mubr.f32.gmra.mrb[0].mxu0 %v1918
        %v1992 = vpop.f32.mrb[0].mxu0
        %v1993 = vadd.f32 0.0, %v1992
        %v1994 = vpop.f32.mrb[0].mxu0
        %1995 = vmatprep.mubr.f32.mxu0 0.0
        %1996 = vmatmul.mubr.f32.gmra.mrb[0].mxu0 %v1920
        %v1997 = vpop.f32.mrb[0].mxu0
        %v1998 = vadd.f32 0.0, %v1997
        %v1999 = vpop.f32.mrb[0].mxu0
        %2000 = vdwg.mxu0
        %v2001 = vcombine.low %v1319, %v1321
        %v2002 = vcombine.low %v1323, %v1325
        %v2004 = vunpack.c.l.s4 1983009808
        %v2005 = vunpack.c.0.s8 %v2004
        %v2006 = vlaneseq
        %v2007 = vshrl.u32 %v2006, 7
        %v2008 = vsub.s32 %v2005, %v2007
        %v2009 = vrot.slane %v2001, %v2008
        %v2011 = vunpack.c.l.s4 1983009808
        %v2012 = vunpack.c.0.s8 %v2011
        %v2013 = vlaneseq
        %v2014 = vshrl.u32 %v2013, 7
        %v2015 = vsub.s32 %v2012, %v2014
        %v2016 = vrot.slane %v2002, %v2015
        %v2017 = vcombine.low %v2009, %v2016
        %v2019 = vunpack.c.l.s4 1983009808
        %v2020 = vunpack.c.0.s8 %v2019
        %v2021 = vlaneseq
        %v2022 = vshrl.u32 %v2021, 7
        %v2023 = vsub.s32 %v2020, %v2022
        %v2024 = vrot.slane %v1327, %v2023
        %v2025 = vcombine.low %v1459, %v1461
        %v2026 = vcombine.low %v1463, %v1465
        %v2028 = vunpack.c.l.s4 1983009808
        %v2029 = vunpack.c.0.s8 %v2028
        %v2030 = vlaneseq
        %v2031 = vshrl.u32 %v2030, 7
        %v2032 = vsub.s32 %v2029, %v2031
        %v2033 = vrot.slane %v2025, %v2032
        %v2035 = vunpack.c.l.s4 1983009808
        %v2036 = vunpack.c.0.s8 %v2035
        %v2037 = vlaneseq
        %v2038 = vshrl.u32 %v2037, 7
        %v2039 = vsub.s32 %v2036, %v2038
        %v2040 = vrot.slane %v2026, %v2039
        %v2041 = vcombine.low %v2033, %v2040
        %v2043 = vunpack.c.l.s4 1983009808
        %v2044 = vunpack.c.0.s8 %v2043
        %v2045 = vlaneseq
        %v2046 = vshrl.u32 %v2045, 7
        %v2047 = vsub.s32 %v2044, %v2046
        %v2048 = vrot.slane %v1467, %v2047
        %v2049 = vsel %vm1786, %v2017, 0
        %v2051 = vsel %vm1786, %v2024, 0
        %v2053 = vsel %vm1786, %v2041, 0
        %v2055 = vsel %vm1786, %v2048, 0
        %2057 = vmatprep.subr.mxu0 0.0
        %2058 = vmatpush1.xpose.msra.mxu0 %v2053
        %2059 = vmatprep.subr.mxu0 0.0
        %2060 = vmatpush1.xpose.msra.mxu0 %v2055
        %2061 = vmatprep.subr.mxu0 0.0
        %2062 = vmatpush1.xpose.msra.mxu0 0.0
        %2063 = vmatprep.subr.mxu0 0.0
        %2064 = vmatpush1.xpose.msra.mxu0 0.0
        %2065 = vmatprep.subr.mxu0 0.0
        %2066 = vmatpush1.xpose.msra.mxu0 0.0
        %2067 = vmatprep.subr.mxu0 0.0
        %2068 = vmatpush1.xpose.msra.mxu0 0.0
        %2069 = vmatprep.subr.mxu0 0.0
        %2070 = vmatpush1.xpose.msra.mxu0 0.0
        %2071 = vmatprep.subr.mxu0 0.0
        %2072 = vmatpush1.xpose.msra.mxu0 0.0
        %2073 = vmatprep.subr.mxu0 0.0
        %2074 = vmatpush1.xpose.msra.mxu0 0.0
        %2075 = vmatprep.subr.mxu0 0.0
        %2076 = vmatpush1.xpose.msra.mxu0 0.0
        %2077 = vmatprep.subr.mxu0 0.0
        %2078 = vmatpush1.xpose.msra.mxu0 0.0
        %2079 = vmatprep.subr.mxu0 0.0
        %2080 = vmatpush1.xpose.msra.mxu0 0.0
        %2081 = vmatprep.subr.mxu0 0.0
        %2082 = vmatpush1.xpose.msra.mxu0 0.0
        %2083 = vmatprep.subr.mxu0 0.0
        %2084 = vmatpush1.xpose.msra.mxu0 0.0
        %2085 = vmatprep.subr.mxu0 0.0
        %2086 = vmatpush1.xpose.msra.mxu0 0.0
        %2087 = vmatprep.subr.mxu0 0.0
        %2088 = vmatpush1.xpose.msra.mxu0 0.0
        %2089 = vmatprep.subr.mxu0 0.0
        %2090 = vmatpush1.xpose.msra.mxu0 0.0
        %2091 = vmatprep.subr.mxu0 0.0
        %2092 = vmatpush1.xpose.msra.mxu0 0.0
        %2093 = vmatprep.subr.mxu0 0.0
        %2094 = vmatpush1.xpose.msra.mxu0 0.0
        %2095 = vmatprep.subr.mxu0 0.0
        %2096 = vmatpush1.xpose.msra.mxu0 0.0
        %2097 = vmatprep.subr.mxu0 0.0
        %2098 = vmatpush1.xpose.msra.mxu0 0.0
        %2099 = vmatprep.subr.mxu0 0.0
        %2100 = vmatpush1.xpose.msra.mxu0 0.0
        %2101 = vmatprep.subr.mxu0 0.0
        %2102 = vmatpush1.xpose.msra.mxu0 0.0
        %2103 = vmatprep.subr.mxu0 0.0
        %2104 = vmatpush1.xpose.msra.mxu0 0.0
        %2105 = vmatprep.subr.mxu0 0.0
        %2106 = vmatpush1.xpose.msra.mxu0 0.0
        %2107 = vmatprep.subr.mxu0 0.0
        %2108 = vmatpush1.xpose.msra.mxu0 0.0
        %2109 = vmatprep.subr.mxu0 0.0
        %2110 = vmatpush1.xpose.msra.mxu0 0.0
        %2111 = vmatprep.subr.mxu0 0.0
        %2112 = vmatpush1.xpose.msra.mxu0 0.0
        %2113 = vmatprep.subr.mxu0 0.0
        %2114 = vmatpush1.xpose.msra.mxu0 0.0
        %2115 = vmatprep.subr.mxu0 0.0
        %2116 = vmatpush1.xpose.msra.mxu0 0.0
        %2117 = vmatprep.subr.mxu0 0.0
        %2118 = vmatpush1.xpose.msra.mxu0 0.0
        %2119 = vmatprep.subr.mxu0 0.0
        %2120 = vmatpush1.xpose.msra.mxu0 0.0
        %2121 = vmatprep.mubr.f32.mxu0 0.0
        %2122 = vmatmul.mubr.f32.gmra.mrb[0].mxu0 %v2049
        %v2123 = vpop.f32.mrb[0].mxu0
        %v2124 = vadd.f32 0.0, %v2123
        %v2125 = vpop.f32.mrb[0].mxu0
        %2126 = vmatprep.mubr.f32.mxu0 0.0
        %2127 = vmatmul.mubr.f32.gmra.mrb[0].mxu0 %v2051
        %v2128 = vpop.f32.mrb[0].mxu0
        %v2129 = vadd.f32 0.0, %v2128
        %v2130 = vpop.f32.mrb[0].mxu0
        %2131 = vdwg.mxu0
        %v2132 = vcombine.low %v1329, %v1331
        %v2133 = vcombine.low %v1333, %v1335
        %v2135 = vunpack.c.l.s4 1983009808
        %v2136 = vunpack.c.0.s8 %v2135
        %v2137 = vlaneseq
        %v2138 = vshrl.u32 %v2137, 7
        %v2139 = vsub.s32 %v2136, %v2138
        %v2140 = vrot.slane %v2132, %v2139
        %v2142 = vunpack.c.l.s4 1983009808
        %v2143 = vunpack.c.0.s8 %v2142
        %v2144 = vlaneseq
        %v2145 = vshrl.u32 %v2144, 7
        %v2146 = vsub.s32 %v2143, %v2145
        %v2147 = vrot.slane %v2133, %v2146
        %v2148 = vcombine.low %v2140, %v2147
        %v2150 = vunpack.c.l.s4 1983009808
        %v2151 = vunpack.c.0.s8 %v2150
        %v2152 = vlaneseq
        %v2153 = vshrl.u32 %v2152, 7
        %v2154 = vsub.s32 %v2151, %v2153
        %v2155 = vrot.slane %v1337, %v2154
        %v2156 = vcombine.low %v1469, %v1471
        %v2157 = vcombine.low %v1473, %v1475
        %v2159 = vunpack.c.l.s4 1983009808
        %v2160 = vunpack.c.0.s8 %v2159
        %v2161 = vlaneseq
        %v2162 = vshrl.u32 %v2161, 7
        %v2163 = vsub.s32 %v2160, %v2162
        %v2164 = vrot.slane %v2156, %v2163
        %v2166 = vunpack.c.l.s4 1983009808
        %v2167 = vunpack.c.0.s8 %v2166
        %v2168 = vlaneseq
        %v2169 = vshrl.u32 %v2168, 7
        %v2170 = vsub.s32 %v2167, %v2169
        %v2171 = vrot.slane %v2157, %v2170
        %v2172 = vcombine.low %v2164, %v2171
        %v2174 = vunpack.c.l.s4 1983009808
        %v2175 = vunpack.c.0.s8 %v2174
        %v2176 = vlaneseq
        %v2177 = vshrl.u32 %v2176, 7
        %v2178 = vsub.s32 %v2175, %v2177
        %v2179 = vrot.slane %v1477, %v2178
        %v2180 = vsel %vm1786, %v2148, 0
        %v2182 = vsel %vm1786, %v2155, 0
        %v2184 = vsel %vm1786, %v2172, 0
        %v2186 = vsel %vm1786, %v2179, 0
        %2188 = vmatprep.subr.mxu0 0.0
        %2189 = vmatpush1.xpose.msra.mxu0 %v2184
        %2190 = vmatprep.subr.mxu0 0.0
        %2191 = vmatpush1.xpose.msra.mxu0 %v2186
        %2192 = vmatprep.subr.mxu0 0.0
        %2193 = vmatpush1.xpose.msra.mxu0 0.0
        %2194 = vmatprep.subr.mxu0 0.0
        %2195 = vmatpush1.xpose.msra.mxu0 0.0
        %2196 = vmatprep.subr.mxu0 0.0
        %2197 = vmatpush1.xpose.msra.mxu0 0.0
        %2198 = vmatprep.subr.mxu0 0.0
        %2199 = vmatpush1.xpose.msra.mxu0 0.0
        %2200 = vmatprep.subr.mxu0 0.0
        %2201 = vmatpush1.xpose.msra.mxu0 0.0
        %2202 = vmatprep.subr.mxu0 0.0
        %2203 = vmatpush1.xpose.msra.mxu0 0.0
        %2204 = vmatprep.subr.mxu0 0.0
        %2205 = vmatpush1.xpose.msra.mxu0 0.0
        %2206 = vmatprep.subr.mxu0 0.0
        %2207 = vmatpush1.xpose.msra.mxu0 0.0
        %2208 = vmatprep.subr.mxu0 0.0
        %2209 = vmatpush1.xpose.msra.mxu0 0.0
        %2210 = vmatprep.subr.mxu0 0.0
        %2211 = vmatpush1.xpose.msra.mxu0 0.0
        %2212 = vmatprep.subr.mxu0 0.0
        %2213 = vmatpush1.xpose.msra.mxu0 0.0
        %2214 = vmatprep.subr.mxu0 0.0
        %2215 = vmatpush1.xpose.msra.mxu0 0.0
        %2216 = vmatprep.subr.mxu0 0.0
        %2217 = vmatpush1.xpose.msra.mxu0 0.0
        %2218 = vmatprep.subr.mxu0 0.0
        %2219 = vmatpush1.xpose.msra.mxu0 0.0
        %2220 = vmatprep.subr.mxu0 0.0
        %2221 = vmatpush1.xpose.msra.mxu0 0.0
        %2222 = vmatprep.subr.mxu0 0.0
        %2223 = vmatpush1.xpose.msra.mxu0 0.0
        %2224 = vmatprep.subr.mxu0 0.0
        %2225 = vmatpush1.xpose.msra.mxu0 0.0
        %2226 = vmatprep.subr.mxu0 0.0
        %2227 = vmatpush1.xpose.msra.mxu0 0.0
        %2228 = vmatprep.subr.mxu0 0.0
        %2229 = vmatpush1.xpose.msra.mxu0 0.0
        %2230 = vmatprep.subr.mxu0 0.0
        %2231 = vmatpush1.xpose.msra.mxu0 0.0
        %2232 = vmatprep.subr.mxu0 0.0
        %2233 = vmatpush1.xpose.msra.mxu0 0.0
        %2234 = vmatprep.subr.mxu0 0.0
        %2235 = vmatpush1.xpose.msra.mxu0 0.0
        %2236 = vmatprep.subr.mxu0 0.0
        %2237 = vmatpush1.xpose.msra.mxu0 0.0
        %2238 = vmatprep.subr.mxu0 0.0
        %2239 = vmatpush1.xpose.msra.mxu0 0.0
        %2240 = vmatprep.subr.mxu0 0.0
        %2241 = vmatpush1.xpose.msra.mxu0 0.0
        %2242 = vmatprep.subr.mxu0 0.0
        %2243 = vmatpush1.xpose.msra.mxu0 0.0
        %2244 = vmatprep.subr.mxu0 0.0
        %2245 = vmatpush1.xpose.msra.mxu0 0.0
        %2246 = vmatprep.subr.mxu0 0.0
        %2247 = vmatpush1.xpose.msra.mxu0 0.0
        %2248 = vmatprep.subr.mxu0 0.0
        %2249 = vmatpush1.xpose.msra.mxu0 0.0
        %2250 = vmatprep.subr.mxu0 0.0
        %2251 = vmatpush1.xpose.msra.mxu0 0.0
        %2252 = vmatprep.mubr.f32.mxu0 0.0
        %2253 = vmatmul.mubr.f32.gmra.mrb[0].mxu0 %v2180
        %v2254 = vpop.f32.mrb[0].mxu0
        %v2255 = vadd.f32 0.0, %v2254
        %v2256 = vpop.f32.mrb[0].mxu0
        %2257 = vmatprep.mubr.f32.mxu0 0.0
        %2258 = vmatmul.mubr.f32.gmra.mrb[0].mxu0 %v2182
        %v2259 = vpop.f32.mrb[0].mxu0
        %v2260 = vadd.f32 0.0, %v2259
        %v2261 = vpop.f32.mrb[0].mxu0
        %2262 = vdwg.mxu0
        %v2263 = vcombine.low %v1339, %v1341
        %v2264 = vcombine.low %v1343, %v1345
        %v2266 = vunpack.c.l.s4 1983009808
        %v2267 = vunpack.c.0.s8 %v2266
        %v2268 = vlaneseq
        %v2269 = vshrl.u32 %v2268, 7
        %v2270 = vsub.s32 %v2267, %v2269
        %v2271 = vrot.slane %v2263, %v2270
        %v2273 = vunpack.c.l.s4 1983009808
        %v2274 = vunpack.c.0.s8 %v2273
        %v2275 = vlaneseq
        %v2276 = vshrl.u32 %v2275, 7
        %v2277 = vsub.s32 %v2274, %v2276
        %v2278 = vrot.slane %v2264, %v2277
        %v2279 = vcombine.low %v2271, %v2278
        %v2281 = vunpack.c.l.s4 1983009808
        %v2282 = vunpack.c.0.s8 %v2281
        %v2283 = vlaneseq
        %v2284 = vshrl.u32 %v2283, 7
        %v2285 = vsub.s32 %v2282, %v2284
        %v2286 = vrot.slane %v1347, %v2285
        %v2287 = vcombine.low %v1479, %v1481
        %v2288 = vcombine.low %v1483, %v1485
        %v2290 = vunpack.c.l.s4 1983009808
        %v2291 = vunpack.c.0.s8 %v2290
        %v2292 = vlaneseq
        %v2293 = vshrl.u32 %v2292, 7
        %v2294 = vsub.s32 %v2291, %v2293
        %v2295 = vrot.slane %v2287, %v2294
        %v2297 = vunpack.c.l.s4 1983009808
        %v2298 = vunpack.c.0.s8 %v2297
        %v2299 = vlaneseq
        %v2300 = vshrl.u32 %v2299, 7
        %v2301 = vsub.s32 %v2298, %v2300
        %v2302 = vrot.slane %v2288, %v2301
        %v2303 = vcombine.low %v2295, %v2302
        %v2305 = vunpack.c.l.s4 1983009808
        %v2306 = vunpack.c.0.s8 %v2305
        %v2307 = vlaneseq
        %v2308 = vshrl.u32 %v2307, 7
        %v2309 = vsub.s32 %v2306, %v2308
        %v2310 = vrot.slane %v1487, %v2309
        %v2311 = vsel %vm1786, %v2279, 0
        %v2313 = vsel %vm1786, %v2286, 0
        %v2315 = vsel %vm1786, %v2303, 0
        %v2317 = vsel %vm1786, %v2310, 0
        %2319 = vmatprep.subr.mxu0 0.0
        %2320 = vmatpush1.xpose.msra.mxu0 %v2315
        %2321 = vmatprep.subr.mxu0 0.0
        %2322 = vmatpush1.xpose.msra.mxu0 %v2317
        %2323 = vmatprep.subr.mxu0 0.0
        %2324 = vmatpush1.xpose.msra.mxu0 0.0
        %2325 = vmatprep.subr.mxu0 0.0
        %2326 = vmatpush1.xpose.msra.mxu0 0.0
        %2327 = vmatprep.subr.mxu0 0.0
        %2328 = vmatpush1.xpose.msra.mxu0 0.0
        %2329 = vmatprep.subr.mxu0 0.0
        %2330 = vmatpush1.xpose.msra.mxu0 0.0
        %2331 = vmatprep.subr.mxu0 0.0
        %2332 = vmatpush1.xpose.msra.mxu0 0.0
        %2333 = vmatprep.subr.mxu0 0.0
        %2334 = vmatpush1.xpose.msra.mxu0 0.0
        %2335 = vmatprep.subr.mxu0 0.0
        %2336 = vmatpush1.xpose.msra.mxu0 0.0
        %2337 = vmatprep.subr.mxu0 0.0
        %2338 = vmatpush1.xpose.msra.mxu0 0.0
        %2339 = vmatprep.subr.mxu0 0.0
        %2340 = vmatpush1.xpose.msra.mxu0 0.0
        %2341 = vmatprep.subr.mxu0 0.0
        %2342 = vmatpush1.xpose.msra.mxu0 0.0
        %2343 = vmatprep.subr.mxu0 0.0
        %2344 = vmatpush1.xpose.msra.mxu0 0.0
        %2345 = vmatprep.subr.mxu0 0.0
        %2346 = vmatpush1.xpose.msra.mxu0 0.0
        %2347 = vmatprep.subr.mxu0 0.0
        %2348 = vmatpush1.xpose.msra.mxu0 0.0
        %2349 = vmatprep.subr.mxu0 0.0
        %2350 = vmatpush1.xpose.msra.mxu0 0.0
        %2351 = vmatprep.subr.mxu0 0.0
        %2352 = vmatpush1.xpose.msra.mxu0 0.0
        %2353 = vmatprep.subr.mxu0 0.0
        %2354 = vmatpush1.xpose.msra.mxu0 0.0
        %2355 = vmatprep.subr.mxu0 0.0
        %2356 = vmatpush1.xpose.msra.mxu0 0.0
        %2357 = vmatprep.subr.mxu0 0.0
        %2358 = vmatpush1.xpose.msra.mxu0 0.0
        %2359 = vmatprep.subr.mxu0 0.0
        %2360 = vmatpush1.xpose.msra.mxu0 0.0
        %2361 = vmatprep.subr.mxu0 0.0
        %2362 = vmatpush1.xpose.msra.mxu0 0.0
        %2363 = vmatprep.subr.mxu0 0.0
        %2364 = vmatpush1.xpose.msra.mxu0 0.0
        %2365 = vmatprep.subr.mxu0 0.0
        %2366 = vmatpush1.xpose.msra.mxu0 0.0
        %2367 = vmatprep.subr.mxu0 0.0
        %2368 = vmatpush1.xpose.msra.mxu0 0.0
        %2369 = vmatprep.subr.mxu0 0.0
        %2370 = vmatpush1.xpose.msra.mxu0 0.0
        %2371 = vmatprep.subr.mxu0 0.0
        %2372 = vmatpush1.xpose.msra.mxu0 0.0
        %2373 = vmatprep.subr.mxu0 0.0
        %2374 = vmatpush1.xpose.msra.mxu0 0.0
        %2375 = vmatprep.subr.mxu0 0.0
        %2376 = vmatpush1.xpose.msra.mxu0 0.0
        %2377 = vmatprep.subr.mxu0 0.0
        %2378 = vmatpush1.xpose.msra.mxu0 0.0
        %2379 = vmatprep.subr.mxu0 0.0
        %2380 = vmatpush1.xpose.msra.mxu0 0.0
        %2381 = vmatprep.subr.mxu0 0.0
        %2382 = vmatpush1.xpose.msra.mxu0 0.0
        %2383 = vmatprep.mubr.f32.mxu0 0.0
        %2384 = vmatmul.mubr.f32.gmra.mrb[0].mxu0 %v2311
        %v2385 = vpop.f32.mrb[0].mxu0
        %v2386 = vadd.f32 0.0, %v2385
        %v2387 = vpop.f32.mrb[0].mxu0
        %2388 = vmatprep.mubr.f32.mxu0 0.0
        %2389 = vmatmul.mubr.f32.gmra.mrb[0].mxu0 %v2313
        %v2390 = vpop.f32.mrb[0].mxu0
        %v2391 = vadd.f32 0.0, %v2390
        %v2392 = vpop.f32.mrb[0].mxu0
        %2393 = vdwg.mxu0
        %v2394 = vcombine.low %v1349, %v1351
        %v2395 = vcombine.low %v1353, %v1355
        %v2397 = vunpack.c.l.s4 1983009808
        %v2398 = vunpack.c.0.s8 %v2397
        %v2399 = vlaneseq
        %v2400 = vshrl.u32 %v2399, 7
        %v2401 = vsub.s32 %v2398, %v2400
        %v2402 = vrot.slane %v2394, %v2401
        %v2404 = vunpack.c.l.s4 1983009808
        %v2405 = vunpack.c.0.s8 %v2404
        %v2406 = vlaneseq
        %v2407 = vshrl.u32 %v2406, 7
        %v2408 = vsub.s32 %v2405, %v2407
        %v2409 = vrot.slane %v2395, %v2408
        %v2410 = vcombine.low %v2402, %v2409
        %v2412 = vunpack.c.l.s4 1983009808
        %v2413 = vunpack.c.0.s8 %v2412
        %v2414 = vlaneseq
        %v2415 = vshrl.u32 %v2414, 7
        %v2416 = vsub.s32 %v2413, %v2415
        %v2417 = vrot.slane %v1357, %v2416
        %v2418 = vcombine.low %v1489, %v1491
        %v2419 = vcombine.low %v1493, %v1495
        %v2421 = vunpack.c.l.s4 1983009808
        %v2422 = vunpack.c.0.s8 %v2421
        %v2423 = vlaneseq
        %v2424 = vshrl.u32 %v2423, 7
        %v2425 = vsub.s32 %v2422, %v2424
        %v2426 = vrot.slane %v2418, %v2425
        %v2428 = vunpack.c.l.s4 1983009808
        %v2429 = vunpack.c.0.s8 %v2428
        %v2430 = vlaneseq
        %v2431 = vshrl.u32 %v2430, 7
        %v2432 = vsub.s32 %v2429, %v2431
        %v2433 = vrot.slane %v2419, %v2432
        %v2434 = vcombine.low %v2426, %v2433
        %v2436 = vunpack.c.l.s4 1983009808
        %v2437 = vunpack.c.0.s8 %v2436
        %v2438 = vlaneseq
        %v2439 = vshrl.u32 %v2438, 7
        %v2440 = vsub.s32 %v2437, %v2439
        %v2441 = vrot.slane %v1497, %v2440
        %v2442 = vsel %vm1786, %v2410, 0
        %v2444 = vsel %vm1786, %v2417, 0
        %v2446 = vsel %vm1786, %v2434, 0
        %v2448 = vsel %vm1786, %v2441, 0
        %2450 = vmatprep.subr.mxu0 0.0
        %2451 = vmatpush1.xpose.msra.mxu0 %v2446
        %2452 = vmatprep.subr.mxu0 0.0
        %2453 = vmatpush1.xpose.msra.mxu0 %v2448
        %2454 = vmatprep.subr.mxu0 0.0
        %2455 = vmatpush1.xpose.msra.mxu0 0.0
        %2456 = vmatprep.subr.mxu0 0.0
        %2457 = vmatpush1.xpose.msra.mxu0 0.0
        %2458 = vmatprep.subr.mxu0 0.0
        %2459 = vmatpush1.xpose.msra.mxu0 0.0
        %2460 = vmatprep.subr.mxu0 0.0
        %2461 = vmatpush1.xpose.msra.mxu0 0.0
        %2462 = vmatprep.subr.mxu0 0.0
        %2463 = vmatpush1.xpose.msra.mxu0 0.0
        %2464 = vmatprep.subr.mxu0 0.0
        %2465 = vmatpush1.xpose.msra.mxu0 0.0
        %2466 = vmatprep.subr.mxu0 0.0
        %2467 = vmatpush1.xpose.msra.mxu0 0.0
        %2468 = vmatprep.subr.mxu0 0.0
        %2469 = vmatpush1.xpose.msra.mxu0 0.0
        %2470 = vmatprep.subr.mxu0 0.0
        %2471 = vmatpush1.xpose.msra.mxu0 0.0
        %2472 = vmatprep.subr.mxu0 0.0
        %2473 = vmatpush1.xpose.msra.mxu0 0.0
        %2474 = vmatprep.subr.mxu0 0.0
        %2475 = vmatpush1.xpose.msra.mxu0 0.0
        %2476 = vmatprep.subr.mxu0 0.0
        %2477 = vmatpush1.xpose.msra.mxu0 0.0
        %2478 = vmatprep.subr.mxu0 0.0
        %2479 = vmatpush1.xpose.msra.mxu0 0.0
        %2480 = vmatprep.subr.mxu0 0.0
        %2481 = vmatpush1.xpose.msra.mxu0 0.0
        %2482 = vmatprep.subr.mxu0 0.0
        %2483 = vmatpush1.xpose.msra.mxu0 0.0
        %2484 = vmatprep.subr.mxu0 0.0
        %2485 = vmatpush1.xpose.msra.mxu0 0.0
        %2486 = vmatprep.subr.mxu0 0.0
        %2487 = vmatpush1.xpose.msra.mxu0 0.0
        %2488 = vmatprep.subr.mxu0 0.0
        %2489 = vmatpush1.xpose.msra.mxu0 0.0
        %2490 = vmatprep.subr.mxu0 0.0
        %2491 = vmatpush1.xpose.msra.mxu0 0.0
        %2492 = vmatprep.subr.mxu0 0.0
        %2493 = vmatpush1.xpose.msra.mxu0 0.0
        %2494 = vmatprep.subr.mxu0 0.0
        %2495 = vmatpush1.xpose.msra.mxu0 0.0
        %2496 = vmatprep.subr.mxu0 0.0
        %2497 = vmatpush1.xpose.msra.mxu0 0.0
        %2498 = vmatprep.subr.mxu0 0.0
        %2499 = vmatpush1.xpose.msra.mxu0 0.0
        %2500 = vmatprep.subr.mxu0 0.0
        %2501 = vmatpush1.xpose.msra.mxu0 0.0
        %2502 = vmatprep.subr.mxu0 0.0
        %2503 = vmatpush1.xpose.msra.mxu0 0.0
        %2504 = vmatprep.subr.mxu0 0.0
        %2505 = vmatpush1.xpose.msra.mxu0 0.0
        %2506 = vmatprep.subr.mxu0 0.0
        %2507 = vmatpush1.xpose.msra.mxu0 0.0
        %2508 = vmatprep.subr.mxu0 0.0
        %2509 = vmatpush1.xpose.msra.mxu0 0.0
        %2510 = vmatprep.subr.mxu0 0.0
        %2511 = vmatpush1.xpose.msra.mxu0 0.0
        %2512 = vmatprep.subr.mxu0 0.0
        %2513 = vmatpush1.xpose.msra.mxu0 0.0
        %2514 = vmatprep.mubr.f32.mxu0 0.0
        %2515 = vmatmul.mubr.f32.gmra.mrb[0].mxu0 %v2442
        %v2516 = vpop.f32.mrb[0].mxu0
        %v2517 = vadd.f32 0.0, %v2516
        %v2518 = vpop.f32.mrb[0].mxu0
        %2519 = vmatprep.mubr.f32.mxu0 0.0
        %2520 = vmatmul.mubr.f32.gmra.mrb[0].mxu0 %v2444
        %v2521 = vpop.f32.mrb[0].mxu0
        %v2522 = vadd.f32 0.0, %v2521
        %v2523 = vpop.f32.mrb[0].mxu0
        %2524 = vdwg.mxu0
        %v2525 = vcombine.low %v1359, %v1361
        %v2526 = vcombine.low %v1363, %v1365
        %v2528 = vunpack.c.l.s4 1983009808
        %v2529 = vunpack.c.0.s8 %v2528
        %v2530 = vlaneseq
        %v2531 = vshrl.u32 %v2530, 7
        %v2532 = vsub.s32 %v2529, %v2531
        %v2533 = vrot.slane %v2525, %v2532
        %v2535 = vunpack.c.l.s4 1983009808
        %v2536 = vunpack.c.0.s8 %v2535
        %v2537 = vlaneseq
        %v2538 = vshrl.u32 %v2537, 7
        %v2539 = vsub.s32 %v2536, %v2538
        %v2540 = vrot.slane %v2526, %v2539
        %v2541 = vcombine.low %v2533, %v2540
        %v2543 = vunpack.c.l.s4 1983009808
        %v2544 = vunpack.c.0.s8 %v2543
        %v2545 = vlaneseq
        %v2546 = vshrl.u32 %v2545, 7
        %v2547 = vsub.s32 %v2544, %v2546
        %v2548 = vrot.slane %v1367, %v2547
        %v2549 = vcombine.low %v1499, %v1501
        %v2550 = vcombine.low %v1503, %v1505
        %v2552 = vunpack.c.l.s4 1983009808
        %v2553 = vunpack.c.0.s8 %v2552
        %v2554 = vlaneseq
        %v2555 = vshrl.u32 %v2554, 7
        %v2556 = vsub.s32 %v2553, %v2555
        %v2557 = vrot.slane %v2549, %v2556
        %v2559 = vunpack.c.l.s4 1983009808
        %v2560 = vunpack.c.0.s8 %v2559
        %v2561 = vlaneseq
        %v2562 = vshrl.u32 %v2561, 7
        %v2563 = vsub.s32 %v2560, %v2562
        %v2564 = vrot.slane %v2550, %v2563
        %v2565 = vcombine.low %v2557, %v2564
        %v2567 = vunpack.c.l.s4 1983009808
        %v2568 = vunpack.c.0.s8 %v2567
        %v2569 = vlaneseq
        %v2570 = vshrl.u32 %v2569, 7
        %v2571 = vsub.s32 %v2568, %v2570
        %v2572 = vrot.slane %v1507, %v2571
        %v2573 = vsel %vm1786, %v2541, 0
        %v2575 = vsel %vm1786, %v2548, 0
        %v2577 = vsel %vm1786, %v2565, 0
        %v2579 = vsel %vm1786, %v2572, 0
        %2581 = vmatprep.subr.mxu0 0.0
        %2582 = vmatpush1.xpose.msra.mxu0 %v2577
        %2583 = vmatprep.subr.mxu0 0.0
        %2584 = vmatpush1.xpose.msra.mxu0 %v2579
        %2585 = vmatprep.subr.mxu0 0.0
        %2586 = vmatpush1.xpose.msra.mxu0 0.0
        %2587 = vmatprep.subr.mxu0 0.0
        %2588 = vmatpush1.xpose.msra.mxu0 0.0
        %2589 = vmatprep.subr.mxu0 0.0
        %2590 = vmatpush1.xpose.msra.mxu0 0.0
        %2591 = vmatprep.subr.mxu0 0.0
        %2592 = vmatpush1.xpose.msra.mxu0 0.0
        %2593 = vmatprep.subr.mxu0 0.0
        %2594 = vmatpush1.xpose.msra.mxu0 0.0
        %2595 = vmatprep.subr.mxu0 0.0
        %2596 = vmatpush1.xpose.msra.mxu0 0.0
        %2597 = vmatprep.subr.mxu0 0.0
        %2598 = vmatpush1.xpose.msra.mxu0 0.0
        %2599 = vmatprep.subr.mxu0 0.0
        %2600 = vmatpush1.xpose.msra.mxu0 0.0
        %2601 = vmatprep.subr.mxu0 0.0
        %2602 = vmatpush1.xpose.msra.mxu0 0.0
        %2603 = vmatprep.subr.mxu0 0.0
        %2604 = vmatpush1.xpose.msra.mxu0 0.0
        %2605 = vmatprep.subr.mxu0 0.0
        %2606 = vmatpush1.xpose.msra.mxu0 0.0
        %2607 = vmatprep.subr.mxu0 0.0
        %2608 = vmatpush1.xpose.msra.mxu0 0.0
        %2609 = vmatprep.subr.mxu0 0.0
        %2610 = vmatpush1.xpose.msra.mxu0 0.0
        %2611 = vmatprep.subr.mxu0 0.0
        %2612 = vmatpush1.xpose.msra.mxu0 0.0
        %2613 = vmatprep.subr.mxu0 0.0
        %2614 = vmatpush1.xpose.msra.mxu0 0.0
        %2615 = vmatprep.subr.mxu0 0.0
        %2616 = vmatpush1.xpose.msra.mxu0 0.0
        %2617 = vmatprep.subr.mxu0 0.0
        %2618 = vmatpush1.xpose.msra.mxu0 0.0
        %2619 = vmatprep.subr.mxu0 0.0
        %2620 = vmatpush1.xpose.msra.mxu0 0.0
        %2621 = vmatprep.subr.mxu0 0.0
        %2622 = vmatpush1.xpose.msra.mxu0 0.0
        %2623 = vmatprep.subr.mxu0 0.0
        %2624 = vmatpush1.xpose.msra.mxu0 0.0
        %2625 = vmatprep.subr.mxu0 0.0
        %2626 = vmatpush1.xpose.msra.mxu0 0.0
        %2627 = vmatprep.subr.mxu0 0.0
        %2628 = vmatpush1.xpose.msra.mxu0 0.0
        %2629 = vmatprep.subr.mxu0 0.0
        %2630 = vmatpush1.xpose.msra.mxu0 0.0
        %2631 = vmatprep.subr.mxu0 0.0
        %2632 = vmatpush1.xpose.msra.mxu0 0.0
        %2633 = vmatprep.subr.mxu0 0.0
        %2634 = vmatpush1.xpose.msra.mxu0 0.0
        %2635 = vmatprep.subr.mxu0 0.0
        %2636 = vmatpush1.xpose.msra.mxu0 0.0
        %2637 = vmatprep.subr.mxu0 0.0
        %2638 = vmatpush1.xpose.msra.mxu0 0.0
        %2639 = vmatprep.subr.mxu0 0.0
        %2640 = vmatpush1.xpose.msra.mxu0 0.0
        %2641 = vmatprep.subr.mxu0 0.0
        %2642 = vmatpush1.xpose.msra.mxu0 0.0
        %2643 = vmatprep.subr.mxu0 0.0
        %2644 = vmatpush1.xpose.msra.mxu0 0.0
        %2645 = vmatprep.mubr.f32.mxu0 0.0
        %2646 = vmatmul.mubr.f32.gmra.mrb[0].mxu0 %v2573
        %v2647 = vpop.f32.mrb[0].mxu0
        %v2648 = vadd.f32 0.0, %v2647
        %v2649 = vpop.f32.mrb[0].mxu0
        %2650 = vmatprep.mubr.f32.mxu0 0.0
        %2651 = vmatmul.mubr.f32.gmra.mrb[0].mxu0 %v2575
        %v2652 = vpop.f32.mrb[0].mxu0
        %v2653 = vadd.f32 0.0, %v2652
        %v2654 = vpop.f32.mrb[0].mxu0
        %2655 = vdwg.mxu0
        %v2656 = vcombine.low %v1369, %v1371
        %v2657 = vcombine.low %v1373, %v1375
        %v2659 = vunpack.c.l.s4 1983009808
        %v2660 = vunpack.c.0.s8 %v2659
        %v2661 = vlaneseq
        %v2662 = vshrl.u32 %v2661, 7
        %v2663 = vsub.s32 %v2660, %v2662
        %v2664 = vrot.slane %v2656, %v2663
        %v2666 = vunpack.c.l.s4 1983009808
        %v2667 = vunpack.c.0.s8 %v2666
        %v2668 = vlaneseq
        %v2669 = vshrl.u32 %v2668, 7
        %v2670 = vsub.s32 %v2667, %v2669
        %v2671 = vrot.slane %v2657, %v2670
        %v2672 = vcombine.low %v2664, %v2671
        %v2674 = vunpack.c.l.s4 1983009808
        %v2675 = vunpack.c.0.s8 %v2674
        %v2676 = vlaneseq
        %v2677 = vshrl.u32 %v2676, 7
        %v2678 = vsub.s32 %v2675, %v2677
        %v2679 = vrot.slane %v1377, %v2678
        %v2680 = vcombine.low %v1509, %v1511
        %v2681 = vcombine.low %v1513, %v1515
        %v2683 = vunpack.c.l.s4 1983009808
        %v2684 = vunpack.c.0.s8 %v2683
        %v2685 = vlaneseq
        %v2686 = vshrl.u32 %v2685, 7
        %v2687 = vsub.s32 %v2684, %v2686
        %v2688 = vrot.slane %v2680, %v2687
        %v2690 = vunpack.c.l.s4 1983009808
        %v2691 = vunpack.c.0.s8 %v2690
        %v2692 = vlaneseq
        %v2693 = vshrl.u32 %v2692, 7
        %v2694 = vsub.s32 %v2691, %v2693
        %v2695 = vrot.slane %v2681, %v2694
        %v2696 = vcombine.low %v2688, %v2695
        %v2698 = vunpack.c.l.s4 1983009808
        %v2699 = vunpack.c.0.s8 %v2698
        %v2700 = vlaneseq
        %v2701 = vshrl.u32 %v2700, 7
        %v2702 = vsub.s32 %v2699, %v2701
        %v2703 = vrot.slane %v1517, %v2702
        %v2704 = vsel %vm1786, %v2672, 0
        %v2706 = vsel %vm1786, %v2679, 0
        %v2708 = vsel %vm1786, %v2696, 0
        %v2710 = vsel %vm1786, %v2703, 0
        %2712 = vmatprep.subr.mxu0 0.0
        %2713 = vmatpush1.xpose.msra.mxu0 %v2708
        %2714 = vmatprep.subr.mxu0 0.0
        %2715 = vmatpush1.xpose.msra.mxu0 %v2710
        %2716 = vmatprep.subr.mxu0 0.0
        %2717 = vmatpush1.xpose.msra.mxu0 0.0
        %2718 = vmatprep.subr.mxu0 0.0
        %2719 = vmatpush1.xpose.msra.mxu0 0.0
        %2720 = vmatprep.subr.mxu0 0.0
        %2721 = vmatpush1.xpose.msra.mxu0 0.0
        %2722 = vmatprep.subr.mxu0 0.0
        %2723 = vmatpush1.xpose.msra.mxu0 0.0
        %2724 = vmatprep.subr.mxu0 0.0
        %2725 = vmatpush1.xpose.msra.mxu0 0.0
        %2726 = vmatprep.subr.mxu0 0.0
        %2727 = vmatpush1.xpose.msra.mxu0 0.0
        %2728 = vmatprep.subr.mxu0 0.0
        %2729 = vmatpush1.xpose.msra.mxu0 0.0
        %2730 = vmatprep.subr.mxu0 0.0
        %2731 = vmatpush1.xpose.msra.mxu0 0.0
        %2732 = vmatprep.subr.mxu0 0.0
        %2733 = vmatpush1.xpose.msra.mxu0 0.0
        %2734 = vmatprep.subr.mxu0 0.0
        %2735 = vmatpush1.xpose.msra.mxu0 0.0
        %2736 = vmatprep.subr.mxu0 0.0
        %2737 = vmatpush1.xpose.msra.mxu0 0.0
        %2738 = vmatprep.subr.mxu0 0.0
        %2739 = vmatpush1.xpose.msra.mxu0 0.0
        %2740 = vmatprep.subr.mxu0 0.0
        %2741 = vmatpush1.xpose.msra.mxu0 0.0
        %2742 = vmatprep.subr.mxu0 0.0
        %2743 = vmatpush1.xpose.msra.mxu0 0.0
        %2744 = vmatprep.subr.mxu0 0.0
        %2745 = vmatpush1.xpose.msra.mxu0 0.0
        %2746 = vmatprep.subr.mxu0 0.0
        %2747 = vmatpush1.xpose.msra.mxu0 0.0
        %2748 = vmatprep.subr.mxu0 0.0
        %2749 = vmatpush1.xpose.msra.mxu0 0.0
        %2750 = vmatprep.subr.mxu0 0.0
        %2751 = vmatpush1.xpose.msra.mxu0 0.0
        %2752 = vmatprep.subr.mxu0 0.0
        %2753 = vmatpush1.xpose.msra.mxu0 0.0
        %2754 = vmatprep.subr.mxu0 0.0
        %2755 = vmatpush1.xpose.msra.mxu0 0.0
        %2756 = vmatprep.subr.mxu0 0.0
        %2757 = vmatpush1.xpose.msra.mxu0 0.0
        %2758 = vmatprep.subr.mxu0 0.0
        %2759 = vmatpush1.xpose.msra.mxu0 0.0
        %2760 = vmatprep.subr.mxu0 0.0
        %2761 = vmatpush1.xpose.msra.mxu0 0.0
        %2762 = vmatprep.subr.mxu0 0.0
        %2763 = vmatpush1.xpose.msra.mxu0 0.0
        %2764 = vmatprep.subr.mxu0 0.0
        %2765 = vmatpush1.xpose.msra.mxu0 0.0
        %2766 = vmatprep.subr.mxu0 0.0
        %2767 = vmatpush1.xpose.msra.mxu0 0.0
        %2768 = vmatprep.subr.mxu0 0.0
        %2769 = vmatpush1.xpose.msra.mxu0 0.0
        %2770 = vmatprep.subr.mxu0 0.0
        %2771 = vmatpush1.xpose.msra.mxu0 0.0
        %2772 = vmatprep.subr.mxu0 0.0
        %2773 = vmatpush1.xpose.msra.mxu0 0.0
        %2774 = vmatprep.subr.mxu0 0.0
        %2775 = vmatpush1.xpose.msra.mxu0 0.0
        %2776 = vmatprep.mubr.f32.mxu0 0.0
        %2777 = vmatmul.mubr.f32.gmra.mrb[0].mxu0 %v2704
        %v2778 = vpop.f32.mrb[0].mxu0
        %v2779 = vadd.f32 0.0, %v2778
        %v2780 = vpop.f32.mrb[0].mxu0
        %2781 = vmatprep.mubr.f32.mxu0 0.0
        %2782 = vmatmul.mubr.f32.gmra.mrb[0].mxu0 %v2706
        %v2783 = vpop.f32.mrb[0].mxu0
        %v2784 = vadd.f32 0.0, %v2783
        %v2785 = vpop.f32.mrb[0].mxu0
        %2786 = vdwg.mxu0
        %v2787 = vcombine.low %v1379, %v1381
        %v2788 = vcombine.low %v1383, %v1385
        %v2790 = vunpack.c.l.s4 1983009808
        %v2791 = vunpack.c.0.s8 %v2790
        %v2792 = vlaneseq
        %v2793 = vshrl.u32 %v2792, 7
        %v2794 = vsub.s32 %v2791, %v2793
        %v2795 = vrot.slane %v2787, %v2794
        %v2797 = vunpack.c.l.s4 1983009808
        %v2798 = vunpack.c.0.s8 %v2797
        %v2799 = vlaneseq
        %v2800 = vshrl.u32 %v2799, 7
        %v2801 = vsub.s32 %v2798, %v2800
        %v2802 = vrot.slane %v2788, %v2801
        %v2803 = vcombine.low %v2795, %v2802
        %v2805 = vunpack.c.l.s4 1983009808
        %v2806 = vunpack.c.0.s8 %v2805
        %v2807 = vlaneseq
        %v2808 = vshrl.u32 %v2807, 7
        %v2809 = vsub.s32 %v2806, %v2808
        %v2810 = vrot.slane %v1387, %v2809
        %v2811 = vcombine.low %v1519, %v1521
        %v2812 = vcombine.low %v1523, %v1525
        %v2814 = vunpack.c.l.s4 1983009808
        %v2815 = vunpack.c.0.s8 %v2814
        %v2816 = vlaneseq
        %v2817 = vshrl.u32 %v2816, 7
        %v2818 = vsub.s32 %v2815, %v2817
        %v2819 = vrot.slane %v2811, %v2818
        %v2821 = vunpack.c.l.s4 1983009808
        %v2822 = vunpack.c.0.s8 %v2821
        %v2823 = vlaneseq
        %v2824 = vshrl.u32 %v2823, 7
        %v2825 = vsub.s32 %v2822, %v2824
        %v2826 = vrot.slane %v2812, %v2825
        %v2827 = vcombine.low %v2819, %v2826
        %v2829 = vunpack.c.l.s4 1983009808
        %v2830 = vunpack.c.0.s8 %v2829
        %v2831 = vlaneseq
        %v2832 = vshrl.u32 %v2831, 7
        %v2833 = vsub.s32 %v2830, %v2832
        %v2834 = vrot.slane %v1527, %v2833
        %v2835 = vsel %vm1786, %v2803, 0
        %v2837 = vsel %vm1786, %v2810, 0
        %v2839 = vsel %vm1786, %v2827, 0
        %v2841 = vsel %vm1786, %v2834, 0
        %2843 = vmatprep.subr.mxu0 0.0
        %2844 = vmatpush1.xpose.msra.mxu0 %v2839
        %2845 = vmatprep.subr.mxu0 0.0
        %2846 = vmatpush1.xpose.msra.mxu0 %v2841
        %2847 = vmatprep.subr.mxu0 0.0
        %2848 = vmatpush1.xpose.msra.mxu0 0.0
        %2849 = vmatprep.subr.mxu0 0.0
        %2850 = vmatpush1.xpose.msra.mxu0 0.0
        %2851 = vmatprep.subr.mxu0 0.0
        %2852 = vmatpush1.xpose.msra.mxu0 0.0
        %2853 = vmatprep.subr.mxu0 0.0
        %2854 = vmatpush1.xpose.msra.mxu0 0.0
        %2855 = vmatprep.subr.mxu0 0.0
        %2856 = vmatpush1.xpose.msra.mxu0 0.0
        %2857 = vmatprep.subr.mxu0 0.0
        %2858 = vmatpush1.xpose.msra.mxu0 0.0
        %2859 = vmatprep.subr.mxu0 0.0
        %2860 = vmatpush1.xpose.msra.mxu0 0.0
        %2861 = vmatprep.subr.mxu0 0.0
        %2862 = vmatpush1.xpose.msra.mxu0 0.0
        %2863 = vmatprep.subr.mxu0 0.0
        %2864 = vmatpush1.xpose.msra.mxu0 0.0
        %2865 = vmatprep.subr.mxu0 0.0
        %2866 = vmatpush1.xpose.msra.mxu0 0.0
        %2867 = vmatprep.subr.mxu0 0.0
        %2868 = vmatpush1.xpose.msra.mxu0 0.0
        %2869 = vmatprep.subr.mxu0 0.0
        %2870 = vmatpush1.xpose.msra.mxu0 0.0
        %2871 = vmatprep.subr.mxu0 0.0
        %2872 = vmatpush1.xpose.msra.mxu0 0.0
        %2873 = vmatprep.subr.mxu0 0.0
        %2874 = vmatpush1.xpose.msra.mxu0 0.0
        %2875 = vmatprep.subr.mxu0 0.0
        %2876 = vmatpush1.xpose.msra.mxu0 0.0
        %2877 = vmatprep.subr.mxu0 0.0
        %2878 = vmatpush1.xpose.msra.mxu0 0.0
        %2879 = vmatprep.subr.mxu0 0.0
        %2880 = vmatpush1.xpose.msra.mxu0 0.0
        %2881 = vmatprep.subr.mxu0 0.0
        %2882 = vmatpush1.xpose.msra.mxu0 0.0
        %2883 = vmatprep.subr.mxu0 0.0
        %2884 = vmatpush1.xpose.msra.mxu0 0.0
        %2885 = vmatprep.subr.mxu0 0.0
        %2886 = vmatpush1.xpose.msra.mxu0 0.0
        %2887 = vmatprep.subr.mxu0 0.0
        %2888 = vmatpush1.xpose.msra.mxu0 0.0
        %2889 = vmatprep.subr.mxu0 0.0
        %2890 = vmatpush1.xpose.msra.mxu0 0.0
        %2891 = vmatprep.subr.mxu0 0.0
        %2892 = vmatpush1.xpose.msra.mxu0 0.0
        %2893 = vmatprep.subr.mxu0 0.0
        %2894 = vmatpush1.xpose.msra.mxu0 0.0
        %2895 = vmatprep.subr.mxu0 0.0
        %2896 = vmatpush1.xpose.msra.mxu0 0.0
        %2897 = vmatprep.subr.mxu0 0.0
        %2898 = vmatpush1.xpose.msra.mxu0 0.0
        %2899 = vmatprep.subr.mxu0 0.0
        %2900 = vmatpush1.xpose.msra.mxu0 0.0
        %2901 = vmatprep.subr.mxu0 0.0
        %2902 = vmatpush1.xpose.msra.mxu0 0.0
        %2903 = vmatprep.subr.mxu0 0.0
        %2904 = vmatpush1.xpose.msra.mxu0 0.0
        %2905 = vmatprep.subr.mxu0 0.0
        %2906 = vmatpush1.xpose.msra.mxu0 0.0
        %2907 = vmatprep.mubr.f32.mxu0 0.0
        %2908 = vmatmul.mubr.f32.gmra.mrb[0].mxu0 %v2835
        %v2909 = vpop.f32.mrb[0].mxu0
        %v2910 = vadd.f32 0.0, %v2909
        %v2911 = vpop.f32.mrb[0].mxu0
        %2912 = vmatprep.mubr.f32.mxu0 0.0
        %2913 = vmatmul.mubr.f32.gmra.mrb[0].mxu0 %v2837
        %v2914 = vpop.f32.mrb[0].mxu0
        %v2915 = vadd.f32 0.0, %v2914
        %v2916 = vpop.f32.mrb[0].mxu0
        %2917 = vdwg.mxu0
        %v2918 = vcombine.low %v1389, %v1391
        %v2919 = vcombine.low %v1393, %v1395
        %v2921 = vunpack.c.l.s4 1983009808
        %v2922 = vunpack.c.0.s8 %v2921
        %v2923 = vlaneseq
        %v2924 = vshrl.u32 %v2923, 7
        %v2925 = vsub.s32 %v2922, %v2924
        %v2926 = vrot.slane %v2918, %v2925
        %v2928 = vunpack.c.l.s4 1983009808
        %v2929 = vunpack.c.0.s8 %v2928
        %v2930 = vlaneseq
        %v2931 = vshrl.u32 %v2930, 7
        %v2932 = vsub.s32 %v2929, %v2931
        %v2933 = vrot.slane %v2919, %v2932
        %v2934 = vcombine.low %v2926, %v2933
        %v2936 = vunpack.c.l.s4 1983009808
        %v2937 = vunpack.c.0.s8 %v2936
        %v2938 = vlaneseq
        %v2939 = vshrl.u32 %v2938, 7
        %v2940 = vsub.s32 %v2937, %v2939
        %v2941 = vrot.slane %v1397, %v2940
        %v2942 = vcombine.low %v1529, %v1531
        %v2943 = vcombine.low %v1533, %v1535
        %v2945 = vunpack.c.l.s4 1983009808
        %v2946 = vunpack.c.0.s8 %v2945
        %v2947 = vlaneseq
        %v2948 = vshrl.u32 %v2947, 7
        %v2949 = vsub.s32 %v2946, %v2948
        %v2950 = vrot.slane %v2942, %v2949
        %v2952 = vunpack.c.l.s4 1983009808
        %v2953 = vunpack.c.0.s8 %v2952
        %v2954 = vlaneseq
        %v2955 = vshrl.u32 %v2954, 7
        %v2956 = vsub.s32 %v2953, %v2955
        %v2957 = vrot.slane %v2943, %v2956
        %v2958 = vcombine.low %v2950, %v2957
        %v2960 = vunpack.c.l.s4 1983009808
        %v2961 = vunpack.c.0.s8 %v2960
        %v2962 = vlaneseq
        %v2963 = vshrl.u32 %v2962, 7
        %v2964 = vsub.s32 %v2961, %v2963
        %v2965 = vrot.slane %v1537, %v2964
        %v2966 = vsel %vm1786, %v2934, 0
        %v2968 = vsel %vm1786, %v2941, 0
        %v2970 = vsel %vm1786, %v2958, 0
        %v2972 = vsel %vm1786, %v2965, 0
        %2974 = vmatprep.subr.mxu0 0.0
        %2975 = vmatpush1.xpose.msra.mxu0 %v2970
        %2976 = vmatprep.subr.mxu0 0.0
        %2977 = vmatpush1.xpose.msra.mxu0 %v2972
        %2978 = vmatprep.subr.mxu0 0.0
        %2979 = vmatpush1.xpose.msra.mxu0 0.0
        %2980 = vmatprep.subr.mxu0 0.0
        %2981 = vmatpush1.xpose.msra.mxu0 0.0
        %2982 = vmatprep.subr.mxu0 0.0
        %2983 = vmatpush1.xpose.msra.mxu0 0.0
        %2984 = vmatprep.subr.mxu0 0.0
        %2985 = vmatpush1.xpose.msra.mxu0 0.0
        %2986 = vmatprep.subr.mxu0 0.0
        %2987 = vmatpush1.xpose.msra.mxu0 0.0
        %2988 = vmatprep.subr.mxu0 0.0
        %2989 = vmatpush1.xpose.msra.mxu0 0.0
        %2990 = vmatprep.subr.mxu0 0.0
        %2991 = vmatpush1.xpose.msra.mxu0 0.0
        %2992 = vmatprep.subr.mxu0 0.0
        %2993 = vmatpush1.xpose.msra.mxu0 0.0
        %2994 = vmatprep.subr.mxu0 0.0
        %2995 = vmatpush1.xpose.msra.mxu0 0.0
        %2996 = vmatprep.subr.mxu0 0.0
        %2997 = vmatpush1.xpose.msra.mxu0 0.0
        %2998 = vmatprep.subr.mxu0 0.0
        %2999 = vmatpush1.xpose.msra.mxu0 0.0
        %3000 = vmatprep.subr.mxu0 0.0
        %3001 = vmatpush1.xpose.msra.mxu0 0.0
        %3002 = vmatprep.subr.mxu0 0.0
        %3003 = vmatpush1.xpose.msra.mxu0 0.0
        %3004 = vmatprep.subr.mxu0 0.0
        %3005 = vmatpush1.xpose.msra.mxu0 0.0
        %3006 = vmatprep.subr.mxu0 0.0
        %3007 = vmatpush1.xpose.msra.mxu0 0.0
        %3008 = vmatprep.subr.mxu0 0.0
        %3009 = vmatpush1.xpose.msra.mxu0 0.0
        %3010 = vmatprep.subr.mxu0 0.0
        %3011 = vmatpush1.xpose.msra.mxu0 0.0
        %3012 = vmatprep.subr.mxu0 0.0
        %3013 = vmatpush1.xpose.msra.mxu0 0.0
        %3014 = vmatprep.subr.mxu0 0.0
        %3015 = vmatpush1.xpose.msra.mxu0 0.0
        %3016 = vmatprep.subr.mxu0 0.0
        %3017 = vmatpush1.xpose.msra.mxu0 0.0
        %3018 = vmatprep.subr.mxu0 0.0
        %3019 = vmatpush1.xpose.msra.mxu0 0.0
        %3020 = vmatprep.subr.mxu0 0.0
        %3021 = vmatpush1.xpose.msra.mxu0 0.0
        %3022 = vmatprep.subr.mxu0 0.0
        %3023 = vmatpush1.xpose.msra.mxu0 0.0
        %3024 = vmatprep.subr.mxu0 0.0
        %3025 = vmatpush1.xpose.msra.mxu0 0.0
        %3026 = vmatprep.subr.mxu0 0.0
        %3027 = vmatpush1.xpose.msra.mxu0 0.0
        %3028 = vmatprep.subr.mxu0 0.0
        %3029 = vmatpush1.xpose.msra.mxu0 0.0
        %3030 = vmatprep.subr.mxu0 0.0
        %3031 = vmatpush1.xpose.msra.mxu0 0.0
        %3032 = vmatprep.subr.mxu0 0.0
        %3033 = vmatpush1.xpose.msra.mxu0 0.0
        %3034 = vmatprep.subr.mxu0 0.0
        %3035 = vmatpush1.xpose.msra.mxu0 0.0
        %3036 = vmatprep.subr.mxu0 0.0
        %3037 = vmatpush1.xpose.msra.mxu0 0.0
        %3038 = vmatprep.mubr.f32.mxu0 0.0
        %3039 = vmatmul.mubr.f32.gmra.mrb[0].mxu0 %v2966
        %v3040 = vpop.f32.mrb[0].mxu0
        %v3041 = vadd.f32 0.0, %v3040
        %v3042 = vpop.f32.mrb[0].mxu0
        %3043 = vmatprep.mubr.f32.mxu0 0.0
        %3044 = vmatmul.mubr.f32.gmra.mrb[0].mxu0 %v2968
        %v3045 = vpop.f32.mrb[0].mxu0
        %v3046 = vadd.f32 0.0, %v3045
        %v3047 = vpop.f32.mrb[0].mxu0
        %3048 = vdwg.mxu0
        %v3049 = vcombine.low %v1399, %v1401
        %v3050 = vcombine.low %v1403, %v1405
        %v3052 = vunpack.c.l.s4 1983009808
        %v3053 = vunpack.c.0.s8 %v3052
        %v3054 = vlaneseq
        %v3055 = vshrl.u32 %v3054, 7
        %v3056 = vsub.s32 %v3053, %v3055
        %v3057 = vrot.slane %v3049, %v3056
        %v3059 = vunpack.c.l.s4 1983009808
        %v3060 = vunpack.c.0.s8 %v3059
        %v3061 = vlaneseq
        %v3062 = vshrl.u32 %v3061, 7
        %v3063 = vsub.s32 %v3060, %v3062
        %v3064 = vrot.slane %v3050, %v3063
        %v3065 = vcombine.low %v3057, %v3064
        %v3067 = vunpack.c.l.s4 1983009808
        %v3068 = vunpack.c.0.s8 %v3067
        %v3069 = vlaneseq
        %v3070 = vshrl.u32 %v3069, 7
        %v3071 = vsub.s32 %v3068, %v3070
        %v3072 = vrot.slane %v1407, %v3071
        %v3073 = vcombine.low %v1539, %v1541
        %v3074 = vcombine.low %v1543, %v1545
        %v3076 = vunpack.c.l.s4 1983009808
        %v3077 = vunpack.c.0.s8 %v3076
        %v3078 = vlaneseq
        %v3079 = vshrl.u32 %v3078, 7
        %v3080 = vsub.s32 %v3077, %v3079
        %v3081 = vrot.slane %v3073, %v3080
        %v3083 = vunpack.c.l.s4 1983009808
        %v3084 = vunpack.c.0.s8 %v3083
        %v3085 = vlaneseq
        %v3086 = vshrl.u32 %v3085, 7
        %v3087 = vsub.s32 %v3084, %v3086
        %v3088 = vrot.slane %v3074, %v3087
        %v3089 = vcombine.low %v3081, %v3088
        %v3091 = vunpack.c.l.s4 1983009808
        %v3092 = vunpack.c.0.s8 %v3091
        %v3093 = vlaneseq
        %v3094 = vshrl.u32 %v3093, 7
        %v3095 = vsub.s32 %v3092, %v3094
        %v3096 = vrot.slane %v1547, %v3095
        %v3097 = vsel %vm1786, %v3065, 0
        %v3099 = vsel %vm1786, %v3072, 0
        %v3101 = vsel %vm1786, %v3089, 0
        %v3103 = vsel %vm1786, %v3096, 0
        %3105 = vmatprep.subr.mxu0 0.0
        %3106 = vmatpush1.xpose.msra.mxu0 %v3101
        %3107 = vmatprep.subr.mxu0 0.0
        %3108 = vmatpush1.xpose.msra.mxu0 %v3103
        %3109 = vmatprep.subr.mxu0 0.0
        %3110 = vmatpush1.xpose.msra.mxu0 0.0
        %3111 = vmatprep.subr.mxu0 0.0
        %3112 = vmatpush1.xpose.msra.mxu0 0.0
        %3113 = vmatprep.subr.mxu0 0.0
        %3114 = vmatpush1.xpose.msra.mxu0 0.0
        %3115 = vmatprep.subr.mxu0 0.0
        %3116 = vmatpush1.xpose.msra.mxu0 0.0
        %3117 = vmatprep.subr.mxu0 0.0
        %3118 = vmatpush1.xpose.msra.mxu0 0.0
        %3119 = vmatprep.subr.mxu0 0.0
        %3120 = vmatpush1.xpose.msra.mxu0 0.0
        %3121 = vmatprep.subr.mxu0 0.0
        %3122 = vmatpush1.xpose.msra.mxu0 0.0
        %3123 = vmatprep.subr.mxu0 0.0
        %3124 = vmatpush1.xpose.msra.mxu0 0.0
        %3125 = vmatprep.subr.mxu0 0.0
        %3126 = vmatpush1.xpose.msra.mxu0 0.0
        %3127 = vmatprep.subr.mxu0 0.0
        %3128 = vmatpush1.xpose.msra.mxu0 0.0
        %3129 = vmatprep.subr.mxu0 0.0
        %3130 = vmatpush1.xpose.msra.mxu0 0.0
        %3131 = vmatprep.subr.mxu0 0.0
        %3132 = vmatpush1.xpose.msra.mxu0 0.0
        %3133 = vmatprep.subr.mxu0 0.0
        %3134 = vmatpush1.xpose.msra.mxu0 0.0
        %3135 = vmatprep.subr.mxu0 0.0
        %3136 = vmatpush1.xpose.msra.mxu0 0.0
        %3137 = vmatprep.subr.mxu0 0.0
        %3138 = vmatpush1.xpose.msra.mxu0 0.0
        %3139 = vmatprep.subr.mxu0 0.0
        %3140 = vmatpush1.xpose.msra.mxu0 0.0
        %3141 = vmatprep.subr.mxu0 0.0
        %3142 = vmatpush1.xpose.msra.mxu0 0.0
        %3143 = vmatprep.subr.mxu0 0.0
        %3144 = vmatpush1.xpose.msra.mxu0 0.0
        %3145 = vmatprep.subr.mxu0 0.0
        %3146 = vmatpush1.xpose.msra.mxu0 0.0
        %3147 = vmatprep.subr.mxu0 0.0
        %3148 = vmatpush1.xpose.msra.mxu0 0.0
        %3149 = vmatprep.subr.mxu0 0.0
        %3150 = vmatpush1.xpose.msra.mxu0 0.0
        %3151 = vmatprep.subr.mxu0 0.0
        %3152 = vmatpush1.xpose.msra.mxu0 0.0
        %3153 = vmatprep.subr.mxu0 0.0
        %3154 = vmatpush1.xpose.msra.mxu0 0.0
        %3155 = vmatprep.subr.mxu0 0.0
        %3156 = vmatpush1.xpose.msra.mxu0 0.0
        %3157 = vmatprep.subr.mxu0 0.0
        %3158 = vmatpush1.xpose.msra.mxu0 0.0
        %3159 = vmatprep.subr.mxu0 0.0
        %3160 = vmatpush1.xpose.msra.mxu0 0.0
        %3161 = vmatprep.subr.mxu0 0.0
        %3162 = vmatpush1.xpose.msra.mxu0 0.0
        %3163 = vmatprep.subr.mxu0 0.0
        %3164 = vmatpush1.xpose.msra.mxu0 0.0
        %3165 = vmatprep.subr.mxu0 0.0
        %3166 = vmatpush1.xpose.msra.mxu0 0.0
        %3167 = vmatprep.subr.mxu0 0.0
        %3168 = vmatpush1.xpose.msra.mxu0 0.0
        %3169 = vmatprep.mubr.f32.mxu0 0.0
        %3170 = vmatmul.mubr.f32.gmra.mrb[0].mxu0 %v3097
        %v3171 = vpop.f32.mrb[0].mxu0
        %v3172 = vadd.f32 0.0, %v3171
        %v3173 = vpop.f32.mrb[0].mxu0
        %3174 = vmatprep.mubr.f32.mxu0 0.0
        %3175 = vmatmul.mubr.f32.gmra.mrb[0].mxu0 %v3099
        %v3176 = vpop.f32.mrb[0].mxu0
        %v3177 = vadd.f32 0.0, %v3176
        %v3178 = vpop.f32.mrb[0].mxu0
        %3179 = vdwg.mxu0
        %v3180 = vcombine.low %v1409, %v1411
        %v3181 = vcombine.low %v1413, %v1415
        %v3183 = vunpack.c.l.s4 1983009808
        %v3184 = vunpack.c.0.s8 %v3183
        %v3185 = vlaneseq
        %v3186 = vshrl.u32 %v3185, 7
        %v3187 = vsub.s32 %v3184, %v3186
        %v3188 = vrot.slane %v3180, %v3187
        %v3190 = vunpack.c.l.s4 1983009808
        %v3191 = vunpack.c.0.s8 %v3190
        %v3192 = vlaneseq
        %v3193 = vshrl.u32 %v3192, 7
        %v3194 = vsub.s32 %v3191, %v3193
        %v3195 = vrot.slane %v3181, %v3194
        %v3196 = vcombine.low %v3188, %v3195
        %v3198 = vunpack.c.l.s4 1983009808
        %v3199 = vunpack.c.0.s8 %v3198
        %v3200 = vlaneseq
        %v3201 = vshrl.u32 %v3200, 7
        %v3202 = vsub.s32 %v3199, %v3201
        %v3203 = vrot.slane %v1417, %v3202
        %v3204 = vcombine.low %v1549, %v1551
        %v3205 = vcombine.low %v1553, %v1555
        %v3207 = vunpack.c.l.s4 1983009808
        %v3208 = vunpack.c.0.s8 %v3207
        %v3209 = vlaneseq
        %v3210 = vshrl.u32 %v3209, 7
        %v3211 = vsub.s32 %v3208, %v3210
        %v3212 = vrot.slane %v3204, %v3211
        %v3214 = vunpack.c.l.s4 1983009808
        %v3215 = vunpack.c.0.s8 %v3214
        %v3216 = vlaneseq
        %v3217 = vshrl.u32 %v3216, 7
        %v3218 = vsub.s32 %v3215, %v3217
        %v3219 = vrot.slane %v3205, %v3218
        %v3220 = vcombine.low %v3212, %v3219
        %v3222 = vunpack.c.l.s4 1983009808
        %v3223 = vunpack.c.0.s8 %v3222
        %v3224 = vlaneseq
        %v3225 = vshrl.u32 %v3224, 7
        %v3226 = vsub.s32 %v3223, %v3225
        %v3227 = vrot.slane %v1557, %v3226
        %v3228 = vsel %vm1786, %v3196, 0
        %v3230 = vsel %vm1786, %v3203, 0
        %v3232 = vsel %vm1786, %v3220, 0
        %v3234 = vsel %vm1786, %v3227, 0
        %3236 = vmatprep.subr.mxu0 0.0
        %3237 = vmatpush1.xpose.msra.mxu0 %v3232
        %3238 = vmatprep.subr.mxu0 0.0
        %3239 = vmatpush1.xpose.msra.mxu0 %v3234
        %3240 = vmatprep.subr.mxu0 0.0
        %3241 = vmatpush1.xpose.msra.mxu0 0.0
        %3242 = vmatprep.subr.mxu0 0.0
        %3243 = vmatpush1.xpose.msra.mxu0 0.0
        %3244 = vmatprep.subr.mxu0 0.0
        %3245 = vmatpush1.xpose.msra.mxu0 0.0
        %3246 = vmatprep.subr.mxu0 0.0
        %3247 = vmatpush1.xpose.msra.mxu0 0.0
        %3248 = vmatprep.subr.mxu0 0.0
        %3249 = vmatpush1.xpose.msra.mxu0 0.0
        %3250 = vmatprep.subr.mxu0 0.0
        %3251 = vmatpush1.xpose.msra.mxu0 0.0
        %3252 = vmatprep.subr.mxu0 0.0
        %3253 = vmatpush1.xpose.msra.mxu0 0.0
        %3254 = vmatprep.subr.mxu0 0.0
        %3255 = vmatpush1.xpose.msra.mxu0 0.0
        %3256 = vmatprep.subr.mxu0 0.0
        %3257 = vmatpush1.xpose.msra.mxu0 0.0
        %3258 = vmatprep.subr.mxu0 0.0
        %3259 = vmatpush1.xpose.msra.mxu0 0.0
        %3260 = vmatprep.subr.mxu0 0.0
        %3261 = vmatpush1.xpose.msra.mxu0 0.0
        %3262 = vmatprep.subr.mxu0 0.0
        %3263 = vmatpush1.xpose.msra.mxu0 0.0
        %3264 = vmatprep.subr.mxu0 0.0
        %3265 = vmatpush1.xpose.msra.mxu0 0.0
        %3266 = vmatprep.subr.mxu0 0.0
        %3267 = vmatpush1.xpose.msra.mxu0 0.0
        %3268 = vmatprep.subr.mxu0 0.0
        %3269 = vmatpush1.xpose.msra.mxu0 0.0
        %3270 = vmatprep.subr.mxu0 0.0
        %3271 = vmatpush1.xpose.msra.mxu0 0.0
        %3272 = vmatprep.subr.mxu0 0.0
        %3273 = vmatpush1.xpose.msra.mxu0 0.0
        %3274 = vmatprep.subr.mxu0 0.0
        %3275 = vmatpush1.xpose.msra.mxu0 0.0
        %3276 = vmatprep.subr.mxu0 0.0
        %3277 = vmatpush1.xpose.msra.mxu0 0.0
        %3278 = vmatprep.subr.mxu0 0.0
        %3279 = vmatpush1.xpose.msra.mxu0 0.0
        %3280 = vmatprep.subr.mxu0 0.0
        %3281 = vmatpush1.xpose.msra.mxu0 0.0
        %3282 = vmatprep.subr.mxu0 0.0
        %3283 = vmatpush1.xpose.msra.mxu0 0.0
        %3284 = vmatprep.subr.mxu0 0.0
        %3285 = vmatpush1.xpose.msra.mxu0 0.0
        %3286 = vmatprep.subr.mxu0 0.0
        %3287 = vmatpush1.xpose.msra.mxu0 0.0
        %3288 = vmatprep.subr.mxu0 0.0
        %3289 = vmatpush1.xpose.msra.mxu0 0.0
        %3290 = vmatprep.subr.mxu0 0.0
        %3291 = vmatpush1.xpose.msra.mxu0 0.0
        %3292 = vmatprep.subr.mxu0 0.0
        %3293 = vmatpush1.xpose.msra.mxu0 0.0
        %3294 = vmatprep.subr.mxu0 0.0
        %3295 = vmatpush1.xpose.msra.mxu0 0.0
        %3296 = vmatprep.subr.mxu0 0.0
        %3297 = vmatpush1.xpose.msra.mxu0 0.0
        %3298 = vmatprep.subr.mxu0 0.0
        %3299 = vmatpush1.xpose.msra.mxu0 0.0
        %3300 = vmatprep.mubr.f32.mxu0 0.0
        %3301 = vmatmul.mubr.f32.gmra.mrb[0].mxu0 %v3228
        %v3302 = vpop.f32.mrb[0].mxu0
        %v3303 = vadd.f32 0.0, %v3302
        %v3304 = vpop.f32.mrb[0].mxu0
        %3305 = vmatprep.mubr.f32.mxu0 0.0
        %3306 = vmatmul.mubr.f32.gmra.mrb[0].mxu0 %v3230
        %v3307 = vpop.f32.mrb[0].mxu0
        %v3308 = vadd.f32 0.0, %v3307
        %v3309 = vpop.f32.mrb[0].mxu0
        %3310 = vdwg.mxu0
        %v3311 = vcombine.low %v1419, %v1421
        %v3312 = vcombine.low %v1423, %v1425
        %v3314 = vunpack.c.l.s4 1983009808
        %v3315 = vunpack.c.0.s8 %v3314
        %v3316 = vlaneseq
        %v3317 = vshrl.u32 %v3316, 7
        %v3318 = vsub.s32 %v3315, %v3317
        %v3319 = vrot.slane %v3311, %v3318
        %v3321 = vunpack.c.l.s4 1983009808
        %v3322 = vunpack.c.0.s8 %v3321
        %v3323 = vlaneseq
        %v3324 = vshrl.u32 %v3323, 7
        %v3325 = vsub.s32 %v3322, %v3324
        %v3326 = vrot.slane %v3312, %v3325
        %v3327 = vcombine.low %v3319, %v3326
        %v3329 = vunpack.c.l.s4 1983009808
        %v3330 = vunpack.c.0.s8 %v3329
        %v3331 = vlaneseq
        %v3332 = vshrl.u32 %v3331, 7
        %v3333 = vsub.s32 %v3330, %v3332
        %v3334 = vrot.slane %v1427, %v3333
        %v3335 = vcombine.low %v1559, %v1561
        %v3336 = vcombine.low %v1563, %v1565
        %v3338 = vunpack.c.l.s4 1983009808
        %v3339 = vunpack.c.0.s8 %v3338
        %v3340 = vlaneseq
        %v3341 = vshrl.u32 %v3340, 7
        %v3342 = vsub.s32 %v3339, %v3341
        %v3343 = vrot.slane %v3335, %v3342
        %v3345 = vunpack.c.l.s4 1983009808
        %v3346 = vunpack.c.0.s8 %v3345
        %v3347 = vlaneseq
        %v3348 = vshrl.u32 %v3347, 7
        %v3349 = vsub.s32 %v3346, %v3348
        %v3350 = vrot.slane %v3336, %v3349
        %v3351 = vcombine.low %v3343, %v3350
        %v3353 = vunpack.c.l.s4 1983009808
        %v3354 = vunpack.c.0.s8 %v3353
        %v3355 = vlaneseq
        %v3356 = vshrl.u32 %v3355, 7
        %v3357 = vsub.s32 %v3354, %v3356
        %v3358 = vrot.slane %v1567, %v3357
        %v3359 = vsel %vm1786, %v3327, 0
        %v3361 = vsel %vm1786, %v3334, 0
        %v3363 = vsel %vm1786, %v3351, 0
        %v3365 = vsel %vm1786, %v3358, 0
        %3367 = vmatprep.subr.mxu0 0.0
        %3368 = vmatpush1.xpose.msra.mxu0 %v3363
        %3369 = vmatprep.subr.mxu0 0.0
        %3370 = vmatpush1.xpose.msra.mxu0 %v3365
        %3371 = vmatprep.subr.mxu0 0.0
        %3372 = vmatpush1.xpose.msra.mxu0 0.0
        %3373 = vmatprep.subr.mxu0 0.0
        %3374 = vmatpush1.xpose.msra.mxu0 0.0
        %3375 = vmatprep.subr.mxu0 0.0
        %3376 = vmatpush1.xpose.msra.mxu0 0.0
        %3377 = vmatprep.subr.mxu0 0.0
        %3378 = vmatpush1.xpose.msra.mxu0 0.0
        %3379 = vmatprep.subr.mxu0 0.0
        %3380 = vmatpush1.xpose.msra.mxu0 0.0
        %3381 = vmatprep.subr.mxu0 0.0
        %3382 = vmatpush1.xpose.msra.mxu0 0.0
        %3383 = vmatprep.subr.mxu0 0.0
        %3384 = vmatpush1.xpose.msra.mxu0 0.0
        %3385 = vmatprep.subr.mxu0 0.0
        %3386 = vmatpush1.xpose.msra.mxu0 0.0
        %3387 = vmatprep.subr.mxu0 0.0
        %3388 = vmatpush1.xpose.msra.mxu0 0.0
        %3389 = vmatprep.subr.mxu0 0.0
        %3390 = vmatpush1.xpose.msra.mxu0 0.0
        %3391 = vmatprep.subr.mxu0 0.0
        %3392 = vmatpush1.xpose.msra.mxu0 0.0
        %3393 = vmatprep.subr.mxu0 0.0
        %3394 = vmatpush1.xpose.msra.mxu0 0.0
        %3395 = vmatprep.subr.mxu0 0.0
        %3396 = vmatpush1.xpose.msra.mxu0 0.0
        %3397 = vmatprep.subr.mxu0 0.0
        %3398 = vmatpush1.xpose.msra.mxu0 0.0
        %3399 = vmatprep.subr.mxu0 0.0
        %3400 = vmatpush1.xpose.msra.mxu0 0.0
        %3401 = vmatprep.subr.mxu0 0.0
        %3402 = vmatpush1.xpose.msra.mxu0 0.0
        %3403 = vmatprep.subr.mxu0 0.0
        %3404 = vmatpush1.xpose.msra.mxu0 0.0
        %3405 = vmatprep.subr.mxu0 0.0
        %3406 = vmatpush1.xpose.msra.mxu0 0.0
        %3407 = vmatprep.subr.mxu0 0.0
        %3408 = vmatpush1.xpose.msra.mxu0 0.0
        %3409 = vmatprep.subr.mxu0 0.0
        %3410 = vmatpush1.xpose.msra.mxu0 0.0
        %3411 = vmatprep.subr.mxu0 0.0
        %3412 = vmatpush1.xpose.msra.mxu0 0.0
        %3413 = vmatprep.subr.mxu0 0.0
        %3414 = vmatpush1.xpose.msra.mxu0 0.0
        %3415 = vmatprep.subr.mxu0 0.0
        %3416 = vmatpush1.xpose.msra.mxu0 0.0
        %3417 = vmatprep.subr.mxu0 0.0
        %3418 = vmatpush1.xpose.msra.mxu0 0.0
        %3419 = vmatprep.subr.mxu0 0.0
        %3420 = vmatpush1.xpose.msra.mxu0 0.0
        %3421 = vmatprep.subr.mxu0 0.0
        %3422 = vmatpush1.xpose.msra.mxu0 0.0
        %3423 = vmatprep.subr.mxu0 0.0
        %3424 = vmatpush1.xpose.msra.mxu0 0.0
        %3425 = vmatprep.subr.mxu0 0.0
        %3426 = vmatpush1.xpose.msra.mxu0 0.0
        %3427 = vmatprep.subr.mxu0 0.0
        %3428 = vmatpush1.xpose.msra.mxu0 0.0
        %3429 = vmatprep.subr.mxu0 0.0
        %3430 = vmatpush1.xpose.msra.mxu0 0.0
        %3431 = vmatprep.mubr.f32.mxu0 0.0
        %3432 = vmatmul.mubr.f32.gmra.mrb[0].mxu0 %v3359
        %v3433 = vpop.f32.mrb[0].mxu0
        %v3434 = vadd.f32 0.0, %v3433
        %v3435 = vpop.f32.mrb[0].mxu0
        %3436 = vmatprep.mubr.f32.mxu0 0.0
        %3437 = vmatmul.mubr.f32.gmra.mrb[0].mxu0 %v3361
        %v3438 = vpop.f32.mrb[0].mxu0
        %v3439 = vadd.f32 0.0, %v3438
        %v3440 = vpop.f32.mrb[0].mxu0
        %3441 = vdwg.mxu0
        %v3442 = vcombine.low %v1429, %v1431
        %v3443 = vcombine.low %v1433, %v1435
        %v3445 = vunpack.c.l.s4 1983009808
        %v3446 = vunpack.c.0.s8 %v3445
        %v3447 = vlaneseq
        %v3448 = vshrl.u32 %v3447, 7
        %v3449 = vsub.s32 %v3446, %v3448
        %v3450 = vrot.slane %v3442, %v3449
        %v3452 = vunpack.c.l.s4 1983009808
        %v3453 = vunpack.c.0.s8 %v3452
        %v3454 = vlaneseq
        %v3455 = vshrl.u32 %v3454, 7
        %v3456 = vsub.s32 %v3453, %v3455
        %v3457 = vrot.slane %v3443, %v3456
        %v3458 = vcombine.low %v3450, %v3457
        %v3460 = vunpack.c.l.s4 1983009808
        %v3461 = vunpack.c.0.s8 %v3460
        %v3462 = vlaneseq
        %v3463 = vshrl.u32 %v3462, 7
        %v3464 = vsub.s32 %v3461, %v3463
        %v3465 = vrot.slane %v1437, %v3464
        %v3466 = vcombine.low %v1569, %v1571
        %v3467 = vcombine.low %v1573, %v1575
        %v3469 = vunpack.c.l.s4 1983009808
        %v3470 = vunpack.c.0.s8 %v3469
        %v3471 = vlaneseq
        %v3472 = vshrl.u32 %v3471, 7
        %v3473 = vsub.s32 %v3470, %v3472
        %v3474 = vrot.slane %v3466, %v3473
        %v3476 = vunpack.c.l.s4 1983009808
        %v3477 = vunpack.c.0.s8 %v3476
        %v3478 = vlaneseq
        %v3479 = vshrl.u32 %v3478, 7
        %v3480 = vsub.s32 %v3477, %v3479
        %v3481 = vrot.slane %v3467, %v3480
        %v3482 = vcombine.low %v3474, %v3481
        %v3484 = vunpack.c.l.s4 1983009808
        %v3485 = vunpack.c.0.s8 %v3484
        %v3486 = vlaneseq
        %v3487 = vshrl.u32 %v3486, 7
        %v3488 = vsub.s32 %v3485, %v3487
        %v3489 = vrot.slane %v1577, %v3488
        %v3490 = vsel %vm1786, %v3458, 0
        %v3492 = vsel %vm1786, %v3465, 0
        %v3494 = vsel %vm1786, %v3482, 0
        %v3496 = vsel %vm1786, %v3489, 0
        %3498 = vmatprep.subr.mxu0 0.0
        %3499 = vmatpush1.xpose.msra.mxu0 %v3494
        %3500 = vmatprep.subr.mxu0 0.0
        %3501 = vmatpush1.xpose.msra.mxu0 %v3496
        %3502 = vmatprep.subr.mxu0 0.0
        %3503 = vmatpush1.xpose.msra.mxu0 0.0
        %3504 = vmatprep.subr.mxu0 0.0
        %3505 = vmatpush1.xpose.msra.mxu0 0.0
        %3506 = vmatprep.subr.mxu0 0.0
        %3507 = vmatpush1.xpose.msra.mxu0 0.0
        %3508 = vmatprep.subr.mxu0 0.0
        %3509 = vmatpush1.xpose.msra.mxu0 0.0
        %3510 = vmatprep.subr.mxu0 0.0
        %3511 = vmatpush1.xpose.msra.mxu0 0.0
        %3512 = vmatprep.subr.mxu0 0.0
        %3513 = vmatpush1.xpose.msra.mxu0 0.0
        %3514 = vmatprep.subr.mxu0 0.0
        %3515 = vmatpush1.xpose.msra.mxu0 0.0
        %3516 = vmatprep.subr.mxu0 0.0
        %3517 = vmatpush1.xpose.msra.mxu0 0.0
        %3518 = vmatprep.subr.mxu0 0.0
        %3519 = vmatpush1.xpose.msra.mxu0 0.0
        %3520 = vmatprep.subr.mxu0 0.0
        %3521 = vmatpush1.xpose.msra.mxu0 0.0
        %3522 = vmatprep.subr.mxu0 0.0
        %3523 = vmatpush1.xpose.msra.mxu0 0.0
        %3524 = vmatprep.subr.mxu0 0.0
        %3525 = vmatpush1.xpose.msra.mxu0 0.0
        %3526 = vmatprep.subr.mxu0 0.0
        %3527 = vmatpush1.xpose.msra.mxu0 0.0
        %3528 = vmatprep.subr.mxu0 0.0
        %3529 = vmatpush1.xpose.msra.mxu0 0.0
        %3530 = vmatprep.subr.mxu0 0.0
        %3531 = vmatpush1.xpose.msra.mxu0 0.0
        %3532 = vmatprep.subr.mxu0 0.0
        %3533 = vmatpush1.xpose.msra.mxu0 0.0
        %3534 = vmatprep.subr.mxu0 0.0
        %3535 = vmatpush1.xpose.msra.mxu0 0.0
        %3536 = vmatprep.subr.mxu0 0.0
        %3537 = vmatpush1.xpose.msra.mxu0 0.0
        %3538 = vmatprep.subr.mxu0 0.0
        %3539 = vmatpush1.xpose.msra.mxu0 0.0
        %3540 = vmatprep.subr.mxu0 0.0
        %3541 = vmatpush1.xpose.msra.mxu0 0.0
        %3542 = vmatprep.subr.mxu0 0.0
        %3543 = vmatpush1.xpose.msra.mxu0 0.0
        %3544 = vmatprep.subr.mxu0 0.0
        %3545 = vmatpush1.xpose.msra.mxu0 0.0
        %3546 = vmatprep.subr.mxu0 0.0
        %3547 = vmatpush1.xpose.msra.mxu0 0.0
        %3548 = vmatprep.subr.mxu0 0.0
        %3549 = vmatpush1.xpose.msra.mxu0 0.0
        %3550 = vmatprep.subr.mxu0 0.0
        %3551 = vmatpush1.xpose.msra.mxu0 0.0
        %3552 = vmatprep.subr.mxu0 0.0
        %3553 = vmatpush1.xpose.msra.mxu0 0.0
        %3554 = vmatprep.subr.mxu0 0.0
        %3555 = vmatpush1.xpose.msra.mxu0 0.0
        %3556 = vmatprep.subr.mxu0 0.0
        %3557 = vmatpush1.xpose.msra.mxu0 0.0
        %3558 = vmatprep.subr.mxu0 0.0
        %3559 = vmatpush1.xpose.msra.mxu0 0.0
        %3560 = vmatprep.subr.mxu0 0.0
        %3561 = vmatpush1.xpose.msra.mxu0 0.0
        %3562 = vmatprep.mubr.f32.mxu0 0.0
        %3563 = vmatmul.mubr.f32.gmra.mrb[0].mxu0 %v3490
        %v3564 = vpop.f32.mrb[0].mxu0
        %v3565 = vadd.f32 0.0, %v3564
        %v3566 = vpop.f32.mrb[0].mxu0
        %3567 = vmatprep.mubr.f32.mxu0 0.0
        %3568 = vmatmul.mubr.f32.gmra.mrb[0].mxu0 %v3492
        %v3569 = vpop.f32.mrb[0].mxu0
        %v3570 = vadd.f32 0.0, %v3569
        %v3571 = vpop.f32.mrb[0].mxu0
        %3572 = vdwg.mxu0
        %v3573 = vcombine.low %v1439, %v1441
        %v3574 = vcombine.low %v1443, %v1445
        %v3576 = vunpack.c.l.s4 1983009808
        %v3577 = vunpack.c.0.s8 %v3576
        %v3578 = vlaneseq
        %v3579 = vshrl.u32 %v3578, 7
        %v3580 = vsub.s32 %v3577, %v3579
        %v3581 = vrot.slane %v3573, %v3580
        %v3583 = vunpack.c.l.s4 1983009808
        %v3584 = vunpack.c.0.s8 %v3583
        %v3585 = vlaneseq
        %v3586 = vshrl.u32 %v3585, 7
        %v3587 = vsub.s32 %v3584, %v3586
        %v3588 = vrot.slane %v3574, %v3587
        %v3589 = vcombine.low %v3581, %v3588
        %v3591 = vunpack.c.l.s4 1983009808
        %v3592 = vunpack.c.0.s8 %v3591
        %v3593 = vlaneseq
        %v3594 = vshrl.u32 %v3593, 7
        %v3595 = vsub.s32 %v3592, %v3594
        %v3596 = vrot.slane %v1447, %v3595
        %v3597 = vcombine.low %v1579, %v1581
        %v3598 = vcombine.low %v1583, %v1585
        %v3600 = vunpack.c.l.s4 1983009808
        %v3601 = vunpack.c.0.s8 %v3600
        %v3602 = vlaneseq
        %v3603 = vshrl.u32 %v3602, 7
        %v3604 = vsub.s32 %v3601, %v3603
        %v3605 = vrot.slane %v3597, %v3604
        %v3607 = vunpack.c.l.s4 1983009808
        %v3608 = vunpack.c.0.s8 %v3607
        %v3609 = vlaneseq
        %v3610 = vshrl.u32 %v3609, 7
        %v3611 = vsub.s32 %v3608, %v3610
        %v3612 = vrot.slane %v3598, %v3611
        %v3613 = vcombine.low %v3605, %v3612
        %v3615 = vunpack.c.l.s4 1983009808
        %v3616 = vunpack.c.0.s8 %v3615
        %v3617 = vlaneseq
        %v3618 = vshrl.u32 %v3617, 7
        %v3619 = vsub.s32 %v3616, %v3618
        %v3620 = vrot.slane %v1587, %v3619
        %v3621 = vsel %vm1786, %v3589, 0
        %v3623 = vsel %vm1786, %v3596, 0
        %v3625 = vsel %vm1786, %v3613, 0
        %v3627 = vsel %vm1786, %v3620, 0
        %3629 = vmatprep.subr.mxu0 0.0
        %3630 = vmatpush1.xpose.msra.mxu0 %v3625
        %3631 = vmatprep.subr.mxu0 0.0
        %3632 = vmatpush1.xpose.msra.mxu0 %v3627
        %3633 = vmatprep.subr.mxu0 0.0
        %3634 = vmatpush1.xpose.msra.mxu0 0.0
        %3635 = vmatprep.subr.mxu0 0.0
        %3636 = vmatpush1.xpose.msra.mxu0 0.0
        %3637 = vmatprep.subr.mxu0 0.0
        %3638 = vmatpush1.xpose.msra.mxu0 0.0
        %3639 = vmatprep.subr.mxu0 0.0
        %3640 = vmatpush1.xpose.msra.mxu0 0.0
        %3641 = vmatprep.subr.mxu0 0.0
        %3642 = vmatpush1.xpose.msra.mxu0 0.0
        %3643 = vmatprep.subr.mxu0 0.0
        %3644 = vmatpush1.xpose.msra.mxu0 0.0
        %3645 = vmatprep.subr.mxu0 0.0
        %3646 = vmatpush1.xpose.msra.mxu0 0.0
        %3647 = vmatprep.subr.mxu0 0.0
        %3648 = vmatpush1.xpose.msra.mxu0 0.0
        %3649 = vmatprep.subr.mxu0 0.0
        %3650 = vmatpush1.xpose.msra.mxu0 0.0
        %3651 = vmatprep.subr.mxu0 0.0
        %3652 = vmatpush1.xpose.msra.mxu0 0.0
        %3653 = vmatprep.subr.mxu0 0.0
        %3654 = vmatpush1.xpose.msra.mxu0 0.0
        %3655 = vmatprep.subr.mxu0 0.0
        %3656 = vmatpush1.xpose.msra.mxu0 0.0
        %3657 = vmatprep.subr.mxu0 0.0
        %3658 = vmatpush1.xpose.msra.mxu0 0.0
        %3659 = vmatprep.subr.mxu0 0.0
        %3660 = vmatpush1.xpose.msra.mxu0 0.0
        %3661 = vmatprep.subr.mxu0 0.0
        %3662 = vmatpush1.xpose.msra.mxu0 0.0
        %3663 = vmatprep.subr.mxu0 0.0
        %3664 = vmatpush1.xpose.msra.mxu0 0.0
        %3665 = vmatprep.subr.mxu0 0.0
        %3666 = vmatpush1.xpose.msra.mxu0 0.0
        %3667 = vmatprep.subr.mxu0 0.0
        %3668 = vmatpush1.xpose.msra.mxu0 0.0
        %3669 = vmatprep.subr.mxu0 0.0
        %3670 = vmatpush1.xpose.msra.mxu0 0.0
        %3671 = vmatprep.subr.mxu0 0.0
        %3672 = vmatpush1.xpose.msra.mxu0 0.0
        %3673 = vmatprep.subr.mxu0 0.0
        %3674 = vmatpush1.xpose.msra.mxu0 0.0
        %3675 = vmatprep.subr.mxu0 0.0
        %3676 = vmatpush1.xpose.msra.mxu0 0.0
        %3677 = vmatprep.subr.mxu0 0.0
        %3678 = vmatpush1.xpose.msra.mxu0 0.0
        %3679 = vmatprep.subr.mxu0 0.0
        %3680 = vmatpush1.xpose.msra.mxu0 0.0
        %3681 = vmatprep.subr.mxu0 0.0
        %3682 = vmatpush1.xpose.msra.mxu0 0.0
        %3683 = vmatprep.subr.mxu0 0.0
        %3684 = vmatpush1.xpose.msra.mxu0 0.0
        %3685 = vmatprep.subr.mxu0 0.0
        %3686 = vmatpush1.xpose.msra.mxu0 0.0
        %3687 = vmatprep.subr.mxu0 0.0
        %3688 = vmatpush1.xpose.msra.mxu0 0.0
        %3689 = vmatprep.subr.mxu0 0.0
        %3690 = vmatpush1.xpose.msra.mxu0 0.0
        %3691 = vmatprep.subr.mxu0 0.0
        %3692 = vmatpush1.xpose.msra.mxu0 0.0
        %3693 = vmatprep.mubr.f32.mxu0 0.0
        %3694 = vmatmul.mubr.f32.gmra.mrb[0].mxu0 %v3621
        %v3695 = vpop.f32.mrb[0].mxu0
        %v3696 = vadd.f32 0.0, %v3695
        %v3697 = vpop.f32.mrb[0].mxu0
        %3698 = vmatprep.mubr.f32.mxu0 0.0
        %3699 = vmatmul.mubr.f32.gmra.mrb[0].mxu0 %v3623
        %v3700 = vpop.f32.mrb[0].mxu0
        %v3701 = vadd.f32 0.0, %v3700
        %v3702 = vpop.f32.mrb[0].mxu0
        %3703 = vdwg.mxu0
        %v3704 = vcombine.low %v1449, %v1451
        %v3705 = vcombine.low %v1453, %v1455
        %v3707 = vunpack.c.l.s4 1983009808
        %v3708 = vunpack.c.0.s8 %v3707
        %v3709 = vlaneseq
        %v3710 = vshrl.u32 %v3709, 7
        %v3711 = vsub.s32 %v3708, %v3710
        %v3712 = vrot.slane %v3704, %v3711
        %v3714 = vunpack.c.l.s4 1983009808
        %v3715 = vunpack.c.0.s8 %v3714
        %v3716 = vlaneseq
        %v3717 = vshrl.u32 %v3716, 7
        %v3718 = vsub.s32 %v3715, %v3717
        %v3719 = vrot.slane %v3705, %v3718
        %v3720 = vcombine.low %v3712, %v3719
        %v3722 = vunpack.c.l.s4 1983009808
        %v3723 = vunpack.c.0.s8 %v3722
        %v3724 = vlaneseq
        %v3725 = vshrl.u32 %v3724, 7
        %v3726 = vsub.s32 %v3723, %v3725
        %v3727 = vrot.slane %v1457, %v3726
        %v3728 = vcombine.low %v1589, %v1591
        %v3729 = vcombine.low %v1593, %v1595
        %v3731 = vunpack.c.l.s4 1983009808
        %v3732 = vunpack.c.0.s8 %v3731
        %v3733 = vlaneseq
        %v3734 = vshrl.u32 %v3733, 7
        %v3735 = vsub.s32 %v3732, %v3734
        %v3736 = vrot.slane %v3728, %v3735
        %v3738 = vunpack.c.l.s4 1983009808
        %v3739 = vunpack.c.0.s8 %v3738
        %v3740 = vlaneseq
        %v3741 = vshrl.u32 %v3740, 7
        %v3742 = vsub.s32 %v3739, %v3741
        %v3743 = vrot.slane %v3729, %v3742
        %v3744 = vcombine.low %v3736, %v3743
        %v3746 = vunpack.c.l.s4 1983009808
        %v3747 = vunpack.c.0.s8 %v3746
        %v3748 = vlaneseq
        %v3749 = vshrl.u32 %v3748, 7
        %v3750 = vsub.s32 %v3747, %v3749
        %v3751 = vrot.slane %v1597, %v3750
        %v3752 = vsel %vm1786, %v3720, 0
        %v3754 = vsel %vm1786, %v3727, 0
        %v3756 = vsel %vm1786, %v3744, 0
        %v3758 = vsel %vm1786, %v3751, 0
        %3760 = vmatprep.subr.mxu0 0.0
        %3761 = vmatpush1.xpose.msra.mxu0 %v3756
        %3762 = vmatprep.subr.mxu0 0.0
        %3763 = vmatpush1.xpose.msra.mxu0 %v3758
        %3764 = vmatprep.subr.mxu0 0.0
        %3765 = vmatpush1.xpose.msra.mxu0 0.0
        %3766 = vmatprep.subr.mxu0 0.0
        %3767 = vmatpush1.xpose.msra.mxu0 0.0
        %3768 = vmatprep.subr.mxu0 0.0
        %3769 = vmatpush1.xpose.msra.mxu0 0.0
        %3770 = vmatprep.subr.mxu0 0.0
        %3771 = vmatpush1.xpose.msra.mxu0 0.0
        %3772 = vmatprep.subr.mxu0 0.0
        %3773 = vmatpush1.xpose.msra.mxu0 0.0
        %3774 = vmatprep.subr.mxu0 0.0
        %3775 = vmatpush1.xpose.msra.mxu0 0.0
        %3776 = vmatprep.subr.mxu0 0.0
        %3777 = vmatpush1.xpose.msra.mxu0 0.0
        %3778 = vmatprep.subr.mxu0 0.0
        %3779 = vmatpush1.xpose.msra.mxu0 0.0
        %3780 = vmatprep.subr.mxu0 0.0
        %3781 = vmatpush1.xpose.msra.mxu0 0.0
        %3782 = vmatprep.subr.mxu0 0.0
        %3783 = vmatpush1.xpose.msra.mxu0 0.0
        %3784 = vmatprep.subr.mxu0 0.0
        %3785 = vmatpush1.xpose.msra.mxu0 0.0
        %3786 = vmatprep.subr.mxu0 0.0
        %3787 = vmatpush1.xpose.msra.mxu0 0.0
        %3788 = vmatprep.subr.mxu0 0.0
        %3789 = vmatpush1.xpose.msra.mxu0 0.0
        %3790 = vmatprep.subr.mxu0 0.0
        %3791 = vmatpush1.xpose.msra.mxu0 0.0
        %3792 = vmatprep.subr.mxu0 0.0
        %3793 = vmatpush1.xpose.msra.mxu0 0.0
        %3794 = vmatprep.subr.mxu0 0.0
        %3795 = vmatpush1.xpose.msra.mxu0 0.0
        %3796 = vmatprep.subr.mxu0 0.0
        %3797 = vmatpush1.xpose.msra.mxu0 0.0
        %3798 = vmatprep.subr.mxu0 0.0
        %3799 = vmatpush1.xpose.msra.mxu0 0.0
        %3800 = vmatprep.subr.mxu0 0.0
        %3801 = vmatpush1.xpose.msra.mxu0 0.0
        %3802 = vmatprep.subr.mxu0 0.0
        %3803 = vmatpush1.xpose.msra.mxu0 0.0
        %3804 = vmatprep.subr.mxu0 0.0
        %3805 = vmatpush1.xpose.msra.mxu0 0.0
        %3806 = vmatprep.subr.mxu0 0.0
        %3807 = vmatpush1.xpose.msra.mxu0 0.0
        %3808 = vmatprep.subr.mxu0 0.0
        %3809 = vmatpush1.xpose.msra.mxu0 0.0
        %3810 = vmatprep.subr.mxu0 0.0
        %3811 = vmatpush1.xpose.msra.mxu0 0.0
        %3812 = vmatprep.subr.mxu0 0.0
        %3813 = vmatpush1.xpose.msra.mxu0 0.0
        %3814 = vmatprep.subr.mxu0 0.0
        %3815 = vmatpush1.xpose.msra.mxu0 0.0
        %3816 = vmatprep.subr.mxu0 0.0
        %3817 = vmatpush1.xpose.msra.mxu0 0.0
        %3818 = vmatprep.subr.mxu0 0.0
        %3819 = vmatpush1.xpose.msra.mxu0 0.0
        %3820 = vmatprep.subr.mxu0 0.0
        %3821 = vmatpush1.xpose.msra.mxu0 0.0
        %3822 = vmatprep.subr.mxu0 0.0
        %3823 = vmatpush1.xpose.msra.mxu0 0.0
        %3824 = vmatprep.mubr.f32.mxu0 0.0
        %3825 = vmatmul.mubr.f32.gmra.mrb[0].mxu0 %v3752
        %v3826 = vpop.f32.mrb[0].mxu0
        %v3827 = vadd.f32 0.0, %v3826
        %v3828 = vpop.f32.mrb[0].mxu0
        %3829 = vmatprep.mubr.f32.mxu0 0.0
        %3830 = vmatmul.mubr.f32.gmra.mrb[0].mxu0 %v3754
        %v3831 = vpop.f32.mrb[0].mxu0
        %v3832 = vadd.f32 0.0, %v3831
        %v3833 = vpop.f32.mrb[0].mxu0
        %3834 = vdwg.mxu0
        %vm3835 = vcmask 80896
        %v3836 = vsel %vm3835, %v1862, -inf
        %3837 = vmax.xlane.f32.xlu0 %v3836
        %v3838 = vpop.xlane.xlu0 %3837
        %vm3839 = vcmask 74752
        %v3840 = vsel %vm3839, %v1867, -inf
        %3841 = vmax.xlane.f32.xlu0 %v3840
        %v3842 = vpop.xlane.xlu0 %3841
        %v3843 = vsel %vm3835, %v1993, -inf
        %3844 = vmax.xlane.f32.xlu0 %v3843
        %v3845 = vpop.xlane.xlu0 %3844
        %v3846 = vsel %vm3839, %v1998, -inf
        %3847 = vmax.xlane.f32.xlu0 %v3846
        %v3848 = vpop.xlane.xlu0 %3847
        %v3849 = vsel %vm3835, %v2124, -inf
        %3850 = vmax.xlane.f32.xlu0 %v3849
        %v3851 = vpop.xlane.xlu0 %3850
        %v3852 = vsel %vm3839, %v2129, -inf
        %3853 = vmax.xlane.f32.xlu0 %v3852
        %v3854 = vpop.xlane.xlu0 %3853
        %v3855 = vsel %vm3835, %v2255, -inf
        %3856 = vmax.xlane.f32.xlu0 %v3855
        %v3857 = vpop.xlane.xlu0 %3856
        %v3858 = vsel %vm3839, %v2260, -inf
        %3859 = vmax.xlane.f32.xlu0 %v3858
        %v3860 = vpop.xlane.xlu0 %3859
        %v3861 = vsel %vm3835, %v2386, -inf
        %3862 = vmax.xlane.f32.xlu0 %v3861
        %v3863 = vpop.xlane.xlu0 %3862
        %v3864 = vsel %vm3839, %v2391, -inf
        %3865 = vmax.xlane.f32.xlu0 %v3864
        %v3866 = vpop.xlane.xlu0 %3865
        %v3867 = vsel %vm3835, %v2517, -inf
        %3868 = vmax.xlane.f32.xlu0 %v3867
        %v3869 = vpop.xlane.xlu0 %3868
        %v3870 = vsel %vm3839, %v2522, -inf
        %3871 = vmax.xlane.f32.xlu0 %v3870
        %v3872 = vpop.xlane.xlu0 %3871
        %v3873 = vsel %vm3835, %v2648, -inf
        %3874 = vmax.xlane.f32.xlu0 %v3873
        %v3875 = vpop.xlane.xlu0 %3874
        %v3876 = vsel %vm3839, %v2653, -inf
        %3877 = vmax.xlane.f32.xlu0 %v3876
        %v3878 = vpop.xlane.xlu0 %3877
        %v3879 = vsel %vm3835, %v2779, -inf
        %3880 = vmax.xlane.f32.xlu0 %v3879
        %v3881 = vpop.xlane.xlu0 %3880
        %v3882 = vsel %vm3839, %v2784, -inf
        %3883 = vmax.xlane.f32.xlu0 %v3882
        %v3884 = vpop.xlane.xlu0 %3883
        %v3885 = vsel %vm3835, %v2910, -inf
        %3886 = vmax.xlane.f32.xlu0 %v3885
        %v3887 = vpop.xlane.xlu0 %3886
        %v3888 = vsel %vm3839, %v2915, -inf
        %3889 = vmax.xlane.f32.xlu0 %v3888
        %v3890 = vpop.xlane.xlu0 %3889
        %v3891 = vsel %vm3835, %v3041, -inf
        %3892 = vmax.xlane.f32.xlu0 %v3891
        %v3893 = vpop.xlane.xlu0 %3892
        %v3894 = vsel %vm3839, %v3046, -inf
        %3895 = vmax.xlane.f32.xlu0 %v3894
        %v3896 = vpop.xlane.xlu0 %3895
        %v3897 = vsel %vm3835, %v3172, -inf
        %3898 = vmax.xlane.f32.xlu0 %v3897
        %v3899 = vpop.xlane.xlu0 %3898
        %v3900 = vsel %vm3839, %v3177, -inf
        %3901 = vmax.xlane.f32.xlu0 %v3900
        %v3902 = vpop.xlane.xlu0 %3901
        %v3903 = vsel %vm3835, %v3303, -inf
        %3904 = vmax.xlane.f32.xlu0 %v3903
        %v3905 = vpop.xlane.xlu0 %3904
        %v3906 = vsel %vm3839, %v3308, -inf
        %3907 = vmax.xlane.f32.xlu0 %v3906
        %v3908 = vpop.xlane.xlu0 %3907
        %v3909 = vsel %vm3835, %v3434, -inf
        %3910 = vmax.xlane.f32.xlu0 %v3909
        %v3911 = vpop.xlane.xlu0 %3910
        %v3912 = vsel %vm3839, %v3439, -inf
        %3913 = vmax.xlane.f32.xlu0 %v3912
        %v3914 = vpop.xlane.xlu0 %3913
        %v3915 = vsel %vm3835, %v3565, -inf
        %3916 = vmax.xlane.f32.xlu0 %v3915
        %v3917 = vpop.xlane.xlu0 %3916
        %v3918 = vsel %vm3839, %v3570, -inf
        %3919 = vmax.xlane.f32.xlu0 %v3918
        %v3920 = vpop.xlane.xlu0 %3919
        %v3921 = vsel %vm3835, %v3696, -inf
        %3922 = vmax.xlane.f32.xlu0 %v3921
        %v3923 = vpop.xlane.xlu0 %3922
        %v3924 = vsel %vm3839, %v3701, -inf
        %3925 = vmax.xlane.f32.xlu0 %v3924
        %v3926 = vpop.xlane.xlu0 %3925
        %v3927 = vsel %vm3835, %v3827, -inf
        %3928 = vmax.xlane.f32.xlu0 %v3927
        %v3929 = vpop.xlane.xlu0 %3928
        %v3930 = vsel %vm3839, %v3832, -inf
        %3931 = vmax.xlane.f32.xlu0 %v3930
        %v3932 = vpop.xlane.xlu0 %3931
        %v3933 = vsub.f32 %v1862, %v3838
        %v3934 = vsub.f32 %v1867, %v3842
        %v3935 = vsub.f32 %v1993, %v3845
        %v3936 = vsub.f32 %v1998, %v3848
        %v3937 = vsub.f32 %v2124, %v3851
        %v3938 = vsub.f32 %v2129, %v3854
        %v3939 = vsub.f32 %v2255, %v3857
        %v3940 = vsub.f32 %v2260, %v3860
        %v3941 = vsub.f32 %v2386, %v3863
        %v3942 = vsub.f32 %v2391, %v3866
        %v3943 = vsub.f32 %v2517, %v3869
        %v3944 = vsub.f32 %v2522, %v3872
        %v3945 = vsub.f32 %v2648, %v3875
        %v3946 = vsub.f32 %v2653, %v3878
        %v3947 = vsub.f32 %v2779, %v3881
        %v3948 = vsub.f32 %v2784, %v3884
        %v3949 = vsub.f32 %v2910, %v3887
        %v3950 = vsub.f32 %v2915, %v3890
        %v3951 = vsub.f32 %v3041, %v3893
        %v3952 = vsub.f32 %v3046, %v3896
        %v3953 = vsub.f32 %v3172, %v3899
        %v3954 = vsub.f32 %v3177, %v3902
        %v3955 = vsub.f32 %v3303, %v3905
        %v3956 = vsub.f32 %v3308, %v3908
        %v3957 = vsub.f32 %v3434, %v3911
        %v3958 = vsub.f32 %v3439, %v3914
        %v3959 = vsub.f32 %v3565, %v3917
        %v3960 = vsub.f32 %v3570, %v3920
        %v3961 = vsub.f32 %v3696, %v3923
        %v3962 = vsub.f32 %v3701, %v3926
        %v3963 = vsub.f32 %v3827, %v3929
        %v3964 = vsub.f32 %v3832, %v3932
        %v3965 = vmul.f32 %v3933, 1.442695
        %v3966 = vpow.pop %v3965
        %v3967 = vmul.f32 %v3934, 1.442695
        %v3968 = vpow.pop %v3967
        %v3969 = vmul.f32 %v3935, 1.442695
        %v3970 = vpow.pop %v3969
        %v3971 = vmul.f32 %v3936, 1.442695
        %v3972 = vpow.pop %v3971
        %v3973 = vmul.f32 %v3937, 1.442695
        %v3974 = vpow.pop %v3973
        %v3975 = vmul.f32 %v3938, 1.442695
        %v3976 = vpow.pop %v3975
        %v3977 = vmul.f32 %v3939, 1.442695
        %v3978 = vpow.pop %v3977
        %v3979 = vmul.f32 %v3940, 1.442695
        %v3980 = vpow.pop %v3979
        %v3981 = vmul.f32 %v3941, 1.442695
        %v3982 = vpow.pop %v3981
        %v3983 = vmul.f32 %v3942, 1.442695
        %v3984 = vpow.pop %v3983
        %v3985 = vmul.f32 %v3943, 1.442695
        %v3986 = vpow.pop %v3985
        %v3987 = vmul.f32 %v3944, 1.442695
        %v3988 = vpow.pop %v3987
        %v3989 = vmul.f32 %v3945, 1.442695
        %v3990 = vpow.pop %v3989
        %v3991 = vmul.f32 %v3946, 1.442695
        %v3992 = vpow.pop %v3991
        %v3993 = vmul.f32 %v3947, 1.442695
        %v3994 = vpow.pop %v3993
        %v3995 = vmul.f32 %v3948, 1.442695
        %v3996 = vpow.pop %v3995
        %v3997 = vmul.f32 %v3949, 1.442695
        %v3998 = vpow.pop %v3997
        %v3999 = vmul.f32 %v3950, 1.442695
        %v4000 = vpow.pop %v3999
        %v4001 = vmul.f32 %v3951, 1.442695
        %v4002 = vpow.pop %v4001
        %v4003 = vmul.f32 %v3952, 1.442695
        %v4004 = vpow.pop %v4003
        %v4005 = vmul.f32 %v3953, 1.442695
        %v4006 = vpow.pop %v4005
        %v4007 = vmul.f32 %v3954, 1.442695
        %v4008 = vpow.pop %v4007
        %v4009 = vmul.f32 %v3955, 1.442695
        %v4010 = vpow.pop %v4009
        %v4011 = vmul.f32 %v3956, 1.442695
        %v4012 = vpow.pop %v4011
        %v4013 = vmul.f32 %v3957, 1.442695
        %v4014 = vpow.pop %v4013
        %v4015 = vmul.f32 %v3958, 1.442695
        %v4016 = vpow.pop %v4015
        %v4017 = vmul.f32 %v3959, 1.442695
        %v4018 = vpow.pop %v4017
        %v4019 = vmul.f32 %v3960, 1.442695
        %v4020 = vpow.pop %v4019
        %v4021 = vmul.f32 %v3961, 1.442695
        %v4022 = vpow.pop %v4021
        %v4023 = vmul.f32 %v3962, 1.442695
        %v4024 = vpow.pop %v4023
        %v4025 = vmul.f32 %v3963, 1.442695
        %v4026 = vpow.pop %v4025
        %v4027 = vmul.f32 %v3964, 1.442695
        %v4028 = vpow.pop %v4027
        %v4029 = vsel %vm3835, %v3966, 0.0
        %4030 = vadd.xlane.f32.xlu0 %v4029
        %v4031 = vpop.xlane.xlu0 %4030
        %v4032 = vsel %vm3839, %v3968, 0.0
        %4033 = vadd.xlane.f32.xlu0 %v4032
        %v4034 = vpop.xlane.xlu0 %4033
        %v4035 = vsel %vm3835, %v3970, 0.0
        %4036 = vadd.xlane.f32.xlu0 %v4035
        %v4037 = vpop.xlane.xlu0 %4036
        %v4038 = vsel %vm3839, %v3972, 0.0
        %4039 = vadd.xlane.f32.xlu0 %v4038
        %v4040 = vpop.xlane.xlu0 %4039
        %v4041 = vsel %vm3835, %v3974, 0.0
        %4042 = vadd.xlane.f32.xlu0 %v4041
        %v4043 = vpop.xlane.xlu0 %4042
        %v4044 = vsel %vm3839, %v3976, 0.0
        %4045 = vadd.xlane.f32.xlu0 %v4044
        %v4046 = vpop.xlane.xlu0 %4045
        %v4047 = vsel %vm3835, %v3978, 0.0
        %4048 = vadd.xlane.f32.xlu0 %v4047
        %v4049 = vpop.xlane.xlu0 %4048
        %v4050 = vsel %vm3839, %v3980, 0.0
        %4051 = vadd.xlane.f32.xlu0 %v4050
        %v4052 = vpop.xlane.xlu0 %4051
        %v4053 = vsel %vm3835, %v3982, 0.0
        %4054 = vadd.xlane.f32.xlu0 %v4053
        %v4055 = vpop.xlane.xlu0 %4054
        %v4056 = vsel %vm3839, %v3984, 0.0
        %4057 = vadd.xlane.f32.xlu0 %v4056
        %v4058 = vpop.xlane.xlu0 %4057
        %v4059 = vsel %vm3835, %v3986, 0.0
        %4060 = vadd.xlane.f32.xlu0 %v4059
        %v4061 = vpop.xlane.xlu0 %4060
        %v4062 = vsel %vm3839, %v3988, 0.0
        %4063 = vadd.xlane.f32.xlu0 %v4062
        %v4064 = vpop.xlane.xlu0 %4063
        %v4065 = vsel %vm3835, %v3990, 0.0
        %4066 = vadd.xlane.f32.xlu0 %v4065
        %v4067 = vpop.xlane.xlu0 %4066
        %v4068 = vsel %vm3839, %v3992, 0.0
        %4069 = vadd.xlane.f32.xlu0 %v4068
        %v4070 = vpop.xlane.xlu0 %4069
        %v4071 = vsel %vm3835, %v3994, 0.0
        %4072 = vadd.xlane.f32.xlu0 %v4071
        %v4073 = vpop.xlane.xlu0 %4072
        %v4074 = vsel %vm3839, %v3996, 0.0
        %4075 = vadd.xlane.f32.xlu0 %v4074
        %v4076 = vpop.xlane.xlu0 %4075
        %v4077 = vsel %vm3835, %v3998, 0.0
        %4078 = vadd.xlane.f32.xlu0 %v4077
        %v4079 = vpop.xlane.xlu0 %4078
        %v4080 = vsel %vm3839, %v4000, 0.0
        %4081 = vadd.xlane.f32.xlu0 %v4080
        %v4082 = vpop.xlane.xlu0 %4081
        %v4083 = vsel %vm3835, %v4002, 0.0
        %4084 = vadd.xlane.f32.xlu0 %v4083
        %v4085 = vpop.xlane.xlu0 %4084
        %v4086 = vsel %vm3839, %v4004, 0.0
        %4087 = vadd.xlane.f32.xlu0 %v4086
        %v4088 = vpop.xlane.xlu0 %4087
        %v4089 = vsel %vm3835, %v4006, 0.0
        %4090 = vadd.xlane.f32.xlu0 %v4089
        %v4091 = vpop.xlane.xlu0 %4090
        %v4092 = vsel %vm3839, %v4008, 0.0
        %4093 = vadd.xlane.f32.xlu0 %v4092
        %v4094 = vpop.xlane.xlu0 %4093
        %v4095 = vsel %vm3835, %v4010, 0.0
        %4096 = vadd.xlane.f32.xlu0 %v4095
        %v4097 = vpop.xlane.xlu0 %4096
        %v4098 = vsel %vm3839, %v4012, 0.0
        %4099 = vadd.xlane.f32.xlu0 %v4098
        %v4100 = vpop.xlane.xlu0 %4099
        %v4101 = vsel %vm3835, %v4014, 0.0
        %4102 = vadd.xlane.f32.xlu0 %v4101
        %v4103 = vpop.xlane.xlu0 %4102
        %v4104 = vsel %vm3839, %v4016, 0.0
        %4105 = vadd.xlane.f32.xlu0 %v4104
        %v4106 = vpop.xlane.xlu0 %4105
        %v4107 = vsel %vm3835, %v4018, 0.0
        %4108 = vadd.xlane.f32.xlu0 %v4107
        %v4109 = vpop.xlane.xlu0 %4108
        %v4110 = vsel %vm3839, %v4020, 0.0
        %4111 = vadd.xlane.f32.xlu0 %v4110
        %v4112 = vpop.xlane.xlu0 %4111
        %v4113 = vsel %vm3835, %v4022, 0.0
        %4114 = vadd.xlane.f32.xlu0 %v4113
        %v4115 = vpop.xlane.xlu0 %4114
        %v4116 = vsel %vm3839, %v4024, 0.0
        %4117 = vadd.xlane.f32.xlu0 %v4116
        %v4118 = vpop.xlane.xlu0 %4117
        %v4119 = vsel %vm3835, %v4026, 0.0
        %4120 = vadd.xlane.f32.xlu0 %v4119
        %v4121 = vpop.xlane.xlu0 %4120
        %v4122 = vsel %vm3839, %v4028, 0.0
        %4123 = vadd.xlane.f32.xlu0 %v4122
        %v4124 = vpop.xlane.xlu0 %4123
        %v4125 = vrcp.pop %v4031
        %v4126 = vrcp.pop %v4034
        %v4127 = vrcp.pop %v4037
        %v4128 = vrcp.pop %v4040
        %v4129 = vrcp.pop %v4043
        %v4130 = vrcp.pop %v4046
        %v4131 = vrcp.pop %v4049
        %v4132 = vrcp.pop %v4052
        %v4133 = vrcp.pop %v4055
        %v4134 = vrcp.pop %v4058
        %v4135 = vrcp.pop %v4061
        %v4136 = vrcp.pop %v4064
        %v4137 = vrcp.pop %v4067
        %v4138 = vrcp.pop %v4070
        %v4139 = vrcp.pop %v4073
        %v4140 = vrcp.pop %v4076
        %v4141 = vrcp.pop %v4079
        %v4142 = vrcp.pop %v4082
        %v4143 = vrcp.pop %v4085
        %v4144 = vrcp.pop %v4088
        %v4145 = vrcp.pop %v4091
        %v4146 = vrcp.pop %v4094
        %v4147 = vrcp.pop %v4097
        %v4148 = vrcp.pop %v4100
        %v4149 = vrcp.pop %v4103
        %v4150 = vrcp.pop %v4106
        %v4151 = vrcp.pop %v4109
        %v4152 = vrcp.pop %v4112
        %v4153 = vrcp.pop %v4115
        %v4154 = vrcp.pop %v4118
        %v4155 = vrcp.pop %v4121
        %v4156 = vrcp.pop %v4124
        %v4157 = vmul.f32 %v3966, %v4125
        %v4158 = vmul.f32 %v3968, %v4126
        %v4159 = vmul.f32 %v3970, %v4127
        %v4160 = vmul.f32 %v3972, %v4128
        %v4161 = vmul.f32 %v3974, %v4129
        %v4162 = vmul.f32 %v3976, %v4130
        %v4163 = vmul.f32 %v3978, %v4131
        %v4164 = vmul.f32 %v3980, %v4132
        %v4165 = vmul.f32 %v3982, %v4133
        %v4166 = vmul.f32 %v3984, %v4134
        %v4167 = vmul.f32 %v3986, %v4135
        %v4168 = vmul.f32 %v3988, %v4136
        %v4169 = vmul.f32 %v3990, %v4137
        %v4170 = vmul.f32 %v3992, %v4138
        %v4171 = vmul.f32 %v3994, %v4139
        %v4172 = vmul.f32 %v3996, %v4140
        %v4173 = vmul.f32 %v3998, %v4141
        %v4174 = vmul.f32 %v4000, %v4142
        %v4175 = vmul.f32 %v4002, %v4143
        %v4176 = vmul.f32 %v4004, %v4144
        %v4177 = vmul.f32 %v4006, %v4145
        %v4178 = vmul.f32 %v4008, %v4146
        %v4179 = vmul.f32 %v4010, %v4147
        %v4180 = vmul.f32 %v4012, %v4148
        %v4181 = vmul.f32 %v4014, %v4149
        %v4182 = vmul.f32 %v4016, %v4150
        %v4183 = vmul.f32 %v4018, %v4151
        %v4184 = vmul.f32 %v4020, %v4152
        %v4185 = vmul.f32 %v4022, %v4153
        %v4186 = vmul.f32 %v4024, %v4154
        %v4187 = vmul.f32 %v4026, %v4155
        %v4188 = vmul.f32 %v4028, %v4156
        %v4189 = vcombine.low %v1283, %v1291
        %v4190 = vcombine.low %v1290, %v1292
        %v4192 = vunpack.c.l.s4 1983009808
        %v4193 = vunpack.c.0.s8 %v4192
        %v4194 = vlaneseq
        %v4195 = vshrl.u32 %v4194, 7
        %v4196 = vsub.s32 %v4193, %v4195
        %v4197 = vrot.slane %v4189, %v4196
        %v4199 = vunpack.c.l.s4 1983009808
        %v4200 = vunpack.c.0.s8 %v4199
        %v4201 = vlaneseq
        %v4202 = vshrl.u32 %v4201, 7
        %v4203 = vsub.s32 %v4200, %v4202
        %v4204 = vrot.slane %v4190, %v4203
        %v4205 = vcombine.low %v4197, %v4204
        %v4207 = vunpack.c.l.s4 1983009808
        %v4208 = vunpack.c.0.s8 %v4207
        %v4209 = vlaneseq
        %v4210 = vshrl.u32 %v4209, 7
        %v4211 = vsub.s32 %v4208, %v4210
        %v4212 = vrot.slane %v1300, %v4211
        %v4215 = vsel %vm3835, %v4157, 0
        %v4218 = vsel %vm3835, %v4158, 0
        %vm4220 = vcmask 1041408
        %v4221 = vsel %vm4220, %v4212, 0
        %4223 = vmatprep.subr.mxu0 0.0
        %4224 = vmatpush1.msra.mxu0 %v4205
        %4225 = vmatprep.subr.mxu0 0.0
        %4226 = vmatpush1.msra.mxu0 %v4221
        %4227 = vmatprep.subr.mxu0 0.0
        %4228 = vmatpush1.msra.mxu0 0.0
        %4229 = vmatprep.subr.mxu0 0.0
        %4230 = vmatpush1.msra.mxu0 0.0
        %4231 = vmatprep.subr.mxu0 0.0
        %4232 = vmatpush1.msra.mxu0 0.0
        %4233 = vmatprep.subr.mxu0 0.0
        %4234 = vmatpush1.msra.mxu0 0.0
        %4235 = vmatprep.subr.mxu0 0.0
        %4236 = vmatpush1.msra.mxu0 0.0
        %4237 = vmatprep.subr.mxu0 0.0
        %4238 = vmatpush1.msra.mxu0 0.0
        %4239 = vmatprep.subr.mxu0 0.0
        %4240 = vmatpush1.msra.mxu0 0.0
        %4241 = vmatprep.subr.mxu0 0.0
        %4242 = vmatpush1.msra.mxu0 0.0
        %4243 = vmatprep.subr.mxu0 0.0
        %4244 = vmatpush1.msra.mxu0 0.0
        %4245 = vmatprep.subr.mxu0 0.0
        %4246 = vmatpush1.msra.mxu0 0.0
        %4247 = vmatprep.subr.mxu0 0.0
        %4248 = vmatpush1.msra.mxu0 0.0
        %4249 = vmatprep.subr.mxu0 0.0
        %4250 = vmatpush1.msra.mxu0 0.0
        %4251 = vmatprep.subr.mxu0 0.0
        %4252 = vmatpush1.msra.mxu0 0.0
        %4253 = vmatprep.subr.mxu0 0.0
        %4254 = vmatpush1.msra.mxu0 0.0
        %4255 = vmatprep.subr.mxu0 0.0
        %4256 = vmatpush1.msra.mxu0 0.0
        %4257 = vmatprep.subr.mxu0 0.0
        %4258 = vmatpush1.msra.mxu0 0.0
        %4259 = vmatprep.subr.mxu0 0.0
        %4260 = vmatpush1.msra.mxu0 0.0
        %4261 = vmatprep.subr.mxu0 0.0
        %4262 = vmatpush1.msra.mxu0 0.0
        %4263 = vmatprep.subr.mxu0 0.0
        %4264 = vmatpush1.msra.mxu0 0.0
        %4265 = vmatprep.subr.mxu0 0.0
        %4266 = vmatpush1.msra.mxu0 0.0
        %4267 = vmatprep.subr.mxu0 0.0
        %4268 = vmatpush1.msra.mxu0 0.0
        %4269 = vmatprep.subr.mxu0 0.0
        %4270 = vmatpush1.msra.mxu0 0.0
        %4271 = vmatprep.subr.mxu0 0.0
        %4272 = vmatpush1.msra.mxu0 0.0
        %4273 = vmatprep.subr.mxu0 0.0
        %4274 = vmatpush1.msra.mxu0 0.0
        %4275 = vmatprep.subr.mxu0 0.0
        %4276 = vmatpush1.msra.mxu0 0.0
        %4277 = vmatprep.subr.mxu0 0.0
        %4278 = vmatpush1.msra.mxu0 0.0
        %4279 = vmatprep.subr.mxu0 0.0
        %4280 = vmatpush1.msra.mxu0 0.0
        %4281 = vmatprep.subr.mxu0 0.0
        %4282 = vmatpush1.msra.mxu0 0.0
        %4283 = vmatprep.subr.mxu0 0.0
        %4284 = vmatpush1.msra.mxu0 0.0
        %4285 = vmatprep.subr.mxu0 0.0
        %4286 = vmatpush1.msra.mxu0 0.0
        %4287 = vmatprep.mubr.f32.mxu0 0.0
        %4288 = vmatmul.mubr.f32.gmra.mrb[0].mxu0 %v4215
        %v4289 = vpop.f32.mrb[0].mxu0
        %v4290 = vadd.f32 0.0, %v4289
        %v4291 = vpop.f32.mrb[0].mxu0
        %4292 = vmatprep.mubr.f32.mxu0 0.0
        %4293 = vmatmul.mubr.f32.gmra.mrb[0].mxu0 %v4218
        %v4294 = vpop.f32.mrb[0].mxu0
        %v4295 = vadd.f32 0.0, %v4294
        %v4296 = vpop.f32.mrb[0].mxu0
        %4297 = vdwg.mxu0
        %v4298 = vcombine.low %v1308, %v1307
        %v4299 = vcombine.low %v1309, %v1316
        %v4301 = vunpack.c.l.s4 1983009808
        %v4302 = vunpack.c.0.s8 %v4301
        %v4303 = vlaneseq
        %v4304 = vshrl.u32 %v4303, 7
        %v4305 = vsub.s32 %v4302, %v4304
        %v4306 = vrot.slane %v4298, %v4305
        %v4308 = vunpack.c.l.s4 1983009808
        %v4309 = vunpack.c.0.s8 %v4308
        %v4310 = vlaneseq
        %v4311 = vshrl.u32 %v4310, 7
        %v4312 = vsub.s32 %v4309, %v4311
        %v4313 = vrot.slane %v4299, %v4312
        %v4314 = vcombine.low %v4306, %v4313
        %v4316 = vunpack.c.l.s4 1983009808
        %v4317 = vunpack.c.0.s8 %v4316
        %v4318 = vlaneseq
        %v4319 = vshrl.u32 %v4318, 7
        %v4320 = vsub.s32 %v4317, %v4319
        %v4321 = vrot.slane %v1317, %v4320
        %v4324 = vsel %vm3835, %v4159, 0
        %v4327 = vsel %vm3835, %v4160, 0
        %v4329 = vsel %vm4220, %v4321, 0
        %4331 = vmatprep.subr.mxu0 0.0
        %4332 = vmatpush1.msra.mxu0 %v4314
        %4333 = vmatprep.subr.mxu0 0.0
        %4334 = vmatpush1.msra.mxu0 %v4329
        %4335 = vmatprep.subr.mxu0 0.0
        %4336 = vmatpush1.msra.mxu0 0.0
        %4337 = vmatprep.subr.mxu0 0.0
        %4338 = vmatpush1.msra.mxu0 0.0
        %4339 = vmatprep.subr.mxu0 0.0
        %4340 = vmatpush1.msra.mxu0 0.0
        %4341 = vmatprep.subr.mxu0 0.0
        %4342 = vmatpush1.msra.mxu0 0.0
        %4343 = vmatprep.subr.mxu0 0.0
        %4344 = vmatpush1.msra.mxu0 0.0
        %4345 = vmatprep.subr.mxu0 0.0
        %4346 = vmatpush1.msra.mxu0 0.0
        %4347 = vmatprep.subr.mxu0 0.0
        %4348 = vmatpush1.msra.mxu0 0.0
        %4349 = vmatprep.subr.mxu0 0.0
        %4350 = vmatpush1.msra.mxu0 0.0
        %4351 = vmatprep.subr.mxu0 0.0
        %4352 = vmatpush1.msra.mxu0 0.0
        %4353 = vmatprep.subr.mxu0 0.0
        %4354 = vmatpush1.msra.mxu0 0.0
        %4355 = vmatprep.subr.mxu0 0.0
        %4356 = vmatpush1.msra.mxu0 0.0
        %4357 = vmatprep.subr.mxu0 0.0
        %4358 = vmatpush1.msra.mxu0 0.0
        %4359 = vmatprep.subr.mxu0 0.0
        %4360 = vmatpush1.msra.mxu0 0.0
        %4361 = vmatprep.subr.mxu0 0.0
        %4362 = vmatpush1.msra.mxu0 0.0
        %4363 = vmatprep.subr.mxu0 0.0
        %4364 = vmatpush1.msra.mxu0 0.0
        %4365 = vmatprep.subr.mxu0 0.0
        %4366 = vmatpush1.msra.mxu0 0.0
        %4367 = vmatprep.subr.mxu0 0.0
        %4368 = vmatpush1.msra.mxu0 0.0
        %4369 = vmatprep.subr.mxu0 0.0
        %4370 = vmatpush1.msra.mxu0 0.0
        %4371 = vmatprep.subr.mxu0 0.0
        %4372 = vmatpush1.msra.mxu0 0.0
        %4373 = vmatprep.subr.mxu0 0.0
        %4374 = vmatpush1.msra.mxu0 0.0
        %4375 = vmatprep.subr.mxu0 0.0
        %4376 = vmatpush1.msra.mxu0 0.0
        %4377 = vmatprep.subr.mxu0 0.0
        %4378 = vmatpush1.msra.mxu0 0.0
        %4379 = vmatprep.subr.mxu0 0.0
        %4380 = vmatpush1.msra.mxu0 0.0
        %4381 = vmatprep.subr.mxu0 0.0
        %4382 = vmatpush1.msra.mxu0 0.0
        %4383 = vmatprep.subr.mxu0 0.0
        %4384 = vmatpush1.msra.mxu0 0.0
        %4385 = vmatprep.subr.mxu0 0.0
        %4386 = vmatpush1.msra.mxu0 0.0
        %4387 = vmatprep.subr.mxu0 0.0
        %4388 = vmatpush1.msra.mxu0 0.0
        %4389 = vmatprep.subr.mxu0 0.0
        %4390 = vmatpush1.msra.mxu0 0.0
        %4391 = vmatprep.subr.mxu0 0.0
        %4392 = vmatpush1.msra.mxu0 0.0
        %4393 = vmatprep.subr.mxu0 0.0
        %4394 = vmatpush1.msra.mxu0 0.0
        %4395 = vmatprep.mubr.f32.mxu0 0.0
        %4396 = vmatmul.mubr.f32.gmra.mrb[0].mxu0 %v4324
        %v4397 = vpop.f32.mrb[0].mxu0
        %v4398 = vadd.f32 0.0, %v4397
        %v4399 = vpop.f32.mrb[0].mxu0
        %4400 = vmatprep.mubr.f32.mxu0 0.0
        %4401 = vmatmul.mubr.f32.gmra.mrb[0].mxu0 %v4327
        %v4402 = vpop.f32.mrb[0].mxu0
        %v4403 = vadd.f32 0.0, %v4402
        %v4404 = vpop.f32.mrb[0].mxu0
        %4405 = vdwg.mxu0
        %v4406 = vcombine.low %v1599, %v1601
        %v4407 = vcombine.low %v1603, %v1605
        %v4409 = vunpack.c.l.s4 1983009808
        %v4410 = vunpack.c.0.s8 %v4409
        %v4411 = vlaneseq
        %v4412 = vshrl.u32 %v4411, 7
        %v4413 = vsub.s32 %v4410, %v4412
        %v4414 = vrot.slane %v4406, %v4413
        %v4416 = vunpack.c.l.s4 1983009808
        %v4417 = vunpack.c.0.s8 %v4416
        %v4418 = vlaneseq
        %v4419 = vshrl.u32 %v4418, 7
        %v4420 = vsub.s32 %v4417, %v4419
        %v4421 = vrot.slane %v4407, %v4420
        %v4422 = vcombine.low %v4414, %v4421
        %v4424 = vunpack.c.l.s4 1983009808
        %v4425 = vunpack.c.0.s8 %v4424
        %v4426 = vlaneseq
        %v4427 = vshrl.u32 %v4426, 7
        %v4428 = vsub.s32 %v4425, %v4427
        %v4429 = vrot.slane %v1607, %v4428
        %v4432 = vsel %vm3835, %v4161, 0
        %v4435 = vsel %vm3835, %v4162, 0
        %v4437 = vsel %vm4220, %v4429, 0
        %4439 = vmatprep.subr.mxu0 0.0
        %4440 = vmatpush1.msra.mxu0 %v4422
        %4441 = vmatprep.subr.mxu0 0.0
        %4442 = vmatpush1.msra.mxu0 %v4437
        %4443 = vmatprep.subr.mxu0 0.0
        %4444 = vmatpush1.msra.mxu0 0.0
        %4445 = vmatprep.subr.mxu0 0.0
        %4446 = vmatpush1.msra.mxu0 0.0
        %4447 = vmatprep.subr.mxu0 0.0
        %4448 = vmatpush1.msra.mxu0 0.0
        %4449 = vmatprep.subr.mxu0 0.0
        %4450 = vmatpush1.msra.mxu0 0.0
        %4451 = vmatprep.subr.mxu0 0.0
        %4452 = vmatpush1.msra.mxu0 0.0
        %4453 = vmatprep.subr.mxu0 0.0
        %4454 = vmatpush1.msra.mxu0 0.0
        %4455 = vmatprep.subr.mxu0 0.0
        %4456 = vmatpush1.msra.mxu0 0.0
        %4457 = vmatprep.subr.mxu0 0.0
        %4458 = vmatpush1.msra.mxu0 0.0
        %4459 = vmatprep.subr.mxu0 0.0
        %4460 = vmatpush1.msra.mxu0 0.0
        %4461 = vmatprep.subr.mxu0 0.0
        %4462 = vmatpush1.msra.mxu0 0.0
        %4463 = vmatprep.subr.mxu0 0.0
        %4464 = vmatpush1.msra.mxu0 0.0
        %4465 = vmatprep.subr.mxu0 0.0
        %4466 = vmatpush1.msra.mxu0 0.0
        %4467 = vmatprep.subr.mxu0 0.0
        %4468 = vmatpush1.msra.mxu0 0.0
        %4469 = vmatprep.subr.mxu0 0.0
        %4470 = vmatpush1.msra.mxu0 0.0
        %4471 = vmatprep.subr.mxu0 0.0
        %4472 = vmatpush1.msra.mxu0 0.0
        %4473 = vmatprep.subr.mxu0 0.0
        %4474 = vmatpush1.msra.mxu0 0.0
        %4475 = vmatprep.subr.mxu0 0.0
        %4476 = vmatpush1.msra.mxu0 0.0
        %4477 = vmatprep.subr.mxu0 0.0
        %4478 = vmatpush1.msra.mxu0 0.0
        %4479 = vmatprep.subr.mxu0 0.0
        %4480 = vmatpush1.msra.mxu0 0.0
        %4481 = vmatprep.subr.mxu0 0.0
        %4482 = vmatpush1.msra.mxu0 0.0
        %4483 = vmatprep.subr.mxu0 0.0
        %4484 = vmatpush1.msra.mxu0 0.0
        %4485 = vmatprep.subr.mxu0 0.0
        %4486 = vmatpush1.msra.mxu0 0.0
        %4487 = vmatprep.subr.mxu0 0.0
        %4488 = vmatpush1.msra.mxu0 0.0
        %4489 = vmatprep.subr.mxu0 0.0
        %4490 = vmatpush1.msra.mxu0 0.0
        %4491 = vmatprep.subr.mxu0 0.0
        %4492 = vmatpush1.msra.mxu0 0.0
        %4493 = vmatprep.subr.mxu0 0.0
        %4494 = vmatpush1.msra.mxu0 0.0
        %4495 = vmatprep.subr.mxu0 0.0
        %4496 = vmatpush1.msra.mxu0 0.0
        %4497 = vmatprep.subr.mxu0 0.0
        %4498 = vmatpush1.msra.mxu0 0.0
        %4499 = vmatprep.subr.mxu0 0.0
        %4500 = vmatpush1.msra.mxu0 0.0
        %4501 = vmatprep.subr.mxu0 0.0
        %4502 = vmatpush1.msra.mxu0 0.0
        %4503 = vmatprep.mubr.f32.mxu0 0.0
        %4504 = vmatmul.mubr.f32.gmra.mrb[0].mxu0 %v4432
        %v4505 = vpop.f32.mrb[0].mxu0
        %v4506 = vadd.f32 0.0, %v4505
        %v4507 = vpop.f32.mrb[0].mxu0
        %4508 = vmatprep.mubr.f32.mxu0 0.0
        %4509 = vmatmul.mubr.f32.gmra.mrb[0].mxu0 %v4435
        %v4510 = vpop.f32.mrb[0].mxu0
        %v4511 = vadd.f32 0.0, %v4510
        %v4512 = vpop.f32.mrb[0].mxu0
        %4513 = vdwg.mxu0
        %v4514 = vcombine.low %v1609, %v1611
        %v4515 = vcombine.low %v1613, %v1615
        %v4517 = vunpack.c.l.s4 1983009808
        %v4518 = vunpack.c.0.s8 %v4517
        %v4519 = vlaneseq
        %v4520 = vshrl.u32 %v4519, 7
        %v4521 = vsub.s32 %v4518, %v4520
        %v4522 = vrot.slane %v4514, %v4521
        %v4524 = vunpack.c.l.s4 1983009808
        %v4525 = vunpack.c.0.s8 %v4524
        %v4526 = vlaneseq
        %v4527 = vshrl.u32 %v4526, 7
        %v4528 = vsub.s32 %v4525, %v4527
        %v4529 = vrot.slane %v4515, %v4528
        %v4530 = vcombine.low %v4522, %v4529
        %v4532 = vunpack.c.l.s4 1983009808
        %v4533 = vunpack.c.0.s8 %v4532
        %v4534 = vlaneseq
        %v4535 = vshrl.u32 %v4534, 7
        %v4536 = vsub.s32 %v4533, %v4535
        %v4537 = vrot.slane %v1617, %v4536
        %v4540 = vsel %vm3835, %v4163, 0
        %v4543 = vsel %vm3835, %v4164, 0
        %v4545 = vsel %vm4220, %v4537, 0
        %4547 = vmatprep.subr.mxu0 0.0
        %4548 = vmatpush1.msra.mxu0 %v4530
        %4549 = vmatprep.subr.mxu0 0.0
        %4550 = vmatpush1.msra.mxu0 %v4545
        %4551 = vmatprep.subr.mxu0 0.0
        %4552 = vmatpush1.msra.mxu0 0.0
        %4553 = vmatprep.subr.mxu0 0.0
        %4554 = vmatpush1.msra.mxu0 0.0
        %4555 = vmatprep.subr.mxu0 0.0
        %4556 = vmatpush1.msra.mxu0 0.0
        %4557 = vmatprep.subr.mxu0 0.0
        %4558 = vmatpush1.msra.mxu0 0.0
        %4559 = vmatprep.subr.mxu0 0.0
        %4560 = vmatpush1.msra.mxu0 0.0
        %4561 = vmatprep.subr.mxu0 0.0
        %4562 = vmatpush1.msra.mxu0 0.0
        %4563 = vmatprep.subr.mxu0 0.0
        %4564 = vmatpush1.msra.mxu0 0.0
        %4565 = vmatprep.subr.mxu0 0.0
        %4566 = vmatpush1.msra.mxu0 0.0
        %4567 = vmatprep.subr.mxu0 0.0
        %4568 = vmatpush1.msra.mxu0 0.0
        %4569 = vmatprep.subr.mxu0 0.0
        %4570 = vmatpush1.msra.mxu0 0.0
        %4571 = vmatprep.subr.mxu0 0.0
        %4572 = vmatpush1.msra.mxu0 0.0
        %4573 = vmatprep.subr.mxu0 0.0
        %4574 = vmatpush1.msra.mxu0 0.0
        %4575 = vmatprep.subr.mxu0 0.0
        %4576 = vmatpush1.msra.mxu0 0.0
        %4577 = vmatprep.subr.mxu0 0.0
        %4578 = vmatpush1.msra.mxu0 0.0
        %4579 = vmatprep.subr.mxu0 0.0
        %4580 = vmatpush1.msra.mxu0 0.0
        %4581 = vmatprep.subr.mxu0 0.0
        %4582 = vmatpush1.msra.mxu0 0.0
        %4583 = vmatprep.subr.mxu0 0.0
        %4584 = vmatpush1.msra.mxu0 0.0
        %4585 = vmatprep.subr.mxu0 0.0
        %4586 = vmatpush1.msra.mxu0 0.0
        %4587 = vmatprep.subr.mxu0 0.0
        %4588 = vmatpush1.msra.mxu0 0.0
        %4589 = vmatprep.subr.mxu0 0.0
        %4590 = vmatpush1.msra.mxu0 0.0
        %4591 = vmatprep.subr.mxu0 0.0
        %4592 = vmatpush1.msra.mxu0 0.0
        %4593 = vmatprep.subr.mxu0 0.0
        %4594 = vmatpush1.msra.mxu0 0.0
        %4595 = vmatprep.subr.mxu0 0.0
        %4596 = vmatpush1.msra.mxu0 0.0
        %4597 = vmatprep.subr.mxu0 0.0
        %4598 = vmatpush1.msra.mxu0 0.0
        %4599 = vmatprep.subr.mxu0 0.0
        %4600 = vmatpush1.msra.mxu0 0.0
        %4601 = vmatprep.subr.mxu0 0.0
        %4602 = vmatpush1.msra.mxu0 0.0
        %4603 = vmatprep.subr.mxu0 0.0
        %4604 = vmatpush1.msra.mxu0 0.0
        %4605 = vmatprep.subr.mxu0 0.0
        %4606 = vmatpush1.msra.mxu0 0.0
        %4607 = vmatprep.subr.mxu0 0.0
        %4608 = vmatpush1.msra.mxu0 0.0
        %4609 = vmatprep.subr.mxu0 0.0
        %4610 = vmatpush1.msra.mxu0 0.0
        %4611 = vmatprep.mubr.f32.mxu0 0.0
        %4612 = vmatmul.mubr.f32.gmra.mrb[0].mxu0 %v4540
        %v4613 = vpop.f32.mrb[0].mxu0
        %v4614 = vadd.f32 0.0, %v4613
        %v4615 = vpop.f32.mrb[0].mxu0
        %4616 = vmatprep.mubr.f32.mxu0 0.0
        %4617 = vmatmul.mubr.f32.gmra.mrb[0].mxu0 %v4543
        %v4618 = vpop.f32.mrb[0].mxu0
        %v4619 = vadd.f32 0.0, %v4618
        %v4620 = vpop.f32.mrb[0].mxu0
        %4621 = vdwg.mxu0
        %v4622 = vcombine.low %v1619, %v1621
        %v4623 = vcombine.low %v1623, %v1625
        %v4625 = vunpack.c.l.s4 1983009808
        %v4626 = vunpack.c.0.s8 %v4625
        %v4627 = vlaneseq
        %v4628 = vshrl.u32 %v4627, 7
        %v4629 = vsub.s32 %v4626, %v4628
        %v4630 = vrot.slane %v4622, %v4629
        %v4632 = vunpack.c.l.s4 1983009808
        %v4633 = vunpack.c.0.s8 %v4632
        %v4634 = vlaneseq
        %v4635 = vshrl.u32 %v4634, 7
        %v4636 = vsub.s32 %v4633, %v4635
        %v4637 = vrot.slane %v4623, %v4636
        %v4638 = vcombine.low %v4630, %v4637
        %v4640 = vunpack.c.l.s4 1983009808
        %v4641 = vunpack.c.0.s8 %v4640
        %v4642 = vlaneseq
        %v4643 = vshrl.u32 %v4642, 7
        %v4644 = vsub.s32 %v4641, %v4643
        %v4645 = vrot.slane %v1627, %v4644
        %v4648 = vsel %vm3835, %v4165, 0
        %v4651 = vsel %vm3835, %v4166, 0
        %v4653 = vsel %vm4220, %v4645, 0
        %4655 = vmatprep.subr.mxu0 0.0
        %4656 = vmatpush1.msra.mxu0 %v4638
        %4657 = vmatprep.subr.mxu0 0.0
        %4658 = vmatpush1.msra.mxu0 %v4653
        %4659 = vmatprep.subr.mxu0 0.0
        %4660 = vmatpush1.msra.mxu0 0.0
        %4661 = vmatprep.subr.mxu0 0.0
        %4662 = vmatpush1.msra.mxu0 0.0
        %4663 = vmatprep.subr.mxu0 0.0
        %4664 = vmatpush1.msra.mxu0 0.0
        %4665 = vmatprep.subr.mxu0 0.0
        %4666 = vmatpush1.msra.mxu0 0.0
        %4667 = vmatprep.subr.mxu0 0.0
        %4668 = vmatpush1.msra.mxu0 0.0
        %4669 = vmatprep.subr.mxu0 0.0
        %4670 = vmatpush1.msra.mxu0 0.0
        %4671 = vmatprep.subr.mxu0 0.0
        %4672 = vmatpush1.msra.mxu0 0.0
        %4673 = vmatprep.subr.mxu0 0.0
        %4674 = vmatpush1.msra.mxu0 0.0
        %4675 = vmatprep.subr.mxu0 0.0
        %4676 = vmatpush1.msra.mxu0 0.0
        %4677 = vmatprep.subr.mxu0 0.0
        %4678 = vmatpush1.msra.mxu0 0.0
        %4679 = vmatprep.subr.mxu0 0.0
        %4680 = vmatpush1.msra.mxu0 0.0
        %4681 = vmatprep.subr.mxu0 0.0
        %4682 = vmatpush1.msra.mxu0 0.0
        %4683 = vmatprep.subr.mxu0 0.0
        %4684 = vmatpush1.msra.mxu0 0.0
        %4685 = vmatprep.subr.mxu0 0.0
        %4686 = vmatpush1.msra.mxu0 0.0
        %4687 = vmatprep.subr.mxu0 0.0
        %4688 = vmatpush1.msra.mxu0 0.0
        %4689 = vmatprep.subr.mxu0 0.0
        %4690 = vmatpush1.msra.mxu0 0.0
        %4691 = vmatprep.subr.mxu0 0.0
        %4692 = vmatpush1.msra.mxu0 0.0
        %4693 = vmatprep.subr.mxu0 0.0
        %4694 = vmatpush1.msra.mxu0 0.0
        %4695 = vmatprep.subr.mxu0 0.0
        %4696 = vmatpush1.msra.mxu0 0.0
        %4697 = vmatprep.subr.mxu0 0.0
        %4698 = vmatpush1.msra.mxu0 0.0
        %4699 = vmatprep.subr.mxu0 0.0
        %4700 = vmatpush1.msra.mxu0 0.0
        %4701 = vmatprep.subr.mxu0 0.0
        %4702 = vmatpush1.msra.mxu0 0.0
        %4703 = vmatprep.subr.mxu0 0.0
        %4704 = vmatpush1.msra.mxu0 0.0
        %4705 = vmatprep.subr.mxu0 0.0
        %4706 = vmatpush1.msra.mxu0 0.0
        %4707 = vmatprep.subr.mxu0 0.0
        %4708 = vmatpush1.msra.mxu0 0.0
        %4709 = vmatprep.subr.mxu0 0.0
        %4710 = vmatpush1.msra.mxu0 0.0
        %4711 = vmatprep.subr.mxu0 0.0
        %4712 = vmatpush1.msra.mxu0 0.0
        %4713 = vmatprep.subr.mxu0 0.0
        %4714 = vmatpush1.msra.mxu0 0.0
        %4715 = vmatprep.subr.mxu0 0.0
        %4716 = vmatpush1.msra.mxu0 0.0
        %4717 = vmatprep.subr.mxu0 0.0
        %4718 = vmatpush1.msra.mxu0 0.0
        %4719 = vmatprep.mubr.f32.mxu0 0.0
        %4720 = vmatmul.mubr.f32.gmra.mrb[0].mxu0 %v4648
        %v4721 = vpop.f32.mrb[0].mxu0
        %v4722 = vadd.f32 0.0, %v4721
        %v4723 = vpop.f32.mrb[0].mxu0
        %4724 = vmatprep.mubr.f32.mxu0 0.0
        %4725 = vmatmul.mubr.f32.gmra.mrb[0].mxu0 %v4651
        %v4726 = vpop.f32.mrb[0].mxu0
        %v4727 = vadd.f32 0.0, %v4726
        %v4728 = vpop.f32.mrb[0].mxu0
        %4729 = vdwg.mxu0
        %v4730 = vcombine.low %v1629, %v1631
        %v4731 = vcombine.low %v1633, %v1635
        %v4733 = vunpack.c.l.s4 1983009808
        %v4734 = vunpack.c.0.s8 %v4733
        %v4735 = vlaneseq
        %v4736 = vshrl.u32 %v4735, 7
        %v4737 = vsub.s32 %v4734, %v4736
        %v4738 = vrot.slane %v4730, %v4737
        %v4740 = vunpack.c.l.s4 1983009808
        %v4741 = vunpack.c.0.s8 %v4740
        %v4742 = vlaneseq
        %v4743 = vshrl.u32 %v4742, 7
        %v4744 = vsub.s32 %v4741, %v4743
        %v4745 = vrot.slane %v4731, %v4744
        %v4746 = vcombine.low %v4738, %v4745
        %v4748 = vunpack.c.l.s4 1983009808
        %v4749 = vunpack.c.0.s8 %v4748
        %v4750 = vlaneseq
        %v4751 = vshrl.u32 %v4750, 7
        %v4752 = vsub.s32 %v4749, %v4751
        %v4753 = vrot.slane %v1637, %v4752
        %v4756 = vsel %vm3835, %v4167, 0
        %v4759 = vsel %vm3835, %v4168, 0
        %v4761 = vsel %vm4220, %v4753, 0
        %4763 = vmatprep.subr.mxu0 0.0
        %4764 = vmatpush1.msra.mxu0 %v4746
        %4765 = vmatprep.subr.mxu0 0.0
        %4766 = vmatpush1.msra.mxu0 %v4761
        %4767 = vmatprep.subr.mxu0 0.0
        %4768 = vmatpush1.msra.mxu0 0.0
        %4769 = vmatprep.subr.mxu0 0.0
        %4770 = vmatpush1.msra.mxu0 0.0
        %4771 = vmatprep.subr.mxu0 0.0
        %4772 = vmatpush1.msra.mxu0 0.0
        %4773 = vmatprep.subr.mxu0 0.0
        %4774 = vmatpush1.msra.mxu0 0.0
        %4775 = vmatprep.subr.mxu0 0.0
        %4776 = vmatpush1.msra.mxu0 0.0
        %4777 = vmatprep.subr.mxu0 0.0
        %4778 = vmatpush1.msra.mxu0 0.0
        %4779 = vmatprep.subr.mxu0 0.0
        %4780 = vmatpush1.msra.mxu0 0.0
        %4781 = vmatprep.subr.mxu0 0.0
        %4782 = vmatpush1.msra.mxu0 0.0
        %4783 = vmatprep.subr.mxu0 0.0
        %4784 = vmatpush1.msra.mxu0 0.0
        %4785 = vmatprep.subr.mxu0 0.0
        %4786 = vmatpush1.msra.mxu0 0.0
        %4787 = vmatprep.subr.mxu0 0.0
        %4788 = vmatpush1.msra.mxu0 0.0
        %4789 = vmatprep.subr.mxu0 0.0
        %4790 = vmatpush1.msra.mxu0 0.0
        %4791 = vmatprep.subr.mxu0 0.0
        %4792 = vmatpush1.msra.mxu0 0.0
        %4793 = vmatprep.subr.mxu0 0.0
        %4794 = vmatpush1.msra.mxu0 0.0
        %4795 = vmatprep.subr.mxu0 0.0
        %4796 = vmatpush1.msra.mxu0 0.0
        %4797 = vmatprep.subr.mxu0 0.0
        %4798 = vmatpush1.msra.mxu0 0.0
        %4799 = vmatprep.subr.mxu0 0.0
        %4800 = vmatpush1.msra.mxu0 0.0
        %4801 = vmatprep.subr.mxu0 0.0
        %4802 = vmatpush1.msra.mxu0 0.0
        %4803 = vmatprep.subr.mxu0 0.0
        %4804 = vmatpush1.msra.mxu0 0.0
        %4805 = vmatprep.subr.mxu0 0.0
        %4806 = vmatpush1.msra.mxu0 0.0
        %4807 = vmatprep.subr.mxu0 0.0
        %4808 = vmatpush1.msra.mxu0 0.0
        %4809 = vmatprep.subr.mxu0 0.0
        %4810 = vmatpush1.msra.mxu0 0.0
        %4811 = vmatprep.subr.mxu0 0.0
        %4812 = vmatpush1.msra.mxu0 0.0
        %4813 = vmatprep.subr.mxu0 0.0
        %4814 = vmatpush1.msra.mxu0 0.0
        %4815 = vmatprep.subr.mxu0 0.0
        %4816 = vmatpush1.msra.mxu0 0.0
        %4817 = vmatprep.subr.mxu0 0.0
        %4818 = vmatpush1.msra.mxu0 0.0
        %4819 = vmatprep.subr.mxu0 0.0
        %4820 = vmatpush1.msra.mxu0 0.0
        %4821 = vmatprep.subr.mxu0 0.0
        %4822 = vmatpush1.msra.mxu0 0.0
        %4823 = vmatprep.subr.mxu0 0.0
        %4824 = vmatpush1.msra.mxu0 0.0
        %4825 = vmatprep.subr.mxu0 0.0
        %4826 = vmatpush1.msra.mxu0 0.0
        %4827 = vmatprep.mubr.f32.mxu0 0.0
        %4828 = vmatmul.mubr.f32.gmra.mrb[0].mxu0 %v4756
        %v4829 = vpop.f32.mrb[0].mxu0
        %v4830 = vadd.f32 0.0, %v4829
        %v4831 = vpop.f32.mrb[0].mxu0
        %4832 = vmatprep.mubr.f32.mxu0 0.0
        %4833 = vmatmul.mubr.f32.gmra.mrb[0].mxu0 %v4759
        %v4834 = vpop.f32.mrb[0].mxu0
        %v4835 = vadd.f32 0.0, %v4834
        %v4836 = vpop.f32.mrb[0].mxu0
        %4837 = vdwg.mxu0
        %v4838 = vcombine.low %v1639, %v1641
        %v4839 = vcombine.low %v1643, %v1645
        %v4841 = vunpack.c.l.s4 1983009808
        %v4842 = vunpack.c.0.s8 %v4841
        %v4843 = vlaneseq
        %v4844 = vshrl.u32 %v4843, 7
        %v4845 = vsub.s32 %v4842, %v4844
        %v4846 = vrot.slane %v4838, %v4845
        %v4848 = vunpack.c.l.s4 1983009808
        %v4849 = vunpack.c.0.s8 %v4848
        %v4850 = vlaneseq
        %v4851 = vshrl.u32 %v4850, 7
        %v4852 = vsub.s32 %v4849, %v4851
        %v4853 = vrot.slane %v4839, %v4852
        %v4854 = vcombine.low %v4846, %v4853
        %v4856 = vunpack.c.l.s4 1983009808
        %v4857 = vunpack.c.0.s8 %v4856
        %v4858 = vlaneseq
        %v4859 = vshrl.u32 %v4858, 7
        %v4860 = vsub.s32 %v4857, %v4859
        %v4861 = vrot.slane %v1647, %v4860
        %v4864 = vsel %vm3835, %v4169, 0
        %v4867 = vsel %vm3835, %v4170, 0
        %v4869 = vsel %vm4220, %v4861, 0
        %4871 = vmatprep.subr.mxu0 0.0
        %4872 = vmatpush1.msra.mxu0 %v4854
        %4873 = vmatprep.subr.mxu0 0.0
        %4874 = vmatpush1.msra.mxu0 %v4869
        %4875 = vmatprep.subr.mxu0 0.0
        %4876 = vmatpush1.msra.mxu0 0.0
        %4877 = vmatprep.subr.mxu0 0.0
        %4878 = vmatpush1.msra.mxu0 0.0
        %4879 = vmatprep.subr.mxu0 0.0
        %4880 = vmatpush1.msra.mxu0 0.0
        %4881 = vmatprep.subr.mxu0 0.0
        %4882 = vmatpush1.msra.mxu0 0.0
        %4883 = vmatprep.subr.mxu0 0.0
        %4884 = vmatpush1.msra.mxu0 0.0
        %4885 = vmatprep.subr.mxu0 0.0
        %4886 = vmatpush1.msra.mxu0 0.0
        %4887 = vmatprep.subr.mxu0 0.0
        %4888 = vmatpush1.msra.mxu0 0.0
        %4889 = vmatprep.subr.mxu0 0.0
        %4890 = vmatpush1.msra.mxu0 0.0
        %4891 = vmatprep.subr.mxu0 0.0
        %4892 = vmatpush1.msra.mxu0 0.0
        %4893 = vmatprep.subr.mxu0 0.0
        %4894 = vmatpush1.msra.mxu0 0.0
        %4895 = vmatprep.subr.mxu0 0.0
        %4896 = vmatpush1.msra.mxu0 0.0
        %4897 = vmatprep.subr.mxu0 0.0
        %4898 = vmatpush1.msra.mxu0 0.0
        %4899 = vmatprep.subr.mxu0 0.0
        %4900 = vmatpush1.msra.mxu0 0.0
        %4901 = vmatprep.subr.mxu0 0.0
        %4902 = vmatpush1.msra.mxu0 0.0
        %4903 = vmatprep.subr.mxu0 0.0
        %4904 = vmatpush1.msra.mxu0 0.0
        %4905 = vmatprep.subr.mxu0 0.0
        %4906 = vmatpush1.msra.mxu0 0.0
        %4907 = vmatprep.subr.mxu0 0.0
        %4908 = vmatpush1.msra.mxu0 0.0
        %4909 = vmatprep.subr.mxu0 0.0
        %4910 = vmatpush1.msra.mxu0 0.0
        %4911 = vmatprep.subr.mxu0 0.0
        %4912 = vmatpush1.msra.mxu0 0.0
        %4913 = vmatprep.subr.mxu0 0.0
        %4914 = vmatpush1.msra.mxu0 0.0
        %4915 = vmatprep.subr.mxu0 0.0
        %4916 = vmatpush1.msra.mxu0 0.0
        %4917 = vmatprep.subr.mxu0 0.0
        %4918 = vmatpush1.msra.mxu0 0.0
        %4919 = vmatprep.subr.mxu0 0.0
        %4920 = vmatpush1.msra.mxu0 0.0
        %4921 = vmatprep.subr.mxu0 0.0
        %4922 = vmatpush1.msra.mxu0 0.0
        %4923 = vmatprep.subr.mxu0 0.0
        %4924 = vmatpush1.msra.mxu0 0.0
        %4925 = vmatprep.subr.mxu0 0.0
        %4926 = vmatpush1.msra.mxu0 0.0
        %4927 = vmatprep.subr.mxu0 0.0
        %4928 = vmatpush1.msra.mxu0 0.0
        %4929 = vmatprep.subr.mxu0 0.0
        %4930 = vmatpush1.msra.mxu0 0.0
        %4931 = vmatprep.subr.mxu0 0.0
        %4932 = vmatpush1.msra.mxu0 0.0
        %4933 = vmatprep.subr.mxu0 0.0
        %4934 = vmatpush1.msra.mxu0 0.0
        %4935 = vmatprep.mubr.f32.mxu0 0.0
        %4936 = vmatmul.mubr.f32.gmra.mrb[0].mxu0 %v4864
        %v4937 = vpop.f32.mrb[0].mxu0
        %v4938 = vadd.f32 0.0, %v4937
        %v4939 = vpop.f32.mrb[0].mxu0
        %4940 = vmatprep.mubr.f32.mxu0 0.0
        %4941 = vmatmul.mubr.f32.gmra.mrb[0].mxu0 %v4867
        %v4942 = vpop.f32.mrb[0].mxu0
        %v4943 = vadd.f32 0.0, %v4942
        %v4944 = vpop.f32.mrb[0].mxu0
        %4945 = vdwg.mxu0
        %v4946 = vcombine.low %v1649, %v1651
        %v4947 = vcombine.low %v1653, %v1655
        %v4949 = vunpack.c.l.s4 1983009808
        %v4950 = vunpack.c.0.s8 %v4949
        %v4951 = vlaneseq
        %v4952 = vshrl.u32 %v4951, 7
        %v4953 = vsub.s32 %v4950, %v4952
        %v4954 = vrot.slane %v4946, %v4953
        %v4956 = vunpack.c.l.s4 1983009808
        %v4957 = vunpack.c.0.s8 %v4956
        %v4958 = vlaneseq
        %v4959 = vshrl.u32 %v4958, 7
        %v4960 = vsub.s32 %v4957, %v4959
        %v4961 = vrot.slane %v4947, %v4960
        %v4962 = vcombine.low %v4954, %v4961
        %v4964 = vunpack.c.l.s4 1983009808
        %v4965 = vunpack.c.0.s8 %v4964
        %v4966 = vlaneseq
        %v4967 = vshrl.u32 %v4966, 7
        %v4968 = vsub.s32 %v4965, %v4967
        %v4969 = vrot.slane %v1657, %v4968
        %v4972 = vsel %vm3835, %v4171, 0
        %v4975 = vsel %vm3835, %v4172, 0
        %v4977 = vsel %vm4220, %v4969, 0
        %4979 = vmatprep.subr.mxu0 0.0
        %4980 = vmatpush1.msra.mxu0 %v4962
        %4981 = vmatprep.subr.mxu0 0.0
        %4982 = vmatpush1.msra.mxu0 %v4977
        %4983 = vmatprep.subr.mxu0 0.0
        %4984 = vmatpush1.msra.mxu0 0.0
        %4985 = vmatprep.subr.mxu0 0.0
        %4986 = vmatpush1.msra.mxu0 0.0
        %4987 = vmatprep.subr.mxu0 0.0
        %4988 = vmatpush1.msra.mxu0 0.0
        %4989 = vmatprep.subr.mxu0 0.0
        %4990 = vmatpush1.msra.mxu0 0.0
        %4991 = vmatprep.subr.mxu0 0.0
        %4992 = vmatpush1.msra.mxu0 0.0
        %4993 = vmatprep.subr.mxu0 0.0
        %4994 = vmatpush1.msra.mxu0 0.0
        %4995 = vmatprep.subr.mxu0 0.0
        %4996 = vmatpush1.msra.mxu0 0.0
        %4997 = vmatprep.subr.mxu0 0.0
        %4998 = vmatpush1.msra.mxu0 0.0
        %4999 = vmatprep.subr.mxu0 0.0
        %5000 = vmatpush1.msra.mxu0 0.0
        %5001 = vmatprep.subr.mxu0 0.0
        %5002 = vmatpush1.msra.mxu0 0.0
        %5003 = vmatprep.subr.mxu0 0.0
        %5004 = vmatpush1.msra.mxu0 0.0
        %5005 = vmatprep.subr.mxu0 0.0
        %5006 = vmatpush1.msra.mxu0 0.0
        %5007 = vmatprep.subr.mxu0 0.0
        %5008 = vmatpush1.msra.mxu0 0.0
        %5009 = vmatprep.subr.mxu0 0.0
        %5010 = vmatpush1.msra.mxu0 0.0
        %5011 = vmatprep.subr.mxu0 0.0
        %5012 = vmatpush1.msra.mxu0 0.0
        %5013 = vmatprep.subr.mxu0 0.0
        %5014 = vmatpush1.msra.mxu0 0.0
        %5015 = vmatprep.subr.mxu0 0.0
        %5016 = vmatpush1.msra.mxu0 0.0
        %5017 = vmatprep.subr.mxu0 0.0
        %5018 = vmatpush1.msra.mxu0 0.0
        %5019 = vmatprep.subr.mxu0 0.0
        %5020 = vmatpush1.msra.mxu0 0.0
        %5021 = vmatprep.subr.mxu0 0.0
        %5022 = vmatpush1.msra.mxu0 0.0
        %5023 = vmatprep.subr.mxu0 0.0
        %5024 = vmatpush1.msra.mxu0 0.0
        %5025 = vmatprep.subr.mxu0 0.0
        %5026 = vmatpush1.msra.mxu0 0.0
        %5027 = vmatprep.subr.mxu0 0.0
        %5028 = vmatpush1.msra.mxu0 0.0
        %5029 = vmatprep.subr.mxu0 0.0
        %5030 = vmatpush1.msra.mxu0 0.0
        %5031 = vmatprep.subr.mxu0 0.0
        %5032 = vmatpush1.msra.mxu0 0.0
        %5033 = vmatprep.subr.mxu0 0.0
        %5034 = vmatpush1.msra.mxu0 0.0
        %5035 = vmatprep.subr.mxu0 0.0
        %5036 = vmatpush1.msra.mxu0 0.0
        %5037 = vmatprep.subr.mxu0 0.0
        %5038 = vmatpush1.msra.mxu0 0.0
        %5039 = vmatprep.subr.mxu0 0.0
        %5040 = vmatpush1.msra.mxu0 0.0
        %5041 = vmatprep.subr.mxu0 0.0
        %5042 = vmatpush1.msra.mxu0 0.0
        %5043 = vmatprep.mubr.f32.mxu0 0.0
        %5044 = vmatmul.mubr.f32.gmra.mrb[0].mxu0 %v4972
        %v5045 = vpop.f32.mrb[0].mxu0
        %v5046 = vadd.f32 0.0, %v5045
        %v5047 = vpop.f32.mrb[0].mxu0
        %5048 = vmatprep.mubr.f32.mxu0 0.0
        %5049 = vmatmul.mubr.f32.gmra.mrb[0].mxu0 %v4975
        %v5050 = vpop.f32.mrb[0].mxu0
        %v5051 = vadd.f32 0.0, %v5050
        %v5052 = vpop.f32.mrb[0].mxu0
        %5053 = vdwg.mxu0
        %v5054 = vcombine.low %v1659, %v1661
        %v5055 = vcombine.low %v1663, %v1665
        %v5057 = vunpack.c.l.s4 1983009808
        %v5058 = vunpack.c.0.s8 %v5057
        %v5059 = vlaneseq
        %v5060 = vshrl.u32 %v5059, 7
        %v5061 = vsub.s32 %v5058, %v5060
        %v5062 = vrot.slane %v5054, %v5061
        %v5064 = vunpack.c.l.s4 1983009808
        %v5065 = vunpack.c.0.s8 %v5064
        %v5066 = vlaneseq
        %v5067 = vshrl.u32 %v5066, 7
        %v5068 = vsub.s32 %v5065, %v5067
        %v5069 = vrot.slane %v5055, %v5068
        %v5070 = vcombine.low %v5062, %v5069
        %v5072 = vunpack.c.l.s4 1983009808
        %v5073 = vunpack.c.0.s8 %v5072
        %v5074 = vlaneseq
        %v5075 = vshrl.u32 %v5074, 7
        %v5076 = vsub.s32 %v5073, %v5075
        %v5077 = vrot.slane %v1667, %v5076
        %v5080 = vsel %vm3835, %v4173, 0
        %v5083 = vsel %vm3835, %v4174, 0
        %v5085 = vsel %vm4220, %v5077, 0
        %5087 = vmatprep.subr.mxu0 0.0
        %5088 = vmatpush1.msra.mxu0 %v5070
        %5089 = vmatprep.subr.mxu0 0.0
        %5090 = vmatpush1.msra.mxu0 %v5085
        %5091 = vmatprep.subr.mxu0 0.0
        %5092 = vmatpush1.msra.mxu0 0.0
        %5093 = vmatprep.subr.mxu0 0.0
        %5094 = vmatpush1.msra.mxu0 0.0
        %5095 = vmatprep.subr.mxu0 0.0
        %5096 = vmatpush1.msra.mxu0 0.0
        %5097 = vmatprep.subr.mxu0 0.0
        %5098 = vmatpush1.msra.mxu0 0.0
        %5099 = vmatprep.subr.mxu0 0.0
        %5100 = vmatpush1.msra.mxu0 0.0
        %5101 = vmatprep.subr.mxu0 0.0
        %5102 = vmatpush1.msra.mxu0 0.0
        %5103 = vmatprep.subr.mxu0 0.0
        %5104 = vmatpush1.msra.mxu0 0.0
        %5105 = vmatprep.subr.mxu0 0.0
        %5106 = vmatpush1.msra.mxu0 0.0
        %5107 = vmatprep.subr.mxu0 0.0
        %5108 = vmatpush1.msra.mxu0 0.0
        %5109 = vmatprep.subr.mxu0 0.0
        %5110 = vmatpush1.msra.mxu0 0.0
        %5111 = vmatprep.subr.mxu0 0.0
        %5112 = vmatpush1.msra.mxu0 0.0
        %5113 = vmatprep.subr.mxu0 0.0
        %5114 = vmatpush1.msra.mxu0 0.0
        %5115 = vmatprep.subr.mxu0 0.0
        %5116 = vmatpush1.msra.mxu0 0.0
        %5117 = vmatprep.subr.mxu0 0.0
        %5118 = vmatpush1.msra.mxu0 0.0
        %5119 = vmatprep.subr.mxu0 0.0
        %5120 = vmatpush1.msra.mxu0 0.0
        %5121 = vmatprep.subr.mxu0 0.0
        %5122 = vmatpush1.msra.mxu0 0.0
        %5123 = vmatprep.subr.mxu0 0.0
        %5124 = vmatpush1.msra.mxu0 0.0
        %5125 = vmatprep.subr.mxu0 0.0
        %5126 = vmatpush1.msra.mxu0 0.0
        %5127 = vmatprep.subr.mxu0 0.0
        %5128 = vmatpush1.msra.mxu0 0.0
        %5129 = vmatprep.subr.mxu0 0.0
        %5130 = vmatpush1.msra.mxu0 0.0
        %5131 = vmatprep.subr.mxu0 0.0
        %5132 = vmatpush1.msra.mxu0 0.0
        %5133 = vmatprep.subr.mxu0 0.0
        %5134 = vmatpush1.msra.mxu0 0.0
        %5135 = vmatprep.subr.mxu0 0.0
        %5136 = vmatpush1.msra.mxu0 0.0
        %5137 = vmatprep.subr.mxu0 0.0
        %5138 = vmatpush1.msra.mxu0 0.0
        %5139 = vmatprep.subr.mxu0 0.0
        %5140 = vmatpush1.msra.mxu0 0.0
        %5141 = vmatprep.subr.mxu0 0.0
        %5142 = vmatpush1.msra.mxu0 0.0
        %5143 = vmatprep.subr.mxu0 0.0
        %5144 = vmatpush1.msra.mxu0 0.0
        %5145 = vmatprep.subr.mxu0 0.0
        %5146 = vmatpush1.msra.mxu0 0.0
        %5147 = vmatprep.subr.mxu0 0.0
        %5148 = vmatpush1.msra.mxu0 0.0
        %5149 = vmatprep.subr.mxu0 0.0
        %5150 = vmatpush1.msra.mxu0 0.0
        %5151 = vmatprep.mubr.f32.mxu0 0.0
        %5152 = vmatmul.mubr.f32.gmra.mrb[0].mxu0 %v5080
        %v5153 = vpop.f32.mrb[0].mxu0
        %v5154 = vadd.f32 0.0, %v5153
        %v5155 = vpop.f32.mrb[0].mxu0
        %5156 = vmatprep.mubr.f32.mxu0 0.0
        %5157 = vmatmul.mubr.f32.gmra.mrb[0].mxu0 %v5083
        %v5158 = vpop.f32.mrb[0].mxu0
        %v5159 = vadd.f32 0.0, %v5158
        %v5160 = vpop.f32.mrb[0].mxu0
        %5161 = vdwg.mxu0
        %v5162 = vcombine.low %v1669, %v1671
        %v5163 = vcombine.low %v1673, %v1675
        %v5165 = vunpack.c.l.s4 1983009808
        %v5166 = vunpack.c.0.s8 %v5165
        %v5167 = vlaneseq
        %v5168 = vshrl.u32 %v5167, 7
        %v5169 = vsub.s32 %v5166, %v5168
        %v5170 = vrot.slane %v5162, %v5169
        %v5172 = vunpack.c.l.s4 1983009808
        %v5173 = vunpack.c.0.s8 %v5172
        %v5174 = vlaneseq
        %v5175 = vshrl.u32 %v5174, 7
        %v5176 = vsub.s32 %v5173, %v5175
        %v5177 = vrot.slane %v5163, %v5176
        %v5178 = vcombine.low %v5170, %v5177
        %v5180 = vunpack.c.l.s4 1983009808
        %v5181 = vunpack.c.0.s8 %v5180
        %v5182 = vlaneseq
        %v5183 = vshrl.u32 %v5182, 7
        %v5184 = vsub.s32 %v5181, %v5183
        %v5185 = vrot.slane %v1677, %v5184
        %v5188 = vsel %vm3835, %v4175, 0
        %v5191 = vsel %vm3835, %v4176, 0
        %v5193 = vsel %vm4220, %v5185, 0
        %5195 = vmatprep.subr.mxu0 0.0
        %5196 = vmatpush1.msra.mxu0 %v5178
        %5197 = vmatprep.subr.mxu0 0.0
        %5198 = vmatpush1.msra.mxu0 %v5193
        %5199 = vmatprep.subr.mxu0 0.0
        %5200 = vmatpush1.msra.mxu0 0.0
        %5201 = vmatprep.subr.mxu0 0.0
        %5202 = vmatpush1.msra.mxu0 0.0
        %5203 = vmatprep.subr.mxu0 0.0
        %5204 = vmatpush1.msra.mxu0 0.0
        %5205 = vmatprep.subr.mxu0 0.0
        %5206 = vmatpush1.msra.mxu0 0.0
        %5207 = vmatprep.subr.mxu0 0.0
        %5208 = vmatpush1.msra.mxu0 0.0
        %5209 = vmatprep.subr.mxu0 0.0
        %5210 = vmatpush1.msra.mxu0 0.0
        %5211 = vmatprep.subr.mxu0 0.0
        %5212 = vmatpush1.msra.mxu0 0.0
        %5213 = vmatprep.subr.mxu0 0.0
        %5214 = vmatpush1.msra.mxu0 0.0
        %5215 = vmatprep.subr.mxu0 0.0
        %5216 = vmatpush1.msra.mxu0 0.0
        %5217 = vmatprep.subr.mxu0 0.0
        %5218 = vmatpush1.msra.mxu0 0.0
        %5219 = vmatprep.subr.mxu0 0.0
        %5220 = vmatpush1.msra.mxu0 0.0
        %5221 = vmatprep.subr.mxu0 0.0
        %5222 = vmatpush1.msra.mxu0 0.0
        %5223 = vmatprep.subr.mxu0 0.0
        %5224 = vmatpush1.msra.mxu0 0.0
        %5225 = vmatprep.subr.mxu0 0.0
        %5226 = vmatpush1.msra.mxu0 0.0
        %5227 = vmatprep.subr.mxu0 0.0
        %5228 = vmatpush1.msra.mxu0 0.0
        %5229 = vmatprep.subr.mxu0 0.0
        %5230 = vmatpush1.msra.mxu0 0.0
        %5231 = vmatprep.subr.mxu0 0.0
        %5232 = vmatpush1.msra.mxu0 0.0
        %5233 = vmatprep.subr.mxu0 0.0
        %5234 = vmatpush1.msra.mxu0 0.0
        %5235 = vmatprep.subr.mxu0 0.0
        %5236 = vmatpush1.msra.mxu0 0.0
        %5237 = vmatprep.subr.mxu0 0.0
        %5238 = vmatpush1.msra.mxu0 0.0
        %5239 = vmatprep.subr.mxu0 0.0
        %5240 = vmatpush1.msra.mxu0 0.0
        %5241 = vmatprep.subr.mxu0 0.0
        %5242 = vmatpush1.msra.mxu0 0.0
        %5243 = vmatprep.subr.mxu0 0.0
        %5244 = vmatpush1.msra.mxu0 0.0
        %5245 = vmatprep.subr.mxu0 0.0
        %5246 = vmatpush1.msra.mxu0 0.0
        %5247 = vmatprep.subr.mxu0 0.0
        %5248 = vmatpush1.msra.mxu0 0.0
        %5249 = vmatprep.subr.mxu0 0.0
        %5250 = vmatpush1.msra.mxu0 0.0
        %5251 = vmatprep.subr.mxu0 0.0
        %5252 = vmatpush1.msra.mxu0 0.0
        %5253 = vmatprep.subr.mxu0 0.0
        %5254 = vmatpush1.msra.mxu0 0.0
        %5255 = vmatprep.subr.mxu0 0.0
        %5256 = vmatpush1.msra.mxu0 0.0
        %5257 = vmatprep.subr.mxu0 0.0
        %5258 = vmatpush1.msra.mxu0 0.0
        %5259 = vmatprep.mubr.f32.mxu0 0.0
        %5260 = vmatmul.mubr.f32.gmra.mrb[0].mxu0 %v5188
        %v5261 = vpop.f32.mrb[0].mxu0
        %v5262 = vadd.f32 0.0, %v5261
        %v5263 = vpop.f32.mrb[0].mxu0
        %5264 = vmatprep.mubr.f32.mxu0 0.0
        %5265 = vmatmul.mubr.f32.gmra.mrb[0].mxu0 %v5191
        %v5266 = vpop.f32.mrb[0].mxu0
        %v5267 = vadd.f32 0.0, %v5266
        %v5268 = vpop.f32.mrb[0].mxu0
        %5269 = vdwg.mxu0
        %v5270 = vcombine.low %v1679, %v1681
        %v5271 = vcombine.low %v1683, %v1685
        %v5273 = vunpack.c.l.s4 1983009808
        %v5274 = vunpack.c.0.s8 %v5273
        %v5275 = vlaneseq
        %v5276 = vshrl.u32 %v5275, 7
        %v5277 = vsub.s32 %v5274, %v5276
        %v5278 = vrot.slane %v5270, %v5277
        %v5280 = vunpack.c.l.s4 1983009808
        %v5281 = vunpack.c.0.s8 %v5280
        %v5282 = vlaneseq
        %v5283 = vshrl.u32 %v5282, 7
        %v5284 = vsub.s32 %v5281, %v5283
        %v5285 = vrot.slane %v5271, %v5284
        %v5286 = vcombine.low %v5278, %v5285
        %v5288 = vunpack.c.l.s4 1983009808
        %v5289 = vunpack.c.0.s8 %v5288
        %v5290 = vlaneseq
        %v5291 = vshrl.u32 %v5290, 7
        %v5292 = vsub.s32 %v5289, %v5291
        %v5293 = vrot.slane %v1687, %v5292
        %v5296 = vsel %vm3835, %v4177, 0
        %v5299 = vsel %vm3835, %v4178, 0
        %v5301 = vsel %vm4220, %v5293, 0
        %5303 = vmatprep.subr.mxu0 0.0
        %5304 = vmatpush1.msra.mxu0 %v5286
        %5305 = vmatprep.subr.mxu0 0.0
        %5306 = vmatpush1.msra.mxu0 %v5301
        %5307 = vmatprep.subr.mxu0 0.0
        %5308 = vmatpush1.msra.mxu0 0.0
        %5309 = vmatprep.subr.mxu0 0.0
        %5310 = vmatpush1.msra.mxu0 0.0
        %5311 = vmatprep.subr.mxu0 0.0
        %5312 = vmatpush1.msra.mxu0 0.0
        %5313 = vmatprep.subr.mxu0 0.0
        %5314 = vmatpush1.msra.mxu0 0.0
        %5315 = vmatprep.subr.mxu0 0.0
        %5316 = vmatpush1.msra.mxu0 0.0
        %5317 = vmatprep.subr.mxu0 0.0
        %5318 = vmatpush1.msra.mxu0 0.0
        %5319 = vmatprep.subr.mxu0 0.0
        %5320 = vmatpush1.msra.mxu0 0.0
        %5321 = vmatprep.subr.mxu0 0.0
        %5322 = vmatpush1.msra.mxu0 0.0
        %5323 = vmatprep.subr.mxu0 0.0
        %5324 = vmatpush1.msra.mxu0 0.0
        %5325 = vmatprep.subr.mxu0 0.0
        %5326 = vmatpush1.msra.mxu0 0.0
        %5327 = vmatprep.subr.mxu0 0.0
        %5328 = vmatpush1.msra.mxu0 0.0
        %5329 = vmatprep.subr.mxu0 0.0
        %5330 = vmatpush1.msra.mxu0 0.0
        %5331 = vmatprep.subr.mxu0 0.0
        %5332 = vmatpush1.msra.mxu0 0.0
        %5333 = vmatprep.subr.mxu0 0.0
        %5334 = vmatpush1.msra.mxu0 0.0
        %5335 = vmatprep.subr.mxu0 0.0
        %5336 = vmatpush1.msra.mxu0 0.0
        %5337 = vmatprep.subr.mxu0 0.0
        %5338 = vmatpush1.msra.mxu0 0.0
        %5339 = vmatprep.subr.mxu0 0.0
        %5340 = vmatpush1.msra.mxu0 0.0
        %5341 = vmatprep.subr.mxu0 0.0
        %5342 = vmatpush1.msra.mxu0 0.0
        %5343 = vmatprep.subr.mxu0 0.0
        %5344 = vmatpush1.msra.mxu0 0.0
        %5345 = vmatprep.subr.mxu0 0.0
        %5346 = vmatpush1.msra.mxu0 0.0
        %5347 = vmatprep.subr.mxu0 0.0
        %5348 = vmatpush1.msra.mxu0 0.0
        %5349 = vmatprep.subr.mxu0 0.0
        %5350 = vmatpush1.msra.mxu0 0.0
        %5351 = vmatprep.subr.mxu0 0.0
        %5352 = vmatpush1.msra.mxu0 0.0
        %5353 = vmatprep.subr.mxu0 0.0
        %5354 = vmatpush1.msra.mxu0 0.0
        %5355 = vmatprep.subr.mxu0 0.0
        %5356 = vmatpush1.msra.mxu0 0.0
        %5357 = vmatprep.subr.mxu0 0.0
        %5358 = vmatpush1.msra.mxu0 0.0
        %5359 = vmatprep.subr.mxu0 0.0
        %5360 = vmatpush1.msra.mxu0 0.0
        %5361 = vmatprep.subr.mxu0 0.0
        %5362 = vmatpush1.msra.mxu0 0.0
        %5363 = vmatprep.subr.mxu0 0.0
        %5364 = vmatpush1.msra.mxu0 0.0
        %5365 = vmatprep.subr.mxu0 0.0
        %5366 = vmatpush1.msra.mxu0 0.0
        %5367 = vmatprep.mubr.f32.mxu0 0.0
        %5368 = vmatmul.mubr.f32.gmra.mrb[0].mxu0 %v5296
        %v5369 = vpop.f32.mrb[0].mxu0
        %v5370 = vadd.f32 0.0, %v5369
        %v5371 = vpop.f32.mrb[0].mxu0
        %5372 = vmatprep.mubr.f32.mxu0 0.0
        %5373 = vmatmul.mubr.f32.gmra.mrb[0].mxu0 %v5299
        %v5374 = vpop.f32.mrb[0].mxu0
        %v5375 = vadd.f32 0.0, %v5374
        %v5376 = vpop.f32.mrb[0].mxu0
        %5377 = vdwg.mxu0
        %v5378 = vcombine.low %v1689, %v1691
        %v5379 = vcombine.low %v1693, %v1695
        %v5381 = vunpack.c.l.s4 1983009808
        %v5382 = vunpack.c.0.s8 %v5381
        %v5383 = vlaneseq
        %v5384 = vshrl.u32 %v5383, 7
        %v5385 = vsub.s32 %v5382, %v5384
        %v5386 = vrot.slane %v5378, %v5385
        %v5388 = vunpack.c.l.s4 1983009808
        %v5389 = vunpack.c.0.s8 %v5388
        %v5390 = vlaneseq
        %v5391 = vshrl.u32 %v5390, 7
        %v5392 = vsub.s32 %v5389, %v5391
        %v5393 = vrot.slane %v5379, %v5392
        %v5394 = vcombine.low %v5386, %v5393
        %v5396 = vunpack.c.l.s4 1983009808
        %v5397 = vunpack.c.0.s8 %v5396
        %v5398 = vlaneseq
        %v5399 = vshrl.u32 %v5398, 7
        %v5400 = vsub.s32 %v5397, %v5399
        %v5401 = vrot.slane %v1697, %v5400
        %v5404 = vsel %vm3835, %v4179, 0
        %v5407 = vsel %vm3835, %v4180, 0
        %v5409 = vsel %vm4220, %v5401, 0
        %5411 = vmatprep.subr.mxu0 0.0
        %5412 = vmatpush1.msra.mxu0 %v5394
        %5413 = vmatprep.subr.mxu0 0.0
        %5414 = vmatpush1.msra.mxu0 %v5409
        %5415 = vmatprep.subr.mxu0 0.0
        %5416 = vmatpush1.msra.mxu0 0.0
        %5417 = vmatprep.subr.mxu0 0.0
        %5418 = vmatpush1.msra.mxu0 0.0
        %5419 = vmatprep.subr.mxu0 0.0
        %5420 = vmatpush1.msra.mxu0 0.0
        %5421 = vmatprep.subr.mxu0 0.0
        %5422 = vmatpush1.msra.mxu0 0.0
        %5423 = vmatprep.subr.mxu0 0.0
        %5424 = vmatpush1.msra.mxu0 0.0
        %5425 = vmatprep.subr.mxu0 0.0
        %5426 = vmatpush1.msra.mxu0 0.0
        %5427 = vmatprep.subr.mxu0 0.0
        %5428 = vmatpush1.msra.mxu0 0.0
        %5429 = vmatprep.subr.mxu0 0.0
        %5430 = vmatpush1.msra.mxu0 0.0
        %5431 = vmatprep.subr.mxu0 0.0
        %5432 = vmatpush1.msra.mxu0 0.0
        %5433 = vmatprep.subr.mxu0 0.0
        %5434 = vmatpush1.msra.mxu0 0.0
        %5435 = vmatprep.subr.mxu0 0.0
        %5436 = vmatpush1.msra.mxu0 0.0
        %5437 = vmatprep.subr.mxu0 0.0
        %5438 = vmatpush1.msra.mxu0 0.0
        %5439 = vmatprep.subr.mxu0 0.0
        %5440 = vmatpush1.msra.mxu0 0.0
        %5441 = vmatprep.subr.mxu0 0.0
        %5442 = vmatpush1.msra.mxu0 0.0
        %5443 = vmatprep.subr.mxu0 0.0
        %5444 = vmatpush1.msra.mxu0 0.0
        %5445 = vmatprep.subr.mxu0 0.0
        %5446 = vmatpush1.msra.mxu0 0.0
        %5447 = vmatprep.subr.mxu0 0.0
        %5448 = vmatpush1.msra.mxu0 0.0
        %5449 = vmatprep.subr.mxu0 0.0
        %5450 = vmatpush1.msra.mxu0 0.0
        %5451 = vmatprep.subr.mxu0 0.0
        %5452 = vmatpush1.msra.mxu0 0.0
        %5453 = vmatprep.subr.mxu0 0.0
        %5454 = vmatpush1.msra.mxu0 0.0
        %5455 = vmatprep.subr.mxu0 0.0
        %5456 = vmatpush1.msra.mxu0 0.0
        %5457 = vmatprep.subr.mxu0 0.0
        %5458 = vmatpush1.msra.mxu0 0.0
        %5459 = vmatprep.subr.mxu0 0.0
        %5460 = vmatpush1.msra.mxu0 0.0
        %5461 = vmatprep.subr.mxu0 0.0
        %5462 = vmatpush1.msra.mxu0 0.0
        %5463 = vmatprep.subr.mxu0 0.0
        %5464 = vmatpush1.msra.mxu0 0.0
        %5465 = vmatprep.subr.mxu0 0.0
        %5466 = vmatpush1.msra.mxu0 0.0
        %5467 = vmatprep.subr.mxu0 0.0
        %5468 = vmatpush1.msra.mxu0 0.0
        %5469 = vmatprep.subr.mxu0 0.0
        %5470 = vmatpush1.msra.mxu0 0.0
        %5471 = vmatprep.subr.mxu0 0.0
        %5472 = vmatpush1.msra.mxu0 0.0
        %5473 = vmatprep.subr.mxu0 0.0
        %5474 = vmatpush1.msra.mxu0 0.0
        %5475 = vmatprep.mubr.f32.mxu0 0.0
        %5476 = vmatmul.mubr.f32.gmra.mrb[0].mxu0 %v5404
        %v5477 = vpop.f32.mrb[0].mxu0
        %v5478 = vadd.f32 0.0, %v5477
        %v5479 = vpop.f32.mrb[0].mxu0
        %5480 = vmatprep.mubr.f32.mxu0 0.0
        %5481 = vmatmul.mubr.f32.gmra.mrb[0].mxu0 %v5407
        %v5482 = vpop.f32.mrb[0].mxu0
        %v5483 = vadd.f32 0.0, %v5482
        %v5484 = vpop.f32.mrb[0].mxu0
        %5485 = vdwg.mxu0
        %v5486 = vcombine.low %v1699, %v1701
        %v5487 = vcombine.low %v1703, %v1705
        %v5489 = vunpack.c.l.s4 1983009808
        %v5490 = vunpack.c.0.s8 %v5489
        %v5491 = vlaneseq
        %v5492 = vshrl.u32 %v5491, 7
        %v5493 = vsub.s32 %v5490, %v5492
        %v5494 = vrot.slane %v5486, %v5493
        %v5496 = vunpack.c.l.s4 1983009808
        %v5497 = vunpack.c.0.s8 %v5496
        %v5498 = vlaneseq
        %v5499 = vshrl.u32 %v5498, 7
        %v5500 = vsub.s32 %v5497, %v5499
        %v5501 = vrot.slane %v5487, %v5500
        %v5502 = vcombine.low %v5494, %v5501
        %v5504 = vunpack.c.l.s4 1983009808
        %v5505 = vunpack.c.0.s8 %v5504
        %v5506 = vlaneseq
        %v5507 = vshrl.u32 %v5506, 7
        %v5508 = vsub.s32 %v5505, %v5507
        %v5509 = vrot.slane %v1707, %v5508
        %v5512 = vsel %vm3835, %v4181, 0
        %v5515 = vsel %vm3835, %v4182, 0
        %v5517 = vsel %vm4220, %v5509, 0
        %5519 = vmatprep.subr.mxu0 0.0
        %5520 = vmatpush1.msra.mxu0 %v5502
        %5521 = vmatprep.subr.mxu0 0.0
        %5522 = vmatpush1.msra.mxu0 %v5517
        %5523 = vmatprep.subr.mxu0 0.0
        %5524 = vmatpush1.msra.mxu0 0.0
        %5525 = vmatprep.subr.mxu0 0.0
        %5526 = vmatpush1.msra.mxu0 0.0
        %5527 = vmatprep.subr.mxu0 0.0
        %5528 = vmatpush1.msra.mxu0 0.0
        %5529 = vmatprep.subr.mxu0 0.0
        %5530 = vmatpush1.msra.mxu0 0.0
        %5531 = vmatprep.subr.mxu0 0.0
        %5532 = vmatpush1.msra.mxu0 0.0
        %5533 = vmatprep.subr.mxu0 0.0
        %5534 = vmatpush1.msra.mxu0 0.0
        %5535 = vmatprep.subr.mxu0 0.0
        %5536 = vmatpush1.msra.mxu0 0.0
        %5537 = vmatprep.subr.mxu0 0.0
        %5538 = vmatpush1.msra.mxu0 0.0
        %5539 = vmatprep.subr.mxu0 0.0
        %5540 = vmatpush1.msra.mxu0 0.0
        %5541 = vmatprep.subr.mxu0 0.0
        %5542 = vmatpush1.msra.mxu0 0.0
        %5543 = vmatprep.subr.mxu0 0.0
        %5544 = vmatpush1.msra.mxu0 0.0
        %5545 = vmatprep.subr.mxu0 0.0
        %5546 = vmatpush1.msra.mxu0 0.0
        %5547 = vmatprep.subr.mxu0 0.0
        %5548 = vmatpush1.msra.mxu0 0.0
        %5549 = vmatprep.subr.mxu0 0.0
        %5550 = vmatpush1.msra.mxu0 0.0
        %5551 = vmatprep.subr.mxu0 0.0
        %5552 = vmatpush1.msra.mxu0 0.0
        %5553 = vmatprep.subr.mxu0 0.0
        %5554 = vmatpush1.msra.mxu0 0.0
        %5555 = vmatprep.subr.mxu0 0.0
        %5556 = vmatpush1.msra.mxu0 0.0
        %5557 = vmatprep.subr.mxu0 0.0
        %5558 = vmatpush1.msra.mxu0 0.0
        %5559 = vmatprep.subr.mxu0 0.0
        %5560 = vmatpush1.msra.mxu0 0.0
        %5561 = vmatprep.subr.mxu0 0.0
        %5562 = vmatpush1.msra.mxu0 0.0
        %5563 = vmatprep.subr.mxu0 0.0
        %5564 = vmatpush1.msra.mxu0 0.0
        %5565 = vmatprep.subr.mxu0 0.0
        %5566 = vmatpush1.msra.mxu0 0.0
        %5567 = vmatprep.subr.mxu0 0.0
        %5568 = vmatpush1.msra.mxu0 0.0
        %5569 = vmatprep.subr.mxu0 0.0
        %5570 = vmatpush1.msra.mxu0 0.0
        %5571 = vmatprep.subr.mxu0 0.0
        %5572 = vmatpush1.msra.mxu0 0.0
        %5573 = vmatprep.subr.mxu0 0.0
        %5574 = vmatpush1.msra.mxu0 0.0
        %5575 = vmatprep.subr.mxu0 0.0
        %5576 = vmatpush1.msra.mxu0 0.0
        %5577 = vmatprep.subr.mxu0 0.0
        %5578 = vmatpush1.msra.mxu0 0.0
        %5579 = vmatprep.subr.mxu0 0.0
        %5580 = vmatpush1.msra.mxu0 0.0
        %5581 = vmatprep.subr.mxu0 0.0
        %5582 = vmatpush1.msra.mxu0 0.0
        %5583 = vmatprep.mubr.f32.mxu0 0.0
        %5584 = vmatmul.mubr.f32.gmra.mrb[0].mxu0 %v5512
        %v5585 = vpop.f32.mrb[0].mxu0
        %v5586 = vadd.f32 0.0, %v5585
        %v5587 = vpop.f32.mrb[0].mxu0
        %5588 = vmatprep.mubr.f32.mxu0 0.0
        %5589 = vmatmul.mubr.f32.gmra.mrb[0].mxu0 %v5515
        %v5590 = vpop.f32.mrb[0].mxu0
        %v5591 = vadd.f32 0.0, %v5590
        %v5592 = vpop.f32.mrb[0].mxu0
        %5593 = vdwg.mxu0
        %v5594 = vcombine.low %v1709, %v1711
        %v5595 = vcombine.low %v1713, %v1715
        %v5597 = vunpack.c.l.s4 1983009808
        %v5598 = vunpack.c.0.s8 %v5597
        %v5599 = vlaneseq
        %v5600 = vshrl.u32 %v5599, 7
        %v5601 = vsub.s32 %v5598, %v5600
        %v5602 = vrot.slane %v5594, %v5601
        %v5604 = vunpack.c.l.s4 1983009808
        %v5605 = vunpack.c.0.s8 %v5604
        %v5606 = vlaneseq
        %v5607 = vshrl.u32 %v5606, 7
        %v5608 = vsub.s32 %v5605, %v5607
        %v5609 = vrot.slane %v5595, %v5608
        %v5610 = vcombine.low %v5602, %v5609
        %v5612 = vunpack.c.l.s4 1983009808
        %v5613 = vunpack.c.0.s8 %v5612
        %v5614 = vlaneseq
        %v5615 = vshrl.u32 %v5614, 7
        %v5616 = vsub.s32 %v5613, %v5615
        %v5617 = vrot.slane %v1717, %v5616
        %v5620 = vsel %vm3835, %v4183, 0
        %v5623 = vsel %vm3835, %v4184, 0
        %v5625 = vsel %vm4220, %v5617, 0
        %5627 = vmatprep.subr.mxu0 0.0
        %5628 = vmatpush1.msra.mxu0 %v5610
        %5629 = vmatprep.subr.mxu0 0.0
        %5630 = vmatpush1.msra.mxu0 %v5625
        %5631 = vmatprep.subr.mxu0 0.0
        %5632 = vmatpush1.msra.mxu0 0.0
        %5633 = vmatprep.subr.mxu0 0.0
        %5634 = vmatpush1.msra.mxu0 0.0
        %5635 = vmatprep.subr.mxu0 0.0
        %5636 = vmatpush1.msra.mxu0 0.0
        %5637 = vmatprep.subr.mxu0 0.0
        %5638 = vmatpush1.msra.mxu0 0.0
        %5639 = vmatprep.subr.mxu0 0.0
        %5640 = vmatpush1.msra.mxu0 0.0
        %5641 = vmatprep.subr.mxu0 0.0
        %5642 = vmatpush1.msra.mxu0 0.0
        %5643 = vmatprep.subr.mxu0 0.0
        %5644 = vmatpush1.msra.mxu0 0.0
        %5645 = vmatprep.subr.mxu0 0.0
        %5646 = vmatpush1.msra.mxu0 0.0
        %5647 = vmatprep.subr.mxu0 0.0
        %5648 = vmatpush1.msra.mxu0 0.0
        %5649 = vmatprep.subr.mxu0 0.0
        %5650 = vmatpush1.msra.mxu0 0.0
        %5651 = vmatprep.subr.mxu0 0.0
        %5652 = vmatpush1.msra.mxu0 0.0
        %5653 = vmatprep.subr.mxu0 0.0
        %5654 = vmatpush1.msra.mxu0 0.0
        %5655 = vmatprep.subr.mxu0 0.0
        %5656 = vmatpush1.msra.mxu0 0.0
        %5657 = vmatprep.subr.mxu0 0.0
        %5658 = vmatpush1.msra.mxu0 0.0
        %5659 = vmatprep.subr.mxu0 0.0
        %5660 = vmatpush1.msra.mxu0 0.0
        %5661 = vmatprep.subr.mxu0 0.0
        %5662 = vmatpush1.msra.mxu0 0.0
        %5663 = vmatprep.subr.mxu0 0.0
        %5664 = vmatpush1.msra.mxu0 0.0
        %5665 = vmatprep.subr.mxu0 0.0
        %5666 = vmatpush1.msra.mxu0 0.0
        %5667 = vmatprep.subr.mxu0 0.0
        %5668 = vmatpush1.msra.mxu0 0.0
        %5669 = vmatprep.subr.mxu0 0.0
        %5670 = vmatpush1.msra.mxu0 0.0
        %5671 = vmatprep.subr.mxu0 0.0
        %5672 = vmatpush1.msra.mxu0 0.0
        %5673 = vmatprep.subr.mxu0 0.0
        %5674 = vmatpush1.msra.mxu0 0.0
        %5675 = vmatprep.subr.mxu0 0.0
        %5676 = vmatpush1.msra.mxu0 0.0
        %5677 = vmatprep.subr.mxu0 0.0
        %5678 = vmatpush1.msra.mxu0 0.0
        %5679 = vmatprep.subr.mxu0 0.0
        %5680 = vmatpush1.msra.mxu0 0.0
        %5681 = vmatprep.subr.mxu0 0.0
        %5682 = vmatpush1.msra.mxu0 0.0
        %5683 = vmatprep.subr.mxu0 0.0
        %5684 = vmatpush1.msra.mxu0 0.0
        %5685 = vmatprep.subr.mxu0 0.0
        %5686 = vmatpush1.msra.mxu0 0.0
        %5687 = vmatprep.subr.mxu0 0.0
        %5688 = vmatpush1.msra.mxu0 0.0
        %5689 = vmatprep.subr.mxu0 0.0
        %5690 = vmatpush1.msra.mxu0 0.0
        %5691 = vmatprep.mubr.f32.mxu0 0.0
        %5692 = vmatmul.mubr.f32.gmra.mrb[0].mxu0 %v5620
        %v5693 = vpop.f32.mrb[0].mxu0
        %v5694 = vadd.f32 0.0, %v5693
        %v5695 = vpop.f32.mrb[0].mxu0
        %5696 = vmatprep.mubr.f32.mxu0 0.0
        %5697 = vmatmul.mubr.f32.gmra.mrb[0].mxu0 %v5623
        %v5698 = vpop.f32.mrb[0].mxu0
        %v5699 = vadd.f32 0.0, %v5698
        %v5700 = vpop.f32.mrb[0].mxu0
        %5701 = vdwg.mxu0
        %v5702 = vcombine.low %v1719, %v1721
        %v5703 = vcombine.low %v1723, %v1725
        %v5705 = vunpack.c.l.s4 1983009808
        %v5706 = vunpack.c.0.s8 %v5705
        %v5707 = vlaneseq
        %v5708 = vshrl.u32 %v5707, 7
        %v5709 = vsub.s32 %v5706, %v5708
        %v5710 = vrot.slane %v5702, %v5709
        %v5712 = vunpack.c.l.s4 1983009808
        %v5713 = vunpack.c.0.s8 %v5712
        %v5714 = vlaneseq
        %v5715 = vshrl.u32 %v5714, 7
        %v5716 = vsub.s32 %v5713, %v5715
        %v5717 = vrot.slane %v5703, %v5716
        %v5718 = vcombine.low %v5710, %v5717
        %v5720 = vunpack.c.l.s4 1983009808
        %v5721 = vunpack.c.0.s8 %v5720
        %v5722 = vlaneseq
        %v5723 = vshrl.u32 %v5722, 7
        %v5724 = vsub.s32 %v5721, %v5723
        %v5725 = vrot.slane %v1727, %v5724
        %v5728 = vsel %vm3835, %v4185, 0
        %v5731 = vsel %vm3835, %v4186, 0
        %v5733 = vsel %vm4220, %v5725, 0
        %5735 = vmatprep.subr.mxu0 0.0
        %5736 = vmatpush1.msra.mxu0 %v5718
        %5737 = vmatprep.subr.mxu0 0.0
        %5738 = vmatpush1.msra.mxu0 %v5733
        %5739 = vmatprep.subr.mxu0 0.0
        %5740 = vmatpush1.msra.mxu0 0.0
        %5741 = vmatprep.subr.mxu0 0.0
        %5742 = vmatpush1.msra.mxu0 0.0
        %5743 = vmatprep.subr.mxu0 0.0
        %5744 = vmatpush1.msra.mxu0 0.0
        %5745 = vmatprep.subr.mxu0 0.0
        %5746 = vmatpush1.msra.mxu0 0.0
        %5747 = vmatprep.subr.mxu0 0.0
        %5748 = vmatpush1.msra.mxu0 0.0
        %5749 = vmatprep.subr.mxu0 0.0
        %5750 = vmatpush1.msra.mxu0 0.0
        %5751 = vmatprep.subr.mxu0 0.0
        %5752 = vmatpush1.msra.mxu0 0.0
        %5753 = vmatprep.subr.mxu0 0.0
        %5754 = vmatpush1.msra.mxu0 0.0
        %5755 = vmatprep.subr.mxu0 0.0
        %5756 = vmatpush1.msra.mxu0 0.0
        %5757 = vmatprep.subr.mxu0 0.0
        %5758 = vmatpush1.msra.mxu0 0.0
        %5759 = vmatprep.subr.mxu0 0.0
        %5760 = vmatpush1.msra.mxu0 0.0
        %5761 = vmatprep.subr.mxu0 0.0
        %5762 = vmatpush1.msra.mxu0 0.0
        %5763 = vmatprep.subr.mxu0 0.0
        %5764 = vmatpush1.msra.mxu0 0.0
        %5765 = vmatprep.subr.mxu0 0.0
        %5766 = vmatpush1.msra.mxu0 0.0
        %5767 = vmatprep.subr.mxu0 0.0
        %5768 = vmatpush1.msra.mxu0 0.0
        %5769 = vmatprep.subr.mxu0 0.0
        %5770 = vmatpush1.msra.mxu0 0.0
        %5771 = vmatprep.subr.mxu0 0.0
        %5772 = vmatpush1.msra.mxu0 0.0
        %5773 = vmatprep.subr.mxu0 0.0
        %5774 = vmatpush1.msra.mxu0 0.0
        %5775 = vmatprep.subr.mxu0 0.0
        %5776 = vmatpush1.msra.mxu0 0.0
        %5777 = vmatprep.subr.mxu0 0.0
        %5778 = vmatpush1.msra.mxu0 0.0
        %5779 = vmatprep.subr.mxu0 0.0
        %5780 = vmatpush1.msra.mxu0 0.0
        %5781 = vmatprep.subr.mxu0 0.0
        %5782 = vmatpush1.msra.mxu0 0.0
        %5783 = vmatprep.subr.mxu0 0.0
        %5784 = vmatpush1.msra.mxu0 0.0
        %5785 = vmatprep.subr.mxu0 0.0
        %5786 = vmatpush1.msra.mxu0 0.0
        %5787 = vmatprep.subr.mxu0 0.0
        %5788 = vmatpush1.msra.mxu0 0.0
        %5789 = vmatprep.subr.mxu0 0.0
        %5790 = vmatpush1.msra.mxu0 0.0
        %5791 = vmatprep.subr.mxu0 0.0
        %5792 = vmatpush1.msra.mxu0 0.0
        %5793 = vmatprep.subr.mxu0 0.0
        %5794 = vmatpush1.msra.mxu0 0.0
        %5795 = vmatprep.subr.mxu0 0.0
        %5796 = vmatpush1.msra.mxu0 0.0
        %5797 = vmatprep.subr.mxu0 0.0
        %5798 = vmatpush1.msra.mxu0 0.0
        %5799 = vmatprep.mubr.f32.mxu0 0.0
        %5800 = vmatmul.mubr.f32.gmra.mrb[0].mxu0 %v5728
        %v5801 = vpop.f32.mrb[0].mxu0
        %v5802 = vadd.f32 0.0, %v5801
        %v5803 = vpop.f32.mrb[0].mxu0
        %5804 = vmatprep.mubr.f32.mxu0 0.0
        %5805 = vmatmul.mubr.f32.gmra.mrb[0].mxu0 %v5731
        %v5806 = vpop.f32.mrb[0].mxu0
        %v5807 = vadd.f32 0.0, %v5806
        %v5808 = vpop.f32.mrb[0].mxu0
        %5809 = vdwg.mxu0
        %v5810 = vcombine.low %v1729, %v1731
        %v5811 = vcombine.low %v1733, %v1735
        %v5813 = vunpack.c.l.s4 1983009808
        %v5814 = vunpack.c.0.s8 %v5813
        %v5815 = vlaneseq
        %v5816 = vshrl.u32 %v5815, 7
        %v5817 = vsub.s32 %v5814, %v5816
        %v5818 = vrot.slane %v5810, %v5817
        %v5820 = vunpack.c.l.s4 1983009808
        %v5821 = vunpack.c.0.s8 %v5820
        %v5822 = vlaneseq
        %v5823 = vshrl.u32 %v5822, 7
        %v5824 = vsub.s32 %v5821, %v5823
        %v5825 = vrot.slane %v5811, %v5824
        %v5826 = vcombine.low %v5818, %v5825
        %v5828 = vunpack.c.l.s4 1983009808
        %v5829 = vunpack.c.0.s8 %v5828
        %v5830 = vlaneseq
        %v5831 = vshrl.u32 %v5830, 7
        %v5832 = vsub.s32 %v5829, %v5831
        %v5833 = vrot.slane %v1737, %v5832
        %v5836 = vsel %vm3835, %v4187, 0
        %v5839 = vsel %vm3835, %v4188, 0
        %v5841 = vsel %vm4220, %v5833, 0
        %5843 = vmatprep.subr.mxu0 0.0
        %5844 = vmatpush1.msra.mxu0 %v5826
        %5845 = vmatprep.subr.mxu0 0.0
        %5846 = vmatpush1.msra.mxu0 %v5841
        %5847 = vmatprep.subr.mxu0 0.0
        %5848 = vmatpush1.msra.mxu0 0.0
        %5849 = vmatprep.subr.mxu0 0.0
        %5850 = vmatpush1.msra.mxu0 0.0
        %5851 = vmatprep.subr.mxu0 0.0
        %5852 = vmatpush1.msra.mxu0 0.0
        %5853 = vmatprep.subr.mxu0 0.0
        %5854 = vmatpush1.msra.mxu0 0.0
        %5855 = vmatprep.subr.mxu0 0.0
        %5856 = vmatpush1.msra.mxu0 0.0
        %5857 = vmatprep.subr.mxu0 0.0
        %5858 = vmatpush1.msra.mxu0 0.0
        %5859 = vmatprep.subr.mxu0 0.0
        %5860 = vmatpush1.msra.mxu0 0.0
        %5861 = vmatprep.subr.mxu0 0.0
        %5862 = vmatpush1.msra.mxu0 0.0
        %5863 = vmatprep.subr.mxu0 0.0
        %5864 = vmatpush1.msra.mxu0 0.0
        %5865 = vmatprep.subr.mxu0 0.0
        %5866 = vmatpush1.msra.mxu0 0.0
        %5867 = vmatprep.subr.mxu0 0.0
        %5868 = vmatpush1.msra.mxu0 0.0
        %5869 = vmatprep.subr.mxu0 0.0
        %5870 = vmatpush1.msra.mxu0 0.0
        %5871 = vmatprep.subr.mxu0 0.0
        %5872 = vmatpush1.msra.mxu0 0.0
        %5873 = vmatprep.subr.mxu0 0.0
        %5874 = vmatpush1.msra.mxu0 0.0
        %5875 = vmatprep.subr.mxu0 0.0
        %5876 = vmatpush1.msra.mxu0 0.0
        %5877 = vmatprep.subr.mxu0 0.0
        %5878 = vmatpush1.msra.mxu0 0.0
        %5879 = vmatprep.subr.mxu0 0.0
        %5880 = vmatpush1.msra.mxu0 0.0
        %5881 = vmatprep.subr.mxu0 0.0
        %5882 = vmatpush1.msra.mxu0 0.0
        %5883 = vmatprep.subr.mxu0 0.0
        %5884 = vmatpush1.msra.mxu0 0.0
        %5885 = vmatprep.subr.mxu0 0.0
        %5886 = vmatpush1.msra.mxu0 0.0
        %5887 = vmatprep.subr.mxu0 0.0
        %5888 = vmatpush1.msra.mxu0 0.0
        %5889 = vmatprep.subr.mxu0 0.0
        %5890 = vmatpush1.msra.mxu0 0.0
        %5891 = vmatprep.subr.mxu0 0.0
        %5892 = vmatpush1.msra.mxu0 0.0
        %5893 = vmatprep.subr.mxu0 0.0
        %5894 = vmatpush1.msra.mxu0 0.0
        %5895 = vmatprep.subr.mxu0 0.0
        %5896 = vmatpush1.msra.mxu0 0.0
        %5897 = vmatprep.subr.mxu0 0.0
        %5898 = vmatpush1.msra.mxu0 0.0
        %5899 = vmatprep.subr.mxu0 0.0
        %5900 = vmatpush1.msra.mxu0 0.0
        %5901 = vmatprep.subr.mxu0 0.0
        %5902 = vmatpush1.msra.mxu0 0.0
        %5903 = vmatprep.subr.mxu0 0.0
        %5904 = vmatpush1.msra.mxu0 0.0
        %5905 = vmatprep.subr.mxu0 0.0
        %5906 = vmatpush1.msra.mxu0 0.0
        %5907 = vmatprep.mubr.f32.mxu0 0.0
        %5908 = vmatmul.mubr.f32.gmra.mrb[0].mxu0 %v5836
        %v5909 = vpop.f32.mrb[0].mxu0
        %v5910 = vadd.f32 0.0, %v5909
        %v5911 = vpop.f32.mrb[0].mxu0
        %5912 = vmatprep.mubr.f32.mxu0 0.0
        %5913 = vmatmul.mubr.f32.gmra.mrb[0].mxu0 %v5839
        %v5914 = vpop.f32.mrb[0].mxu0
        %v5915 = vadd.f32 0.0, %v5914
        %v5916 = vpop.f32.mrb[0].mxu0
        %5917 = vdwg.mxu0
        %5922 = vrot.lane.b32.xlu0 %v4506, 16
        %v5923 = vpop.permute.xlu0 %5922
        %5924 = vrot.lane.b32.xlu0 %v4511, 16
        %v5925 = vpop.permute.xlu0 %5924
        %5926 = vrot.lane.b32.xlu0 %v4614, 16
        %v5927 = vpop.permute.xlu0 %5926
        %5928 = vrot.lane.b32.xlu0 %v4619, 16
        %v5929 = vpop.permute.xlu0 %5928
        %5938 = vrot.lane.b32.xlu0 %v4722, 32
        %v5939 = vpop.permute.xlu0 %5938
        %5940 = vrot.lane.b32.xlu0 %v4727, 32
        %v5941 = vpop.permute.xlu0 %5940
        %5942 = vrot.lane.b32.xlu0 %v4830, 32
        %v5943 = vpop.permute.xlu0 %5942
        %5944 = vrot.lane.b32.xlu0 %v4835, 32
        %v5945 = vpop.permute.xlu0 %5944
        %5954 = vrot.lane.b32.xlu0 %v4938, 48
        %v5955 = vpop.permute.xlu0 %5954
        %5956 = vrot.lane.b32.xlu0 %v4943, 48
        %v5957 = vpop.permute.xlu0 %5956
        %5958 = vrot.lane.b32.xlu0 %v5046, 48
        %v5959 = vpop.permute.xlu0 %5958
        %5960 = vrot.lane.b32.xlu0 %v5051, 48
        %v5961 = vpop.permute.xlu0 %5960
        %5970 = vrot.lane.b32.xlu0 %v5154, 64
        %v5971 = vpop.permute.xlu0 %5970
        %5972 = vrot.lane.b32.xlu0 %v5159, 64
        %v5973 = vpop.permute.xlu0 %5972
        %5974 = vrot.lane.b32.xlu0 %v5262, 64
        %v5975 = vpop.permute.xlu0 %5974
        %5976 = vrot.lane.b32.xlu0 %v5267, 64
        %v5977 = vpop.permute.xlu0 %5976
        %5986 = vrot.lane.b32.xlu0 %v5370, 80
        %v5987 = vpop.permute.xlu0 %5986
        %5988 = vrot.lane.b32.xlu0 %v5375, 80
        %v5989 = vpop.permute.xlu0 %5988
        %5990 = vrot.lane.b32.xlu0 %v5478, 80
        %v5991 = vpop.permute.xlu0 %5990
        %5992 = vrot.lane.b32.xlu0 %v5483, 80
        %v5993 = vpop.permute.xlu0 %5992
        %6002 = vrot.lane.b32.xlu0 %v5586, 96
        %v6003 = vpop.permute.xlu0 %6002
        %6004 = vrot.lane.b32.xlu0 %v5591, 96
        %v6005 = vpop.permute.xlu0 %6004
        %6006 = vrot.lane.b32.xlu0 %v5694, 96
        %v6007 = vpop.permute.xlu0 %6006
        %6008 = vrot.lane.b32.xlu0 %v5699, 96
        %v6009 = vpop.permute.xlu0 %6008
        %6018 = vrot.lane.b32.xlu0 %v5802, 112
        %v6019 = vpop.permute.xlu0 %6018
        %6020 = vrot.lane.b32.xlu0 %v5807, 112
        %v6021 = vpop.permute.xlu0 %6020
        %6022 = vrot.lane.b32.xlu0 %v5910, 112
        %v6023 = vpop.permute.xlu0 %6022
        %6024 = vrot.lane.b32.xlu0 %v5915, 112
        %v6025 = vpop.permute.xlu0 %6024
        %v6030 = vsel %vm1786, %v4290, %v5923
        %v6031 = vsel %vm1786, %v4295, %v5925
        %v6032 = vsel %vm1786, %v4398, %v5927
        %v6033 = vsel %vm1786, %v4403, %v5929
        %vm6034 = vcmask 261120
        %v6035 = vsel %vm6034, %v6030, %v5939
        %v6036 = vsel %vm6034, %v6031, %v5941
        %v6037 = vsel %vm6034, %v6032, %v5943
        %v6038 = vsel %vm6034, %v6033, %v5945
        %vm6039 = vcmask 392192
        %v6040 = vsel %vm6039, %v6035, %v5955
        %v6041 = vsel %vm6039, %v6036, %v5957
        %v6042 = vsel %vm6039, %v6037, %v5959
        %v6043 = vsel %vm6039, %v6038, %v5961
        %vm6044 = vcmask 523264
        %v6045 = vsel %vm6044, %v6040, %v5971
        %v6046 = vsel %vm6044, %v6041, %v5973
        %v6047 = vsel %vm6044, %v6042, %v5975
        %v6048 = vsel %vm6044, %v6043, %v5977
        %vm6049 = vcmask 654336
        %v6050 = vsel %vm6049, %v6045, %v5987
        %v6051 = vsel %vm6049, %v6046, %v5989
        %v6052 = vsel %vm6049, %v6047, %v5991
        %v6053 = vsel %vm6049, %v6048, %v5993
        %vm6054 = vcmask 785408
        %v6055 = vsel %vm6054, %v6050, %v6003
        %v6056 = vsel %vm6054, %v6051, %v6005
        %v6057 = vsel %vm6054, %v6052, %v6007
        %v6058 = vsel %vm6054, %v6053, %v6009
        %vm6059 = vcmask 916480
        %v6060 = vsel %vm6059, %v6055, %v6019
        %v6061 = vsel %vm6059, %v6056, %v6021
        %v6062 = vsel %vm6059, %v6057, %v6023
        %v6063 = vsel %vm6059, %v6058, %v6025
        %v6068 = vcombine.high %v6060, %v6060
        %v6070 = vunpack.c.l.s4 1983009808
        %v6071 = vunpack.c.0.s8 %v6070
        %v6072 = vlaneseq
        %v6073 = vshrl.u32 %v6072, 7
        %v6074 = vsub.s32 %v6071, %v6073
        %v6075 = vrot.slane %v6060, %v6074
        %v6077 = vunpack.c.l.s4 1983009808
        %v6078 = vunpack.c.0.s8 %v6077
        %v6079 = vlaneseq
        %v6080 = vshrl.u32 %v6079, 7
        %v6081 = vsub.s32 %v6078, %v6080
        %v6082 = vrot.slane %v6068, %v6081
        %v6083 = vcombine.high %v6075, %v6075
        %v6084 = vcombine.high %v6082, %v6082
        %v6086 = vunpack.c.l.s4 1983009808
        %v6087 = vunpack.c.0.s8 %v6086
        %v6088 = vlaneseq
        %v6089 = vshrl.u32 %v6088, 7
        %v6090 = vsub.s32 %v6087, %v6089
        %v6091 = vrot.slane %v6061, %v6090
        %v6092 = vcombine.high %v6062, %v6062
        %v6094 = vunpack.c.l.s4 1983009808
        %v6095 = vunpack.c.0.s8 %v6094
        %v6096 = vlaneseq
        %v6097 = vshrl.u32 %v6096, 7
        %v6098 = vsub.s32 %v6095, %v6097
        %v6099 = vrot.slane %v6062, %v6098
        %v6101 = vunpack.c.l.s4 1983009808
        %v6102 = vunpack.c.0.s8 %v6101
        %v6103 = vlaneseq
        %v6104 = vshrl.u32 %v6103, 7
        %v6105 = vsub.s32 %v6102, %v6104
        %v6106 = vrot.slane %v6092, %v6105
        %v6107 = vcombine.high %v6099, %v6099
        %v6108 = vcombine.high %v6106, %v6106
        %v6110 = vunpack.c.l.s4 1983009808
        %v6111 = vunpack.c.0.s8 %v6110
        %v6112 = vlaneseq
        %v6113 = vshrl.u32 %v6112, 7
        %v6114 = vsub.s32 %v6111, %v6113
        %v6115 = vrot.slane %v6063, %v6114
        %v6116 = vcombine.low %v6075, %v6083
        %v6117 = vcombine.low %v6082, %v6084
        %v6119 = vunpack.c.l.s4 1983009808
        %v6120 = vunpack.c.0.s8 %v6119
        %v6121 = vlaneseq
        %v6122 = vshrl.u32 %v6121, 7
        %v6123 = vsub.s32 %v6120, %v6122
        %v6124 = vrot.slane %v6116, %v6123
        %v6126 = vunpack.c.l.s4 1983009808
        %v6127 = vunpack.c.0.s8 %v6126
        %v6128 = vlaneseq
        %v6129 = vshrl.u32 %v6128, 7
        %v6130 = vsub.s32 %v6127, %v6129
        %v6131 = vrot.slane %v6117, %v6130
        %v6132 = vcombine.low %v6124, %v6131
        %v6133 = vcombine.low %v6091, %v6099
        %v6134 = vcombine.low %v6107, %v6106
        %v6136 = vunpack.c.l.s4 1983009808
        %v6137 = vunpack.c.0.s8 %v6136
        %v6138 = vlaneseq
        %v6139 = vshrl.u32 %v6138, 7
        %v6140 = vsub.s32 %v6137, %v6139
        %v6141 = vrot.slane %v6133, %v6140
        %v6143 = vunpack.c.l.s4 1983009808
        %v6144 = vunpack.c.0.s8 %v6143
        %v6145 = vlaneseq
        %v6146 = vshrl.u32 %v6145, 7
        %v6147 = vsub.s32 %v6144, %v6146
        %v6148 = vrot.slane %v6134, %v6147
        %v6149 = vcombine.low %v6141, %v6148
        %v6150 = vcombine.low %v6108, %v6115
        %v6152 = vunpack.c.l.s4 1983009808
        %v6153 = vunpack.c.0.s8 %v6152
        %v6154 = vlaneseq
        %v6155 = vshrl.u32 %v6154, 7
        %v6156 = vsub.s32 %v6153, %v6155
        %v6157 = vrot.slane %v6150, %v6156
        %v6161 = vpack.c.bf16 %v6149, %v6132
        %v6162 = vpack.c.bf16 %v6157, %v6157
        %v6163 = vld [vmem:[%s757] sm:$0xf]
        %v6164 = vld [vmem:[%s757 + $0x4] sm:$0xf]
        %v6165 = vld [vmem:[%s757 + $0x8] sm:$0xf]
        %v6166 = vld [vmem:[%s757 + $0xc] sm:$0xf]
        %v6167 = vld [vmem:[%s757 + $0x10] sm:$0xf]
        %v6168 = vld [vmem:[%s757 + $0x14] sm:$0xf]
        %v6169 = vld [vmem:[%s757 + $0x18] sm:$0xf]
        %v6170 = vld [vmem:[%s757 + $0x1c] sm:$0xf]
        %v6171 = vld [vmem:[%s757 + $0x20] sm:$0xf]
        %v6172 = vld [vmem:[%s757 + $0x24] sm:$0xf]
        %v6173 = vld [vmem:[%s757 + $0x28] sm:$0xf]
        %v6174 = vld [vmem:[%s757 + $0x2c] sm:$0xf]
        %v6175 = vld [vmem:[%s757 + $0x30] sm:$0xf]
        %v6176 = vld [vmem:[%s757 + $0x34] sm:$0xf]
        %v6177 = vld [vmem:[%s757 + $0x38] sm:$0xf]
        %v6178 = vld [vmem:[%s757 + $0x3c] sm:$0xf]
        %v6179 = vld [vmem:[%s760] sm:$0x1]
        %v6181 = vlaneseq
        %v6182 = vshrl.u32 %v6181, 7
        %v6183 = vsub.s32 0, %v6182
        %v6184 = vrot.slane %v6179, %v6183
        %v6202 = vunpack.c.l.b16 %v6163
        %v6203 = vunpack.c.l.b16 %v6164
        %v6204 = vunpack.c.l.b16 %v6165
        %v6205 = vunpack.c.l.b16 %v6166
        %v6206 = vunpack.c.l.b16 %v6167
        %v6207 = vunpack.c.l.b16 %v6168
        %v6208 = vunpack.c.l.b16 %v6169
        %v6209 = vunpack.c.l.b16 %v6170
        %v6210 = vunpack.c.l.b16 %v6171
        %v6211 = vunpack.c.l.b16 %v6172
        %v6212 = vunpack.c.l.b16 %v6173
        %v6213 = vunpack.c.l.b16 %v6174
        %v6214 = vunpack.c.l.b16 %v6175
        %v6215 = vunpack.c.l.b16 %v6176
        %v6216 = vunpack.c.l.b16 %v6177
        %v6217 = vunpack.c.l.b16 %v6178
        %v6218 = vpack.c.b16 %v6203, %v6202
        %v6219 = vpack.c.b16 %v6205, %v6204
        %v6220 = vpack.c.b16 %v6207, %v6206
        %v6221 = vpack.c.b16 %v6209, %v6208
        %v6222 = vpack.c.b16 %v6211, %v6210
        %v6223 = vpack.c.b16 %v6213, %v6212
        %v6224 = vpack.c.b16 %v6215, %v6214
        %v6225 = vpack.c.b16 %v6217, %v6216
        %6234 = vmatprep.subr.bf16.mxu0 0
        %6235 = vmatpush1.bf16.msra.mxu0 %v6218
        %6236 = vmatprep.subr.bf16.mxu0 0
        %6237 = vmatpush1.bf16.msra.mxu0 %v6219
        %6238 = vmatprep.subr.bf16.mxu0 0
        %6239 = vmatpush1.bf16.msra.mxu0 %v6220
        %6240 = vmatprep.subr.bf16.mxu0 0
        %6241 = vmatpush1.bf16.msra.mxu0 %v6221
        %6242 = vmatprep.subr.bf16.mxu0 0
        %6243 = vmatpush1.bf16.msra.mxu0 %v6222
        %6244 = vmatprep.subr.bf16.mxu0 0
        %6245 = vmatpush1.bf16.msra.mxu0 %v6223
        %6246 = vmatprep.subr.bf16.mxu0 0
        %6247 = vmatpush1.bf16.msra.mxu0 %v6224
        %6248 = vmatprep.subr.bf16.mxu0 0
        %6249 = vmatpush1.bf16.msra.mxu0 %v6225
        %6250 = vmatprep.subr.bf16.mxu0 0
        %6251 = vmatpush1.bf16.msra.mxu0 0
        %6252 = vmatprep.subr.bf16.mxu0 0
        %6253 = vmatpush1.bf16.msra.mxu0 0
        %6254 = vmatprep.subr.bf16.mxu0 0
        %6255 = vmatpush1.bf16.msra.mxu0 0
        %6256 = vmatprep.subr.bf16.mxu0 0
        %6257 = vmatpush1.bf16.msra.mxu0 0
        %6258 = vmatprep.subr.bf16.mxu0 0
        %6259 = vmatpush1.bf16.msra.mxu0 0
        %6260 = vmatprep.subr.bf16.mxu0 0
        %6261 = vmatpush1.bf16.msra.mxu0 0
        %6262 = vmatprep.subr.bf16.mxu0 0
        %6263 = vmatpush1.bf16.msra.mxu0 0
        %6264 = vmatprep.subr.bf16.mxu0 0
        %6265 = vmatpush1.bf16.msra.mxu0 0
        %6266 = vmatprep.mubr.bf16.mxu0 0
        %6267 = vmatmul.mubr.bf16.gmra.mrb[0].mxu0 %v6161
        %v6268 = vpop.f32.mrb[0].mxu0
        %v6269 = vadd.f32 %v6184, %v6268
        %v6270 = vpop.f32.mrb[0].mxu0
        %v6271 = vpop.f32.mrb[0].mxu0
        %v6272 = vadd.f32 %v6184, %v6271
        %v6273 = vpop.f32.mrb[0].mxu0
        %6274 = vmatprep.mubr.bf16.mxu0 0
        %6275 = vmatmul.mubr.bf16.gmra.mrb[0].mxu0 %v6162
        %v6276 = vpop.f32.mrb[0].mxu0
        %v6277 = vadd.f32 %v6184, %v6276
        %v6278 = vpop.f32.mrb[0].mxu0
        %v6279 = vpop.f32.mrb[0].mxu0
        %v6280 = vpop.f32.mrb[0].mxu0
        %6281 = vdwg.mxu0
        %v6282 = vadd.f32 %v899, %v6269
        %v6283 = vadd.f32 %v900, %v6272
        %v6284 = vadd.f32 %v901, %v6277
        %v6285 = vld [vmem:[%s763] sm:$0x1]
        %v6286 = vld [vmem:[%s766] sm:$0x1]
        %6287 = vadd.xlane.f32.xlu0 %v6282
        %v6288 = vpop.xlane.xlu0 %6287
        %6289 = vadd.xlane.f32.xlu0 %v6283
        %v6290 = vpop.xlane.xlu0 %6289
        %vm6291 = vcmask 1043456
        %v6292 = vsel %vm6291, %v6284, 0.0
        %6293 = vadd.xlane.f32.xlu0 %v6292
        %v6294 = vpop.xlane.xlu0 %6293
        %v6295 = vrcp.pop 128.0
        %v6296 = vmul.f32 %v6288, %v6295
        %v6297 = vmul.f32 %v6290, %v6295
        %v6298 = vmul.f32 %v6294, %v6295
        %v6299 = vsub.f32 %v6282, %v6296
        %v6300 = vsub.f32 %v6283, %v6297
        %v6301 = vsub.f32 %v6284, %v6298
        %v6302 = vmul.f32 %v6299, %v6299
        %v6303 = vmul.f32 %v6300, %v6300
        %v6304 = vmul.f32 %v6301, %v6301
        %6305 = vadd.xlane.f32.xlu0 %v6302
        %v6306 = vpop.xlane.xlu0 %6305
        %6307 = vadd.xlane.f32.xlu0 %v6303
        %v6308 = vpop.xlane.xlu0 %6307
        %v6309 = vsel %vm6291, %v6304, 0.0
        %6310 = vadd.xlane.f32.xlu0 %v6309
        %v6311 = vpop.xlane.xlu0 %6310
        %v6312 = vmul.f32 %v6306, %v6295
        %v6313 = vmul.f32 %v6308, %v6295
        %v6314 = vmul.f32 %v6311, %v6295
        %v6315 = vadd.f32 %v6312, 1e-05
        %v6316 = vadd.f32 %v6313, 1e-05
        %v6317 = vadd.f32 %v6314, 1e-05
        %v6318 = vrsqrt.pop %v6315
        %v6319 = vrsqrt.pop %v6316
        %v6320 = vrsqrt.pop %v6317
        %v6321 = vmul.f32 %v6299, %v6318
        %v6322 = vmul.f32 %v6300, %v6319
        %v6323 = vmul.f32 %v6301, %v6320
        %v6325 = vlaneseq
        %v6326 = vshrl.u32 %v6325, 7
        %v6327 = vsub.s32 0, %v6326
        %v6328 = vrot.slane %v6285, %v6327
        %v6330 = vmul.f32 %v6321, %v6328
        %v6331 = vmul.f32 %v6322, %v6328
        %v6332 = vmul.f32 %v6323, %v6328
        %v6334 = vlaneseq
        %v6335 = vshrl.u32 %v6334, 7
        %v6336 = vsub.s32 0, %v6335
        %v6337 = vrot.slane %v6286, %v6336
        %v6339 = vadd.f32 %v6330, %v6337
        %v6340 = vadd.f32 %v6331, %v6337
        %v6341 = vadd.f32 %v6332, %v6337
        %v6342 = vpack.c.bf16 %v6340, %v6339
        %v6343 = vpack.c.bf16 %v6341, %v6341
        %v6344 = vld [vmem:[%s646] sm:$0xff]
        %v6345 = vld [vmem:[%s646 + $0x8] sm:$0xff]
        %v6346 = vld [vmem:[%s646 + $0x40] sm:$0xff]
        %v6347 = vld [vmem:[%s646 + $0x48] sm:$0xff]
        %v6348 = vld [vmem:[%s646 + $0x80] sm:$0xff]
        %v6349 = vld [vmem:[%s646 + $0x88] sm:$0xff]
        %v6350 = vld [vmem:[%s646 + $0xc0] sm:$0xff]
        %v6351 = vld [vmem:[%s646 + $0xc8] sm:$0xff]
        %v6352 = vld [vmem:[%s646 + $0x100] sm:$0xff]
        %v6353 = vld [vmem:[%s646 + $0x108] sm:$0xff]
        %v6354 = vld [vmem:[%s646 + $0x140] sm:$0xff]
        %v6355 = vld [vmem:[%s646 + $0x148] sm:$0xff]
        %v6356 = vld [vmem:[%s646 + $0x180] sm:$0xff]
        %v6357 = vld [vmem:[%s646 + $0x188] sm:$0xff]
        %v6358 = vld [vmem:[%s646 + $0x1c0] sm:$0xff]
        %v6359 = vld [vmem:[%s646 + $0x1c8] sm:$0xff]
        %v6360 = vld [vmem:[%s646 + $0x200] sm:$0xff]
        %v6361 = vld [vmem:[%s646 + $0x208] sm:$0xff]
        %v6362 = vld [vmem:[%s646 + $0x240] sm:$0xff]
        %v6363 = vld [vmem:[%s646 + $0x248] sm:$0xff]
        %v6364 = vld [vmem:[%s646 + $0x280] sm:$0xff]
        %v6365 = vld [vmem:[%s646 + $0x288] sm:$0xff]
        %v6366 = vld [vmem:[%s646 + $0x2c0] sm:$0xff]
        %v6367 = vld [vmem:[%s646 + $0x2c8] sm:$0xff]
        %v6368 = vld [vmem:[%s646 + $0x300] sm:$0xff]
        %v6369 = vld [vmem:[%s646 + $0x308] sm:$0xff]
        %v6370 = vld [vmem:[%s646 + $0x340] sm:$0xff]
        %v6371 = vld [vmem:[%s646 + $0x348] sm:$0xff]
        %v6372 = vld [vmem:[%s646 + $0x380] sm:$0xff]
        %v6373 = vld [vmem:[%s646 + $0x388] sm:$0xff]
        %v6374 = vld [vmem:[%s646 + $0x3c0] sm:$0xff]
        %v6375 = vld [vmem:[%s646 + $0x3c8] sm:$0xff]
        %v6376 = vld [vmem:[%s770] sm:$0xf]
        %v6378 = vlaneseq
        %v6379 = vshrl.u32 %v6378, 7
        %v6380 = vsub.s32 0, %v6379
        %v6381 = vrot.slane %v6376, %v6380
        %v6382 = vlaneseq
        %v6383 = vshrl.u32 %v6382, 7
        %v6384 = vsub.s32 1, %v6383
        %v6385 = vrot.slane %v6376, %v6384
        %v6386 = vlaneseq
        %v6387 = vshrl.u32 %v6386, 7
        %v6388 = vsub.s32 2, %v6387
        %v6389 = vrot.slane %v6376, %v6388
        %v6390 = vlaneseq
        %v6391 = vshrl.u32 %v6390, 7
        %v6392 = vsub.s32 3, %v6391
        %v6393 = vrot.slane %v6376, %v6392
        %v6430 = vunpack.c.l.b16 %v6344
        %v6431 = vunpack.c.h.b16 %v6344
        %v6432 = vunpack.c.l.b16 %v6345
        %v6433 = vunpack.c.h.b16 %v6345
        %v6434 = vunpack.c.l.b16 %v6346
        %v6435 = vunpack.c.h.b16 %v6346
        %v6436 = vunpack.c.l.b16 %v6347
        %v6437 = vunpack.c.h.b16 %v6347
        %v6438 = vunpack.c.l.b16 %v6348
        %v6439 = vunpack.c.h.b16 %v6348
        %v6440 = vunpack.c.l.b16 %v6349
        %v6441 = vunpack.c.h.b16 %v6349
        %v6442 = vunpack.c.l.b16 %v6350
        %v6443 = vunpack.c.h.b16 %v6350
        %v6444 = vunpack.c.l.b16 %v6351
        %v6445 = vunpack.c.h.b16 %v6351
        %v6446 = vunpack.c.l.b16 %v6352
        %v6447 = vunpack.c.h.b16 %v6352
        %v6448 = vunpack.c.l.b16 %v6353
        %v6449 = vunpack.c.h.b16 %v6353
        %v6450 = vunpack.c.l.b16 %v6354
        %v6451 = vunpack.c.h.b16 %v6354
        %v6452 = vunpack.c.l.b16 %v6355
        %v6453 = vunpack.c.h.b16 %v6355
        %v6454 = vunpack.c.l.b16 %v6356
        %v6455 = vunpack.c.h.b16 %v6356
        %v6456 = vunpack.c.l.b16 %v6357
        %v6457 = vunpack.c.h.b16 %v6357
        %v6458 = vunpack.c.l.b16 %v6358
        %v6459 = vunpack.c.h.b16 %v6358
        %v6460 = vunpack.c.l.b16 %v6359
        %v6461 = vunpack.c.h.b16 %v6359
        %v6462 = vunpack.c.l.b16 %v6360
        %v6463 = vunpack.c.h.b16 %v6360
        %v6464 = vunpack.c.l.b16 %v6361
        %v6465 = vunpack.c.h.b16 %v6361
        %v6466 = vunpack.c.l.b16 %v6362
        %v6467 = vunpack.c.h.b16 %v6362
        %v6468 = vunpack.c.l.b16 %v6363
        %v6469 = vunpack.c.h.b16 %v6363
        %v6470 = vunpack.c.l.b16 %v6364
        %v6471 = vunpack.c.h.b16 %v6364
        %v6472 = vunpack.c.l.b16 %v6365
        %v6473 = vunpack.c.h.b16 %v6365
        %v6474 = vunpack.c.l.b16 %v6366
        %v6475 = vunpack.c.h.b16 %v6366
        %v6476 = vunpack.c.l.b16 %v6367
        %v6477 = vunpack.c.h.b16 %v6367
        %v6478 = vunpack.c.l.b16 %v6368
        %v6479 = vunpack.c.h.b16 %v6368
        %v6480 = vunpack.c.l.b16 %v6369
        %v6481 = vunpack.c.h.b16 %v6369
        %v6482 = vunpack.c.l.b16 %v6370
        %v6483 = vunpack.c.h.b16 %v6370
        %v6484 = vunpack.c.l.b16 %v6371
        %v6485 = vunpack.c.h.b16 %v6371
        %v6486 = vunpack.c.l.b16 %v6372
        %v6487 = vunpack.c.h.b16 %v6372
        %v6488 = vunpack.c.l.b16 %v6373
        %v6489 = vunpack.c.h.b16 %v6373
        %v6490 = vunpack.c.l.b16 %v6374
        %v6491 = vunpack.c.h.b16 %v6374
        %v6492 = vunpack.c.l.b16 %v6375
        %v6493 = vunpack.c.h.b16 %v6375
        %v6494 = vpack.c.b16 %v6434, %v6430
        %v6495 = vpack.c.b16 %v6435, %v6431
        %v6496 = vpack.c.b16 %v6436, %v6432
        %v6497 = vpack.c.b16 %v6437, %v6433
        %v6498 = vpack.c.b16 %v6442, %v6438
        %v6499 = vpack.c.b16 %v6443, %v6439
        %v6500 = vpack.c.b16 %v6444, %v6440
        %v6501 = vpack.c.b16 %v6445, %v6441
        %v6502 = vpack.c.b16 %v6450, %v6446
        %v6503 = vpack.c.b16 %v6451, %v6447
        %v6504 = vpack.c.b16 %v6452, %v6448
        %v6505 = vpack.c.b16 %v6453, %v6449
        %v6506 = vpack.c.b16 %v6458, %v6454
        %v6507 = vpack.c.b16 %v6459, %v6455
        %v6508 = vpack.c.b16 %v6460, %v6456
        %v6509 = vpack.c.b16 %v6461, %v6457
        %v6510 = vpack.c.b16 %v6466, %v6462
        %v6511 = vpack.c.b16 %v6467, %v6463
        %v6512 = vpack.c.b16 %v6468, %v6464
        %v6513 = vpack.c.b16 %v6469, %v6465
        %v6514 = vpack.c.b16 %v6474, %v6470
        %v6515 = vpack.c.b16 %v6475, %v6471
        %v6516 = vpack.c.b16 %v6476, %v6472
        %v6517 = vpack.c.b16 %v6477, %v6473
        %v6518 = vpack.c.b16 %v6482, %v6478
        %v6519 = vpack.c.b16 %v6483, %v6479
        %v6520 = vpack.c.b16 %v6484, %v6480
        %v6521 = vpack.c.b16 %v6485, %v6481
        %v6522 = vpack.c.b16 %v6490, %v6486
        %v6523 = vpack.c.b16 %v6491, %v6487
        %v6524 = vpack.c.b16 %v6492, %v6488
        %v6525 = vpack.c.b16 %v6493, %v6489
        %6558 = vmatprep.subr.bf16.mxu0 %v6495
        %6559 = vmatpush1.bf16.msra.mxu0 %v6494
        %6560 = vmatprep.subr.bf16.mxu0 %v6499
        %6561 = vmatpush1.bf16.msra.mxu0 %v6498
        %6562 = vmatprep.subr.bf16.mxu0 %v6503
        %6563 = vmatpush1.bf16.msra.mxu0 %v6502
        %6564 = vmatprep.subr.bf16.mxu0 %v6507
        %6565 = vmatpush1.bf16.msra.mxu0 %v6506
        %6566 = vmatprep.subr.bf16.mxu0 %v6511
        %6567 = vmatpush1.bf16.msra.mxu0 %v6510
        %6568 = vmatprep.subr.bf16.mxu0 %v6515
        %6569 = vmatpush1.bf16.msra.mxu0 %v6514
        %6570 = vmatprep.subr.bf16.mxu0 %v6519
        %6571 = vmatpush1.bf16.msra.mxu0 %v6518
        %6572 = vmatprep.subr.bf16.mxu0 %v6523
        %6573 = vmatpush1.bf16.msra.mxu0 %v6522
        %6574 = vmatprep.subr.bf16.mxu0 0
        %6575 = vmatpush1.bf16.msra.mxu0 0
        %6576 = vmatprep.subr.bf16.mxu0 0
        %6577 = vmatpush1.bf16.msra.mxu0 0
        %6578 = vmatprep.subr.bf16.mxu0 0
        %6579 = vmatpush1.bf16.msra.mxu0 0
        %6580 = vmatprep.subr.bf16.mxu0 0
        %6581 = vmatpush1.bf16.msra.mxu0 0
        %6582 = vmatprep.subr.bf16.mxu0 0
        %6583 = vmatpush1.bf16.msra.mxu0 0
        %6584 = vmatprep.subr.bf16.mxu0 0
        %6585 = vmatpush1.bf16.msra.mxu0 0
        %6586 = vmatprep.subr.bf16.mxu0 0
        %6587 = vmatpush1.bf16.msra.mxu0 0
        %6588 = vmatprep.subr.bf16.mxu0 0
        %6589 = vmatpush1.bf16.msra.mxu0 0
        %6590 = vmatprep.mubr.bf16.mxu0 0
        %6591 = vmatmul.mubr.bf16.gmra.mrb[0].mxu0 %v6342
        %v6592 = vpop.f32.mrb[0].mxu0
        %v6593 = vadd.f32 %v6381, %v6592
        %v6594 = vpop.f32.mrb[0].mxu0
        %v6595 = vadd.f32 %v6385, %v6594
        %v6596 = vpop.f32.mrb[0].mxu0
        %v6597 = vadd.f32 %v6381, %v6596
        %v6598 = vpop.f32.mrb[0].mxu0
        %v6599 = vadd.f32 %v6385, %v6598
        %6600 = vmatprep.mubr.bf16.mxu0 0
        %6601 = vmatmul.mubr.bf16.gmra.mrb[0].mxu0 %v6343
        %v6602 = vpop.f32.mrb[0].mxu0
        %v6603 = vadd.f32 %v6381, %v6602
        %v6604 = vpop.f32.mrb[0].mxu0
        %v6605 = vadd.f32 %v6385, %v6604
        %v6606 = vpop.f32.mrb[0].mxu0
        %v6607 = vpop.f32.mrb[0].mxu0
        %6608 = vdwg.mxu0
        %6609 = vmatprep.subr.bf16.mxu0 %v6497
        %6610 = vmatpush1.bf16.msra.mxu0 %v6496
        %6611 = vmatprep.subr.bf16.mxu0 %v6501
        %6612 = vmatpush1.bf16.msra.mxu0 %v6500
        %6613 = vmatprep.subr.bf16.mxu0 %v6505
        %6614 = vmatpush1.bf16.msra.mxu0 %v6504
        %6615 = vmatprep.subr.bf16.mxu0 %v6509
        %6616 = vmatpush1.bf16.msra.mxu0 %v6508
        %6617 = vmatprep.subr.bf16.mxu0 %v6513
        %6618 = vmatpush1.bf16.msra.mxu0 %v6512
        %6619 = vmatprep.subr.bf16.mxu0 %v6517
        %6620 = vmatpush1.bf16.msra.mxu0 %v6516
        %6621 = vmatprep.subr.bf16.mxu0 %v6521
        %6622 = vmatpush1.bf16.msra.mxu0 %v6520
        %6623 = vmatprep.subr.bf16.mxu0 %v6525
        %6624 = vmatpush1.bf16.msra.mxu0 %v6524
        %6625 = vmatprep.subr.bf16.mxu0 0
        %6626 = vmatpush1.bf16.msra.mxu0 0
        %6627 = vmatprep.subr.bf16.mxu0 0
        %6628 = vmatpush1.bf16.msra.mxu0 0
        %6629 = vmatprep.subr.bf16.mxu0 0
        %6630 = vmatpush1.bf16.msra.mxu0 0
        %6631 = vmatprep.subr.bf16.mxu0 0
        %6632 = vmatpush1.bf16.msra.mxu0 0
        %6633 = vmatprep.subr.bf16.mxu0 0
        %6634 = vmatpush1.bf16.msra.mxu0 0
        %6635 = vmatprep.subr.bf16.mxu0 0
        %6636 = vmatpush1.bf16.msra.mxu0 0
        %6637 = vmatprep.subr.bf16.mxu0 0
        %6638 = vmatpush1.bf16.msra.mxu0 0
        %6639 = vmatprep.subr.bf16.mxu0 0
        %6640 = vmatpush1.bf16.msra.mxu0 0
        %6641 = vmatprep.mubr.bf16.mxu0 0
        %6642 = vmatmul.mubr.bf16.gmra.mrb[0].mxu0 %v6342
        %v6643 = vpop.f32.mrb[0].mxu0
        %v6644 = vadd.f32 %v6389, %v6643
        %v6645 = vpop.f32.mrb[0].mxu0
        %v6646 = vadd.f32 %v6393, %v6645
        %v6647 = vpop.f32.mrb[0].mxu0
        %v6648 = vadd.f32 %v6389, %v6647
        %v6649 = vpop.f32.mrb[0].mxu0
        %v6650 = vadd.f32 %v6393, %v6649
        %6651 = vmatprep.mubr.bf16.mxu0 0
        %6652 = vmatmul.mubr.bf16.gmra.mrb[0].mxu0 %v6343
        %v6653 = vpop.f32.mrb[0].mxu0
        %v6654 = vadd.f32 %v6389, %v6653
        %v6655 = vpop.f32.mrb[0].mxu0
        %v6656 = vadd.f32 %v6393, %v6655
        %v6657 = vpop.f32.mrb[0].mxu0
        %v6658 = vpop.f32.mrb[0].mxu0
        %6659 = vdwg.mxu0
        %v6660 = vmax.f32 %v6593, 0.0
        %v6661 = vmax.f32 %v6595, 0.0
        %v6662 = vmax.f32 %v6644, 0.0
        %v6663 = vmax.f32 %v6646, 0.0
        %v6664 = vmax.f32 %v6597, 0.0
        %v6665 = vmax.f32 %v6599, 0.0
        %v6666 = vmax.f32 %v6648, 0.0
        %v6667 = vmax.f32 %v6650, 0.0
        %v6668 = vmax.f32 %v6603, 0.0
        %v6669 = vmax.f32 %v6605, 0.0
        %v6670 = vmax.f32 %v6654, 0.0
        %v6671 = vmax.f32 %v6656, 0.0
        %v6672 = vpack.c.bf16 %v6664, %v6660
        %v6673 = vpack.c.bf16 %v6665, %v6661
        %v6674 = vpack.c.bf16 %v6666, %v6662
        %v6675 = vpack.c.bf16 %v6667, %v6663
        %v6676 = vpack.c.bf16 %v6668, %v6668
        %v6677 = vpack.c.bf16 %v6669, %v6669
        %v6678 = vpack.c.bf16 %v6670, %v6670
        %v6679 = vpack.c.bf16 %v6671, %v6671
        %v6680 = vld [vmem:[%s655] sm:$0xf]
        %v6681 = vld [vmem:[%s655 + $0x4] sm:$0xf]
        %v6682 = vld [vmem:[%s655 + $0x8] sm:$0xf]
        %v6683 = vld [vmem:[%s655 + $0xc] sm:$0xf]
        %v6684 = vld [vmem:[%s655 + $0x10] sm:$0xf]
        %v6685 = vld [vmem:[%s655 + $0x14] sm:$0xf]
        %v6686 = vld [vmem:[%s655 + $0x18] sm:$0xf]
        %v6687 = vld [vmem:[%s655 + $0x1c] sm:$0xf]
        %v6688 = vld [vmem:[%s655 + $0x20] sm:$0xf]
        %v6689 = vld [vmem:[%s655 + $0x24] sm:$0xf]
        %v6690 = vld [vmem:[%s655 + $0x28] sm:$0xf]
        %v6691 = vld [vmem:[%s655 + $0x2c] sm:$0xf]
        %v6692 = vld [vmem:[%s655 + $0x30] sm:$0xf]
        %v6693 = vld [vmem:[%s655 + $0x34] sm:$0xf]
        %v6694 = vld [vmem:[%s655 + $0x38] sm:$0xf]
        %v6695 = vld [vmem:[%s655 + $0x3c] sm:$0xf]
        %v6696 = vld [vmem:[%s655 + $0x40] sm:$0xf]
        %v6697 = vld [vmem:[%s655 + $0x44] sm:$0xf]
        %v6698 = vld [vmem:[%s655 + $0x48] sm:$0xf]
        %v6699 = vld [vmem:[%s655 + $0x4c] sm:$0xf]
        %v6700 = vld [vmem:[%s655 + $0x50] sm:$0xf]
        %v6701 = vld [vmem:[%s655 + $0x54] sm:$0xf]
        %v6702 = vld [vmem:[%s655 + $0x58] sm:$0xf]
        %v6703 = vld [vmem:[%s655 + $0x5c] sm:$0xf]
        %v6704 = vld [vmem:[%s655 + $0x60] sm:$0xf]
        %v6705 = vld [vmem:[%s655 + $0x64] sm:$0xf]
        %v6706 = vld [vmem:[%s655 + $0x68] sm:$0xf]
        %v6707 = vld [vmem:[%s655 + $0x6c] sm:$0xf]
        %v6708 = vld [vmem:[%s655 + $0x70] sm:$0xf]
        %v6709 = vld [vmem:[%s655 + $0x74] sm:$0xf]
        %v6710 = vld [vmem:[%s655 + $0x78] sm:$0xf]
        %v6711 = vld [vmem:[%s655 + $0x7c] sm:$0xf]
        %v6712 = vld [vmem:[%s655 + $0x80] sm:$0xf]
        %v6713 = vld [vmem:[%s655 + $0x84] sm:$0xf]
        %v6714 = vld [vmem:[%s655 + $0x88] sm:$0xf]
        %v6715 = vld [vmem:[%s655 + $0x8c] sm:$0xf]
        %v6716 = vld [vmem:[%s655 + $0x90] sm:$0xf]
        %v6717 = vld [vmem:[%s655 + $0x94] sm:$0xf]
        %v6718 = vld [vmem:[%s655 + $0x98] sm:$0xf]
        %v6719 = vld [vmem:[%s655 + $0x9c] sm:$0xf]
        %v6720 = vld [vmem:[%s655 + $0xa0] sm:$0xf]
        %v6721 = vld [vmem:[%s655 + $0xa4] sm:$0xf]
        %v6722 = vld [vmem:[%s655 + $0xa8] sm:$0xf]
        %v6723 = vld [vmem:[%s655 + $0xac] sm:$0xf]
        %v6724 = vld [vmem:[%s655 + $0xb0] sm:$0xf]
        %v6725 = vld [vmem:[%s655 + $0xb4] sm:$0xf]
        %v6726 = vld [vmem:[%s655 + $0xb8] sm:$0xf]
        %v6727 = vld [vmem:[%s655 + $0xbc] sm:$0xf]
        %v6728 = vld [vmem:[%s655 + $0xc0] sm:$0xf]
        %v6729 = vld [vmem:[%s655 + $0xc4] sm:$0xf]
        %v6730 = vld [vmem:[%s655 + $0xc8] sm:$0xf]
        %v6731 = vld [vmem:[%s655 + $0xcc] sm:$0xf]
        %v6732 = vld [vmem:[%s655 + $0xd0] sm:$0xf]
        %v6733 = vld [vmem:[%s655 + $0xd4] sm:$0xf]
        %v6734 = vld [vmem:[%s655 + $0xd8] sm:$0xf]
        %v6735 = vld [vmem:[%s655 + $0xdc] sm:$0xf]
        %v6736 = vld [vmem:[%s655 + $0xe0] sm:$0xf]
        %v6737 = vld [vmem:[%s655 + $0xe4] sm:$0xf]
        %v6738 = vld [vmem:[%s655 + $0xe8] sm:$0xf]
        %v6739 = vld [vmem:[%s655 + $0xec] sm:$0xf]
        %v6740 = vld [vmem:[%s655 + $0xf0] sm:$0xf]
        %v6741 = vld [vmem:[%s655 + $0xf4] sm:$0xf]
        %v6742 = vld [vmem:[%s655 + $0xf8] sm:$0xf]
        %v6743 = vld [vmem:[%s655 + $0xfc] sm:$0xf]
        %v6744 = vld [vmem:[%s646 + $0x10] sm:$0xff]
        %v6745 = vld [vmem:[%s646 + $0x18] sm:$0xff]
        %v6746 = vld [vmem:[%s646 + $0x50] sm:$0xff]
        %v6747 = vld [vmem:[%s646 + $0x58] sm:$0xff]
        %v6748 = vld [vmem:[%s646 + $0x90] sm:$0xff]
        %v6749 = vld [vmem:[%s646 + $0x98] sm:$0xff]
        %v6750 = vld [vmem:[%s646 + $0xd0] sm:$0xff]
        %v6751 = vld [vmem:[%s646 + $0xd8] sm:$0xff]
        %v6752 = vld [vmem:[%s646 + $0x110] sm:$0xff]
        %v6753 = vld [vmem:[%s646 + $0x118] sm:$0xff]
        %v6754 = vld [vmem:[%s646 + $0x150] sm:$0xff]
        %v6755 = vld [vmem:[%s646 + $0x158] sm:$0xff]
        %v6756 = vld [vmem:[%s646 + $0x190] sm:$0xff]
        %v6757 = vld [vmem:[%s646 + $0x198] sm:$0xff]
        %v6758 = vld [vmem:[%s646 + $0x1d0] sm:$0xff]
        %v6759 = vld [vmem:[%s646 + $0x1d8] sm:$0xff]
        %v6760 = vld [vmem:[%s646 + $0x210] sm:$0xff]
        %v6761 = vld [vmem:[%s646 + $0x218] sm:$0xff]
        %v6762 = vld [vmem:[%s646 + $0x250] sm:$0xff]
        %v6763 = vld [vmem:[%s646 + $0x258] sm:$0xff]
        %v6764 = vld [vmem:[%s646 + $0x290] sm:$0xff]
        %v6765 = vld [vmem:[%s646 + $0x298] sm:$0xff]
        %v6766 = vld [vmem:[%s646 + $0x2d0] sm:$0xff]
        %v6767 = vld [vmem:[%s646 + $0x2d8] sm:$0xff]
        %v6768 = vld [vmem:[%s646 + $0x310] sm:$0xff]
        %v6769 = vld [vmem:[%s646 + $0x318] sm:$0xff]
        %v6770 = vld [vmem:[%s646 + $0x350] sm:$0xff]
        %v6771 = vld [vmem:[%s646 + $0x358] sm:$0xff]
        %v6772 = vld [vmem:[%s646 + $0x390] sm:$0xff]
        %v6773 = vld [vmem:[%s646 + $0x398] sm:$0xff]
        %v6774 = vld [vmem:[%s646 + $0x3d0] sm:$0xff]
        %v6775 = vld [vmem:[%s646 + $0x3d8] sm:$0xff]
        %v6776 = vld [vmem:[%s770 + $0x4] sm:$0xf]
        %v6778 = vlaneseq
        %v6779 = vshrl.u32 %v6778, 7
        %v6780 = vsub.s32 0, %v6779
        %v6781 = vrot.slane %v6776, %v6780
        %v6782 = vlaneseq
        %v6783 = vshrl.u32 %v6782, 7
        %v6784 = vsub.s32 1, %v6783
        %v6785 = vrot.slane %v6776, %v6784
        %v6786 = vlaneseq
        %v6787 = vshrl.u32 %v6786, 7
        %v6788 = vsub.s32 2, %v6787
        %v6789 = vrot.slane %v6776, %v6788
        %v6790 = vlaneseq
        %v6791 = vshrl.u32 %v6790, 7
        %v6792 = vsub.s32 3, %v6791
        %v6793 = vrot.slane %v6776, %v6792
        %v6830 = vunpack.c.l.b16 %v6744
        %v6831 = vunpack.c.h.b16 %v6744
        %v6832 = vunpack.c.l.b16 %v6745
        %v6833 = vunpack.c.h.b16 %v6745
        %v6834 = vunpack.c.l.b16 %v6746
        %v6835 = vunpack.c.h.b16 %v6746
        %v6836 = vunpack.c.l.b16 %v6747
        %v6837 = vunpack.c.h.b16 %v6747
        %v6838 = vunpack.c.l.b16 %v6748
        %v6839 = vunpack.c.h.b16 %v6748
        %v6840 = vunpack.c.l.b16 %v6749
        %v6841 = vunpack.c.h.b16 %v6749
        %v6842 = vunpack.c.l.b16 %v6750
        %v6843 = vunpack.c.h.b16 %v6750
        %v6844 = vunpack.c.l.b16 %v6751
        %v6845 = vunpack.c.h.b16 %v6751
        %v6846 = vunpack.c.l.b16 %v6752
        %v6847 = vunpack.c.h.b16 %v6752
        %v6848 = vunpack.c.l.b16 %v6753
        %v6849 = vunpack.c.h.b16 %v6753
        %v6850 = vunpack.c.l.b16 %v6754
        %v6851 = vunpack.c.h.b16 %v6754
        %v6852 = vunpack.c.l.b16 %v6755
        %v6853 = vunpack.c.h.b16 %v6755
        %v6854 = vunpack.c.l.b16 %v6756
        %v6855 = vunpack.c.h.b16 %v6756
        %v6856 = vunpack.c.l.b16 %v6757
        %v6857 = vunpack.c.h.b16 %v6757
        %v6858 = vunpack.c.l.b16 %v6758
        %v6859 = vunpack.c.h.b16 %v6758
        %v6860 = vunpack.c.l.b16 %v6759
        %v6861 = vunpack.c.h.b16 %v6759
        %v6862 = vunpack.c.l.b16 %v6760
        %v6863 = vunpack.c.h.b16 %v6760
        %v6864 = vunpack.c.l.b16 %v6761
        %v6865 = vunpack.c.h.b16 %v6761
        %v6866 = vunpack.c.l.b16 %v6762
        %v6867 = vunpack.c.h.b16 %v6762
        %v6868 = vunpack.c.l.b16 %v6763
        %v6869 = vunpack.c.h.b16 %v6763
        %v6870 = vunpack.c.l.b16 %v6764
        %v6871 = vunpack.c.h.b16 %v6764
        %v6872 = vunpack.c.l.b16 %v6765
        %v6873 = vunpack.c.h.b16 %v6765
        %v6874 = vunpack.c.l.b16 %v6766
        %v6875 = vunpack.c.h.b16 %v6766
        %v6876 = vunpack.c.l.b16 %v6767
        %v6877 = vunpack.c.h.b16 %v6767
        %v6878 = vunpack.c.l.b16 %v6768
        %v6879 = vunpack.c.h.b16 %v6768
        %v6880 = vunpack.c.l.b16 %v6769
        %v6881 = vunpack.c.h.b16 %v6769
        %v6882 = vunpack.c.l.b16 %v6770
        %v6883 = vunpack.c.h.b16 %v6770
        %v6884 = vunpack.c.l.b16 %v6771
        %v6885 = vunpack.c.h.b16 %v6771
        %v6886 = vunpack.c.l.b16 %v6772
        %v6887 = vunpack.c.h.b16 %v6772
        %v6888 = vunpack.c.l.b16 %v6773
        %v6889 = vunpack.c.h.b16 %v6773
        %v6890 = vunpack.c.l.b16 %v6774
        %v6891 = vunpack.c.h.b16 %v6774
        %v6892 = vunpack.c.l.b16 %v6775
        %v6893 = vunpack.c.h.b16 %v6775
        %v6894 = vpack.c.b16 %v6834, %v6830
        %v6895 = vpack.c.b16 %v6835, %v6831
        %v6896 = vpack.c.b16 %v6836, %v6832
        %v6897 = vpack.c.b16 %v6837, %v6833
        %v6898 = vpack.c.b16 %v6842, %v6838
        %v6899 = vpack.c.b16 %v6843, %v6839
        %v6900 = vpack.c.b16 %v6844, %v6840
        %v6901 = vpack.c.b16 %v6845, %v6841
        %v6902 = vpack.c.b16 %v6850, %v6846
        %v6903 = vpack.c.b16 %v6851, %v6847
        %v6904 = vpack.c.b16 %v6852, %v6848
        %v6905 = vpack.c.b16 %v6853, %v6849
        %v6906 = vpack.c.b16 %v6858, %v6854
        %v6907 = vpack.c.b16 %v6859, %v6855
        %v6908 = vpack.c.b16 %v6860, %v6856
        %v6909 = vpack.c.b16 %v6861, %v6857
        %v6910 = vpack.c.b16 %v6866, %v6862
        %v6911 = vpack.c.b16 %v6867, %v6863
        %v6912 = vpack.c.b16 %v6868, %v6864
        %v6913 = vpack.c.b16 %v6869, %v6865
        %v6914 = vpack.c.b16 %v6874, %v6870
        %v6915 = vpack.c.b16 %v6875, %v6871
        %v6916 = vpack.c.b16 %v6876, %v6872
        %v6917 = vpack.c.b16 %v6877, %v6873
        %v6918 = vpack.c.b16 %v6882, %v6878
        %v6919 = vpack.c.b16 %v6883, %v6879
        %v6920 = vpack.c.b16 %v6884, %v6880
        %v6921 = vpack.c.b16 %v6885, %v6881
        %v6922 = vpack.c.b16 %v6890, %v6886
        %v6923 = vpack.c.b16 %v6891, %v6887
        %v6924 = vpack.c.b16 %v6892, %v6888
        %v6925 = vpack.c.b16 %v6893, %v6889
        %6958 = vmatprep.subr.bf16.mxu0 %v6895
        %6959 = vmatpush1.bf16.msra.mxu0 %v6894
        %6960 = vmatprep.subr.bf16.mxu0 %v6899
        %6961 = vmatpush1.bf16.msra.mxu0 %v6898
        %6962 = vmatprep.subr.bf16.mxu0 %v6903
        %6963 = vmatpush1.bf16.msra.mxu0 %v6902
        %6964 = vmatprep.subr.bf16.mxu0 %v6907
        %6965 = vmatpush1.bf16.msra.mxu0 %v6906
        %6966 = vmatprep.subr.bf16.mxu0 %v6911
        %6967 = vmatpush1.bf16.msra.mxu0 %v6910
        %6968 = vmatprep.subr.bf16.mxu0 %v6915
        %6969 = vmatpush1.bf16.msra.mxu0 %v6914
        %6970 = vmatprep.subr.bf16.mxu0 %v6919
        %6971 = vmatpush1.bf16.msra.mxu0 %v6918
        %6972 = vmatprep.subr.bf16.mxu0 %v6923
        %6973 = vmatpush1.bf16.msra.mxu0 %v6922
        %6974 = vmatprep.subr.bf16.mxu0 0
        %6975 = vmatpush1.bf16.msra.mxu0 0
        %6976 = vmatprep.subr.bf16.mxu0 0
        %6977 = vmatpush1.bf16.msra.mxu0 0
        %6978 = vmatprep.subr.bf16.mxu0 0
        %6979 = vmatpush1.bf16.msra.mxu0 0
        %6980 = vmatprep.subr.bf16.mxu0 0
        %6981 = vmatpush1.bf16.msra.mxu0 0
        %6982 = vmatprep.subr.bf16.mxu0 0
        %6983 = vmatpush1.bf16.msra.mxu0 0
        %6984 = vmatprep.subr.bf16.mxu0 0
        %6985 = vmatpush1.bf16.msra.mxu0 0
        %6986 = vmatprep.subr.bf16.mxu0 0
        %6987 = vmatpush1.bf16.msra.mxu0 0
        %6988 = vmatprep.subr.bf16.mxu0 0
        %6989 = vmatpush1.bf16.msra.mxu0 0
        %6990 = vmatprep.mubr.bf16.mxu0 0
        %6991 = vmatmul.mubr.bf16.gmra.mrb[0].mxu0 %v6342
        %v6992 = vpop.f32.mrb[0].mxu0
        %v6993 = vadd.f32 %v6781, %v6992
        %v6994 = vpop.f32.mrb[0].mxu0
        %v6995 = vadd.f32 %v6785, %v6994
        %v6996 = vpop.f32.mrb[0].mxu0
        %v6997 = vadd.f32 %v6781, %v6996
        %v6998 = vpop.f32.mrb[0].mxu0
        %v6999 = vadd.f32 %v6785, %v6998
        %7000 = vmatprep.mubr.bf16.mxu0 0
        %7001 = vmatmul.mubr.bf16.gmra.mrb[0].mxu0 %v6343
        %v7002 = vpop.f32.mrb[0].mxu0
        %v7003 = vadd.f32 %v6781, %v7002
        %v7004 = vpop.f32.mrb[0].mxu0
        %v7005 = vadd.f32 %v6785, %v7004
        %v7006 = vpop.f32.mrb[0].mxu0
        %v7007 = vpop.f32.mrb[0].mxu0
        %7008 = vdwg.mxu0
        %7009 = vmatprep.subr.bf16.mxu0 %v6897
        %7010 = vmatpush1.bf16.msra.mxu0 %v6896
        %7011 = vmatprep.subr.bf16.mxu0 %v6901
        %7012 = vmatpush1.bf16.msra.mxu0 %v6900
        %7013 = vmatprep.subr.bf16.mxu0 %v6905
        %7014 = vmatpush1.bf16.msra.mxu0 %v6904
        %7015 = vmatprep.subr.bf16.mxu0 %v6909
        %7016 = vmatpush1.bf16.msra.mxu0 %v6908
        %7017 = vmatprep.subr.bf16.mxu0 %v6913
        %7018 = vmatpush1.bf16.msra.mxu0 %v6912
        %7019 = vmatprep.subr.bf16.mxu0 %v6917
        %7020 = vmatpush1.bf16.msra.mxu0 %v6916
        %7021 = vmatprep.subr.bf16.mxu0 %v6921
        %7022 = vmatpush1.bf16.msra.mxu0 %v6920
        %7023 = vmatprep.subr.bf16.mxu0 %v6925
        %7024 = vmatpush1.bf16.msra.mxu0 %v6924
        %7025 = vmatprep.subr.bf16.mxu0 0
        %7026 = vmatpush1.bf16.msra.mxu0 0
        %7027 = vmatprep.subr.bf16.mxu0 0
        %7028 = vmatpush1.bf16.msra.mxu0 0
        %7029 = vmatprep.subr.bf16.mxu0 0
        %7030 = vmatpush1.bf16.msra.mxu0 0
        %7031 = vmatprep.subr.bf16.mxu0 0
        %7032 = vmatpush1.bf16.msra.mxu0 0
        %7033 = vmatprep.subr.bf16.mxu0 0
        %7034 = vmatpush1.bf16.msra.mxu0 0
        %7035 = vmatprep.subr.bf16.mxu0 0
        %7036 = vmatpush1.bf16.msra.mxu0 0
        %7037 = vmatprep.subr.bf16.mxu0 0
        %7038 = vmatpush1.bf16.msra.mxu0 0
        %7039 = vmatprep.subr.bf16.mxu0 0
        %7040 = vmatpush1.bf16.msra.mxu0 0
        %7041 = vmatprep.mubr.bf16.mxu0 0
        %7042 = vmatmul.mubr.bf16.gmra.mrb[0].mxu0 %v6342
        %v7043 = vpop.f32.mrb[0].mxu0
        %v7044 = vadd.f32 %v6789, %v7043
        %v7045 = vpop.f32.mrb[0].mxu0
        %v7046 = vadd.f32 %v6793, %v7045
        %v7047 = vpop.f32.mrb[0].mxu0
        %v7048 = vadd.f32 %v6789, %v7047
        %v7049 = vpop.f32.mrb[0].mxu0
        %v7050 = vadd.f32 %v6793, %v7049
        %7051 = vmatprep.mubr.bf16.mxu0 0
        %7052 = vmatmul.mubr.bf16.gmra.mrb[0].mxu0 %v6343
        %v7053 = vpop.f32.mrb[0].mxu0
        %v7054 = vadd.f32 %v6789, %v7053
        %v7055 = vpop.f32.mrb[0].mxu0
        %v7056 = vadd.f32 %v6793, %v7055
        %v7057 = vpop.f32.mrb[0].mxu0
        %v7058 = vpop.f32.mrb[0].mxu0
        %7059 = vdwg.mxu0
        %v7060 = vmax.f32 %v6993, 0.0
        %v7061 = vmax.f32 %v6995, 0.0
        %v7062 = vmax.f32 %v7044, 0.0
        %v7063 = vmax.f32 %v7046, 0.0
        %v7064 = vmax.f32 %v6997, 0.0
        %v7065 = vmax.f32 %v6999, 0.0
        %v7066 = vmax.f32 %v7048, 0.0
        %v7067 = vmax.f32 %v7050, 0.0
        %v7068 = vmax.f32 %v7003, 0.0
        %v7069 = vmax.f32 %v7005, 0.0
        %v7070 = vmax.f32 %v7054, 0.0
        %v7071 = vmax.f32 %v7056, 0.0
        %v7072 = vpack.c.bf16 %v7064, %v7060
        %v7073 = vpack.c.bf16 %v7065, %v7061
        %v7074 = vpack.c.bf16 %v7066, %v7062
        %v7075 = vpack.c.bf16 %v7067, %v7063
        %v7076 = vpack.c.bf16 %v7068, %v7068
        %v7077 = vpack.c.bf16 %v7069, %v7069
        %v7078 = vpack.c.bf16 %v7070, %v7070
        %v7079 = vpack.c.bf16 %v7071, %v7071
        %v7080 = vld [vmem:[%s655 + $0x100] sm:$0xf]
        %v7081 = vld [vmem:[%s655 + $0x104] sm:$0xf]
        %v7082 = vld [vmem:[%s655 + $0x108] sm:$0xf]
        %v7083 = vld [vmem:[%s655 + $0x10c] sm:$0xf]
        %v7084 = vld [vmem:[%s655 + $0x110] sm:$0xf]
        %v7085 = vld [vmem:[%s655 + $0x114] sm:$0xf]
        %v7086 = vld [vmem:[%s655 + $0x118] sm:$0xf]
        %v7087 = vld [vmem:[%s655 + $0x11c] sm:$0xf]
        %v7088 = vld [vmem:[%s655 + $0x120] sm:$0xf]
        %v7089 = vld [vmem:[%s655 + $0x124] sm:$0xf]
        %v7090 = vld [vmem:[%s655 + $0x128] sm:$0xf]
        %v7091 = vld [vmem:[%s655 + $0x12c] sm:$0xf]
        %v7092 = vld [vmem:[%s655 + $0x130] sm:$0xf]
        %v7093 = vld [vmem:[%s655 + $0x134] sm:$0xf]
        %v7094 = vld [vmem:[%s655 + $0x138] sm:$0xf]
        %v7095 = vld [vmem:[%s655 + $0x13c] sm:$0xf]
        %v7096 = vld [vmem:[%s655 + $0x140] sm:$0xf]
        %v7097 = vld [vmem:[%s655 + $0x144] sm:$0xf]
        %v7098 = vld [vmem:[%s655 + $0x148] sm:$0xf]
        %v7099 = vld [vmem:[%s655 + $0x14c] sm:$0xf]
        %v7100 = vld [vmem:[%s655 + $0x150] sm:$0xf]
        %v7101 = vld [vmem:[%s655 + $0x154] sm:$0xf]
        %v7102 = vld [vmem:[%s655 + $0x158] sm:$0xf]
        %v7103 = vld [vmem:[%s655 + $0x15c] sm:$0xf]
        %v7104 = vld [vmem:[%s655 + $0x160] sm:$0xf]
        %v7105 = vld [vmem:[%s655 + $0x164] sm:$0xf]
        %v7106 = vld [vmem:[%s655 + $0x168] sm:$0xf]
        %v7107 = vld [vmem:[%s655 + $0x16c] sm:$0xf]
        %v7108 = vld [vmem:[%s655 + $0x170] sm:$0xf]
        %v7109 = vld [vmem:[%s655 + $0x174] sm:$0xf]
        %v7110 = vld [vmem:[%s655 + $0x178] sm:$0xf]
        %v7111 = vld [vmem:[%s655 + $0x17c] sm:$0xf]
        %v7112 = vld [vmem:[%s655 + $0x180] sm:$0xf]
        %v7113 = vld [vmem:[%s655 + $0x184] sm:$0xf]
        %v7114 = vld [vmem:[%s655 + $0x188] sm:$0xf]
        %v7115 = vld [vmem:[%s655 + $0x18c] sm:$0xf]
        %v7116 = vld [vmem:[%s655 + $0x190] sm:$0xf]
        %v7117 = vld [vmem:[%s655 + $0x194] sm:$0xf]
        %v7118 = vld [vmem:[%s655 + $0x198] sm:$0xf]
        %v7119 = vld [vmem:[%s655 + $0x19c] sm:$0xf]
        %v7120 = vld [vmem:[%s655 + $0x1a0] sm:$0xf]
        %v7121 = vld [vmem:[%s655 + $0x1a4] sm:$0xf]
        %v7122 = vld [vmem:[%s655 + $0x1a8] sm:$0xf]
        %v7123 = vld [vmem:[%s655 + $0x1ac] sm:$0xf]
        %v7124 = vld [vmem:[%s655 + $0x1b0] sm:$0xf]
        %v7125 = vld [vmem:[%s655 + $0x1b4] sm:$0xf]
        %v7126 = vld [vmem:[%s655 + $0x1b8] sm:$0xf]
        %v7127 = vld [vmem:[%s655 + $0x1bc] sm:$0xf]
        %v7128 = vld [vmem:[%s655 + $0x1c0] sm:$0xf]
        %v7129 = vld [vmem:[%s655 + $0x1c4] sm:$0xf]
        %v7130 = vld [vmem:[%s655 + $0x1c8] sm:$0xf]
        %v7131 = vld [vmem:[%s655 + $0x1cc] sm:$0xf]
        %v7132 = vld [vmem:[%s655 + $0x1d0] sm:$0xf]
        %v7133 = vld [vmem:[%s655 + $0x1d4] sm:$0xf]
        %v7134 = vld [vmem:[%s655 + $0x1d8] sm:$0xf]
        %v7135 = vld [vmem:[%s655 + $0x1dc] sm:$0xf]
        %v7136 = vld [vmem:[%s655 + $0x1e0] sm:$0xf]
        %v7137 = vld [vmem:[%s655 + $0x1e4] sm:$0xf]
        %v7138 = vld [vmem:[%s655 + $0x1e8] sm:$0xf]
        %v7139 = vld [vmem:[%s655 + $0x1ec] sm:$0xf]
        %v7140 = vld [vmem:[%s655 + $0x1f0] sm:$0xf]
        %v7141 = vld [vmem:[%s655 + $0x1f4] sm:$0xf]
        %v7142 = vld [vmem:[%s655 + $0x1f8] sm:$0xf]
        %v7143 = vld [vmem:[%s655 + $0x1fc] sm:$0xf]
        %v7208 = vunpack.c.l.b16 %v7080
        %v7209 = vunpack.c.l.b16 %v7081
        %v7210 = vunpack.c.l.b16 %v7082
        %v7211 = vunpack.c.l.b16 %v7083
        %v7212 = vunpack.c.l.b16 %v7084
        %v7213 = vunpack.c.l.b16 %v7085
        %v7214 = vunpack.c.l.b16 %v7086
        %v7215 = vunpack.c.l.b16 %v7087
        %v7216 = vunpack.c.l.b16 %v7088
        %v7217 = vunpack.c.l.b16 %v7089
        %v7218 = vunpack.c.l.b16 %v7090
        %v7219 = vunpack.c.l.b16 %v7091
        %v7220 = vunpack.c.l.b16 %v7092
        %v7221 = vunpack.c.l.b16 %v7093
        %v7222 = vunpack.c.l.b16 %v7094
        %v7223 = vunpack.c.l.b16 %v7095
        %v7224 = vunpack.c.l.b16 %v7096
        %v7225 = vunpack.c.l.b16 %v7097
        %v7226 = vunpack.c.l.b16 %v7098
        %v7227 = vunpack.c.l.b16 %v7099
        %v7228 = vunpack.c.l.b16 %v7100
        %v7229 = vunpack.c.l.b16 %v7101
        %v7230 = vunpack.c.l.b16 %v7102
        %v7231 = vunpack.c.l.b16 %v7103
        %v7232 = vunpack.c.l.b16 %v7104
        %v7233 = vunpack.c.l.b16 %v7105
        %v7234 = vunpack.c.l.b16 %v7106
        %v7235 = vunpack.c.l.b16 %v7107
        %v7236 = vunpack.c.l.b16 %v7108
        %v7237 = vunpack.c.l.b16 %v7109
        %v7238 = vunpack.c.l.b16 %v7110
        %v7239 = vunpack.c.l.b16 %v7111
        %v7240 = vunpack.c.l.b16 %v7112
        %v7241 = vunpack.c.l.b16 %v7113
        %v7242 = vunpack.c.l.b16 %v7114
        %v7243 = vunpack.c.l.b16 %v7115
        %v7244 = vunpack.c.l.b16 %v7116
        %v7245 = vunpack.c.l.b16 %v7117
        %v7246 = vunpack.c.l.b16 %v7118
        %v7247 = vunpack.c.l.b16 %v7119
        %v7248 = vunpack.c.l.b16 %v7120
        %v7249 = vunpack.c.l.b16 %v7121
        %v7250 = vunpack.c.l.b16 %v7122
        %v7251 = vunpack.c.l.b16 %v7123
        %v7252 = vunpack.c.l.b16 %v7124
        %v7253 = vunpack.c.l.b16 %v7125
        %v7254 = vunpack.c.l.b16 %v7126
        %v7255 = vunpack.c.l.b16 %v7127
        %v7256 = vunpack.c.l.b16 %v7128
        %v7257 = vunpack.c.l.b16 %v7129
        %v7258 = vunpack.c.l.b16 %v7130
        %v7259 = vunpack.c.l.b16 %v7131
        %v7260 = vunpack.c.l.b16 %v7132
        %v7261 = vunpack.c.l.b16 %v7133
        %v7262 = vunpack.c.l.b16 %v7134
        %v7263 = vunpack.c.l.b16 %v7135
        %v7264 = vunpack.c.l.b16 %v7136
        %v7265 = vunpack.c.l.b16 %v7137
        %v7266 = vunpack.c.l.b16 %v7138
        %v7267 = vunpack.c.l.b16 %v7139
        %v7268 = vunpack.c.l.b16 %v7140
        %v7269 = vunpack.c.l.b16 %v7141
        %v7270 = vunpack.c.l.b16 %v7142
        %v7271 = vunpack.c.l.b16 %v7143
        %v7272 = vpack.c.b16 %v7209, %v7208
        %v7273 = vpack.c.b16 %v7211, %v7210
        %v7274 = vpack.c.b16 %v7213, %v7212
        %v7275 = vpack.c.b16 %v7215, %v7214
        %v7276 = vpack.c.b16 %v7217, %v7216
        %v7277 = vpack.c.b16 %v7219, %v7218
        %v7278 = vpack.c.b16 %v7221, %v7220
        %v7279 = vpack.c.b16 %v7223, %v7222
        %v7280 = vpack.c.b16 %v7225, %v7224
        %v7281 = vpack.c.b16 %v7227, %v7226
        %v7282 = vpack.c.b16 %v7229, %v7228
        %v7283 = vpack.c.b16 %v7231, %v7230
        %v7284 = vpack.c.b16 %v7233, %v7232
        %v7285 = vpack.c.b16 %v7235, %v7234
        %v7286 = vpack.c.b16 %v7237, %v7236
        %v7287 = vpack.c.b16 %v7239, %v7238
        %v7288 = vpack.c.b16 %v7241, %v7240
        %v7289 = vpack.c.b16 %v7243, %v7242
        %v7290 = vpack.c.b16 %v7245, %v7244
        %v7291 = vpack.c.b16 %v7247, %v7246
        %v7292 = vpack.c.b16 %v7249, %v7248
        %v7293 = vpack.c.b16 %v7251, %v7250
        %v7294 = vpack.c.b16 %v7253, %v7252
        %v7295 = vpack.c.b16 %v7255, %v7254
        %v7296 = vpack.c.b16 %v7257, %v7256
        %v7297 = vpack.c.b16 %v7259, %v7258
        %v7298 = vpack.c.b16 %v7261, %v7260
        %v7299 = vpack.c.b16 %v7263, %v7262
        %v7300 = vpack.c.b16 %v7265, %v7264
        %v7301 = vpack.c.b16 %v7267, %v7266
        %v7302 = vpack.c.b16 %v7269, %v7268
        %v7303 = vpack.c.b16 %v7271, %v7270
        %7336 = vmatprep.subr.bf16.mxu0 0
        %7337 = vmatpush1.bf16.msra.mxu0 %v7272
        %7338 = vmatprep.subr.bf16.mxu0 0
        %7339 = vmatpush1.bf16.msra.mxu0 %v7273
        %7340 = vmatprep.subr.bf16.mxu0 0
        %7341 = vmatpush1.bf16.msra.mxu0 %v7274
        %7342 = vmatprep.subr.bf16.mxu0 0
        %7343 = vmatpush1.bf16.msra.mxu0 %v7275
        %7344 = vmatprep.subr.bf16.mxu0 0
        %7345 = vmatpush1.bf16.msra.mxu0 %v7276
        %7346 = vmatprep.subr.bf16.mxu0 0
        %7347 = vmatpush1.bf16.msra.mxu0 %v7277
        %7348 = vmatprep.subr.bf16.mxu0 0
        %7349 = vmatpush1.bf16.msra.mxu0 %v7278
        %7350 = vmatprep.subr.bf16.mxu0 0
        %7351 = vmatpush1.bf16.msra.mxu0 %v7279
        %7352 = vmatprep.subr.bf16.mxu0 0
        %7353 = vmatpush1.bf16.msra.mxu0 %v7280
        %7354 = vmatprep.subr.bf16.mxu0 0
        %7355 = vmatpush1.bf16.msra.mxu0 %v7281
        %7356 = vmatprep.subr.bf16.mxu0 0
        %7357 = vmatpush1.bf16.msra.mxu0 %v7282
        %7358 = vmatprep.subr.bf16.mxu0 0
        %7359 = vmatpush1.bf16.msra.mxu0 %v7283
        %7360 = vmatprep.subr.bf16.mxu0 0
        %7361 = vmatpush1.bf16.msra.mxu0 %v7284
        %7362 = vmatprep.subr.bf16.mxu0 0
        %7363 = vmatpush1.bf16.msra.mxu0 %v7285
        %7364 = vmatprep.subr.bf16.mxu0 0
        %7365 = vmatpush1.bf16.msra.mxu0 %v7286
        %7366 = vmatprep.subr.bf16.mxu0 0
        %7367 = vmatpush1.bf16.msra.mxu0 %v7287
        %7368 = vmatprep.mubr.bf16.mxu0 %v7073
        %7369 = vmatmul.mubr.bf16.gmra.mrb[0].mxu0 %v7072
        %v7370 = vpop.f32.mrb[0].mxu0
        %v7371 = vadd.f32 0.0, %v7370
        %v7372 = vpop.f32.mrb[0].mxu0
        %v7373 = vpop.f32.mrb[0].mxu0
        %v7374 = vadd.f32 0.0, %v7373
        %v7375 = vpop.f32.mrb[0].mxu0
        %7376 = vmatprep.mubr.bf16.mxu0 %v7077
        %7377 = vmatmul.mubr.bf16.gmra.mrb[0].mxu0 %v7076
        %v7378 = vpop.f32.mrb[0].mxu0
        %v7379 = vadd.f32 0.0, %v7378
        %v7380 = vpop.f32.mrb[0].mxu0
        %v7381 = vpop.f32.mrb[0].mxu0
        %v7382 = vpop.f32.mrb[0].mxu0
        %7383 = vdwg.mxu0
        %7384 = vmatprep.subr.bf16.mxu0 0
        %7385 = vmatpush1.bf16.msra.mxu0 %v7288
        %7386 = vmatprep.subr.bf16.mxu0 0
        %7387 = vmatpush1.bf16.msra.mxu0 %v7289
        %7388 = vmatprep.subr.bf16.mxu0 0
        %7389 = vmatpush1.bf16.msra.mxu0 %v7290
        %7390 = vmatprep.subr.bf16.mxu0 0
        %7391 = vmatpush1.bf16.msra.mxu0 %v7291
        %7392 = vmatprep.subr.bf16.mxu0 0
        %7393 = vmatpush1.bf16.msra.mxu0 %v7292
        %7394 = vmatprep.subr.bf16.mxu0 0
        %7395 = vmatpush1.bf16.msra.mxu0 %v7293
        %7396 = vmatprep.subr.bf16.mxu0 0
        %7397 = vmatpush1.bf16.msra.mxu0 %v7294
        %7398 = vmatprep.subr.bf16.mxu0 0
        %7399 = vmatpush1.bf16.msra.mxu0 %v7295
        %7400 = vmatprep.subr.bf16.mxu0 0
        %7401 = vmatpush1.bf16.msra.mxu0 %v7296
        %7402 = vmatprep.subr.bf16.mxu0 0
        %7403 = vmatpush1.bf16.msra.mxu0 %v7297
        %7404 = vmatprep.subr.bf16.mxu0 0
        %7405 = vmatpush1.bf16.msra.mxu0 %v7298
        %7406 = vmatprep.subr.bf16.mxu0 0
        %7407 = vmatpush1.bf16.msra.mxu0 %v7299
        %7408 = vmatprep.subr.bf16.mxu0 0
        %7409 = vmatpush1.bf16.msra.mxu0 %v7300
        %7410 = vmatprep.subr.bf16.mxu0 0
        %7411 = vmatpush1.bf16.msra.mxu0 %v7301
        %7412 = vmatprep.subr.bf16.mxu0 0
        %7413 = vmatpush1.bf16.msra.mxu0 %v7302
        %7414 = vmatprep.subr.bf16.mxu0 0
        %7415 = vmatpush1.bf16.msra.mxu0 %v7303
        %7416 = vmatprep.mubr.bf16.mxu0 %v7075
        %7417 = vmatmul.mubr.bf16.gmra.mrb[0].mxu0 %v7074
        %v7418 = vpop.f32.mrb[0].mxu0
        %v7419 = vadd.f32 %v7371, %v7418
        %v7420 = vpop.f32.mrb[0].mxu0
        %v7421 = vpop.f32.mrb[0].mxu0
        %v7422 = vadd.f32 %v7374, %v7421
        %v7423 = vpop.f32.mrb[0].mxu0
        %7424 = vmatprep.mubr.bf16.mxu0 %v7079
        %7425 = vmatmul.mubr.bf16.gmra.mrb[0].mxu0 %v7078
        %v7426 = vpop.f32.mrb[0].mxu0
        %v7427 = vadd.f32 %v7379, %v7426
        %v7428 = vpop.f32.mrb[0].mxu0
        %v7429 = vpop.f32.mrb[0].mxu0
        %v7430 = vpop.f32.mrb[0].mxu0
        %7431 = vdwg.mxu0
        %v7496 = vunpack.c.l.b16 %v6680
        %v7497 = vunpack.c.l.b16 %v6681
        %v7498 = vunpack.c.l.b16 %v6682
        %v7499 = vunpack.c.l.b16 %v6683
        %v7500 = vunpack.c.l.b16 %v6684
        %v7501 = vunpack.c.l.b16 %v6685
        %v7502 = vunpack.c.l.b16 %v6686
        %v7503 = vunpack.c.l.b16 %v6687
        %v7504 = vunpack.c.l.b16 %v6688
        %v7505 = vunpack.c.l.b16 %v6689
        %v7506 = vunpack.c.l.b16 %v6690
        %v7507 = vunpack.c.l.b16 %v6691
        %v7508 = vunpack.c.l.b16 %v6692
        %v7509 = vunpack.c.l.b16 %v6693
        %v7510 = vunpack.c.l.b16 %v6694
        %v7511 = vunpack.c.l.b16 %v6695
        %v7512 = vunpack.c.l.b16 %v6696
        %v7513 = vunpack.c.l.b16 %v6697
        %v7514 = vunpack.c.l.b16 %v6698
        %v7515 = vunpack.c.l.b16 %v6699
        %v7516 = vunpack.c.l.b16 %v6700
        %v7517 = vunpack.c.l.b16 %v6701
        %v7518 = vunpack.c.l.b16 %v6702
        %v7519 = vunpack.c.l.b16 %v6703
        %v7520 = vunpack.c.l.b16 %v6704
        %v7521 = vunpack.c.l.b16 %v6705
        %v7522 = vunpack.c.l.b16 %v6706
        %v7523 = vunpack.c.l.b16 %v6707
        %v7524 = vunpack.c.l.b16 %v6708
        %v7525 = vunpack.c.l.b16 %v6709
        %v7526 = vunpack.c.l.b16 %v6710
        %v7527 = vunpack.c.l.b16 %v6711
        %v7528 = vunpack.c.l.b16 %v6712
        %v7529 = vunpack.c.l.b16 %v6713
        %v7530 = vunpack.c.l.b16 %v6714
        %v7531 = vunpack.c.l.b16 %v6715
        %v7532 = vunpack.c.l.b16 %v6716
        %v7533 = vunpack.c.l.b16 %v6717
        %v7534 = vunpack.c.l.b16 %v6718
        %v7535 = vunpack.c.l.b16 %v6719
        %v7536 = vunpack.c.l.b16 %v6720
        %v7537 = vunpack.c.l.b16 %v6721
        %v7538 = vunpack.c.l.b16 %v6722
        %v7539 = vunpack.c.l.b16 %v6723
        %v7540 = vunpack.c.l.b16 %v6724
        %v7541 = vunpack.c.l.b16 %v6725
        %v7542 = vunpack.c.l.b16 %v6726
        %v7543 = vunpack.c.l.b16 %v6727
        %v7544 = vunpack.c.l.b16 %v6728
        %v7545 = vunpack.c.l.b16 %v6729
        %v7546 = vunpack.c.l.b16 %v6730
        %v7547 = vunpack.c.l.b16 %v6731
        %v7548 = vunpack.c.l.b16 %v6732
        %v7549 = vunpack.c.l.b16 %v6733
        %v7550 = vunpack.c.l.b16 %v6734
        %v7551 = vunpack.c.l.b16 %v6735
        %v7552 = vunpack.c.l.b16 %v6736
        %v7553 = vunpack.c.l.b16 %v6737
        %v7554 = vunpack.c.l.b16 %v6738
        %v7555 = vunpack.c.l.b16 %v6739
        %v7556 = vunpack.c.l.b16 %v6740
        %v7557 = vunpack.c.l.b16 %v6741
        %v7558 = vunpack.c.l.b16 %v6742
        %v7559 = vunpack.c.l.b16 %v6743
        %v7560 = vpack.c.b16 %v7497, %v7496
        %v7561 = vpack.c.b16 %v7499, %v7498
        %v7562 = vpack.c.b16 %v7501, %v7500
        %v7563 = vpack.c.b16 %v7503, %v7502
        %v7564 = vpack.c.b16 %v7505, %v7504
        %v7565 = vpack.c.b16 %v7507, %v7506
        %v7566 = vpack.c.b16 %v7509, %v7508
        %v7567 = vpack.c.b16 %v7511, %v7510
        %v7568 = vpack.c.b16 %v7513, %v7512
        %v7569 = vpack.c.b16 %v7515, %v7514
        %v7570 = vpack.c.b16 %v7517, %v7516
        %v7571 = vpack.c.b16 %v7519, %v7518
        %v7572 = vpack.c.b16 %v7521, %v7520
        %v7573 = vpack.c.b16 %v7523, %v7522
        %v7574 = vpack.c.b16 %v7525, %v7524
        %v7575 = vpack.c.b16 %v7527, %v7526
        %v7576 = vpack.c.b16 %v7529, %v7528
        %v7577 = vpack.c.b16 %v7531, %v7530
        %v7578 = vpack.c.b16 %v7533, %v7532
        %v7579 = vpack.c.b16 %v7535, %v7534
        %v7580 = vpack.c.b16 %v7537, %v7536
        %v7581 = vpack.c.b16 %v7539, %v7538
        %v7582 = vpack.c.b16 %v7541, %v7540
        %v7583 = vpack.c.b16 %v7543, %v7542
        %v7584 = vpack.c.b16 %v7545, %v7544
        %v7585 = vpack.c.b16 %v7547, %v7546
        %v7586 = vpack.c.b16 %v7549, %v7548
        %v7587 = vpack.c.b16 %v7551, %v7550
        %v7588 = vpack.c.b16 %v7553, %v7552
        %v7589 = vpack.c.b16 %v7555, %v7554
        %v7590 = vpack.c.b16 %v7557, %v7556
        %v7591 = vpack.c.b16 %v7559, %v7558
        %7624 = vmatprep.subr.bf16.mxu0 0
        %7625 = vmatpush1.bf16.msra.mxu0 %v7560
        %7626 = vmatprep.subr.bf16.mxu0 0
        %7627 = vmatpush1.bf16.msra.mxu0 %v7561
        %7628 = vmatprep.subr.bf16.mxu0 0
        %7629 = vmatpush1.bf16.msra.mxu0 %v7562
        %7630 = vmatprep.subr.bf16.mxu0 0
        %7631 = vmatpush1.bf16.msra.mxu0 %v7563
        %7632 = vmatprep.subr.bf16.mxu0 0
        %7633 = vmatpush1.bf16.msra.mxu0 %v7564
        %7634 = vmatprep.subr.bf16.mxu0 0
        %7635 = vmatpush1.bf16.msra.mxu0 %v7565
        %7636 = vmatprep.subr.bf16.mxu0 0
        %7637 = vmatpush1.bf16.msra.mxu0 %v7566
        %7638 = vmatprep.subr.bf16.mxu0 0
        %7639 = vmatpush1.bf16.msra.mxu0 %v7567
        %7640 = vmatprep.subr.bf16.mxu0 0
        %7641 = vmatpush1.bf16.msra.mxu0 %v7568
        %7642 = vmatprep.subr.bf16.mxu0 0
        %7643 = vmatpush1.bf16.msra.mxu0 %v7569
        %7644 = vmatprep.subr.bf16.mxu0 0
        %7645 = vmatpush1.bf16.msra.mxu0 %v7570
        %7646 = vmatprep.subr.bf16.mxu0 0
        %7647 = vmatpush1.bf16.msra.mxu0 %v7571
        %7648 = vmatprep.subr.bf16.mxu0 0
        %7649 = vmatpush1.bf16.msra.mxu0 %v7572
        %7650 = vmatprep.subr.bf16.mxu0 0
        %7651 = vmatpush1.bf16.msra.mxu0 %v7573
        %7652 = vmatprep.subr.bf16.mxu0 0
        %7653 = vmatpush1.bf16.msra.mxu0 %v7574
        %7654 = vmatprep.subr.bf16.mxu0 0
        %7655 = vmatpush1.bf16.msra.mxu0 %v7575
        %7656 = vmatprep.mubr.bf16.mxu0 %v6673
        %7657 = vmatmul.mubr.bf16.gmra.mrb[0].mxu0 %v6672
        %v7658 = vpop.f32.mrb[0].mxu0
        %v7659 = vadd.f32 %v7419, %v7658
        %v7660 = vpop.f32.mrb[0].mxu0
        %v7661 = vpop.f32.mrb[0].mxu0
        %v7662 = vadd.f32 %v7422, %v7661
        %v7663 = vpop.f32.mrb[0].mxu0
        %7664 = vmatprep.mubr.bf16.mxu0 %v6677
        %7665 = vmatmul.mubr.bf16.gmra.mrb[0].mxu0 %v6676
        %v7666 = vpop.f32.mrb[0].mxu0
        %v7667 = vadd.f32 %v7427, %v7666
        %v7668 = vpop.f32.mrb[0].mxu0
        %v7669 = vpop.f32.mrb[0].mxu0
        %v7670 = vpop.f32.mrb[0].mxu0
        %7671 = vdwg.mxu0
        %7672 = vmatprep.subr.bf16.mxu0 0
        %7673 = vmatpush1.bf16.msra.mxu0 %v7576
        %7674 = vmatprep.subr.bf16.mxu0 0
        %7675 = vmatpush1.bf16.msra.mxu0 %v7577
        %7676 = vmatprep.subr.bf16.mxu0 0
        %7677 = vmatpush1.bf16.msra.mxu0 %v7578
        %7678 = vmatprep.subr.bf16.mxu0 0
        %7679 = vmatpush1.bf16.msra.mxu0 %v7579
        %7680 = vmatprep.subr.bf16.mxu0 0
        %7681 = vmatpush1.bf16.msra.mxu0 %v7580
        %7682 = vmatprep.subr.bf16.mxu0 0
        %7683 = vmatpush1.bf16.msra.mxu0 %v7581
        %7684 = vmatprep.subr.bf16.mxu0 0
        %7685 = vmatpush1.bf16.msra.mxu0 %v7582
        %7686 = vmatprep.subr.bf16.mxu0 0
        %7687 = vmatpush1.bf16.msra.mxu0 %v7583
        %7688 = vmatprep.subr.bf16.mxu0 0
        %7689 = vmatpush1.bf16.msra.mxu0 %v7584
        %7690 = vmatprep.subr.bf16.mxu0 0
        %7691 = vmatpush1.bf16.msra.mxu0 %v7585
        %7692 = vmatprep.subr.bf16.mxu0 0
        %7693 = vmatpush1.bf16.msra.mxu0 %v7586
        %7694 = vmatprep.subr.bf16.mxu0 0
        %7695 = vmatpush1.bf16.msra.mxu0 %v7587
        %7696 = vmatprep.subr.bf16.mxu0 0
        %7697 = vmatpush1.bf16.msra.mxu0 %v7588
        %7698 = vmatprep.subr.bf16.mxu0 0
        %7699 = vmatpush1.bf16.msra.mxu0 %v7589
        %7700 = vmatprep.subr.bf16.mxu0 0
        %7701 = vmatpush1.bf16.msra.mxu0 %v7590
        %7702 = vmatprep.subr.bf16.mxu0 0
        %7703 = vmatpush1.bf16.msra.mxu0 %v7591
        %7704 = vmatprep.mubr.bf16.mxu0 %v6675
        %7705 = vmatmul.mubr.bf16.gmra.mrb[0].mxu0 %v6674
        %v7706 = vpop.f32.mrb[0].mxu0
        %v7707 = vadd.f32 %v7659, %v7706
        %v7708 = vpop.f32.mrb[0].mxu0
        %v7709 = vpop.f32.mrb[0].mxu0
        %v7710 = vadd.f32 %v7662, %v7709
        %v7711 = vpop.f32.mrb[0].mxu0
        %7712 = vmatprep.mubr.bf16.mxu0 %v6679
        %7713 = vmatmul.mubr.bf16.gmra.mrb[0].mxu0 %v6678
        %v7714 = vpop.f32.mrb[0].mxu0
        %v7715 = vadd.f32 %v7667, %v7714
        %v7716 = vpop.f32.mrb[0].mxu0
        %v7717 = vpop.f32.mrb[0].mxu0
        %v7718 = vpop.f32.mrb[0].mxu0
        %7719 = vdwg.mxu0
        %v7720 = vld [vmem:[%s646 + $0x20] sm:$0xff]
        %v7721 = vld [vmem:[%s646 + $0x28] sm:$0xff]
        %v7722 = vld [vmem:[%s646 + $0x60] sm:$0xff]
        %v7723 = vld [vmem:[%s646 + $0x68] sm:$0xff]
        %v7724 = vld [vmem:[%s646 + $0xa0] sm:$0xff]
        %v7725 = vld [vmem:[%s646 + $0xa8] sm:$0xff]
        %v7726 = vld [vmem:[%s646 + $0xe0] sm:$0xff]
        %v7727 = vld [vmem:[%s646 + $0xe8] sm:$0xff]
        %v7728 = vld [vmem:[%s646 + $0x120] sm:$0xff]
        %v7729 = vld [vmem:[%s646 + $0x128] sm:$0xff]
        %v7730 = vld [vmem:[%s646 + $0x160] sm:$0xff]
        %v7731 = vld [vmem:[%s646 + $0x168] sm:$0xff]
        %v7732 = vld [vmem:[%s646 + $0x1a0] sm:$0xff]
        %v7733 = vld [vmem:[%s646 + $0x1a8] sm:$0xff]
        %v7734 = vld [vmem:[%s646 + $0x1e0] sm:$0xff]
        %v7735 = vld [vmem:[%s646 + $0x1e8] sm:$0xff]
        %v7736 = vld [vmem:[%s646 + $0x220] sm:$0xff]
        %v7737 = vld [vmem:[%s646 + $0x228] sm:$0xff]
        %v7738 = vld [vmem:[%s646 + $0x260] sm:$0xff]
        %v7739 = vld [vmem:[%s646 + $0x268] sm:$0xff]
        %v7740 = vld [vmem:[%s646 + $0x2a0] sm:$0xff]
        %v7741 = vld [vmem:[%s646 + $0x2a8] sm:$0xff]
        %v7742 = vld [vmem:[%s646 + $0x2e0] sm:$0xff]
        %v7743 = vld [vmem:[%s646 + $0x2e8] sm:$0xff]
        %v7744 = vld [vmem:[%s646 + $0x320] sm:$0xff]
        %v7745 = vld [vmem:[%s646 + $0x328] sm:$0xff]
        %v7746 = vld [vmem:[%s646 + $0x360] sm:$0xff]
        %v7747 = vld [vmem:[%s646 + $0x368] sm:$0xff]
        %v7748 = vld [vmem:[%s646 + $0x3a0] sm:$0xff]
        %v7749 = vld [vmem:[%s646 + $0x3a8] sm:$0xff]
        %v7750 = vld [vmem:[%s646 + $0x3e0] sm:$0xff]
        %v7751 = vld [vmem:[%s646 + $0x3e8] sm:$0xff]
        %v7752 = vld [vmem:[%s770 + $0x8] sm:$0xf]
        %v7754 = vlaneseq
        %v7755 = vshrl.u32 %v7754, 7
        %v7756 = vsub.s32 0, %v7755
        %v7757 = vrot.slane %v7752, %v7756
        %v7758 = vlaneseq
        %v7759 = vshrl.u32 %v7758, 7
        %v7760 = vsub.s32 1, %v7759
        %v7761 = vrot.slane %v7752, %v7760
        %v7762 = vlaneseq
        %v7763 = vshrl.u32 %v7762, 7
        %v7764 = vsub.s32 2, %v7763
        %v7765 = vrot.slane %v7752, %v7764
        %v7766 = vlaneseq
        %v7767 = vshrl.u32 %v7766, 7
        %v7768 = vsub.s32 3, %v7767
        %v7769 = vrot.slane %v7752, %v7768
        %v7806 = vunpack.c.l.b16 %v7720
        %v7807 = vunpack.c.h.b16 %v7720
        %v7808 = vunpack.c.l.b16 %v7721
        %v7809 = vunpack.c.h.b16 %v7721
        %v7810 = vunpack.c.l.b16 %v7722
        %v7811 = vunpack.c.h.b16 %v7722
        %v7812 = vunpack.c.l.b16 %v7723
        %v7813 = vunpack.c.h.b16 %v7723
        %v7814 = vunpack.c.l.b16 %v7724
        %v7815 = vunpack.c.h.b16 %v7724
        %v7816 = vunpack.c.l.b16 %v7725
        %v7817 = vunpack.c.h.b16 %v7725
        %v7818 = vunpack.c.l.b16 %v7726
        %v7819 = vunpack.c.h.b16 %v7726
        %v7820 = vunpack.c.l.b16 %v7727
        %v7821 = vunpack.c.h.b16 %v7727
        %v7822 = vunpack.c.l.b16 %v7728
        %v7823 = vunpack.c.h.b16 %v7728
        %v7824 = vunpack.c.l.b16 %v7729
        %v7825 = vunpack.c.h.b16 %v7729
        %v7826 = vunpack.c.l.b16 %v7730
        %v7827 = vunpack.c.h.b16 %v7730
        %v7828 = vunpack.c.l.b16 %v7731
        %v7829 = vunpack.c.h.b16 %v7731
        %v7830 = vunpack.c.l.b16 %v7732
        %v7831 = vunpack.c.h.b16 %v7732
        %v7832 = vunpack.c.l.b16 %v7733
        %v7833 = vunpack.c.h.b16 %v7733
        %v7834 = vunpack.c.l.b16 %v7734
        %v7835 = vunpack.c.h.b16 %v7734
        %v7836 = vunpack.c.l.b16 %v7735
        %v7837 = vunpack.c.h.b16 %v7735
        %v7838 = vunpack.c.l.b16 %v7736
        %v7839 = vunpack.c.h.b16 %v7736
        %v7840 = vunpack.c.l.b16 %v7737
        %v7841 = vunpack.c.h.b16 %v7737
        %v7842 = vunpack.c.l.b16 %v7738
        %v7843 = vunpack.c.h.b16 %v7738
        %v7844 = vunpack.c.l.b16 %v7739
        %v7845 = vunpack.c.h.b16 %v7739
        %v7846 = vunpack.c.l.b16 %v7740
        %v7847 = vunpack.c.h.b16 %v7740
        %v7848 = vunpack.c.l.b16 %v7741
        %v7849 = vunpack.c.h.b16 %v7741
        %v7850 = vunpack.c.l.b16 %v7742
        %v7851 = vunpack.c.h.b16 %v7742
        %v7852 = vunpack.c.l.b16 %v7743
        %v7853 = vunpack.c.h.b16 %v7743
        %v7854 = vunpack.c.l.b16 %v7744
        %v7855 = vunpack.c.h.b16 %v7744
        %v7856 = vunpack.c.l.b16 %v7745
        %v7857 = vunpack.c.h.b16 %v7745
        %v7858 = vunpack.c.l.b16 %v7746
        %v7859 = vunpack.c.h.b16 %v7746
        %v7860 = vunpack.c.l.b16 %v7747
        %v7861 = vunpack.c.h.b16 %v7747
        %v7862 = vunpack.c.l.b16 %v7748
        %v7863 = vunpack.c.h.b16 %v7748
        %v7864 = vunpack.c.l.b16 %v7749
        %v7865 = vunpack.c.h.b16 %v7749
        %v7866 = vunpack.c.l.b16 %v7750
        %v7867 = vunpack.c.h.b16 %v7750
        %v7868 = vunpack.c.l.b16 %v7751
        %v7869 = vunpack.c.h.b16 %v7751
        %v7870 = vpack.c.b16 %v7810, %v7806
        %v7871 = vpack.c.b16 %v7811, %v7807
        %v7872 = vpack.c.b16 %v7812, %v7808
        %v7873 = vpack.c.b16 %v7813, %v7809
        %v7874 = vpack.c.b16 %v7818, %v7814
        %v7875 = vpack.c.b16 %v7819, %v7815
        %v7876 = vpack.c.b16 %v7820, %v7816
        %v7877 = vpack.c.b16 %v7821, %v7817
        %v7878 = vpack.c.b16 %v7826, %v7822
        %v7879 = vpack.c.b16 %v7827, %v7823
        %v7880 = vpack.c.b16 %v7828, %v7824
        %v7881 = vpack.c.b16 %v7829, %v7825
        %v7882 = vpack.c.b16 %v7834, %v7830
        %v7883 = vpack.c.b16 %v7835, %v7831
        %v7884 = vpack.c.b16 %v7836, %v7832
        %v7885 = vpack.c.b16 %v7837, %v7833
        %v7886 = vpack.c.b16 %v7842, %v7838
        %v7887 = vpack.c.b16 %v7843, %v7839
        %v7888 = vpack.c.b16 %v7844, %v7840
        %v7889 = vpack.c.b16 %v7845, %v7841
        %v7890 = vpack.c.b16 %v7850, %v7846
        %v7891 = vpack.c.b16 %v7851, %v7847
        %v7892 = vpack.c.b16 %v7852, %v7848
        %v7893 = vpack.c.b16 %v7853, %v7849
        %v7894 = vpack.c.b16 %v7858, %v7854
        %v7895 = vpack.c.b16 %v7859, %v7855
        %v7896 = vpack.c.b16 %v7860, %v7856
        %v7897 = vpack.c.b16 %v7861, %v7857
        %v7898 = vpack.c.b16 %v7866, %v7862
        %v7899 = vpack.c.b16 %v7867, %v7863
        %v7900 = vpack.c.b16 %v7868, %v7864
        %v7901 = vpack.c.b16 %v7869, %v7865
        %7934 = vmatprep.subr.bf16.mxu0 %v7871
        %7935 = vmatpush1.bf16.msra.mxu0 %v7870
        %7936 = vmatprep.subr.bf16.mxu0 %v7875
        %7937 = vmatpush1.bf16.msra.mxu0 %v7874
        %7938 = vmatprep.subr.bf16.mxu0 %v7879
        %7939 = vmatpush1.bf16.msra.mxu0 %v7878
        %7940 = vmatprep.subr.bf16.mxu0 %v7883
        %7941 = vmatpush1.bf16.msra.mxu0 %v7882
        %7942 = vmatprep.subr.bf16.mxu0 %v7887
        %7943 = vmatpush1.bf16.msra.mxu0 %v7886
        %7944 = vmatprep.subr.bf16.mxu0 %v7891
        %7945 = vmatpush1.bf16.msra.mxu0 %v7890
        %7946 = vmatprep.subr.bf16.mxu0 %v7895
        %7947 = vmatpush1.bf16.msra.mxu0 %v7894
        %7948 = vmatprep.subr.bf16.mxu0 %v7899
        %7949 = vmatpush1.bf16.msra.mxu0 %v7898
        %7950 = vmatprep.subr.bf16.mxu0 0
        %7951 = vmatpush1.bf16.msra.mxu0 0
        %7952 = vmatprep.subr.bf16.mxu0 0
        %7953 = vmatpush1.bf16.msra.mxu0 0
        %7954 = vmatprep.subr.bf16.mxu0 0
        %7955 = vmatpush1.bf16.msra.mxu0 0
        %7956 = vmatprep.subr.bf16.mxu0 0
        %7957 = vmatpush1.bf16.msra.mxu0 0
        %7958 = vmatprep.subr.bf16.mxu0 0
        %7959 = vmatpush1.bf16.msra.mxu0 0
        %7960 = vmatprep.subr.bf16.mxu0 0
        %7961 = vmatpush1.bf16.msra.mxu0 0
        %7962 = vmatprep.subr.bf16.mxu0 0
        %7963 = vmatpush1.bf16.msra.mxu0 0
        %7964 = vmatprep.subr.bf16.mxu0 0
        %7965 = vmatpush1.bf16.msra.mxu0 0
        %7966 = vmatprep.mubr.bf16.mxu0 0
        %7967 = vmatmul.mubr.bf16.gmra.mrb[0].mxu0 %v6342
        %v7968 = vpop.f32.mrb[0].mxu0
        %v7969 = vadd.f32 %v7757, %v7968
        %v7970 = vpop.f32.mrb[0].mxu0
        %v7971 = vadd.f32 %v7761, %v7970
        %v7972 = vpop.f32.mrb[0].mxu0
        %v7973 = vadd.f32 %v7757, %v7972
        %v7974 = vpop.f32.mrb[0].mxu0
        %v7975 = vadd.f32 %v7761, %v7974
        %7976 = vmatprep.mubr.bf16.mxu0 0
        %7977 = vmatmul.mubr.bf16.gmra.mrb[0].mxu0 %v6343
        %v7978 = vpop.f32.mrb[0].mxu0
        %v7979 = vadd.f32 %v7757, %v7978
        %v7980 = vpop.f32.mrb[0].mxu0
        %v7981 = vadd.f32 %v7761, %v7980
        %v7982 = vpop.f32.mrb[0].mxu0
        %v7983 = vpop.f32.mrb[0].mxu0
        %7984 = vdwg.mxu0
        %7985 = vmatprep.subr.bf16.mxu0 %v7873
        %7986 = vmatpush1.bf16.msra.mxu0 %v7872
        %7987 = vmatprep.subr.bf16.mxu0 %v7877
        %7988 = vmatpush1.bf16.msra.mxu0 %v7876
        %7989 = vmatprep.subr.bf16.mxu0 %v7881
        %7990 = vmatpush1.bf16.msra.mxu0 %v7880
        %7991 = vmatprep.subr.bf16.mxu0 %v7885
        %7992 = vmatpush1.bf16.msra.mxu0 %v7884
        %7993 = vmatprep.subr.bf16.mxu0 %v7889
        %7994 = vmatpush1.bf16.msra.mxu0 %v7888
        %7995 = vmatprep.subr.bf16.mxu0 %v7893
        %7996 = vmatpush1.bf16.msra.mxu0 %v7892
        %7997 = vmatprep.subr.bf16.mxu0 %v7897
        %7998 = vmatpush1.bf16.msra.mxu0 %v7896
        %7999 = vmatprep.subr.bf16.mxu0 %v7901
        %8000 = vmatpush1.bf16.msra.mxu0 %v7900
        %8001 = vmatprep.subr.bf16.mxu0 0
        %8002 = vmatpush1.bf16.msra.mxu0 0
        %8003 = vmatprep.subr.bf16.mxu0 0
        %8004 = vmatpush1.bf16.msra.mxu0 0
        %8005 = vmatprep.subr.bf16.mxu0 0
        %8006 = vmatpush1.bf16.msra.mxu0 0
        %8007 = vmatprep.subr.bf16.mxu0 0
        %8008 = vmatpush1.bf16.msra.mxu0 0
        %8009 = vmatprep.subr.bf16.mxu0 0
        %8010 = vmatpush1.bf16.msra.mxu0 0
        %8011 = vmatprep.subr.bf16.mxu0 0
        %8012 = vmatpush1.bf16.msra.mxu0 0
        %8013 = vmatprep.subr.bf16.mxu0 0
        %8014 = vmatpush1.bf16.msra.mxu0 0
        %8015 = vmatprep.subr.bf16.mxu0 0
        %8016 = vmatpush1.bf16.msra.mxu0 0
        %8017 = vmatprep.mubr.bf16.mxu0 0
        %8018 = vmatmul.mubr.bf16.gmra.mrb[0].mxu0 %v6342
        %v8019 = vpop.f32.mrb[0].mxu0
        %v8020 = vadd.f32 %v7765, %v8019
        %v8021 = vpop.f32.mrb[0].mxu0
        %v8022 = vadd.f32 %v7769, %v8021
        %v8023 = vpop.f32.mrb[0].mxu0
        %v8024 = vadd.f32 %v7765, %v8023
        %v8025 = vpop.f32.mrb[0].mxu0
        %v8026 = vadd.f32 %v7769, %v8025
        %8027 = vmatprep.mubr.bf16.mxu0 0
        %8028 = vmatmul.mubr.bf16.gmra.mrb[0].mxu0 %v6343
        %v8029 = vpop.f32.mrb[0].mxu0
        %v8030 = vadd.f32 %v7765, %v8029
        %v8031 = vpop.f32.mrb[0].mxu0
        %v8032 = vadd.f32 %v7769, %v8031
        %v8033 = vpop.f32.mrb[0].mxu0
        %v8034 = vpop.f32.mrb[0].mxu0
        %8035 = vdwg.mxu0
        %v8036 = vmax.f32 %v7969, 0.0
        %v8037 = vmax.f32 %v7971, 0.0
        %v8038 = vmax.f32 %v8020, 0.0
        %v8039 = vmax.f32 %v8022, 0.0
        %v8040 = vmax.f32 %v7973, 0.0
        %v8041 = vmax.f32 %v7975, 0.0
        %v8042 = vmax.f32 %v8024, 0.0
        %v8043 = vmax.f32 %v8026, 0.0
        %v8044 = vmax.f32 %v7979, 0.0
        %v8045 = vmax.f32 %v7981, 0.0
        %v8046 = vmax.f32 %v8030, 0.0
        %v8047 = vmax.f32 %v8032, 0.0
        %v8048 = vpack.c.bf16 %v8040, %v8036
        %v8049 = vpack.c.bf16 %v8041, %v8037
        %v8050 = vpack.c.bf16 %v8042, %v8038
        %v8051 = vpack.c.bf16 %v8043, %v8039
        %v8052 = vpack.c.bf16 %v8044, %v8044
        %v8053 = vpack.c.bf16 %v8045, %v8045
        %v8054 = vpack.c.bf16 %v8046, %v8046
        %v8055 = vpack.c.bf16 %v8047, %v8047
        %v8056 = vld [vmem:[%s655 + $0x200] sm:$0xf]
        %v8057 = vld [vmem:[%s655 + $0x204] sm:$0xf]
        %v8058 = vld [vmem:[%s655 + $0x208] sm:$0xf]
        %v8059 = vld [vmem:[%s655 + $0x20c] sm:$0xf]
        %v8060 = vld [vmem:[%s655 + $0x210] sm:$0xf]
        %v8061 = vld [vmem:[%s655 + $0x214] sm:$0xf]
        %v8062 = vld [vmem:[%s655 + $0x218] sm:$0xf]
        %v8063 = vld [vmem:[%s655 + $0x21c] sm:$0xf]
        %v8064 = vld [vmem:[%s655 + $0x220] sm:$0xf]
        %v8065 = vld [vmem:[%s655 + $0x224] sm:$0xf]
        %v8066 = vld [vmem:[%s655 + $0x228] sm:$0xf]
        %v8067 = vld [vmem:[%s655 + $0x22c] sm:$0xf]
        %v8068 = vld [vmem:[%s655 + $0x230] sm:$0xf]
        %v8069 = vld [vmem:[%s655 + $0x234] sm:$0xf]
        %v8070 = vld [vmem:[%s655 + $0x238] sm:$0xf]
        %v8071 = vld [vmem:[%s655 + $0x23c] sm:$0xf]
        %v8072 = vld [vmem:[%s655 + $0x240] sm:$0xf]
        %v8073 = vld [vmem:[%s655 + $0x244] sm:$0xf]
        %v8074 = vld [vmem:[%s655 + $0x248] sm:$0xf]
        %v8075 = vld [vmem:[%s655 + $0x24c] sm:$0xf]
        %v8076 = vld [vmem:[%s655 + $0x250] sm:$0xf]
        %v8077 = vld [vmem:[%s655 + $0x254] sm:$0xf]
        %v8078 = vld [vmem:[%s655 + $0x258] sm:$0xf]
        %v8079 = vld [vmem:[%s655 + $0x25c] sm:$0xf]
        %v8080 = vld [vmem:[%s655 + $0x260] sm:$0xf]
        %v8081 = vld [vmem:[%s655 + $0x264] sm:$0xf]
        %v8082 = vld [vmem:[%s655 + $0x268] sm:$0xf]
        %v8083 = vld [vmem:[%s655 + $0x26c] sm:$0xf]
        %v8084 = vld [vmem:[%s655 + $0x270] sm:$0xf]
        %v8085 = vld [vmem:[%s655 + $0x274] sm:$0xf]
        %v8086 = vld [vmem:[%s655 + $0x278] sm:$0xf]
        %v8087 = vld [vmem:[%s655 + $0x27c] sm:$0xf]
        %v8088 = vld [vmem:[%s655 + $0x280] sm:$0xf]
        %v8089 = vld [vmem:[%s655 + $0x284] sm:$0xf]
        %v8090 = vld [vmem:[%s655 + $0x288] sm:$0xf]
        %v8091 = vld [vmem:[%s655 + $0x28c] sm:$0xf]
        %v8092 = vld [vmem:[%s655 + $0x290] sm:$0xf]
        %v8093 = vld [vmem:[%s655 + $0x294] sm:$0xf]
        %v8094 = vld [vmem:[%s655 + $0x298] sm:$0xf]
        %v8095 = vld [vmem:[%s655 + $0x29c] sm:$0xf]
        %v8096 = vld [vmem:[%s655 + $0x2a0] sm:$0xf]
        %v8097 = vld [vmem:[%s655 + $0x2a4] sm:$0xf]
        %v8098 = vld [vmem:[%s655 + $0x2a8] sm:$0xf]
        %v8099 = vld [vmem:[%s655 + $0x2ac] sm:$0xf]
        %v8100 = vld [vmem:[%s655 + $0x2b0] sm:$0xf]
        %v8101 = vld [vmem:[%s655 + $0x2b4] sm:$0xf]
        %v8102 = vld [vmem:[%s655 + $0x2b8] sm:$0xf]
        %v8103 = vld [vmem:[%s655 + $0x2bc] sm:$0xf]
        %v8104 = vld [vmem:[%s655 + $0x2c0] sm:$0xf]
        %v8105 = vld [vmem:[%s655 + $0x2c4] sm:$0xf]
        %v8106 = vld [vmem:[%s655 + $0x2c8] sm:$0xf]
        %v8107 = vld [vmem:[%s655 + $0x2cc] sm:$0xf]
        %v8108 = vld [vmem:[%s655 + $0x2d0] sm:$0xf]
        %v8109 = vld [vmem:[%s655 + $0x2d4] sm:$0xf]
        %v8110 = vld [vmem:[%s655 + $0x2d8] sm:$0xf]
        %v8111 = vld [vmem:[%s655 + $0x2dc] sm:$0xf]
        %v8112 = vld [vmem:[%s655 + $0x2e0] sm:$0xf]
        %v8113 = vld [vmem:[%s655 + $0x2e4] sm:$0xf]
        %v8114 = vld [vmem:[%s655 + $0x2e8] sm:$0xf]
        %v8115 = vld [vmem:[%s655 + $0x2ec] sm:$0xf]
        %v8116 = vld [vmem:[%s655 + $0x2f0] sm:$0xf]
        %v8117 = vld [vmem:[%s655 + $0x2f4] sm:$0xf]
        %v8118 = vld [vmem:[%s655 + $0x2f8] sm:$0xf]
        %v8119 = vld [vmem:[%s655 + $0x2fc] sm:$0xf]
        %v8184 = vunpack.c.l.b16 %v8056
        %v8185 = vunpack.c.l.b16 %v8057
        %v8186 = vunpack.c.l.b16 %v8058
        %v8187 = vunpack.c.l.b16 %v8059
        %v8188 = vunpack.c.l.b16 %v8060
        %v8189 = vunpack.c.l.b16 %v8061
        %v8190 = vunpack.c.l.b16 %v8062
        %v8191 = vunpack.c.l.b16 %v8063
        %v8192 = vunpack.c.l.b16 %v8064
        %v8193 = vunpack.c.l.b16 %v8065
        %v8194 = vunpack.c.l.b16 %v8066
        %v8195 = vunpack.c.l.b16 %v8067
        %v8196 = vunpack.c.l.b16 %v8068
        %v8197 = vunpack.c.l.b16 %v8069
        %v8198 = vunpack.c.l.b16 %v8070
        %v8199 = vunpack.c.l.b16 %v8071
        %v8200 = vunpack.c.l.b16 %v8072
        %v8201 = vunpack.c.l.b16 %v8073
        %v8202 = vunpack.c.l.b16 %v8074
        %v8203 = vunpack.c.l.b16 %v8075
        %v8204 = vunpack.c.l.b16 %v8076
        %v8205 = vunpack.c.l.b16 %v8077
        %v8206 = vunpack.c.l.b16 %v8078
        %v8207 = vunpack.c.l.b16 %v8079
        %v8208 = vunpack.c.l.b16 %v8080
        %v8209 = vunpack.c.l.b16 %v8081
        %v8210 = vunpack.c.l.b16 %v8082
        %v8211 = vunpack.c.l.b16 %v8083
        %v8212 = vunpack.c.l.b16 %v8084
        %v8213 = vunpack.c.l.b16 %v8085
        %v8214 = vunpack.c.l.b16 %v8086
        %v8215 = vunpack.c.l.b16 %v8087
        %v8216 = vunpack.c.l.b16 %v8088
        %v8217 = vunpack.c.l.b16 %v8089
        %v8218 = vunpack.c.l.b16 %v8090
        %v8219 = vunpack.c.l.b16 %v8091
        %v8220 = vunpack.c.l.b16 %v8092
        %v8221 = vunpack.c.l.b16 %v8093
        %v8222 = vunpack.c.l.b16 %v8094
        %v8223 = vunpack.c.l.b16 %v8095
        %v8224 = vunpack.c.l.b16 %v8096
        %v8225 = vunpack.c.l.b16 %v8097
        %v8226 = vunpack.c.l.b16 %v8098
        %v8227 = vunpack.c.l.b16 %v8099
        %v8228 = vunpack.c.l.b16 %v8100
        %v8229 = vunpack.c.l.b16 %v8101
        %v8230 = vunpack.c.l.b16 %v8102
        %v8231 = vunpack.c.l.b16 %v8103
        %v8232 = vunpack.c.l.b16 %v8104
        %v8233 = vunpack.c.l.b16 %v8105
        %v8234 = vunpack.c.l.b16 %v8106
        %v8235 = vunpack.c.l.b16 %v8107
        %v8236 = vunpack.c.l.b16 %v8108
        %v8237 = vunpack.c.l.b16 %v8109
        %v8238 = vunpack.c.l.b16 %v8110
        %v8239 = vunpack.c.l.b16 %v8111
        %v8240 = vunpack.c.l.b16 %v8112
        %v8241 = vunpack.c.l.b16 %v8113
        %v8242 = vunpack.c.l.b16 %v8114
        %v8243 = vunpack.c.l.b16 %v8115
        %v8244 = vunpack.c.l.b16 %v8116
        %v8245 = vunpack.c.l.b16 %v8117
        %v8246 = vunpack.c.l.b16 %v8118
        %v8247 = vunpack.c.l.b16 %v8119
        %v8248 = vpack.c.b16 %v8185, %v8184
        %v8249 = vpack.c.b16 %v8187, %v8186
        %v8250 = vpack.c.b16 %v8189, %v8188
        %v8251 = vpack.c.b16 %v8191, %v8190
        %v8252 = vpack.c.b16 %v8193, %v8192
        %v8253 = vpack.c.b16 %v8195, %v8194
        %v8254 = vpack.c.b16 %v8197, %v8196
        %v8255 = vpack.c.b16 %v8199, %v8198
        %v8256 = vpack.c.b16 %v8201, %v8200
        %v8257 = vpack.c.b16 %v8203, %v8202
        %v8258 = vpack.c.b16 %v8205, %v8204
        %v8259 = vpack.c.b16 %v8207, %v8206
        %v8260 = vpack.c.b16 %v8209, %v8208
        %v8261 = vpack.c.b16 %v8211, %v8210
        %v8262 = vpack.c.b16 %v8213, %v8212
        %v8263 = vpack.c.b16 %v8215, %v8214
        %v8264 = vpack.c.b16 %v8217, %v8216
        %v8265 = vpack.c.b16 %v8219, %v8218
        %v8266 = vpack.c.b16 %v8221, %v8220
        %v8267 = vpack.c.b16 %v8223, %v8222
        %v8268 = vpack.c.b16 %v8225, %v8224
        %v8269 = vpack.c.b16 %v8227, %v8226
        %v8270 = vpack.c.b16 %v8229, %v8228
        %v8271 = vpack.c.b16 %v8231, %v8230
        %v8272 = vpack.c.b16 %v8233, %v8232
        %v8273 = vpack.c.b16 %v8235, %v8234
        %v8274 = vpack.c.b16 %v8237, %v8236
        %v8275 = vpack.c.b16 %v8239, %v8238
        %v8276 = vpack.c.b16 %v8241, %v8240
        %v8277 = vpack.c.b16 %v8243, %v8242
        %v8278 = vpack.c.b16 %v8245, %v8244
        %v8279 = vpack.c.b16 %v8247, %v8246
        %8312 = vmatprep.subr.bf16.mxu0 0
        %8313 = vmatpush1.bf16.msra.mxu0 %v8248
        %8314 = vmatprep.subr.bf16.mxu0 0
        %8315 = vmatpush1.bf16.msra.mxu0 %v8249
        %8316 = vmatprep.subr.bf16.mxu0 0
        %8317 = vmatpush1.bf16.msra.mxu0 %v8250
        %8318 = vmatprep.subr.bf16.mxu0 0
        %8319 = vmatpush1.bf16.msra.mxu0 %v8251
        %8320 = vmatprep.subr.bf16.mxu0 0
        %8321 = vmatpush1.bf16.msra.mxu0 %v8252
        %8322 = vmatprep.subr.bf16.mxu0 0
        %8323 = vmatpush1.bf16.msra.mxu0 %v8253
        %8324 = vmatprep.subr.bf16.mxu0 0
        %8325 = vmatpush1.bf16.msra.mxu0 %v8254
        %8326 = vmatprep.subr.bf16.mxu0 0
        %8327 = vmatpush1.bf16.msra.mxu0 %v8255
        %8328 = vmatprep.subr.bf16.mxu0 0
        %8329 = vmatpush1.bf16.msra.mxu0 %v8256
        %8330 = vmatprep.subr.bf16.mxu0 0
        %8331 = vmatpush1.bf16.msra.mxu0 %v8257
        %8332 = vmatprep.subr.bf16.mxu0 0
        %8333 = vmatpush1.bf16.msra.mxu0 %v8258
        %8334 = vmatprep.subr.bf16.mxu0 0
        %8335 = vmatpush1.bf16.msra.mxu0 %v8259
        %8336 = vmatprep.subr.bf16.mxu0 0
        %8337 = vmatpush1.bf16.msra.mxu0 %v8260
        %8338 = vmatprep.subr.bf16.mxu0 0
        %8339 = vmatpush1.bf16.msra.mxu0 %v8261
        %8340 = vmatprep.subr.bf16.mxu0 0
        %8341 = vmatpush1.bf16.msra.mxu0 %v8262
        %8342 = vmatprep.subr.bf16.mxu0 0
        %8343 = vmatpush1.bf16.msra.mxu0 %v8263
        %8344 = vmatprep.mubr.bf16.mxu0 %v8049
        %8345 = vmatmul.mubr.bf16.gmra.mrb[0].mxu0 %v8048
        %v8346 = vpop.f32.mrb[0].mxu0
        %v8347 = vadd.f32 0.0, %v8346
        %v8348 = vpop.f32.mrb[0].mxu0
        %v8349 = vpop.f32.mrb[0].mxu0
        %v8350 = vadd.f32 0.0, %v8349
        %v8351 = vpop.f32.mrb[0].mxu0
        %8352 = vmatprep.mubr.bf16.mxu0 %v8053
        %8353 = vmatmul.mubr.bf16.gmra.mrb[0].mxu0 %v8052
        %v8354 = vpop.f32.mrb[0].mxu0
        %v8355 = vadd.f32 0.0, %v8354
        %v8356 = vpop.f32.mrb[0].mxu0
        %v8357 = vpop.f32.mrb[0].mxu0
        %v8358 = vpop.f32.mrb[0].mxu0
        %8359 = vdwg.mxu0
        %8360 = vmatprep.subr.bf16.mxu0 0
        %8361 = vmatpush1.bf16.msra.mxu0 %v8264
        %8362 = vmatprep.subr.bf16.mxu0 0
        %8363 = vmatpush1.bf16.msra.mxu0 %v8265
        %8364 = vmatprep.subr.bf16.mxu0 0
        %8365 = vmatpush1.bf16.msra.mxu0 %v8266
        %8366 = vmatprep.subr.bf16.mxu0 0
        %8367 = vmatpush1.bf16.msra.mxu0 %v8267
        %8368 = vmatprep.subr.bf16.mxu0 0
        %8369 = vmatpush1.bf16.msra.mxu0 %v8268
        %8370 = vmatprep.subr.bf16.mxu0 0
        %8371 = vmatpush1.bf16.msra.mxu0 %v8269
        %8372 = vmatprep.subr.bf16.mxu0 0
        %8373 = vmatpush1.bf16.msra.mxu0 %v8270
        %8374 = vmatprep.subr.bf16.mxu0 0
        %8375 = vmatpush1.bf16.msra.mxu0 %v8271
        %8376 = vmatprep.subr.bf16.mxu0 0
        %8377 = vmatpush1.bf16.msra.mxu0 %v8272
        %8378 = vmatprep.subr.bf16.mxu0 0
        %8379 = vmatpush1.bf16.msra.mxu0 %v8273
        %8380 = vmatprep.subr.bf16.mxu0 0
        %8381 = vmatpush1.bf16.msra.mxu0 %v8274
        %8382 = vmatprep.subr.bf16.mxu0 0
        %8383 = vmatpush1.bf16.msra.mxu0 %v8275
        %8384 = vmatprep.subr.bf16.mxu0 0
        %8385 = vmatpush1.bf16.msra.mxu0 %v8276
        %8386 = vmatprep.subr.bf16.mxu0 0
        %8387 = vmatpush1.bf16.msra.mxu0 %v8277
        %8388 = vmatprep.subr.bf16.mxu0 0
        %8389 = vmatpush1.bf16.msra.mxu0 %v8278
        %8390 = vmatprep.subr.bf16.mxu0 0
        %8391 = vmatpush1.bf16.msra.mxu0 %v8279
        %8392 = vmatprep.mubr.bf16.mxu0 %v8051
        %8393 = vmatmul.mubr.bf16.gmra.mrb[0].mxu0 %v8050
        %v8394 = vpop.f32.mrb[0].mxu0
        %v8395 = vadd.f32 %v8347, %v8394
        %v8396 = vpop.f32.mrb[0].mxu0
        %v8397 = vpop.f32.mrb[0].mxu0
        %v8398 = vadd.f32 %v8350, %v8397
        %v8399 = vpop.f32.mrb[0].mxu0
        %8400 = vmatprep.mubr.bf16.mxu0 %v8055
        %8401 = vmatmul.mubr.bf16.gmra.mrb[0].mxu0 %v8054
        %v8402 = vpop.f32.mrb[0].mxu0
        %v8403 = vadd.f32 %v8355, %v8402
        %v8404 = vpop.f32.mrb[0].mxu0
        %v8405 = vpop.f32.mrb[0].mxu0
        %v8406 = vpop.f32.mrb[0].mxu0
        %8407 = vdwg.mxu0
        %v8408 = vadd.f32 %v7707, %v8395
        %v8409 = vadd.f32 %v7710, %v8398
        %v8410 = vadd.f32 %v7715, %v8403
        %v8411 = vld [vmem:[%s646 + $0x30] sm:$0xff]
        %v8412 = vld [vmem:[%s646 + $0x38] sm:$0xff]
        %v8413 = vld [vmem:[%s646 + $0x70] sm:$0xff]
        %v8414 = vld [vmem:[%s646 + $0x78] sm:$0xff]
        %v8415 = vld [vmem:[%s646 + $0xb0] sm:$0xff]
        %v8416 = vld [vmem:[%s646 + $0xb8] sm:$0xff]
        %v8417 = vld [vmem:[%s646 + $0xf0] sm:$0xff]
        %v8418 = vld [vmem:[%s646 + $0xf8] sm:$0xff]
        %v8419 = vld [vmem:[%s646 + $0x130] sm:$0xff]
        %v8420 = vld [vmem:[%s646 + $0x138] sm:$0xff]
        %v8421 = vld [vmem:[%s646 + $0x170] sm:$0xff]
        %v8422 = vld [vmem:[%s646 + $0x178] sm:$0xff]
        %v8423 = vld [vmem:[%s646 + $0x1b0] sm:$0xff]
        %v8424 = vld [vmem:[%s646 + $0x1b8] sm:$0xff]
        %v8425 = vld [vmem:[%s646 + $0x1f0] sm:$0xff]
        %v8426 = vld [vmem:[%s646 + $0x1f8] sm:$0xff]
        %v8427 = vld [vmem:[%s646 + $0x230] sm:$0xff]
        %v8428 = vld [vmem:[%s646 + $0x238] sm:$0xff]
        %v8429 = vld [vmem:[%s646 + $0x270] sm:$0xff]
        %v8430 = vld [vmem:[%s646 + $0x278] sm:$0xff]
        %v8431 = vld [vmem:[%s646 + $0x2b0] sm:$0xff]
        %v8432 = vld [vmem:[%s646 + $0x2b8] sm:$0xff]
        %v8433 = vld [vmem:[%s646 + $0x2f0] sm:$0xff]
        %v8434 = vld [vmem:[%s646 + $0x2f8] sm:$0xff]
        %v8435 = vld [vmem:[%s646 + $0x330] sm:$0xff]
        %v8436 = vld [vmem:[%s646 + $0x338] sm:$0xff]
        %v8437 = vld [vmem:[%s646 + $0x370] sm:$0xff]
        %v8438 = vld [vmem:[%s646 + $0x378] sm:$0xff]
        %v8439 = vld [vmem:[%s646 + $0x3b0] sm:$0xff]
        %v8440 = vld [vmem:[%s646 + $0x3b8] sm:$0xff]
        %v8441 = vld [vmem:[%s646 + $0x3f0] sm:$0xff]
        %v8442 = vld [vmem:[%s646 + $0x3f8] sm:$0xff]
        %v8443 = vld [vmem:[%s770 + $0xc] sm:$0xf]
        %v8445 = vlaneseq
        %v8446 = vshrl.u32 %v8445, 7
        %v8447 = vsub.s32 0, %v8446
        %v8448 = vrot.slane %v8443, %v8447
        %v8449 = vlaneseq
        %v8450 = vshrl.u32 %v8449, 7
        %v8451 = vsub.s32 1, %v8450
        %v8452 = vrot.slane %v8443, %v8451
        %v8453 = vlaneseq
        %v8454 = vshrl.u32 %v8453, 7
        %v8455 = vsub.s32 2, %v8454
        %v8456 = vrot.slane %v8443, %v8455
        %v8457 = vlaneseq
        %v8458 = vshrl.u32 %v8457, 7
        %v8459 = vsub.s32 3, %v8458
        %v8460 = vrot.slane %v8443, %v8459
        %v8497 = vunpack.c.l.b16 %v8411
        %v8498 = vunpack.c.h.b16 %v8411
        %v8499 = vunpack.c.l.b16 %v8412
        %v8500 = vunpack.c.h.b16 %v8412
        %v8501 = vunpack.c.l.b16 %v8413
        %v8502 = vunpack.c.h.b16 %v8413
        %v8503 = vunpack.c.l.b16 %v8414
        %v8504 = vunpack.c.h.b16 %v8414
        %v8505 = vunpack.c.l.b16 %v8415
        %v8506 = vunpack.c.h.b16 %v8415
        %v8507 = vunpack.c.l.b16 %v8416
        %v8508 = vunpack.c.h.b16 %v8416
        %v8509 = vunpack.c.l.b16 %v8417
        %v8510 = vunpack.c.h.b16 %v8417
        %v8511 = vunpack.c.l.b16 %v8418
        %v8512 = vunpack.c.h.b16 %v8418
        %v8513 = vunpack.c.l.b16 %v8419
        %v8514 = vunpack.c.h.b16 %v8419
        %v8515 = vunpack.c.l.b16 %v8420
        %v8516 = vunpack.c.h.b16 %v8420
        %v8517 = vunpack.c.l.b16 %v8421
        %v8518 = vunpack.c.h.b16 %v8421
        %v8519 = vunpack.c.l.b16 %v8422
        %v8520 = vunpack.c.h.b16 %v8422
        %v8521 = vunpack.c.l.b16 %v8423
        %v8522 = vunpack.c.h.b16 %v8423
        %v8523 = vunpack.c.l.b16 %v8424
        %v8524 = vunpack.c.h.b16 %v8424
        %v8525 = vunpack.c.l.b16 %v8425
        %v8526 = vunpack.c.h.b16 %v8425
        %v8527 = vunpack.c.l.b16 %v8426
        %v8528 = vunpack.c.h.b16 %v8426
        %v8529 = vunpack.c.l.b16 %v8427
        %v8530 = vunpack.c.h.b16 %v8427
        %v8531 = vunpack.c.l.b16 %v8428
        %v8532 = vunpack.c.h.b16 %v8428
        %v8533 = vunpack.c.l.b16 %v8429
        %v8534 = vunpack.c.h.b16 %v8429
        %v8535 = vunpack.c.l.b16 %v8430
        %v8536 = vunpack.c.h.b16 %v8430
        %v8537 = vunpack.c.l.b16 %v8431
        %v8538 = vunpack.c.h.b16 %v8431
        %v8539 = vunpack.c.l.b16 %v8432
        %v8540 = vunpack.c.h.b16 %v8432
        %v8541 = vunpack.c.l.b16 %v8433
        %v8542 = vunpack.c.h.b16 %v8433
        %v8543 = vunpack.c.l.b16 %v8434
        %v8544 = vunpack.c.h.b16 %v8434
        %v8545 = vunpack.c.l.b16 %v8435
        %v8546 = vunpack.c.h.b16 %v8435
        %v8547 = vunpack.c.l.b16 %v8436
        %v8548 = vunpack.c.h.b16 %v8436
        %v8549 = vunpack.c.l.b16 %v8437
        %v8550 = vunpack.c.h.b16 %v8437
        %v8551 = vunpack.c.l.b16 %v8438
        %v8552 = vunpack.c.h.b16 %v8438
        %v8553 = vunpack.c.l.b16 %v8439
        %v8554 = vunpack.c.h.b16 %v8439
        %v8555 = vunpack.c.l.b16 %v8440
        %v8556 = vunpack.c.h.b16 %v8440
        %v8557 = vunpack.c.l.b16 %v8441
        %v8558 = vunpack.c.h.b16 %v8441
        %v8559 = vunpack.c.l.b16 %v8442
        %v8560 = vunpack.c.h.b16 %v8442
        %v8561 = vpack.c.b16 %v8501, %v8497
        %v8562 = vpack.c.b16 %v8502, %v8498
        %v8563 = vpack.c.b16 %v8503, %v8499
        %v8564 = vpack.c.b16 %v8504, %v8500
        %v8565 = vpack.c.b16 %v8509, %v8505
        %v8566 = vpack.c.b16 %v8510, %v8506
        %v8567 = vpack.c.b16 %v8511, %v8507
        %v8568 = vpack.c.b16 %v8512, %v8508
        %v8569 = vpack.c.b16 %v8517, %v8513
        %v8570 = vpack.c.b16 %v8518, %v8514
        %v8571 = vpack.c.b16 %v8519, %v8515
        %v8572 = vpack.c.b16 %v8520, %v8516
        %v8573 = vpack.c.b16 %v8525, %v8521
        %v8574 = vpack.c.b16 %v8526, %v8522
        %v8575 = vpack.c.b16 %v8527, %v8523
        %v8576 = vpack.c.b16 %v8528, %v8524
        %v8577 = vpack.c.b16 %v8533, %v8529
        %v8578 = vpack.c.b16 %v8534, %v8530
        %v8579 = vpack.c.b16 %v8535, %v8531
        %v8580 = vpack.c.b16 %v8536, %v8532
        %v8581 = vpack.c.b16 %v8541, %v8537
        %v8582 = vpack.c.b16 %v8542, %v8538
        %v8583 = vpack.c.b16 %v8543, %v8539
        %v8584 = vpack.c.b16 %v8544, %v8540
        %v8585 = vpack.c.b16 %v8549, %v8545
        %v8586 = vpack.c.b16 %v8550, %v8546
        %v8587 = vpack.c.b16 %v8551, %v8547
        %v8588 = vpack.c.b16 %v8552, %v8548
        %v8589 = vpack.c.b16 %v8557, %v8553
        %v8590 = vpack.c.b16 %v8558, %v8554
        %v8591 = vpack.c.b16 %v8559, %v8555
        %v8592 = vpack.c.b16 %v8560, %v8556
        %8625 = vmatprep.subr.bf16.mxu0 %v8562
        %8626 = vmatpush1.bf16.msra.mxu0 %v8561
        %8627 = vmatprep.subr.bf16.mxu0 %v8566
        %8628 = vmatpush1.bf16.msra.mxu0 %v8565
        %8629 = vmatprep.subr.bf16.mxu0 %v8570
        %8630 = vmatpush1.bf16.msra.mxu0 %v8569
        %8631 = vmatprep.subr.bf16.mxu0 %v8574
        %8632 = vmatpush1.bf16.msra.mxu0 %v8573
        %8633 = vmatprep.subr.bf16.mxu0 %v8578
        %8634 = vmatpush1.bf16.msra.mxu0 %v8577
        %8635 = vmatprep.subr.bf16.mxu0 %v8582
        %8636 = vmatpush1.bf16.msra.mxu0 %v8581
        %8637 = vmatprep.subr.bf16.mxu0 %v8586
        %8638 = vmatpush1.bf16.msra.mxu0 %v8585
        %8639 = vmatprep.subr.bf16.mxu0 %v8590
        %8640 = vmatpush1.bf16.msra.mxu0 %v8589
        %8641 = vmatprep.subr.bf16.mxu0 0
        %8642 = vmatpush1.bf16.msra.mxu0 0
        %8643 = vmatprep.subr.bf16.mxu0 0
        %8644 = vmatpush1.bf16.msra.mxu0 0
        %8645 = vmatprep.subr.bf16.mxu0 0
        %8646 = vmatpush1.bf16.msra.mxu0 0
        %8647 = vmatprep.subr.bf16.mxu0 0
        %8648 = vmatpush1.bf16.msra.mxu0 0
        %8649 = vmatprep.subr.bf16.mxu0 0
        %8650 = vmatpush1.bf16.msra.mxu0 0
        %8651 = vmatprep.subr.bf16.mxu0 0
        %8652 = vmatpush1.bf16.msra.mxu0 0
        %8653 = vmatprep.subr.bf16.mxu0 0
        %8654 = vmatpush1.bf16.msra.mxu0 0
        %8655 = vmatprep.subr.bf16.mxu0 0
        %8656 = vmatpush1.bf16.msra.mxu0 0
        %8657 = vmatprep.mubr.bf16.mxu0 0
        %8658 = vmatmul.mubr.bf16.gmra.mrb[0].mxu0 %v6342
        %v8659 = vpop.f32.mrb[0].mxu0
        %v8660 = vadd.f32 %v8448, %v8659
        %v8661 = vpop.f32.mrb[0].mxu0
        %v8662 = vadd.f32 %v8452, %v8661
        %v8663 = vpop.f32.mrb[0].mxu0
        %v8664 = vadd.f32 %v8448, %v8663
        %v8665 = vpop.f32.mrb[0].mxu0
        %v8666 = vadd.f32 %v8452, %v8665
        %8667 = vmatprep.mubr.bf16.mxu0 0
        %8668 = vmatmul.mubr.bf16.gmra.mrb[0].mxu0 %v6343
        %v8669 = vpop.f32.mrb[0].mxu0
        %v8670 = vadd.f32 %v8448, %v8669
        %v8671 = vpop.f32.mrb[0].mxu0
        %v8672 = vadd.f32 %v8452, %v8671
        %v8673 = vpop.f32.mrb[0].mxu0
        %v8674 = vpop.f32.mrb[0].mxu0
        %8675 = vdwg.mxu0
        %8676 = vmatprep.subr.bf16.mxu0 %v8564
        %8677 = vmatpush1.bf16.msra.mxu0 %v8563
        %8678 = vmatprep.subr.bf16.mxu0 %v8568
        %8679 = vmatpush1.bf16.msra.mxu0 %v8567
        %8680 = vmatprep.subr.bf16.mxu0 %v8572
        %8681 = vmatpush1.bf16.msra.mxu0 %v8571
        %8682 = vmatprep.subr.bf16.mxu0 %v8576
        %8683 = vmatpush1.bf16.msra.mxu0 %v8575
        %8684 = vmatprep.subr.bf16.mxu0 %v8580
        %8685 = vmatpush1.bf16.msra.mxu0 %v8579
        %8686 = vmatprep.subr.bf16.mxu0 %v8584
        %8687 = vmatpush1.bf16.msra.mxu0 %v8583
        %8688 = vmatprep.subr.bf16.mxu0 %v8588
        %8689 = vmatpush1.bf16.msra.mxu0 %v8587
        %8690 = vmatprep.subr.bf16.mxu0 %v8592
        %8691 = vmatpush1.bf16.msra.mxu0 %v8591
        %8692 = vmatprep.subr.bf16.mxu0 0
        %8693 = vmatpush1.bf16.msra.mxu0 0
        %8694 = vmatprep.subr.bf16.mxu0 0
        %8695 = vmatpush1.bf16.msra.mxu0 0
        %8696 = vmatprep.subr.bf16.mxu0 0
        %8697 = vmatpush1.bf16.msra.mxu0 0
        %8698 = vmatprep.subr.bf16.mxu0 0
        %8699 = vmatpush1.bf16.msra.mxu0 0
        %8700 = vmatprep.subr.bf16.mxu0 0
        %8701 = vmatpush1.bf16.msra.mxu0 0
        %8702 = vmatprep.subr.bf16.mxu0 0
        %8703 = vmatpush1.bf16.msra.mxu0 0
        %8704 = vmatprep.subr.bf16.mxu0 0
        %8705 = vmatpush1.bf16.msra.mxu0 0
        %8706 = vmatprep.subr.bf16.mxu0 0
        %8707 = vmatpush1.bf16.msra.mxu0 0
        %8708 = vmatprep.mubr.bf16.mxu0 0
        %8709 = vmatmul.mubr.bf16.gmra.mrb[0].mxu0 %v6342
        %v8710 = vpop.f32.mrb[0].mxu0
        %v8711 = vadd.f32 %v8456, %v8710
        %v8712 = vpop.f32.mrb[0].mxu0
        %v8713 = vadd.f32 %v8460, %v8712
        %v8714 = vpop.f32.mrb[0].mxu0
        %v8715 = vadd.f32 %v8456, %v8714
        %v8716 = vpop.f32.mrb[0].mxu0
        %v8717 = vadd.f32 %v8460, %v8716
        %8718 = vmatprep.mubr.bf16.mxu0 0
        %8719 = vmatmul.mubr.bf16.gmra.mrb[0].mxu0 %v6343
        %v8720 = vpop.f32.mrb[0].mxu0
        %v8721 = vadd.f32 %v8456, %v8720
        %v8722 = vpop.f32.mrb[0].mxu0
        %v8723 = vadd.f32 %v8460, %v8722
        %v8724 = vpop.f32.mrb[0].mxu0
        %v8725 = vpop.f32.mrb[0].mxu0
        %8726 = vdwg.mxu0
        %v8727 = vmax.f32 %v8660, 0.0
        %v8728 = vmax.f32 %v8662, 0.0
        %v8729 = vmax.f32 %v8711, 0.0
        %v8730 = vmax.f32 %v8713, 0.0
        %v8731 = vmax.f32 %v8664, 0.0
        %v8732 = vmax.f32 %v8666, 0.0
        %v8733 = vmax.f32 %v8715, 0.0
        %v8734 = vmax.f32 %v8717, 0.0
        %v8735 = vmax.f32 %v8670, 0.0
        %v8736 = vmax.f32 %v8672, 0.0
        %v8737 = vmax.f32 %v8721, 0.0
        %v8738 = vmax.f32 %v8723, 0.0
        %v8739 = vpack.c.bf16 %v8731, %v8727
        %v8740 = vpack.c.bf16 %v8732, %v8728
        %v8741 = vpack.c.bf16 %v8733, %v8729
        %v8742 = vpack.c.bf16 %v8734, %v8730
        %v8743 = vpack.c.bf16 %v8735, %v8735
        %v8744 = vpack.c.bf16 %v8736, %v8736
        %v8745 = vpack.c.bf16 %v8737, %v8737
        %v8746 = vpack.c.bf16 %v8738, %v8738
        %v8747 = vld [vmem:[%s655 + $0x300] sm:$0xf]
        %v8748 = vld [vmem:[%s655 + $0x304] sm:$0xf]
        %v8749 = vld [vmem:[%s655 + $0x308] sm:$0xf]
        %v8750 = vld [vmem:[%s655 + $0x30c] sm:$0xf]
        %v8751 = vld [vmem:[%s655 + $0x310] sm:$0xf]
        %v8752 = vld [vmem:[%s655 + $0x314] sm:$0xf]
        %v8753 = vld [vmem:[%s655 + $0x318] sm:$0xf]
        %v8754 = vld [vmem:[%s655 + $0x31c] sm:$0xf]
        %v8755 = vld [vmem:[%s655 + $0x320] sm:$0xf]
        %v8756 = vld [vmem:[%s655 + $0x324] sm:$0xf]
        %v8757 = vld [vmem:[%s655 + $0x328] sm:$0xf]
        %v8758 = vld [vmem:[%s655 + $0x32c] sm:$0xf]
        %v8759 = vld [vmem:[%s655 + $0x330] sm:$0xf]
        %v8760 = vld [vmem:[%s655 + $0x334] sm:$0xf]
        %v8761 = vld [vmem:[%s655 + $0x338] sm:$0xf]
        %v8762 = vld [vmem:[%s655 + $0x33c] sm:$0xf]
        %v8763 = vld [vmem:[%s655 + $0x340] sm:$0xf]
        %v8764 = vld [vmem:[%s655 + $0x344] sm:$0xf]
        %v8765 = vld [vmem:[%s655 + $0x348] sm:$0xf]
        %v8766 = vld [vmem:[%s655 + $0x34c] sm:$0xf]
        %v8767 = vld [vmem:[%s655 + $0x350] sm:$0xf]
        %v8768 = vld [vmem:[%s655 + $0x354] sm:$0xf]
        %v8769 = vld [vmem:[%s655 + $0x358] sm:$0xf]
        %v8770 = vld [vmem:[%s655 + $0x35c] sm:$0xf]
        %v8771 = vld [vmem:[%s655 + $0x360] sm:$0xf]
        %v8772 = vld [vmem:[%s655 + $0x364] sm:$0xf]
        %v8773 = vld [vmem:[%s655 + $0x368] sm:$0xf]
        %v8774 = vld [vmem:[%s655 + $0x36c] sm:$0xf]
        %v8775 = vld [vmem:[%s655 + $0x370] sm:$0xf]
        %v8776 = vld [vmem:[%s655 + $0x374] sm:$0xf]
        %v8777 = vld [vmem:[%s655 + $0x378] sm:$0xf]
        %v8778 = vld [vmem:[%s655 + $0x37c] sm:$0xf]
        %v8779 = vld [vmem:[%s655 + $0x380] sm:$0xf]
        %v8780 = vld [vmem:[%s655 + $0x384] sm:$0xf]
        %v8781 = vld [vmem:[%s655 + $0x388] sm:$0xf]
        %v8782 = vld [vmem:[%s655 + $0x38c] sm:$0xf]
        %v8783 = vld [vmem:[%s655 + $0x390] sm:$0xf]
        %v8784 = vld [vmem:[%s655 + $0x394] sm:$0xf]
        %v8785 = vld [vmem:[%s655 + $0x398] sm:$0xf]
        %v8786 = vld [vmem:[%s655 + $0x39c] sm:$0xf]
        %v8787 = vld [vmem:[%s655 + $0x3a0] sm:$0xf]
        %v8788 = vld [vmem:[%s655 + $0x3a4] sm:$0xf]
        %v8789 = vld [vmem:[%s655 + $0x3a8] sm:$0xf]
        %v8790 = vld [vmem:[%s655 + $0x3ac] sm:$0xf]
        %v8791 = vld [vmem:[%s655 + $0x3b0] sm:$0xf]
        %v8792 = vld [vmem:[%s655 + $0x3b4] sm:$0xf]
        %v8793 = vld [vmem:[%s655 + $0x3b8] sm:$0xf]
        %v8794 = vld [vmem:[%s655 + $0x3bc] sm:$0xf]
        %v8795 = vld [vmem:[%s655 + $0x3c0] sm:$0xf]
        %v8796 = vld [vmem:[%s655 + $0x3c4] sm:$0xf]
        %v8797 = vld [vmem:[%s655 + $0x3c8] sm:$0xf]
        %v8798 = vld [vmem:[%s655 + $0x3cc] sm:$0xf]
        %v8799 = vld [vmem:[%s655 + $0x3d0] sm:$0xf]
        %v8800 = vld [vmem:[%s655 + $0x3d4] sm:$0xf]
        %v8801 = vld [vmem:[%s655 + $0x3d8] sm:$0xf]
        %v8802 = vld [vmem:[%s655 + $0x3dc] sm:$0xf]
        %v8803 = vld [vmem:[%s655 + $0x3e0] sm:$0xf]
        %v8804 = vld [vmem:[%s655 + $0x3e4] sm:$0xf]
        %v8805 = vld [vmem:[%s655 + $0x3e8] sm:$0xf]
        %v8806 = vld [vmem:[%s655 + $0x3ec] sm:$0xf]
        %v8807 = vld [vmem:[%s655 + $0x3f0] sm:$0xf]
        %v8808 = vld [vmem:[%s655 + $0x3f4] sm:$0xf]
        %v8809 = vld [vmem:[%s655 + $0x3f8] sm:$0xf]
        %v8810 = vld [vmem:[%s655 + $0x3fc] sm:$0xf]
        %v8875 = vunpack.c.l.b16 %v8747
        %v8876 = vunpack.c.l.b16 %v8748
        %v8877 = vunpack.c.l.b16 %v8749
        %v8878 = vunpack.c.l.b16 %v8750
        %v8879 = vunpack.c.l.b16 %v8751
        %v8880 = vunpack.c.l.b16 %v8752
        %v8881 = vunpack.c.l.b16 %v8753
        %v8882 = vunpack.c.l.b16 %v8754
        %v8883 = vunpack.c.l.b16 %v8755
        %v8884 = vunpack.c.l.b16 %v8756
        %v8885 = vunpack.c.l.b16 %v8757
        %v8886 = vunpack.c.l.b16 %v8758
        %v8887 = vunpack.c.l.b16 %v8759
        %v8888 = vunpack.c.l.b16 %v8760
        %v8889 = vunpack.c.l.b16 %v8761
        %v8890 = vunpack.c.l.b16 %v8762
        %v8891 = vunpack.c.l.b16 %v8763
        %v8892 = vunpack.c.l.b16 %v8764
        %v8893 = vunpack.c.l.b16 %v8765
        %v8894 = vunpack.c.l.b16 %v8766
        %v8895 = vunpack.c.l.b16 %v8767
        %v8896 = vunpack.c.l.b16 %v8768
        %v8897 = vunpack.c.l.b16 %v8769
        %v8898 = vunpack.c.l.b16 %v8770
        %v8899 = vunpack.c.l.b16 %v8771
        %v8900 = vunpack.c.l.b16 %v8772
        %v8901 = vunpack.c.l.b16 %v8773
        %v8902 = vunpack.c.l.b16 %v8774
        %v8903 = vunpack.c.l.b16 %v8775
        %v8904 = vunpack.c.l.b16 %v8776
        %v8905 = vunpack.c.l.b16 %v8777
        %v8906 = vunpack.c.l.b16 %v8778
        %v8907 = vunpack.c.l.b16 %v8779
        %v8908 = vunpack.c.l.b16 %v8780
        %v8909 = vunpack.c.l.b16 %v8781
        %v8910 = vunpack.c.l.b16 %v8782
        %v8911 = vunpack.c.l.b16 %v8783
        %v8912 = vunpack.c.l.b16 %v8784
        %v8913 = vunpack.c.l.b16 %v8785
        %v8914 = vunpack.c.l.b16 %v8786
        %v8915 = vunpack.c.l.b16 %v8787
        %v8916 = vunpack.c.l.b16 %v8788
        %v8917 = vunpack.c.l.b16 %v8789
        %v8918 = vunpack.c.l.b16 %v8790
        %v8919 = vunpack.c.l.b16 %v8791
        %v8920 = vunpack.c.l.b16 %v8792
        %v8921 = vunpack.c.l.b16 %v8793
        %v8922 = vunpack.c.l.b16 %v8794
        %v8923 = vunpack.c.l.b16 %v8795
        %v8924 = vunpack.c.l.b16 %v8796
        %v8925 = vunpack.c.l.b16 %v8797
        %v8926 = vunpack.c.l.b16 %v8798
        %v8927 = vunpack.c.l.b16 %v8799
        %v8928 = vunpack.c.l.b16 %v8800
        %v8929 = vunpack.c.l.b16 %v8801
        %v8930 = vunpack.c.l.b16 %v8802
        %v8931 = vunpack.c.l.b16 %v8803
        %v8932 = vunpack.c.l.b16 %v8804
        %v8933 = vunpack.c.l.b16 %v8805
        %v8934 = vunpack.c.l.b16 %v8806
        %v8935 = vunpack.c.l.b16 %v8807
        %v8936 = vunpack.c.l.b16 %v8808
        %v8937 = vunpack.c.l.b16 %v8809
        %v8938 = vunpack.c.l.b16 %v8810
        %v8939 = vpack.c.b16 %v8876, %v8875
        %v8940 = vpack.c.b16 %v8878, %v8877
        %v8941 = vpack.c.b16 %v8880, %v8879
        %v8942 = vpack.c.b16 %v8882, %v8881
        %v8943 = vpack.c.b16 %v8884, %v8883
        %v8944 = vpack.c.b16 %v8886, %v8885
        %v8945 = vpack.c.b16 %v8888, %v8887
        %v8946 = vpack.c.b16 %v8890, %v8889
        %v8947 = vpack.c.b16 %v8892, %v8891
        %v8948 = vpack.c.b16 %v8894, %v8893
        %v8949 = vpack.c.b16 %v8896, %v8895
        %v8950 = vpack.c.b16 %v8898, %v8897
        %v8951 = vpack.c.b16 %v8900, %v8899
        %v8952 = vpack.c.b16 %v8902, %v8901
        %v8953 = vpack.c.b16 %v8904, %v8903
        %v8954 = vpack.c.b16 %v8906, %v8905
        %v8955 = vpack.c.b16 %v8908, %v8907
        %v8956 = vpack.c.b16 %v8910, %v8909
        %v8957 = vpack.c.b16 %v8912, %v8911
        %v8958 = vpack.c.b16 %v8914, %v8913
        %v8959 = vpack.c.b16 %v8916, %v8915
        %v8960 = vpack.c.b16 %v8918, %v8917
        %v8961 = vpack.c.b16 %v8920, %v8919
        %v8962 = vpack.c.b16 %v8922, %v8921
        %v8963 = vpack.c.b16 %v8924, %v8923
        %v8964 = vpack.c.b16 %v8926, %v8925
        %v8965 = vpack.c.b16 %v8928, %v8927
        %v8966 = vpack.c.b16 %v8930, %v8929
        %v8967 = vpack.c.b16 %v8932, %v8931
        %v8968 = vpack.c.b16 %v8934, %v8933
        %v8969 = vpack.c.b16 %v8936, %v8935
        %v8970 = vpack.c.b16 %v8938, %v8937
        %9003 = vmatprep.subr.bf16.mxu0 0
        %9004 = vmatpush1.bf16.msra.mxu0 %v8939
        %9005 = vmatprep.subr.bf16.mxu0 0
        %9006 = vmatpush1.bf16.msra.mxu0 %v8940
        %9007 = vmatprep.subr.bf16.mxu0 0
        %9008 = vmatpush1.bf16.msra.mxu0 %v8941
        %9009 = vmatprep.subr.bf16.mxu0 0
        %9010 = vmatpush1.bf16.msra.mxu0 %v8942
        %9011 = vmatprep.subr.bf16.mxu0 0
        %9012 = vmatpush1.bf16.msra.mxu0 %v8943
        %9013 = vmatprep.subr.bf16.mxu0 0
        %9014 = vmatpush1.bf16.msra.mxu0 %v8944
        %9015 = vmatprep.subr.bf16.mxu0 0
        %9016 = vmatpush1.bf16.msra.mxu0 %v8945
        %9017 = vmatprep.subr.bf16.mxu0 0
        %9018 = vmatpush1.bf16.msra.mxu0 %v8946
        %9019 = vmatprep.subr.bf16.mxu0 0
        %9020 = vmatpush1.bf16.msra.mxu0 %v8947
        %9021 = vmatprep.subr.bf16.mxu0 0
        %9022 = vmatpush1.bf16.msra.mxu0 %v8948
        %9023 = vmatprep.subr.bf16.mxu0 0
        %9024 = vmatpush1.bf16.msra.mxu0 %v8949
        %9025 = vmatprep.subr.bf16.mxu0 0
        %9026 = vmatpush1.bf16.msra.mxu0 %v8950
        %9027 = vmatprep.subr.bf16.mxu0 0
        %9028 = vmatpush1.bf16.msra.mxu0 %v8951
        %9029 = vmatprep.subr.bf16.mxu0 0
        %9030 = vmatpush1.bf16.msra.mxu0 %v8952
        %9031 = vmatprep.subr.bf16.mxu0 0
        %9032 = vmatpush1.bf16.msra.mxu0 %v8953
        %9033 = vmatprep.subr.bf16.mxu0 0
        %9034 = vmatpush1.bf16.msra.mxu0 %v8954
        %9035 = vmatprep.mubr.bf16.mxu0 %v8740
        %9036 = vmatmul.mubr.bf16.gmra.mrb[0].mxu0 %v8739
        %v9037 = vpop.f32.mrb[0].mxu0
        %v9038 = vadd.f32 0.0, %v9037
        %v9039 = vpop.f32.mrb[0].mxu0
        %v9040 = vpop.f32.mrb[0].mxu0
        %v9041 = vadd.f32 0.0, %v9040
        %v9042 = vpop.f32.mrb[0].mxu0
        %9043 = vmatprep.mubr.bf16.mxu0 %v8744
        %9044 = vmatmul.mubr.bf16.gmra.mrb[0].mxu0 %v8743
        %v9045 = vpop.f32.mrb[0].mxu0
        %v9046 = vadd.f32 0.0, %v9045
        %v9047 = vpop.f32.mrb[0].mxu0
        %v9048 = vpop.f32.mrb[0].mxu0
        %v9049 = vpop.f32.mrb[0].mxu0
        %9050 = vdwg.mxu0
        %9051 = vmatprep.subr.bf16.mxu0 0
        %9052 = vmatpush1.bf16.msra.mxu0 %v8955
        %9053 = vmatprep.subr.bf16.mxu0 0
        %9054 = vmatpush1.bf16.msra.mxu0 %v8956
        %9055 = vmatprep.subr.bf16.mxu0 0
        %9056 = vmatpush1.bf16.msra.mxu0 %v8957
        %9057 = vmatprep.subr.bf16.mxu0 0
        %9058 = vmatpush1.bf16.msra.mxu0 %v8958
        %9059 = vmatprep.subr.bf16.mxu0 0
        %9060 = vmatpush1.bf16.msra.mxu0 %v8959
        %9061 = vmatprep.subr.bf16.mxu0 0
        %9062 = vmatpush1.bf16.msra.mxu0 %v8960
        %9063 = vmatprep.subr.bf16.mxu0 0
        %9064 = vmatpush1.bf16.msra.mxu0 %v8961
        %9065 = vmatprep.subr.bf16.mxu0 0
        %9066 = vmatpush1.bf16.msra.mxu0 %v8962
        %9067 = vmatprep.subr.bf16.mxu0 0
        %9068 = vmatpush1.bf16.msra.mxu0 %v8963
        %9069 = vmatprep.subr.bf16.mxu0 0
        %9070 = vmatpush1.bf16.msra.mxu0 %v8964
        %9071 = vmatprep.subr.bf16.mxu0 0
        %9072 = vmatpush1.bf16.msra.mxu0 %v8965
        %9073 = vmatprep.subr.bf16.mxu0 0
        %9074 = vmatpush1.bf16.msra.mxu0 %v8966
        %9075 = vmatprep.subr.bf16.mxu0 0
        %9076 = vmatpush1.bf16.msra.mxu0 %v8967
        %9077 = vmatprep.subr.bf16.mxu0 0
        %9078 = vmatpush1.bf16.msra.mxu0 %v8968
        %9079 = vmatprep.subr.bf16.mxu0 0
        %9080 = vmatpush1.bf16.msra.mxu0 %v8969
        %9081 = vmatprep.subr.bf16.mxu0 0
        %9082 = vmatpush1.bf16.msra.mxu0 %v8970
        %9083 = vmatprep.mubr.bf16.mxu0 %v8742
        %9084 = vmatmul.mubr.bf16.gmra.mrb[0].mxu0 %v8741
        %v9085 = vpop.f32.mrb[0].mxu0
        %v9086 = vadd.f32 %v9038, %v9085
        %v9087 = vpop.f32.mrb[0].mxu0
        %v9088 = vpop.f32.mrb[0].mxu0
        %v9089 = vadd.f32 %v9041, %v9088
        %v9090 = vpop.f32.mrb[0].mxu0
        %9091 = vmatprep.mubr.bf16.mxu0 %v8746
        %9092 = vmatmul.mubr.bf16.gmra.mrb[0].mxu0 %v8745
        %v9093 = vpop.f32.mrb[0].mxu0
        %v9094 = vadd.f32 %v9046, %v9093
        %v9095 = vpop.f32.mrb[0].mxu0
        %v9096 = vpop.f32.mrb[0].mxu0
        %v9097 = vpop.f32.mrb[0].mxu0
        %9098 = vdwg.mxu0
        %v9099 = vadd.f32 %v8408, %v9086
        %v9100 = vadd.f32 %v8409, %v9089
        %v9101 = vadd.f32 %v8410, %v9094
        %v9102 = vld [vmem:[%s773] sm:$0x1]
        %v9104 = vlaneseq
        %v9105 = vshrl.u32 %v9104, 7
        %v9106 = vsub.s32 0, %v9105
        %v9107 = vrot.slane %v9102, %v9106
        %v9109 = vadd.f32 %v9099, %v9107
        %v9110 = vadd.f32 %v9100, %v9107
        %v9111 = vadd.f32 %v9101, %v9107
        %v9112 = vadd.f32 %v6339, %v9109
        %v9113 = vadd.f32 %v6340, %v9110
        %v9114 = vadd.f32 %v6341, %v9111
        %v9115 = vld [vmem:[%s776] sm:$0x1]
        %v9116 = vld [vmem:[%s779] sm:$0x1]
        %9117 = vadd.xlane.f32.xlu0 %v9112
        %v9118 = vpop.xlane.xlu0 %9117
        %9119 = vadd.xlane.f32.xlu0 %v9113
        %v9120 = vpop.xlane.xlu0 %9119
        %v9121 = vsel %vm6291, %v9114, 0.0
        %9122 = vadd.xlane.f32.xlu0 %v9121
        %v9123 = vpop.xlane.xlu0 %9122
        %v9124 = vmul.f32 %v9118, %v6295
        %v9125 = vmul.f32 %v9120, %v6295
        %v9126 = vmul.f32 %v9123, %v6295
        %v9127 = vsub.f32 %v9112, %v9124
        %v9128 = vsub.f32 %v9113, %v9125
        %v9129 = vsub.f32 %v9114, %v9126
        %v9130 = vmul.f32 %v9127, %v9127
        %v9131 = vmul.f32 %v9128, %v9128
        %v9132 = vmul.f32 %v9129, %v9129
        %9133 = vadd.xlane.f32.xlu0 %v9130
        %v9134 = vpop.xlane.xlu0 %9133
        %9135 = vadd.xlane.f32.xlu0 %v9131
        %v9136 = vpop.xlane.xlu0 %9135
        %v9137 = vsel %vm6291, %v9132, 0.0
        %9138 = vadd.xlane.f32.xlu0 %v9137
        %v9139 = vpop.xlane.xlu0 %9138
        %v9140 = vmul.f32 %v9134, %v6295
        %v9141 = vmul.f32 %v9136, %v6295
        %v9142 = vmul.f32 %v9139, %v6295
        %v9143 = vadd.f32 %v9140, 1e-05
        %v9144 = vadd.f32 %v9141, 1e-05
        %v9145 = vadd.f32 %v9142, 1e-05
        %v9146 = vrsqrt.pop %v9143
        %v9147 = vrsqrt.pop %v9144
        %v9148 = vrsqrt.pop %v9145
        %v9149 = vmul.f32 %v9127, %v9146
        %v9150 = vmul.f32 %v9128, %v9147
        %v9151 = vmul.f32 %v9129, %v9148
        %v9153 = vlaneseq
        %v9154 = vshrl.u32 %v9153, 7
        %v9155 = vsub.s32 0, %v9154
        %v9156 = vrot.slane %v9115, %v9155
        %v9158 = vmul.f32 %v9149, %v9156
        %v9159 = vmul.f32 %v9150, %v9156
        %v9160 = vmul.f32 %v9151, %v9156
        %v9162 = vlaneseq
        %v9163 = vshrl.u32 %v9162, 7
        %v9164 = vsub.s32 0, %v9163
        %v9165 = vrot.slane %v9116, %v9164
        %v9167 = vadd.f32 %v9158, %v9165
        %v9168 = vadd.f32 %v9159, %v9165
        %v9169 = vadd.f32 %v9160, %v9165
        %9170 = vst [vmem:[#allocation2] sm:$0xff] %v9167
        %9171 = vst [vmem:[#allocation2 + $0x8] sm:$0xff] %v9168
        %9172 = vst [vmem:[#allocation2 + $0x10] sm:$0xf] %v9169
        %p9173 = scmp.eq.s32.totalorder %s36, 1
        // Predicated region
        $region105: #{tpu_custom_call.1} parent=91 // pred_check
          %p9174 = pneg %p9173
        $region106: #{tpu_custom_call.1} parent=91 // pred_check_branch
          %9176 = sbr.rel (%p9174) target = $region108
        $region107: #{tpu_custom_call.1} parent=91 // pred_region
          %v9177 = vld [vmem:[#allocation2] sm:$0xff]
          %v9178 = vld [vmem:[#allocation2 + $0x8] sm:$0xff]
          %v9179 = vld [vmem:[#allocation2 + $0x10] sm:$0xf]
          %vm9180 = vcmask 1040384
          %v9181 = vsel %vm9180, %v9177, 0.0
          %v9182 = vrot.slane %v9178, 1
          %vm9183 = vcmask 1041409
          %v9184 = vsel %vm9183, %v9182, %v9181
          %v9185 = vrot.slane %v9177, 1
          %v9186 = vsel %vm9180, %v9185, 0.0
          %v9187 = vrot.slane %v9178, 2
          %v9188 = vsel %vm9183, %v9187, %v9186
          %v9189 = vrot.slane %v9177, 2
          %v9190 = vsel %vm9180, %v9189, 0.0
          %v9191 = vrot.slane %v9178, 3
          %v9192 = vsel %vm9183, %v9191, %v9190
          %v9193 = vrot.slane %v9177, 3
          %v9194 = vsel %vm9180, %v9193, 0.0
          %v9195 = vrot.slane %v9178, 4
          %v9196 = vsel %vm9183, %v9195, %v9194
          %v9197 = vrot.slane %v9177, 4
          %v9198 = vsel %vm9180, %v9197, 0.0
          %v9199 = vrot.slane %v9178, 5
          %v9200 = vsel %vm9183, %v9199, %v9198
          %v9201 = vrot.slane %v9177, 5
          %v9202 = vsel %vm9180, %v9201, 0.0
          %v9203 = vrot.slane %v9178, 6
          %v9204 = vsel %vm9183, %v9203, %v9202
          %v9205 = vrot.slane %v9177, 6
          %v9206 = vsel %vm9180, %v9205, 0.0
          %v9207 = vrot.slane %v9179, 7
          %v9208 = vsel %vm9183, %v9207, %v9206
          %v9209 = vrot.slane %v9177, 7
          %v9210 = vsel %vm9180, %v9209, 0.0
          %v9211 = vsel %vm9183, %v9179, %v9210
          %v9212 = vsel %vm9180, %v9178, 0.0
          %v9213 = vrot.slane %v9179, 1
          %v9214 = vsel %vm9183, %v9213, %v9212
          %v9215 = vsel %vm9180, %v9182, 0.0
          %v9216 = vrot.slane %v9179, 2
          %v9217 = vsel %vm9183, %v9216, %v9215
          %v9218 = vld [vmem:[%s16] sm:$0xff]
          %v9219 = vld [vmem:[%s16 + $0x8] sm:$0xff]
          %v9220 = vld [vmem:[%s16 + $0x10] sm:$0xff]
          %v9221 = vld [vmem:[%s16 + $0x18] sm:$0xff]
          %v9222 = vld [vmem:[%s16 + $0x20] sm:$0xff]
          %v9223 = vld [vmem:[%s16 + $0x28] sm:$0xff]
          %v9224 = vld [vmem:[%s16 + $0x30] sm:$0xff]
          %v9225 = vld [vmem:[%s16 + $0x38] sm:$0xff]
          %v9226 = vld [vmem:[%s16 + $0x40] sm:$0xff]
          %v9227 = vld [vmem:[%s16 + $0x48] sm:$0xff]
          %v9228 = vld [vmem:[%s16 + $0x50] sm:$0xff]
          %v9229 = vld [vmem:[%s16 + $0x58] sm:$0xff]
          %v9230 = vld [vmem:[%s16 + $0x60] sm:$0xff]
          %v9231 = vld [vmem:[%s16 + $0x68] sm:$0xff]
          %v9232 = vld [vmem:[%s16 + $0x70] sm:$0xff]
          %v9233 = vld [vmem:[%s16 + $0x78] sm:$0xff]
          %v9234 = vld [vmem:[%s16 + $0x80] sm:$0xff]
          %v9235 = vld [vmem:[%s16 + $0x88] sm:$0xff]
          %v9236 = vld [vmem:[%s16 + $0x90] sm:$0xff]
          %v9237 = vld [vmem:[%s16 + $0x98] sm:$0xff]
          %v9238 = vld [vmem:[%s16 + $0xa0] sm:$0xff]
          %v9239 = vld [vmem:[%s16 + $0xa8] sm:$0xff]
          %v9240 = vld [vmem:[%s16 + $0xb0] sm:$0xff]
          %v9241 = vld [vmem:[%s16 + $0xb8] sm:$0xff]
          %v9242 = vld [vmem:[%s16 + $0xc0] sm:$0xff]
          %v9243 = vld [vmem:[%s16 + $0xc8] sm:$0xff]
          %v9244 = vld [vmem:[%s16 + $0xd0] sm:$0xff]
          %v9245 = vld [vmem:[%s16 + $0xd8] sm:$0xff]
          %v9246 = vld [vmem:[%s16 + $0xe0] sm:$0xff]
          %v9247 = vld [vmem:[%s16 + $0xe8] sm:$0xff]
          %v9248 = vld [vmem:[%s16 + $0xf0] sm:$0xff]
          %v9249 = vld [vmem:[%s16 + $0xf8] sm:$0xff]
          %v9250 = vld [vmem:[%s16 + $0x100] sm:$0xff]
          %v9251 = vld [vmem:[%s16 + $0x108] sm:$0xff]
          %v9252 = vld [vmem:[%s16 + $0x110] sm:$0xff]
          %v9253 = vld [vmem:[%s16 + $0x118] sm:$0xff]
          %v9254 = vld [vmem:[%s16 + $0x120] sm:$0xff]
          %v9255 = vld [vmem:[%s16 + $0x128] sm:$0xff]
          %v9256 = vld [vmem:[%s16 + $0x130] sm:$0xff]
          %v9257 = vld [vmem:[%s16 + $0x138] sm:$0xff]
          %v9258 = vld [vmem:[%s16 + $0x140] sm:$0xff]
          %v9259 = vld [vmem:[%s16 + $0x148] sm:$0xff]
          %v9260 = vld [vmem:[%s16 + $0x150] sm:$0xff]
          %v9261 = vld [vmem:[%s16 + $0x158] sm:$0xff]
          %v9262 = vld [vmem:[%s16 + $0x160] sm:$0xff]
          %v9263 = vld [vmem:[%s16 + $0x168] sm:$0xff]
          %v9264 = vld [vmem:[%s16 + $0x170] sm:$0xff]
          %v9265 = vld [vmem:[%s16 + $0x178] sm:$0xff]
          %v9266 = vld [vmem:[%s16 + $0x180] sm:$0xff]
          %v9267 = vld [vmem:[%s16 + $0x188] sm:$0xff]
          %v9268 = vld [vmem:[%s16 + $0x190] sm:$0xff]
          %v9269 = vld [vmem:[%s16 + $0x198] sm:$0xff]
          %v9270 = vld [vmem:[%s16 + $0x1a0] sm:$0xff]
          %v9271 = vld [vmem:[%s16 + $0x1a8] sm:$0xff]
          %v9272 = vld [vmem:[%s16 + $0x1b0] sm:$0xff]
          %v9273 = vld [vmem:[%s16 + $0x1b8] sm:$0xff]
          %v9274 = vld [vmem:[%s16 + $0x1c0] sm:$0xff]
          %v9275 = vld [vmem:[%s16 + $0x1c8] sm:$0xff]
          %v9276 = vld [vmem:[%s16 + $0x1d0] sm:$0xff]
          %v9277 = vld [vmem:[%s16 + $0x1d8] sm:$0xff]
          %v9278 = vld [vmem:[%s16 + $0x1e0] sm:$0xff]
          %v9279 = vld [vmem:[%s16 + $0x1e8] sm:$0xff]
          %v9280 = vld [vmem:[%s16 + $0x1f0] sm:$0xff]
          %v9281 = vld [vmem:[%s16 + $0x1f8] sm:$0xff]
          %v9282 = vld [vmem:[%s16 + $0x200] sm:$0xff]
          %v9283 = vld [vmem:[%s16 + $0x208] sm:$0xff]
          %v9284 = vld [vmem:[%s16 + $0x210] sm:$0xff]
          %v9285 = vld [vmem:[%s16 + $0x218] sm:$0xff]
          %v9286 = vld [vmem:[%s16 + $0x220] sm:$0xff]
          %v9287 = vld [vmem:[%s16 + $0x228] sm:$0xff]
          %v9288 = vld [vmem:[%s16 + $0x230] sm:$0xff]
          %v9289 = vld [vmem:[%s16 + $0x238] sm:$0xff]
          %v9290 = vld [vmem:[%s16 + $0x240] sm:$0xff]
          %v9291 = vld [vmem:[%s16 + $0x248] sm:$0xff]
          %v9292 = vld [vmem:[%s16 + $0x250] sm:$0xff]
          %v9293 = vld [vmem:[%s16 + $0x258] sm:$0xff]
          %v9294 = vld [vmem:[%s16 + $0x260] sm:$0xff]
          %v9295 = vld [vmem:[%s16 + $0x268] sm:$0xff]
          %v9296 = vld [vmem:[%s16 + $0x270] sm:$0xff]
          %v9297 = vld [vmem:[%s16 + $0x278] sm:$0xff]
          %v9298 = vld [vmem:[%s16 + $0x280] sm:$0xff]
          %v9299 = vld [vmem:[%s16 + $0x288] sm:$0xff]
          %v9300 = vld [vmem:[%s16 + $0x290] sm:$0xff]
          %v9301 = vld [vmem:[%s16 + $0x298] sm:$0xff]
          %v9302 = vld [vmem:[%s16 + $0x2a0] sm:$0xff]
          %v9303 = vld [vmem:[%s16 + $0x2a8] sm:$0xff]
          %v9304 = vld [vmem:[%s16 + $0x2b0] sm:$0xff]
          %v9305 = vld [vmem:[%s16 + $0x2b8] sm:$0xff]
          %v9306 = vld [vmem:[%s16 + $0x2c0] sm:$0xff]
          %v9307 = vld [vmem:[%s16 + $0x2c8] sm:$0xff]
          %v9308 = vld [vmem:[%s16 + $0x2d0] sm:$0xff]
          %v9309 = vld [vmem:[%s16 + $0x2d8] sm:$0xff]
          %v9310 = vld [vmem:[%s16 + $0x2e0] sm:$0xff]
          %v9311 = vld [vmem:[%s16 + $0x2e8] sm:$0xff]
          %v9312 = vld [vmem:[%s16 + $0x2f0] sm:$0xff]
          %v9313 = vld [vmem:[%s16 + $0x2f8] sm:$0xff]
          %v9314 = vld [vmem:[%s16 + $0x300] sm:$0xff]
          %v9315 = vld [vmem:[%s16 + $0x308] sm:$0xff]
          %v9316 = vld [vmem:[%s16 + $0x310] sm:$0xff]
          %v9317 = vld [vmem:[%s16 + $0x318] sm:$0xff]
          %v9318 = vld [vmem:[%s16 + $0x320] sm:$0xff]
          %v9319 = vld [vmem:[%s16 + $0x328] sm:$0xff]
          %v9320 = vld [vmem:[%s16 + $0x330] sm:$0xff]
          %v9321 = vld [vmem:[%s16 + $0x338] sm:$0xff]
          %v9322 = vld [vmem:[%s16 + $0x340] sm:$0xff]
          %v9323 = vld [vmem:[%s16 + $0x348] sm:$0xff]
          %v9324 = vld [vmem:[%s16 + $0x350] sm:$0xff]
          %v9325 = vld [vmem:[%s16 + $0x358] sm:$0xff]
          %v9326 = vld [vmem:[%s16 + $0x360] sm:$0xff]
          %v9327 = vld [vmem:[%s16 + $0x368] sm:$0xff]
          %v9328 = vld [vmem:[%s16 + $0x370] sm:$0xff]
          %v9329 = vld [vmem:[%s16 + $0x378] sm:$0xff]
          %v9330 = vld [vmem:[%s16 + $0x380] sm:$0xff]
          %v9331 = vld [vmem:[%s16 + $0x388] sm:$0xff]
          %v9332 = vld [vmem:[%s16 + $0x390] sm:$0xff]
          %v9333 = vld [vmem:[%s16 + $0x398] sm:$0xff]
          %v9334 = vld [vmem:[%s16 + $0x3a0] sm:$0xff]
          %v9335 = vld [vmem:[%s16 + $0x3a8] sm:$0xff]
          %v9336 = vld [vmem:[%s16 + $0x3b0] sm:$0xff]
          %v9337 = vld [vmem:[%s16 + $0x3b8] sm:$0xff]
          %v9338 = vld [vmem:[%s16 + $0x3c0] sm:$0xff]
          %v9339 = vld [vmem:[%s16 + $0x3c8] sm:$0xff]
          %v9340 = vld [vmem:[%s16 + $0x3d0] sm:$0xff]
          %v9341 = vld [vmem:[%s16 + $0x3d8] sm:$0xff]
          %v9342 = vld [vmem:[%s16 + $0x3e0] sm:$0xff]
          %v9343 = vld [vmem:[%s16 + $0x3e8] sm:$0xff]
          %v9344 = vld [vmem:[%s16 + $0x3f0] sm:$0xff]
          %v9345 = vld [vmem:[%s16 + $0x3f8] sm:$0xff]
          %v9346 = vld [vmem:[%s16 + $0x400] sm:$0xff]
          %v9347 = vld [vmem:[%s16 + $0x408] sm:$0xff]
          %v9348 = vld [vmem:[%s16 + $0x410] sm:$0xff]
          %v9349 = vld [vmem:[%s16 + $0x418] sm:$0xff]
          %v9350 = vld [vmem:[%s16 + $0x420] sm:$0xff]
          %v9351 = vld [vmem:[%s16 + $0x428] sm:$0xff]
          %v9352 = vld [vmem:[%s16 + $0x430] sm:$0xff]
          %v9353 = vld [vmem:[%s16 + $0x438] sm:$0xff]
          %v9354 = vld [vmem:[%s16 + $0x440] sm:$0xff]
          %v9355 = vld [vmem:[%s16 + $0x448] sm:$0xff]
          %v9356 = vld [vmem:[%s16 + $0x450] sm:$0xff]
          %v9357 = vld [vmem:[%s16 + $0x458] sm:$0xff]
          %v9358 = vld [vmem:[%s16 + $0x460] sm:$0xff]
          %v9359 = vld [vmem:[%s16 + $0x468] sm:$0xff]
          %v9360 = vld [vmem:[%s16 + $0x470] sm:$0xff]
          %v9361 = vld [vmem:[%s16 + $0x478] sm:$0xff]
          %v9362 = vld [vmem:[%s16 + $0x480] sm:$0xff]
          %v9363 = vld [vmem:[%s16 + $0x488] sm:$0xff]
          %v9364 = vld [vmem:[%s16 + $0x490] sm:$0xff]
          %v9365 = vld [vmem:[%s16 + $0x498] sm:$0xff]
          %v9366 = vld [vmem:[%s16 + $0x4a0] sm:$0xff]
          %v9367 = vld [vmem:[%s16 + $0x4a8] sm:$0xff]
          %v9368 = vld [vmem:[%s16 + $0x4b0] sm:$0xff]
          %v9369 = vld [vmem:[%s16 + $0x4b8] sm:$0xff]
          %v9370 = vld [vmem:[%s16 + $0x4c0] sm:$0xff]
          %v9371 = vld [vmem:[%s16 + $0x4c8] sm:$0xff]
          %v9372 = vld [vmem:[%s16 + $0x4d0] sm:$0xff]
          %v9373 = vld [vmem:[%s16 + $0x4d8] sm:$0xff]
          %v9374 = vld [vmem:[%s16 + $0x4e0] sm:$0xff]
          %v9375 = vld [vmem:[%s16 + $0x4e8] sm:$0xff]
          %v9376 = vld [vmem:[%s16 + $0x4f0] sm:$0xff]
          %v9377 = vld [vmem:[%s16 + $0x4f8] sm:$0xff]
          %v9378 = vld [vmem:[%s17] sm:$0x1]
          %v9380 = vlaneseq
          %v9381 = vshrl.u32 %v9380, 7
          %v9382 = vsub.s32 0, %v9381
          %v9383 = vrot.slane %v9378, %v9382
          %9385 = vmatprep.subr.mxu0 0.0
          %9386 = vmatpush1.msra.mxu0 %v9218
          %9387 = vmatprep.subr.mxu0 0.0
          %9388 = vmatpush1.msra.mxu0 %v9219
          %9389 = vmatprep.subr.mxu0 0.0
          %9390 = vmatpush1.msra.mxu0 %v9220
          %9391 = vmatprep.subr.mxu0 0.0
          %9392 = vmatpush1.msra.mxu0 %v9221
          %9393 = vmatprep.subr.mxu0 0.0
          %9394 = vmatpush1.msra.mxu0 %v9222
          %9395 = vmatprep.subr.mxu0 0.0
          %9396 = vmatpush1.msra.mxu0 %v9223
          %9397 = vmatprep.subr.mxu0 0.0
          %9398 = vmatpush1.msra.mxu0 %v9224
          %9399 = vmatprep.subr.mxu0 0.0
          %9400 = vmatpush1.msra.mxu0 %v9225
          %9401 = vmatprep.subr.mxu0 0.0
          %9402 = vmatpush1.msra.mxu0 %v9226
          %9403 = vmatprep.subr.mxu0 0.0
          %9404 = vmatpush1.msra.mxu0 %v9227
          %9405 = vmatprep.subr.mxu0 0.0
          %9406 = vmatpush1.msra.mxu0 %v9228
          %9407 = vmatprep.subr.mxu0 0.0
          %9408 = vmatpush1.msra.mxu0 %v9229
          %9409 = vmatprep.subr.mxu0 0.0
          %9410 = vmatpush1.msra.mxu0 %v9230
          %9411 = vmatprep.subr.mxu0 0.0
          %9412 = vmatpush1.msra.mxu0 %v9231
          %9413 = vmatprep.subr.mxu0 0.0
          %9414 = vmatpush1.msra.mxu0 %v9232
          %9415 = vmatprep.subr.mxu0 0.0
          %9416 = vmatpush1.msra.mxu0 %v9233
          %9417 = vmatprep.subr.mxu0 0.0
          %9418 = vmatpush1.msra.mxu0 %v9234
          %9419 = vmatprep.subr.mxu0 0.0
          %9420 = vmatpush1.msra.mxu0 %v9235
          %9421 = vmatprep.subr.mxu0 0.0
          %9422 = vmatpush1.msra.mxu0 %v9236
          %9423 = vmatprep.subr.mxu0 0.0
          %9424 = vmatpush1.msra.mxu0 %v9237
          %9425 = vmatprep.subr.mxu0 0.0
          %9426 = vmatpush1.msra.mxu0 %v9238
          %9427 = vmatprep.subr.mxu0 0.0
          %9428 = vmatpush1.msra.mxu0 %v9239
          %9429 = vmatprep.subr.mxu0 0.0
          %9430 = vmatpush1.msra.mxu0 %v9240
          %9431 = vmatprep.subr.mxu0 0.0
          %9432 = vmatpush1.msra.mxu0 %v9241
          %9433 = vmatprep.subr.mxu0 0.0
          %9434 = vmatpush1.msra.mxu0 %v9242
          %9435 = vmatprep.subr.mxu0 0.0
          %9436 = vmatpush1.msra.mxu0 %v9243
          %9437 = vmatprep.subr.mxu0 0.0
          %9438 = vmatpush1.msra.mxu0 %v9244
          %9439 = vmatprep.subr.mxu0 0.0
          %9440 = vmatpush1.msra.mxu0 %v9245
          %9441 = vmatprep.subr.mxu0 0.0
          %9442 = vmatpush1.msra.mxu0 %v9246
          %9443 = vmatprep.subr.mxu0 0.0
          %9444 = vmatpush1.msra.mxu0 %v9247
          %9445 = vmatprep.subr.mxu0 0.0
          %9446 = vmatpush1.msra.mxu0 %v9248
          %9447 = vmatprep.subr.mxu0 0.0
          %9448 = vmatpush1.msra.mxu0 %v9249
          %9449 = vmatprep.mubr.f32.mxu0 %v9188
          %9450 = vmatmul.mubr.f32.gmra.mrb[0].mxu0 %v9184
          %v9451 = vpop.f32.mrb[0].mxu0
          %v9452 = vadd.f32 %v9383, %v9451
          %v9453 = vpop.f32.mrb[0].mxu0
          %9454 = vdwg.mxu0
          %9455 = vmatprep.subr.mxu0 0.0
          %9456 = vmatpush1.msra.mxu0 %v9250
          %9457 = vmatprep.subr.mxu0 0.0
          %9458 = vmatpush1.msra.mxu0 %v9251
          %9459 = vmatprep.subr.mxu0 0.0
          %9460 = vmatpush1.msra.mxu0 %v9252
          %9461 = vmatprep.subr.mxu0 0.0
          %9462 = vmatpush1.msra.mxu0 %v9253
          %9463 = vmatprep.subr.mxu0 0.0
          %9464 = vmatpush1.msra.mxu0 %v9254
          %9465 = vmatprep.subr.mxu0 0.0
          %9466 = vmatpush1.msra.mxu0 %v9255
          %9467 = vmatprep.subr.mxu0 0.0
          %9468 = vmatpush1.msra.mxu0 %v9256
          %9469 = vmatprep.subr.mxu0 0.0
          %9470 = vmatpush1.msra.mxu0 %v9257
          %9471 = vmatprep.subr.mxu0 0.0
          %9472 = vmatpush1.msra.mxu0 %v9258
          %9473 = vmatprep.subr.mxu0 0.0
          %9474 = vmatpush1.msra.mxu0 %v9259
          %9475 = vmatprep.subr.mxu0 0.0
          %9476 = vmatpush1.msra.mxu0 %v9260
          %9477 = vmatprep.subr.mxu0 0.0
          %9478 = vmatpush1.msra.mxu0 %v9261
          %9479 = vmatprep.subr.mxu0 0.0
          %9480 = vmatpush1.msra.mxu0 %v9262
          %9481 = vmatprep.subr.mxu0 0.0
          %9482 = vmatpush1.msra.mxu0 %v9263
          %9483 = vmatprep.subr.mxu0 0.0
          %9484 = vmatpush1.msra.mxu0 %v9264
          %9485 = vmatprep.subr.mxu0 0.0
          %9486 = vmatpush1.msra.mxu0 %v9265
          %9487 = vmatprep.subr.mxu0 0.0
          %9488 = vmatpush1.msra.mxu0 %v9266
          %9489 = vmatprep.subr.mxu0 0.0
          %9490 = vmatpush1.msra.mxu0 %v9267
          %9491 = vmatprep.subr.mxu0 0.0
          %9492 = vmatpush1.msra.mxu0 %v9268
          %9493 = vmatprep.subr.mxu0 0.0
          %9494 = vmatpush1.msra.mxu0 %v9269
          %9495 = vmatprep.subr.mxu0 0.0
          %9496 = vmatpush1.msra.mxu0 %v9270
          %9497 = vmatprep.subr.mxu0 0.0
          %9498 = vmatpush1.msra.mxu0 %v9271
          %9499 = vmatprep.subr.mxu0 0.0
          %9500 = vmatpush1.msra.mxu0 %v9272
          %9501 = vmatprep.subr.mxu0 0.0
          %9502 = vmatpush1.msra.mxu0 %v9273
          %9503 = vmatprep.subr.mxu0 0.0
          %9504 = vmatpush1.msra.mxu0 %v9274
          %9505 = vmatprep.subr.mxu0 0.0
          %9506 = vmatpush1.msra.mxu0 %v9275
          %9507 = vmatprep.subr.mxu0 0.0
          %9508 = vmatpush1.msra.mxu0 %v9276
          %9509 = vmatprep.subr.mxu0 0.0
          %9510 = vmatpush1.msra.mxu0 %v9277
          %9511 = vmatprep.subr.mxu0 0.0
          %9512 = vmatpush1.msra.mxu0 %v9278
          %9513 = vmatprep.subr.mxu0 0.0
          %9514 = vmatpush1.msra.mxu0 %v9279
          %9515 = vmatprep.subr.mxu0 0.0
          %9516 = vmatpush1.msra.mxu0 %v9280
          %9517 = vmatprep.subr.mxu0 0.0
          %9518 = vmatpush1.msra.mxu0 %v9281
          %9519 = vmatprep.mubr.f32.mxu0 %v9196
          %9520 = vmatmul.mubr.f32.gmra.mrb[0].mxu0 %v9192
          %v9521 = vpop.f32.mrb[0].mxu0
          %v9522 = vadd.f32 %v9452, %v9521
          %v9523 = vpop.f32.mrb[0].mxu0
          %9524 = vdwg.mxu0
          %9525 = vmatprep.subr.mxu0 0.0
          %9526 = vmatpush1.msra.mxu0 %v9282
          %9527 = vmatprep.subr.mxu0 0.0
          %9528 = vmatpush1.msra.mxu0 %v9283
          %9529 = vmatprep.subr.mxu0 0.0
          %9530 = vmatpush1.msra.mxu0 %v9284
          %9531 = vmatprep.subr.mxu0 0.0
          %9532 = vmatpush1.msra.mxu0 %v9285
          %9533 = vmatprep.subr.mxu0 0.0
          %9534 = vmatpush1.msra.mxu0 %v9286
          %9535 = vmatprep.subr.mxu0 0.0
          %9536 = vmatpush1.msra.mxu0 %v9287
          %9537 = vmatprep.subr.mxu0 0.0
          %9538 = vmatpush1.msra.mxu0 %v9288
          %9539 = vmatprep.subr.mxu0 0.0
          %9540 = vmatpush1.msra.mxu0 %v9289
          %9541 = vmatprep.subr.mxu0 0.0
          %9542 = vmatpush1.msra.mxu0 %v9290
          %9543 = vmatprep.subr.mxu0 0.0
          %9544 = vmatpush1.msra.mxu0 %v9291
          %9545 = vmatprep.subr.mxu0 0.0
          %9546 = vmatpush1.msra.mxu0 %v9292
          %9547 = vmatprep.subr.mxu0 0.0
          %9548 = vmatpush1.msra.mxu0 %v9293
          %9549 = vmatprep.subr.mxu0 0.0
          %9550 = vmatpush1.msra.mxu0 %v9294
          %9551 = vmatprep.subr.mxu0 0.0
          %9552 = vmatpush1.msra.mxu0 %v9295
          %9553 = vmatprep.subr.mxu0 0.0
          %9554 = vmatpush1.msra.mxu0 %v9296
          %9555 = vmatprep.subr.mxu0 0.0
          %9556 = vmatpush1.msra.mxu0 %v9297
          %9557 = vmatprep.subr.mxu0 0.0
          %9558 = vmatpush1.msra.mxu0 %v9298
          %9559 = vmatprep.subr.mxu0 0.0
          %9560 = vmatpush1.msra.mxu0 %v9299
          %9561 = vmatprep.subr.mxu0 0.0
          %9562 = vmatpush1.msra.mxu0 %v9300
          %9563 = vmatprep.subr.mxu0 0.0
          %9564 = vmatpush1.msra.mxu0 %v9301
          %9565 = vmatprep.subr.mxu0 0.0
          %9566 = vmatpush1.msra.mxu0 %v9302
          %9567 = vmatprep.subr.mxu0 0.0
          %9568 = vmatpush1.msra.mxu0 %v9303
          %9569 = vmatprep.subr.mxu0 0.0
          %9570 = vmatpush1.msra.mxu0 %v9304
          %9571 = vmatprep.subr.mxu0 0.0
          %9572 = vmatpush1.msra.mxu0 %v9305
          %9573 = vmatprep.subr.mxu0 0.0
          %9574 = vmatpush1.msra.mxu0 %v9306
          %9575 = vmatprep.subr.mxu0 0.0
          %9576 = vmatpush1.msra.mxu0 %v9307
          %9577 = vmatprep.subr.mxu0 0.0
          %9578 = vmatpush1.msra.mxu0 %v9308
          %9579 = vmatprep.subr.mxu0 0.0
          %9580 = vmatpush1.msra.mxu0 %v9309
          %9581 = vmatprep.subr.mxu0 0.0
          %9582 = vmatpush1.msra.mxu0 %v9310
          %9583 = vmatprep.subr.mxu0 0.0
          %9584 = vmatpush1.msra.mxu0 %v9311
          %9585 = vmatprep.subr.mxu0 0.0
          %9586 = vmatpush1.msra.mxu0 %v9312
          %9587 = vmatprep.subr.mxu0 0.0
          %9588 = vmatpush1.msra.mxu0 %v9313
          %9589 = vmatprep.mubr.f32.mxu0 %v9204
          %9590 = vmatmul.mubr.f32.gmra.mrb[0].mxu0 %v9200
          %v9591 = vpop.f32.mrb[0].mxu0
          %v9592 = vadd.f32 %v9522, %v9591
          %v9593 = vpop.f32.mrb[0].mxu0
          %9594 = vdwg.mxu0
          %9595 = vmatprep.subr.mxu0 0.0
          %9596 = vmatpush1.msra.mxu0 %v9314
          %9597 = vmatprep.subr.mxu0 0.0
          %9598 = vmatpush1.msra.mxu0 %v9315
          %9599 = vmatprep.subr.mxu0 0.0
          %9600 = vmatpush1.msra.mxu0 %v9316
          %9601 = vmatprep.subr.mxu0 0.0
          %9602 = vmatpush1.msra.mxu0 %v9317
          %9603 = vmatprep.subr.mxu0 0.0
          %9604 = vmatpush1.msra.mxu0 %v9318
          %9605 = vmatprep.subr.mxu0 0.0
          %9606 = vmatpush1.msra.mxu0 %v9319
          %9607 = vmatprep.subr.mxu0 0.0
          %9608 = vmatpush1.msra.mxu0 %v9320
          %9609 = vmatprep.subr.mxu0 0.0
          %9610 = vmatpush1.msra.mxu0 %v9321
          %9611 = vmatprep.subr.mxu0 0.0
          %9612 = vmatpush1.msra.mxu0 %v9322
          %9613 = vmatprep.subr.mxu0 0.0
          %9614 = vmatpush1.msra.mxu0 %v9323
          %9615 = vmatprep.subr.mxu0 0.0
          %9616 = vmatpush1.msra.mxu0 %v9324
          %9617 = vmatprep.subr.mxu0 0.0
          %9618 = vmatpush1.msra.mxu0 %v9325
          %9619 = vmatprep.subr.mxu0 0.0
          %9620 = vmatpush1.msra.mxu0 %v9326
          %9621 = vmatprep.subr.mxu0 0.0
          %9622 = vmatpush1.msra.mxu0 %v9327
          %9623 = vmatprep.subr.mxu0 0.0
          %9624 = vmatpush1.msra.mxu0 %v9328
          %9625 = vmatprep.subr.mxu0 0.0
          %9626 = vmatpush1.msra.mxu0 %v9329
          %9627 = vmatprep.subr.mxu0 0.0
          %9628 = vmatpush1.msra.mxu0 %v9330
          %9629 = vmatprep.subr.mxu0 0.0
          %9630 = vmatpush1.msra.mxu0 %v9331
          %9631 = vmatprep.subr.mxu0 0.0
          %9632 = vmatpush1.msra.mxu0 %v9332
          %9633 = vmatprep.subr.mxu0 0.0
          %9634 = vmatpush1.msra.mxu0 %v9333
          %9635 = vmatprep.subr.mxu0 0.0
          %9636 = vmatpush1.msra.mxu0 %v9334
          %9637 = vmatprep.subr.mxu0 0.0
          %9638 = vmatpush1.msra.mxu0 %v9335
          %9639 = vmatprep.subr.mxu0 0.0
          %9640 = vmatpush1.msra.mxu0 %v9336
          %9641 = vmatprep.subr.mxu0 0.0
          %9642 = vmatpush1.msra.mxu0 %v9337
          %9643 = vmatprep.subr.mxu0 0.0
          %9644 = vmatpush1.msra.mxu0 %v9338
          %9645 = vmatprep.subr.mxu0 0.0
          %9646 = vmatpush1.msra.mxu0 %v9339
          %9647 = vmatprep.subr.mxu0 0.0
          %9648 = vmatpush1.msra.mxu0 %v9340
          %9649 = vmatprep.subr.mxu0 0.0
          %9650 = vmatpush1.msra.mxu0 %v9341
          %9651 = vmatprep.subr.mxu0 0.0
          %9652 = vmatpush1.msra.mxu0 %v9342
          %9653 = vmatprep.subr.mxu0 0.0
          %9654 = vmatpush1.msra.mxu0 %v9343
          %9655 = vmatprep.subr.mxu0 0.0
          %9656 = vmatpush1.msra.mxu0 %v9344
          %9657 = vmatprep.subr.mxu0 0.0
          %9658 = vmatpush1.msra.mxu0 %v9345
          %9659 = vmatprep.mubr.f32.mxu0 %v9211
          %9660 = vmatmul.mubr.f32.gmra.mrb[0].mxu0 %v9208
          %v9661 = vpop.f32.mrb[0].mxu0
          %v9662 = vadd.f32 %v9592, %v9661
          %v9663 = vpop.f32.mrb[0].mxu0
          %9664 = vdwg.mxu0
          %9665 = vmatprep.subr.mxu0 0.0
          %9666 = vmatpush1.msra.mxu0 %v9346
          %9667 = vmatprep.subr.mxu0 0.0
          %9668 = vmatpush1.msra.mxu0 %v9347
          %9669 = vmatprep.subr.mxu0 0.0
          %9670 = vmatpush1.msra.mxu0 %v9348
          %9671 = vmatprep.subr.mxu0 0.0
          %9672 = vmatpush1.msra.mxu0 %v9349
          %9673 = vmatprep.subr.mxu0 0.0
          %9674 = vmatpush1.msra.mxu0 %v9350
          %9675 = vmatprep.subr.mxu0 0.0
          %9676 = vmatpush1.msra.mxu0 %v9351
          %9677 = vmatprep.subr.mxu0 0.0
          %9678 = vmatpush1.msra.mxu0 %v9352
          %9679 = vmatprep.subr.mxu0 0.0
          %9680 = vmatpush1.msra.mxu0 %v9353
          %9681 = vmatprep.subr.mxu0 0.0
          %9682 = vmatpush1.msra.mxu0 %v9354
          %9683 = vmatprep.subr.mxu0 0.0
          %9684 = vmatpush1.msra.mxu0 %v9355
          %9685 = vmatprep.subr.mxu0 0.0
          %9686 = vmatpush1.msra.mxu0 %v9356
          %9687 = vmatprep.subr.mxu0 0.0
          %9688 = vmatpush1.msra.mxu0 %v9357
          %9689 = vmatprep.subr.mxu0 0.0
          %9690 = vmatpush1.msra.mxu0 %v9358
          %9691 = vmatprep.subr.mxu0 0.0
          %9692 = vmatpush1.msra.mxu0 %v9359
          %9693 = vmatprep.subr.mxu0 0.0
          %9694 = vmatpush1.msra.mxu0 %v9360
          %9695 = vmatprep.subr.mxu0 0.0
          %9696 = vmatpush1.msra.mxu0 %v9361
          %9697 = vmatprep.subr.mxu0 0.0
          %9698 = vmatpush1.msra.mxu0 %v9362
          %9699 = vmatprep.subr.mxu0 0.0
          %9700 = vmatpush1.msra.mxu0 %v9363
          %9701 = vmatprep.subr.mxu0 0.0
          %9702 = vmatpush1.msra.mxu0 %v9364
          %9703 = vmatprep.subr.mxu0 0.0
          %9704 = vmatpush1.msra.mxu0 %v9365
          %9705 = vmatprep.subr.mxu0 0.0
          %9706 = vmatpush1.msra.mxu0 %v9366
          %9707 = vmatprep.subr.mxu0 0.0
          %9708 = vmatpush1.msra.mxu0 %v9367
          %9709 = vmatprep.subr.mxu0 0.0
          %9710 = vmatpush1.msra.mxu0 %v9368
          %9711 = vmatprep.subr.mxu0 0.0
          %9712 = vmatpush1.msra.mxu0 %v9369
          %9713 = vmatprep.subr.mxu0 0.0
          %9714 = vmatpush1.msra.mxu0 %v9370
          %9715 = vmatprep.subr.mxu0 0.0
          %9716 = vmatpush1.msra.mxu0 %v9371
          %9717 = vmatprep.subr.mxu0 0.0
          %9718 = vmatpush1.msra.mxu0 %v9372
          %9719 = vmatprep.subr.mxu0 0.0
          %9720 = vmatpush1.msra.mxu0 %v9373
          %9721 = vmatprep.subr.mxu0 0.0
          %9722 = vmatpush1.msra.mxu0 %v9374
          %9723 = vmatprep.subr.mxu0 0.0
          %9724 = vmatpush1.msra.mxu0 %v9375
          %9725 = vmatprep.subr.mxu0 0.0
          %9726 = vmatpush1.msra.mxu0 %v9376
          %9727 = vmatprep.subr.mxu0 0.0
          %9728 = vmatpush1.msra.mxu0 %v9377
          %9729 = vmatprep.mubr.f32.mxu0 %v9217
          %9730 = vmatmul.mubr.f32.gmra.mrb[0].mxu0 %v9214
          %v9731 = vpop.f32.mrb[0].mxu0
          %v9732 = vadd.f32 %v9662, %v9731
          %v9733 = vpop.f32.mrb[0].mxu0
          %9734 = vdwg.mxu0
          %vm9735 = vcmask 58368
          %9736 = vst.msk [vmem:[#allocation8] sm:$0x3] %vm9735, %v9732
        $region108: #{tpu_custom_call.1} parent=91 // pred_fallthru
          _
        // Predicated region
        $region109: #{tpu_custom_call.1} parent=91 // pred_check
          %p9737 = pneg %p487
        $region110: #{tpu_custom_call.1} parent=91 // pred_check_branch
          %9739 = sbr.rel (%p9737) target = $region112
        $region111: #{tpu_custom_call.1} parent=91 // pred_region
          %s9741 = ssub.s32 32, 32
          %9742 = vsyncadd [#allocation5], %s9741
          %s9744 = sshll.u32 [#allocation8], 4
          %s9745 = int_to_ptr.vmem [resolvable:$true] %s9744
          %9747 = dma.vmem_to_hbm [thread:$0]  %s9745, 32, %s18, [#allocation5]
        $region112: #{tpu_custom_call.1} parent=91 // pred_fallthru
          _
        // Predicated region
        $region113: #{tpu_custom_call.1} parent=91 // pred_check
          %p9748 = pneg %p487
        $region114: #{tpu_custom_call.1} parent=91 // pred_check_branch
          %9750 = sbr.rel (%p9748) target = $region116
        $region115: #{tpu_custom_call.1} parent=91 // pred_region
          %9751 = dma.done [#allocation5], 32
        $region116: #{tpu_custom_call.1} parent=91 // pred_fallthru
          _
      $region92: #{tpu_custom_call.1} parent=5 // pred_fallthru
        _
      %p9752 = scmp.le.s32.totalorder 2, %s31
      // Predicated region
      $region117: #{tpu_custom_call.1} parent=5 // pred_check
        %p9753 = pneg %p9752
      $region118: #{tpu_custom_call.1} parent=5 // pred_check_branch
        %9755 = sbr.rel (%p9753) target = $region120
      $region119: #{tpu_custom_call.1} parent=5 // pred_region
        %s9756 = ssub.s32 %s31, 2
      $region120: #{tpu_custom_call.1} parent=5 // pred_fallthru
        _
    $region6: #{tpu_custom_call.1} parent=1 // loop_footer
      %s35 = sadd.s32 1, %s31
    $region7: #{tpu_custom_call.1} parent=1 // loop_footer_branch
      %30 = sbr.rel target = $region3
    $region8: #{tpu_custom_call.1} parent=1 // loop_exit
      _
    %9757 = vsyncpa [#allocation4], 1
    %s9758 = scalar_lea.sflag [#allocation4], 1
    %9759 = vsyncpa %s9758, 1
    %9760 = vsyncpa [#allocation7], 1
    %s9761 = scalar_lea.sflag [#allocation7], 1
    %9762 = vsyncpa %s9761, 1
    %9763 = vsyncpa [#allocation5], 1
    %s9764 = scalar_lea.sflag [#allocation5], 1
    %9765 = vsyncpa %s9764, 1

</llo_original>
